<compile_context>
chip_gen: v7x
topology: tpu7x:2x2x1
jax: 0.10.0
libtpu: 0.0.40
codegen_flags: <defaults>
</compile_context>

<pallas_src>
import jax
import jax.numpy as jnp
from jax.experimental import pallas as pl
from jax.experimental.pallas import tpu as pltpu


# ---------------------------------------------------------------------------
# Fused Mixed_4a kernel: one batch element per grid step, all stages in VMEM.
# ---------------------------------------------------------------------------
def mixed_4a_pallas(x_cm, fp, H, W):
    """x_cm: (N, 80, H*W) f32 channel-major (NCHW with HW flattened).
    Returns (N, 96, H*W) f32 channel-major."""
    N, Cin, HW = x_cm.shape
    assert Cin == 80 and HW == H * W
    bf16 = jnp.bfloat16
    f32 = jnp.float32

    def kernel(x_ref, w1_ref, b1_ref, w17_ref, b17_ref,
               w71_ref, b71_ref, w33_ref, b33_ref, o_ref,
               pad17, pad71, pad33):
        # ---- stage A: merged branch 1x1 convs [b0_0 | b1_0], 80 -> 64 ------
        # Input is channel-major (80, HW): contract the leading dims of both
        # operands (TN matmul) so no input transpose is needed.
        x_bf = x_ref[0].astype(bf16)                               # (80, HW)
        y1 = jax.lax.dot_general(
            x_bf, w1_ref[...], (((0,), (0,)), ((), ())),
            preferred_element_type=f32)                            # (HW, 64)
        y1 = jnp.maximum(y1 + b1_ref[...], 0.0)

        # ---- zero only the halo that gets read (interiors are overwritten) -
        pad17[:, 5:8, :] = jnp.zeros((H, 3, 32), f32)
        pad17[:, 8 + W:11 + W, :] = jnp.zeros((H, 3, 32), f32)
        pad71[0:3, :, :] = jnp.zeros((3, W, 32), f32)
        pad71[3 + H:6 + H, :, :] = jnp.zeros((3, W, 32), f32)
        pad33[:, 7:8, :] = jnp.zeros((H + 2, 1, 64), f32)
        pad33[:, 8 + W:9 + W, :] = jnp.zeros((H + 2, 1, 64), f32)
        pad33[0:1, 7:9 + W, :] = jnp.zeros((1, W + 2, 64), f32)
        pad33[1 + H:2 + H, 7:9 + W, :] = jnp.zeros((1, W + 2, 64), f32)

        # branch0 half of the fused 3x3 input (channels 0:32)
        pad33[1:1 + H, 8:8 + W, 0:32] = y1[:, :32].reshape(H, W, 32)

        # ---- stage B: branch1 1x7 conv, pad (0,3), 32 -> 32 (per-tap dots) -
        pad17[:, 8:8 + W, :] = y1[:, 32:].reshape(H, W, 32)
        acc = None
        for kw in range(7):
            tap = pad17[:, 5 + kw:5 + kw + W, :].reshape(HW, 32).astype(bf16)
            d = jnp.dot(tap, w17_ref[kw], preferred_element_type=f32)
            acc = d if acc is None else acc + d
        t1 = jnp.maximum(acc + b17_ref[...], 0.0)                  # (HW, 32)

        # ---- stage C: branch1 7x1 conv, pad (3,0), 32 -> 32 ----------------
        pad71[3:3 + H, :, :] = t1.reshape(H, W, 32)
        acc = None
        for kh in range(7):
            tap = pad71[kh:kh + H, :, :].reshape(HW, 32).astype(bf16)
            d = jnp.dot(tap, w71_ref[kh], preferred_element_type=f32)
            acc = d if acc is None else acc + d
        t2 = jnp.maximum(acc + b71_ref[...], 0.0)                  # (HW, 32)

        # ---- stage D: block-diagonal 3x3 convs [b0_1 | b1_3], 64 -> 96 -----
        # (accumulated over 128 padded out-channels so the final transpose is
        #  (8,128)-aligned; channels 96:128 are zero weights/bias)
        pad33[1:1 + H, 8:8 + W, 32:64] = t2.reshape(H, W, 32)
        acc = None
        for kh in range(3):
            for kw in range(3):
                tap = pad33[kh:kh + H, 7 + kw:7 + kw + W, :]
                tap = tap.reshape(HW, 64).astype(bf16)
                d = jnp.dot(tap, w33_ref[kh, kw], preferred_element_type=f32)
                acc = d if acc is None else acc + d
        out = jnp.maximum(acc + b33_ref[...], 0.0)                 # (HW, 128)

        # channel-major (NCHW) store: 96 sublanes x HW lanes, lane-dense.
        out_t = out.T                                              # (128, HW)
        o_ref[0] = out_t[:96, :].astype(o_ref.dtype)

    return pl.pallas_call(
        kernel,
        out_shape=jax.ShapeDtypeStruct((N, 96, HW), jnp.float32),
        grid=(N,),
        in_specs=[
            pl.BlockSpec((1, Cin, HW), lambda b: (b, 0, 0)),
            pl.BlockSpec(fp["w1"].shape, lambda b: (0, 0)),
            pl.BlockSpec(fp["b1"].shape, lambda b: (0, 0)),
            pl.BlockSpec(fp["w17"].shape, lambda b: (0, 0, 0)),
            pl.BlockSpec(fp["b17"].shape, lambda b: (0, 0)),
            pl.BlockSpec(fp["w71"].shape, lambda b: (0, 0, 0)),
            pl.BlockSpec(fp["b71"].shape, lambda b: (0, 0)),
            pl.BlockSpec(fp["w33"].shape, lambda b: (0, 0, 0, 0)),
            pl.BlockSpec(fp["b33"].shape, lambda b: (0, 0)),
        ],
        out_specs=pl.BlockSpec((1, 96, HW), lambda b: (b, 0, 0)),
        scratch_shapes=[
            pltpu.VMEM((H, W + 16, 32), jnp.float32),      # 1x7 padded input
            pltpu.VMEM((H + 6, W, 32), jnp.float32),       # 7x1 padded input
            pltpu.VMEM((H + 2, W + 16, 64), jnp.float32),  # fused 3x3 padded
        ],
        compiler_params=pltpu.CompilerParams(
            dimension_semantics=("parallel",),
            vmem_limit_bytes=64 * 1024 * 1024),
    )(x_cm, fp["w1"], fp["b1"], fp["w17"], fp["b17"],
      fp["w71"], fp["b71"], fp["w33"], fp["b33"])


# ---------------------------------------------------------------------------
# Parameter construction (matches BasicConv2d shapes; BN in eval mode)
# ---------------------------------------------------------------------------
def make_basic_conv_params(key, cin, cout, kh, kw):
    kw_, kg, kb, km, kv = jax.random.split(key, 5)
    w = jax.random.normal(kw_, (kh, kw, cin, cout), jnp.float32) * 0.05
    gamma = 1.0 + 0.1 * jax.random.normal(kg, (cout,), jnp.float32)
    beta = 0.1 * jax.random.normal(kb, (cout,), jnp.float32)
    mean = 0.1 * jax.random.normal(km, (cout,), jnp.float32)
    var = jax.nn.softplus(jax.random.normal(kv, (cout,), jnp.float32)) + 0.5
    eps = 0.001
    scale = gamma / jnp.sqrt(var + eps)   # fold BN (eval) into scale/bias
    bias = beta - mean * scale
    return dict(w=w, scale=scale, bias=bias)


def make_mixed_4a_params(key):
    specs = {
        # branch0
        "b0_0": (80, 32, 1, 1), "b0_1": (32, 48, 3, 3),
        # branch1
        "b1_0": (80, 32, 1, 1), "b1_1": (32, 32, 1, 7),
        "b1_2": (32, 32, 7, 1), "b1_3": (32, 48, 3, 3),
    }
    keys = jax.random.split(key, len(specs))
    return {name: make_basic_conv_params(k, *spec)
            for k, (name, spec) in zip(keys, specs.items())}


def _fold(p):
    # Fold BN scale into conv weights -> kernel only adds bias + ReLU.
    return p["w"] * p["scale"], p["bias"]


def build_fused_params(params):
    """Build fused/folded bf16 weights ONCE (hoisted out of the forward)."""
    bf16 = jnp.bfloat16

    # stage A: merged 1x1 convs, out channels = [b0_0 (32) | b1_0 (32)]
    w_a0, b_a0 = _fold(params["b0_0"])            # (1,1,80,32)
    w_a1, b_a1 = _fold(params["b1_0"])
    w1 = jnp.concatenate([w_a0[0, 0], w_a1[0, 0]], axis=-1).astype(bf16)  # (80,64)
    b1 = jnp.concatenate([b_a0, b_a1])[None, :]                            # (1,64)

    # stage B: 1x7 conv -> per-tap weights (kw, ci, co)
    w_b, b_b = _fold(params["b1_1"])              # (1,7,32,32)
    w17 = w_b[0].astype(bf16)                     # (7,32,32)
    b17 = b_b[None, :]

    # stage C: 7x1 conv -> per-tap weights (kh, ci, co)
    w_c, b_c = _fold(params["b1_2"])              # (7,1,32,32)
    w71 = w_c[:, 0].astype(bf16)                  # (7,32,32)
    b71 = b_c[None, :]

    # stage D: block-diagonal 3x3 (b0_1 -> out 0:48, b1_3 -> out 48:96,
    # out 96:128 zero so the in-kernel transpose stays (8,128)-aligned)
    w_d0, b_d0 = _fold(params["b0_1"])            # (3,3,32,48)
    w_d1, b_d1 = _fold(params["b1_3"])            # (3,3,32,48)
    wbig = jnp.zeros((3, 3, 64, 128), jnp.float32)
    wbig = wbig.at[:, :, :32, :48].set(w_d0)
    wbig = wbig.at[:, :, 32:, 48:96].set(w_d1)
    w33 = wbig.astype(bf16)                       # (3,3,64,128)
    b33 = jnp.concatenate(
        [b_d0, b_d1, jnp.zeros((32,), jnp.float32)])[None, :]              # (1,128)

    return dict(w1=w1, b1=b1, w17=w17, b17=b17,
                w71=w71, b71=b71, w33=w33, b33=b33)


# ---------------------------------------------------------------------------
# Mixed_4a forward (NCHW in / NCHW out, like the PyTorch module)
# ---------------------------------------------------------------------------
def mixed_4a_forward(x_nchw, fused):
    N, C, H, W = x_nchw.shape
    x_cm = x_nchw.reshape(N, C, H * W)      # free reshape: NCHW is W-innermost
    out = mixed_4a_pallas(x_cm, fused, H, W)              # (N, 96, H*W)
    return out.reshape(N, 96, H, W)                       # free reshape -> NCHW


# ---------------------------------------------------------------------------
# Pure-JAX reference (for correctness check), f32 end-to-end
# ---------------------------------------------------------------------------
def _ref_conv_bn_relu(x_nhwc, w, scale, bias, padding):
    y = jax.lax.conv_general_dilated(
        x_nhwc, w, window_strides=(1, 1),
        padding=[(padding[0], padding[0]), (padding[1], padding[1])],
        dimension_numbers=("NHWC", "HWIO", "NHWC"))
    return jnp.maximum(y * scale + bias, 0.0)


def mixed_4a_reference(x_nchw, params):
    x = jnp.transpose(x_nchw, (0, 2, 3, 1))

    def bc(name, x, padding):
        p = params[name]
        return _ref_conv_bn_relu(x, p["w"], p["scale"], p["bias"], padding)

    x0 = bc("b0_1", bc("b0_0", x, (0, 0)), (1, 1))
    x1 = bc("b1_0", x, (0, 0))
    x1 = bc("b1_1", x1, (0, 3))
    x1 = bc("b1_2", x1, (3, 0))
    x1 = bc("b1_3", x1, (1, 1))
    out = jnp.concatenate([x0, x1], axis=-1)
    return jnp.transpose(out, (0, 3, 1, 2))


if __name__ == "__main__":
    key = jax.random.PRNGKey(0)
    kx, kp = jax.random.split(key)

    # Input channels fixed at 80 by the module; small batch / spatial.
    x = jax.random.normal(kx, (2, 80, 16, 16), jnp.float32)   # NCHW
    params = make_mixed_4a_params(kp)
    fused = build_fused_params(params)      # built once, reused across calls

    out = jax.block_until_ready(mixed_4a_forward(x, fused))
    assert out.shape == (2, 96, 16, 16), out.shape

    ref = jax.block_until_ready(mixed_4a_reference(x, params))
    # bf16 MXU operands (f32 accumulate) vs f32 reference -> relaxed tolerance.
    max_err = float(jnp.max(jnp.abs(out - ref)))
    assert jnp.allclose(out, ref, rtol=3e-2, atol=3e-2), max_err

    print("KERNEL_OK")
</pallas_src>

<mosaic_0001>
module attributes {stable_mosaic.version = 11 : i64} {
  func.func @kernel(%arg0: i32, %arg1: memref<1x80x256xf32, #tpu.memory_space<vmem>>, %arg2: memref<80x64xbf16, #tpu.memory_space<vmem>>, %arg3: memref<1x64xf32, #tpu.memory_space<vmem>>, %arg4: memref<7x32x32xbf16, #tpu.memory_space<vmem>>, %arg5: memref<1x32xf32, #tpu.memory_space<vmem>>, %arg6: memref<7x32x32xbf16, #tpu.memory_space<vmem>>, %arg7: memref<1x32xf32, #tpu.memory_space<vmem>>, %arg8: memref<3x3x64x128xbf16, #tpu.memory_space<vmem>>, %arg9: memref<1x128xf32, #tpu.memory_space<vmem>>, %arg10: memref<1x96x256xf32, #tpu.memory_space<vmem>>, %arg11: memref<16x32x32xf32, #tpu.memory_space<vmem>>, %arg12: memref<22x16x32xf32, #tpu.memory_space<vmem>>, %arg13: memref<18x32x64xf32, #tpu.memory_space<vmem>>) attributes {dimension_semantics = [#tpu.dimension_semantics<parallel>], iteration_bounds = array<i64: 2>, scalar_prefetch = 0 : i64, scratch_operands = 3 : i64, tpu.core_type = #tpu.core_type<tc>, window_params = [{transform_indices = @transform_0, window_bounds = array<i64: 1, 80, 256>}, {pipeline_mode = #tpu.pipeline_mode<synchronous>, transform_indices = @transform_1, window_bounds = array<i64: 80, 64>}, {pipeline_mode = #tpu.pipeline_mode<synchronous>, transform_indices = @transform_2, window_bounds = array<i64: 1, 64>}, {pipeline_mode = #tpu.pipeline_mode<synchronous>, transform_indices = @transform_3, window_bounds = array<i64: 7, 32, 32>}, {pipeline_mode = #tpu.pipeline_mode<synchronous>, transform_indices = @transform_4, window_bounds = array<i64: 1, 32>}, {pipeline_mode = #tpu.pipeline_mode<synchronous>, transform_indices = @transform_5, window_bounds = array<i64: 7, 32, 32>}, {pipeline_mode = #tpu.pipeline_mode<synchronous>, transform_indices = @transform_6, window_bounds = array<i64: 1, 32>}, {pipeline_mode = #tpu.pipeline_mode<synchronous>, transform_indices = @transform_7, window_bounds = array<i64: 3, 3, 64, 128>}, {pipeline_mode = #tpu.pipeline_mode<synchronous>, transform_indices = @transform_8, window_bounds = array<i64: 1, 128>}, {transform_indices = @transform_9, window_bounds = array<i64: 1, 96, 256>}]} {
    %c0 = arith.constant 0 : index
    %c0_0 = arith.constant 0 : index
    %c0_1 = arith.constant 0 : index
    %0 = vector.load %arg1[%c0, %c0_0, %c0_1] : memref<1x80x256xf32, #tpu.memory_space<vmem>>, vector<1x80x256xf32>
    %1 = vector.shape_cast %0 : vector<1x80x256xf32> to vector<80x256xf32>
    %2 = arith.truncf %1 : vector<80x256xf32> to vector<80x256xbf16>
    %c0_2 = arith.constant 0 : index
    %c0_3 = arith.constant 0 : index
    %3 = vector.load %arg2[%c0_2, %c0_3] : memref<80x64xbf16, #tpu.memory_space<vmem>>, vector<80x64xbf16>
    %cst = arith.constant dense<0.000000e+00> : vector<256x64xf32>
    %4 = tpu.matmul %2, %3, %cst {dimension_numbers = #tpu.dot_dimension_numbers<[0], [0], [1], [1], [0, 1, 1, 1], [], []>} : vector<80x256xbf16>, vector<80x64xbf16>, vector<256x64xf32> -> vector<256x64xf32>
    %c0_4 = arith.constant 0 : index
    %c0_5 = arith.constant 0 : index
    %5 = vector.load %arg3[%c0_4, %c0_5] : memref<1x64xf32, #tpu.memory_space<vmem>>, vector<1x64xf32>
    %6 = vector.broadcast %5 : vector<1x64xf32> to vector<256x64xf32>
    %7 = arith.addf %4, %6 : vector<256x64xf32>
    %cst_6 = arith.constant 0.000000e+00 : f32
    %8 = vector.broadcast %cst_6 : f32 to vector<256x64xf32>
    %9 = arith.maximumf %7, %8 : vector<256x64xf32>
    %cst_7 = arith.constant 0.000000e+00 : f32
    %10 = vector.broadcast %cst_7 : f32 to vector<16x3x32xf32>
    %c0_8 = arith.constant 0 : index
    %c5 = arith.constant 5 : index
    %c0_9 = arith.constant 0 : index
    %11 = vector.load %arg11[%c0_8, %c5, %c0_9] : memref<16x32x32xf32, #tpu.memory_space<vmem>>, vector<16x3x32xf32>
    tpu.vector_store %arg11[%c0_8, %c5, %c0_9], %10 {strides = array<i32>} : memref<16x32x32xf32, #tpu.memory_space<vmem>>, vector<16x3x32xf32>,
    %cst_10 = arith.constant 0.000000e+00 : f32
    %12 = vector.broadcast %cst_10 : f32 to vector<16x3x32xf32>
    %c0_11 = arith.constant 0 : index
    %c24 = arith.constant 24 : index
    %c0_12 = arith.constant 0 : index
    %13 = vector.load %arg11[%c0_11, %c24, %c0_12] : memref<16x32x32xf32, #tpu.memory_space<vmem>>, vector<16x3x32xf32>
    tpu.vector_store %arg11[%c0_11, %c24, %c0_12], %12 {strides = array<i32>} : memref<16x32x32xf32, #tpu.memory_space<vmem>>, vector<16x3x32xf32>,
    %cst_13 = arith.constant 0.000000e+00 : f32
    %14 = vector.broadcast %cst_13 : f32 to vector<3x16x32xf32>
    %c0_14 = arith.constant 0 : index
    %c0_15 = arith.constant 0 : index
    %c0_16 = arith.constant 0 : index
    %15 = vector.load %arg12[%c0_14, %c0_15, %c0_16] : memref<22x16x32xf32, #tpu.memory_space<vmem>>, vector<3x16x32xf32>
    tpu.vector_store %arg12[%c0_14, %c0_15, %c0_16], %14 {strides = array<i32>} : memref<22x16x32xf32, #tpu.memory_space<vmem>>, vector<3x16x32xf32>,
    %cst_17 = arith.constant 0.000000e+00 : f32
    %16 = vector.broadcast %cst_17 : f32 to vector<3x16x32xf32>
    %c19 = arith.constant 19 : index
    %c0_18 = arith.constant 0 : index
    %c0_19 = arith.constant 0 : index
    %17 = vector.load %arg12[%c19, %c0_18, %c0_19] : memref<22x16x32xf32, #tpu.memory_space<vmem>>, vector<3x16x32xf32>
    tpu.vector_store %arg12[%c19, %c0_18, %c0_19], %16 {strides = array<i32>} : memref<22x16x32xf32, #tpu.memory_space<vmem>>, vector<3x16x32xf32>,
    %cst_20 = arith.constant 0.000000e+00 : f32
    %18 = vector.broadcast %cst_20 : f32 to vector<18x1x64xf32>
    %c0_21 = arith.constant 0 : index
    %c7 = arith.constant 7 : index
    %c0_22 = arith.constant 0 : index
    %19 = vector.load %arg13[%c0_21, %c7, %c0_22] : memref<18x32x64xf32, #tpu.memory_space<vmem>>, vector<18x1x64xf32>
    tpu.vector_store %arg13[%c0_21, %c7, %c0_22], %18 {strides = array<i32>} : memref<18x32x64xf32, #tpu.memory_space<vmem>>, vector<18x1x64xf32>,
    %cst_23 = arith.constant 0.000000e+00 : f32
    %20 = vector.broadcast %cst_23 : f32 to vector<18x1x64xf32>
    %c0_24 = arith.constant 0 : index
    %c24_25 = arith.constant 24 : index
    %c0_26 = arith.constant 0 : index
    %21 = vector.load %arg13[%c0_24, %c24_25, %c0_26] : memref<18x32x64xf32, #tpu.memory_space<vmem>>, vector<18x1x64xf32>
    tpu.vector_store %arg13[%c0_24, %c24_25, %c0_26], %20 {strides = array<i32>} : memref<18x32x64xf32, #tpu.memory_space<vmem>>, vector<18x1x64xf32>,
    %cst_27 = arith.constant 0.000000e+00 : f32
    %22 = vector.broadcast %cst_27 : f32 to vector<1x18x64xf32>
    %c0_28 = arith.constant 0 : index
    %c7_29 = arith.constant 7 : index
    %c0_30 = arith.constant 0 : index
    %23 = vector.load %arg13[%c0_28, %c7_29, %c0_30] : memref<18x32x64xf32, #tpu.memory_space<vmem>>, vector<1x18x64xf32>
    tpu.vector_store %arg13[%c0_28, %c7_29, %c0_30], %22 {strides = array<i32>} : memref<18x32x64xf32, #tpu.memory_space<vmem>>, vector<1x18x64xf32>,
    %cst_31 = arith.constant 0.000000e+00 : f32
    %24 = vector.broadcast %cst_31 : f32 to vector<1x18x64xf32>
    %c17 = arith.constant 17 : index
    %c7_32 = arith.constant 7 : index
    %c0_33 = arith.constant 0 : index
    %25 = vector.load %arg13[%c17, %c7_32, %c0_33] : memref<18x32x64xf32, #tpu.memory_space<vmem>>, vector<1x18x64xf32>
    tpu.vector_store %arg13[%c17, %c7_32, %c0_33], %24 {strides = array<i32>} : memref<18x32x64xf32, #tpu.memory_space<vmem>>, vector<1x18x64xf32>,
    %26 = vector.extract_strided_slice %9 {offsets = [0, 0], sizes = [256, 32], strides = [1, 1]} : vector<256x64xf32> to vector<256x32xf32>
    %27 = vector.shape_cast %26 : vector<256x32xf32> to vector<16x16x32xf32>
    %c1 = arith.constant 1 : index
    %c8 = arith.constant 8 : index
    %c0_34 = arith.constant 0 : index
    %28 = vector.load %arg13[%c1, %c8, %c0_34] : memref<18x32x64xf32, #tpu.memory_space<vmem>>, vector<16x16x32xf32>
    tpu.vector_store %arg13[%c1, %c8, %c0_34], %27 {strides = array<i32>} : memref<18x32x64xf32, #tpu.memory_space<vmem>>, vector<16x16x32xf32>,
    %29 = vector.extract_strided_slice %9 {offsets = [0, 32], sizes = [256, 32], strides = [1, 1]} : vector<256x64xf32> to vector<256x32xf32>
    %30 = vector.shape_cast %29 : vector<256x32xf32> to vector<16x16x32xf32>
    %c0_35 = arith.constant 0 : index
    %c8_36 = arith.constant 8 : index
    %c0_37 = arith.constant 0 : index
    %31 = vector.load %arg11[%c0_35, %c8_36, %c0_37] : memref<16x32x32xf32, #tpu.memory_space<vmem>>, vector<16x16x32xf32>
    tpu.vector_store %arg11[%c0_35, %c8_36, %c0_37], %30 {strides = array<i32>} : memref<16x32x32xf32, #tpu.memory_space<vmem>>, vector<16x16x32xf32>,
    %c0_38 = arith.constant 0 : index
    %c5_39 = arith.constant 5 : index
    %c0_40 = arith.constant 0 : index
    %32 = vector.load %arg11[%c0_38, %c5_39, %c0_40] : memref<16x32x32xf32, #tpu.memory_space<vmem>>, vector<16x16x32xf32>
    %33 = vector.shape_cast %32 : vector<16x16x32xf32> to vector<256x32xf32>
    %34 = arith.truncf %33 : vector<256x32xf32> to vector<256x32xbf16>
    %c0_41 = arith.constant 0 : index
    %c0_42 = arith.constant 0 : index
    %c0_43 = arith.constant 0 : index
    %35 = vector.load %arg4[%c0_41, %c0_42, %c0_43] : memref<7x32x32xbf16, #tpu.memory_space<vmem>>, vector<1x32x32xbf16>
    %36 = vector.shape_cast %35 : vector<1x32x32xbf16> to vector<32x32xbf16>
    %cst_44 = arith.constant dense<0.000000e+00> : vector<256x32xf32>
    %37 = tpu.matmul %34, %36, %cst_44 {dimension_numbers = #tpu.dot_dimension_numbers<[1], [0], [0], [1], [0, 0, 1, 1], [], []>} : vector<256x32xbf16>, vector<32x32xbf16>, vector<256x32xf32> -> vector<256x32xf32>
    %c0_45 = arith.constant 0 : index
    %c6 = arith.constant 6 : index
    %c0_46 = arith.constant 0 : index
    %38 = vector.load %arg11[%c0_45, %c6, %c0_46] : memref<16x32x32xf32, #tpu.memory_space<vmem>>, vector<16x16x32xf32>
    %39 = vector.shape_cast %38 : vector<16x16x32xf32> to vector<256x32xf32>
    %40 = arith.truncf %39 : vector<256x32xf32> to vector<256x32xbf16>
    %c1_47 = arith.constant 1 : index
    %c0_48 = arith.constant 0 : index
    %c0_49 = arith.constant 0 : index
    %41 = vector.load %arg4[%c1_47, %c0_48, %c0_49] : memref<7x32x32xbf16, #tpu.memory_space<vmem>>, vector<1x32x32xbf16>
    %42 = vector.shape_cast %41 : vector<1x32x32xbf16> to vector<32x32xbf16>
    %cst_50 = arith.constant dense<0.000000e+00> : vector<256x32xf32>
    %43 = tpu.matmul %40, %42, %cst_50 {dimension_numbers = #tpu.dot_dimension_numbers<[1], [0], [0], [1], [0, 0, 1, 1], [], []>} : vector<256x32xbf16>, vector<32x32xbf16>, vector<256x32xf32> -> vector<256x32xf32>
    %44 = arith.addf %37, %43 : vector<256x32xf32>
    %c0_51 = arith.constant 0 : index
    %c7_52 = arith.constant 7 : index
    %c0_53 = arith.constant 0 : index
    %45 = vector.load %arg11[%c0_51, %c7_52, %c0_53] : memref<16x32x32xf32, #tpu.memory_space<vmem>>, vector<16x16x32xf32>
    %46 = vector.shape_cast %45 : vector<16x16x32xf32> to vector<256x32xf32>
    %47 = arith.truncf %46 : vector<256x32xf32> to vector<256x32xbf16>
    %c2 = arith.constant 2 : index
    %c0_54 = arith.constant 0 : index
    %c0_55 = arith.constant 0 : index
    %48 = vector.load %arg4[%c2, %c0_54, %c0_55] : memref<7x32x32xbf16, #tpu.memory_space<vmem>>, vector<1x32x32xbf16>
    %49 = vector.shape_cast %48 : vector<1x32x32xbf16> to vector<32x32xbf16>
    %cst_56 = arith.constant dense<0.000000e+00> : vector<256x32xf32>
    %50 = tpu.matmul %47, %49, %cst_56 {dimension_numbers = #tpu.dot_dimension_numbers<[1], [0], [0], [1], [0, 0, 1, 1], [], []>} : vector<256x32xbf16>, vector<32x32xbf16>, vector<256x32xf32> -> vector<256x32xf32>
    %51 = arith.addf %44, %50 : vector<256x32xf32>
    %c0_57 = arith.constant 0 : index
    %c8_58 = arith.constant 8 : index
    %c0_59 = arith.constant 0 : index
    %52 = vector.load %arg11[%c0_57, %c8_58, %c0_59] : memref<16x32x32xf32, #tpu.memory_space<vmem>>, vector<16x16x32xf32>
    %53 = vector.shape_cast %52 : vector<16x16x32xf32> to vector<256x32xf32>
    %54 = arith.truncf %53 : vector<256x32xf32> to vector<256x32xbf16>
    %c3 = arith.constant 3 : index
    %c0_60 = arith.constant 0 : index
    %c0_61 = arith.constant 0 : index
    %55 = vector.load %arg4[%c3, %c0_60, %c0_61] : memref<7x32x32xbf16, #tpu.memory_space<vmem>>, vector<1x32x32xbf16>
    %56 = vector.shape_cast %55 : vector<1x32x32xbf16> to vector<32x32xbf16>
    %cst_62 = arith.constant dense<0.000000e+00> : vector<256x32xf32>
    %57 = tpu.matmul %54, %56, %cst_62 {dimension_numbers = #tpu.dot_dimension_numbers<[1], [0], [0], [1], [0, 0, 1, 1], [], []>} : vector<256x32xbf16>, vector<32x32xbf16>, vector<256x32xf32> -> vector<256x32xf32>
    %58 = arith.addf %51, %57 : vector<256x32xf32>
    %c0_63 = arith.constant 0 : index
    %c9 = arith.constant 9 : index
    %c0_64 = arith.constant 0 : index
    %59 = vector.load %arg11[%c0_63, %c9, %c0_64] : memref<16x32x32xf32, #tpu.memory_space<vmem>>, vector<16x16x32xf32>
    %60 = vector.shape_cast %59 : vector<16x16x32xf32> to vector<256x32xf32>
    %61 = arith.truncf %60 : vector<256x32xf32> to vector<256x32xbf16>
    %c4 = arith.constant 4 : index
    %c0_65 = arith.constant 0 : index
    %c0_66 = arith.constant 0 : index
    %62 = vector.load %arg4[%c4, %c0_65, %c0_66] : memref<7x32x32xbf16, #tpu.memory_space<vmem>>, vector<1x32x32xbf16>
    %63 = vector.shape_cast %62 : vector<1x32x32xbf16> to vector<32x32xbf16>
    %cst_67 = arith.constant dense<0.000000e+00> : vector<256x32xf32>
    %64 = tpu.matmul %61, %63, %cst_67 {dimension_numbers = #tpu.dot_dimension_numbers<[1], [0], [0], [1], [0, 0, 1, 1], [], []>} : vector<256x32xbf16>, vector<32x32xbf16>, vector<256x32xf32> -> vector<256x32xf32>
    %65 = arith.addf %58, %64 : vector<256x32xf32>
    %c0_68 = arith.constant 0 : index
    %c10 = arith.constant 10 : index
    %c0_69 = arith.constant 0 : index
    %66 = vector.load %arg11[%c0_68, %c10, %c0_69] : memref<16x32x32xf32, #tpu.memory_space<vmem>>, vector<16x16x32xf32>
    %67 = vector.shape_cast %66 : vector<16x16x32xf32> to vector<256x32xf32>
    %68 = arith.truncf %67 : vector<256x32xf32> to vector<256x32xbf16>
    %c5_70 = arith.constant 5 : index
    %c0_71 = arith.constant 0 : index
    %c0_72 = arith.constant 0 : index
    %69 = vector.load %arg4[%c5_70, %c0_71, %c0_72] : memref<7x32x32xbf16, #tpu.memory_space<vmem>>, vector<1x32x32xbf16>
    %70 = vector.shape_cast %69 : vector<1x32x32xbf16> to vector<32x32xbf16>
    %cst_73 = arith.constant dense<0.000000e+00> : vector<256x32xf32>
    %71 = tpu.matmul %68, %70, %cst_73 {dimension_numbers = #tpu.dot_dimension_numbers<[1], [0], [0], [1], [0, 0, 1, 1], [], []>} : vector<256x32xbf16>, vector<32x32xbf16>, vector<256x32xf32> -> vector<256x32xf32>
    %72 = arith.addf %65, %71 : vector<256x32xf32>
    %c0_74 = arith.constant 0 : index
    %c11 = arith.constant 11 : index
    %c0_75 = arith.constant 0 : index
    %73 = vector.load %arg11[%c0_74, %c11, %c0_75] : memref<16x32x32xf32, #tpu.memory_space<vmem>>, vector<16x16x32xf32>
    %74 = vector.shape_cast %73 : vector<16x16x32xf32> to vector<256x32xf32>
    %75 = arith.truncf %74 : vector<256x32xf32> to vector<256x32xbf16>
    %c6_76 = arith.constant 6 : index
    %c0_77 = arith.constant 0 : index
    %c0_78 = arith.constant 0 : index
    %76 = vector.load %arg4[%c6_76, %c0_77, %c0_78] : memref<7x32x32xbf16, #tpu.memory_space<vmem>>, vector<1x32x32xbf16>
    %77 = vector.shape_cast %76 : vector<1x32x32xbf16> to vector<32x32xbf16>
    %cst_79 = arith.constant dense<0.000000e+00> : vector<256x32xf32>
    %78 = tpu.matmul %75, %77, %cst_79 {dimension_numbers = #tpu.dot_dimension_numbers<[1], [0], [0], [1], [0, 0, 1, 1], [], []>} : vector<256x32xbf16>, vector<32x32xbf16>, vector<256x32xf32> -> vector<256x32xf32>
    %79 = arith.addf %72, %78 : vector<256x32xf32>
    %c0_80 = arith.constant 0 : index
    %c0_81 = arith.constant 0 : index
    %80 = vector.load %arg5[%c0_80, %c0_81] : memref<1x32xf32, #tpu.memory_space<vmem>>, vector<1x32xf32>
    %81 = vector.broadcast %80 : vector<1x32xf32> to vector<256x32xf32>
    %82 = arith.addf %79, %81 : vector<256x32xf32>
    %cst_82 = arith.constant 0.000000e+00 : f32
    %83 = vector.broadcast %cst_82 : f32 to vector<256x32xf32>
    %84 = arith.maximumf %82, %83 : vector<256x32xf32>
    %85 = vector.shape_cast %84 : vector<256x32xf32> to vector<16x16x32xf32>
    %c3_83 = arith.constant 3 : index
    %c0_84 = arith.constant 0 : index
    %c0_85 = arith.constant 0 : index
    %86 = vector.load %arg12[%c3_83, %c0_84, %c0_85] : memref<22x16x32xf32, #tpu.memory_space<vmem>>, vector<16x16x32xf32>
    tpu.vector_store %arg12[%c3_83, %c0_84, %c0_85], %85 {strides = array<i32>} : memref<22x16x32xf32, #tpu.memory_space<vmem>>, vector<16x16x32xf32>,
    %c0_86 = arith.constant 0 : index
    %c0_87 = arith.constant 0 : index
    %c0_88 = arith.constant 0 : index
    %87 = vector.load %arg12[%c0_86, %c0_87, %c0_88] : memref<22x16x32xf32, #tpu.memory_space<vmem>>, vector<16x16x32xf32>
    %88 = vector.shape_cast %87 : vector<16x16x32xf32> to vector<256x32xf32>
    %89 = arith.truncf %88 : vector<256x32xf32> to vector<256x32xbf16>
    %c0_89 = arith.constant 0 : index
    %c0_90 = arith.constant 0 : index
    %c0_91 = arith.constant 0 : index
    %90 = vector.load %arg6[%c0_89, %c0_90, %c0_91] : memref<7x32x32xbf16, #tpu.memory_space<vmem>>, vector<1x32x32xbf16>
    %91 = vector.shape_cast %90 : vector<1x32x32xbf16> to vector<32x32xbf16>
    %cst_92 = arith.constant dense<0.000000e+00> : vector<256x32xf32>
    %92 = tpu.matmul %89, %91, %cst_92 {dimension_numbers = #tpu.dot_dimension_numbers<[1], [0], [0], [1], [0, 0, 1, 1], [], []>} : vector<256x32xbf16>, vector<32x32xbf16>, vector<256x32xf32> -> vector<256x32xf32>
    %c1_93 = arith.constant 1 : index
    %c0_94 = arith.constant 0 : index
    %c0_95 = arith.constant 0 : index
    %93 = vector.load %arg12[%c1_93, %c0_94, %c0_95] : memref<22x16x32xf32, #tpu.memory_space<vmem>>, vector<16x16x32xf32>
    %94 = vector.shape_cast %93 : vector<16x16x32xf32> to vector<256x32xf32>
    %95 = arith.truncf %94 : vector<256x32xf32> to vector<256x32xbf16>
    %c1_96 = arith.constant 1 : index
    %c0_97 = arith.constant 0 : index
    %c0_98 = arith.constant 0 : index
    %96 = vector.load %arg6[%c1_96, %c0_97, %c0_98] : memref<7x32x32xbf16, #tpu.memory_space<vmem>>, vector<1x32x32xbf16>
    %97 = vector.shape_cast %96 : vector<1x32x32xbf16> to vector<32x32xbf16>
    %cst_99 = arith.constant dense<0.000000e+00> : vector<256x32xf32>
    %98 = tpu.matmul %95, %97, %cst_99 {dimension_numbers = #tpu.dot_dimension_numbers<[1], [0], [0], [1], [0, 0, 1, 1], [], []>} : vector<256x32xbf16>, vector<32x32xbf16>, vector<256x32xf32> -> vector<256x32xf32>
    %99 = arith.addf %92, %98 : vector<256x32xf32>
    %c2_100 = arith.constant 2 : index
    %c0_101 = arith.constant 0 : index
    %c0_102 = arith.constant 0 : index
    %100 = vector.load %arg12[%c2_100, %c0_101, %c0_102] : memref<22x16x32xf32, #tpu.memory_space<vmem>>, vector<16x16x32xf32>
    %101 = vector.shape_cast %100 : vector<16x16x32xf32> to vector<256x32xf32>
    %102 = arith.truncf %101 : vector<256x32xf32> to vector<256x32xbf16>
    %c2_103 = arith.constant 2 : index
    %c0_104 = arith.constant 0 : index
    %c0_105 = arith.constant 0 : index
    %103 = vector.load %arg6[%c2_103, %c0_104, %c0_105] : memref<7x32x32xbf16, #tpu.memory_space<vmem>>, vector<1x32x32xbf16>
    %104 = vector.shape_cast %103 : vector<1x32x32xbf16> to vector<32x32xbf16>
    %cst_106 = arith.constant dense<0.000000e+00> : vector<256x32xf32>
    %105 = tpu.matmul %102, %104, %cst_106 {dimension_numbers = #tpu.dot_dimension_numbers<[1], [0], [0], [1], [0, 0, 1, 1], [], []>} : vector<256x32xbf16>, vector<32x32xbf16>, vector<256x32xf32> -> vector<256x32xf32>
    %106 = arith.addf %99, %105 : vector<256x32xf32>
    %c3_107 = arith.constant 3 : index
    %c0_108 = arith.constant 0 : index
    %c0_109 = arith.constant 0 : index
    %107 = vector.load %arg12[%c3_107, %c0_108, %c0_109] : memref<22x16x32xf32, #tpu.memory_space<vmem>>, vector<16x16x32xf32>
    %108 = vector.shape_cast %107 : vector<16x16x32xf32> to vector<256x32xf32>
    %109 = arith.truncf %108 : vector<256x32xf32> to vector<256x32xbf16>
    %c3_110 = arith.constant 3 : index
    %c0_111 = arith.constant 0 : index
    %c0_112 = arith.constant 0 : index
    %110 = vector.load %arg6[%c3_110, %c0_111, %c0_112] : memref<7x32x32xbf16, #tpu.memory_space<vmem>>, vector<1x32x32xbf16>
    %111 = vector.shape_cast %110 : vector<1x32x32xbf16> to vector<32x32xbf16>
    %cst_113 = arith.constant dense<0.000000e+00> : vector<256x32xf32>
    %112 = tpu.matmul %109, %111, %cst_113 {dimension_numbers = #tpu.dot_dimension_numbers<[1], [0], [0], [1], [0, 0, 1, 1], [], []>} : vector<256x32xbf16>, vector<32x32xbf16>, vector<256x32xf32> -> vector<256x32xf32>
    %113 = arith.addf %106, %112 : vector<256x32xf32>
    %c4_114 = arith.constant 4 : index
    %c0_115 = arith.constant 0 : index
    %c0_116 = arith.constant 0 : index
    %114 = vector.load %arg12[%c4_114, %c0_115, %c0_116] : memref<22x16x32xf32, #tpu.memory_space<vmem>>, vector<16x16x32xf32>
    %115 = vector.shape_cast %114 : vector<16x16x32xf32> to vector<256x32xf32>
    %116 = arith.truncf %115 : vector<256x32xf32> to vector<256x32xbf16>
    %c4_117 = arith.constant 4 : index
    %c0_118 = arith.constant 0 : index
    %c0_119 = arith.constant 0 : index
    %117 = vector.load %arg6[%c4_117, %c0_118, %c0_119] : memref<7x32x32xbf16, #tpu.memory_space<vmem>>, vector<1x32x32xbf16>
    %118 = vector.shape_cast %117 : vector<1x32x32xbf16> to vector<32x32xbf16>
    %cst_120 = arith.constant dense<0.000000e+00> : vector<256x32xf32>
    %119 = tpu.matmul %116, %118, %cst_120 {dimension_numbers = #tpu.dot_dimension_numbers<[1], [0], [0], [1], [0, 0, 1, 1], [], []>} : vector<256x32xbf16>, vector<32x32xbf16>, vector<256x32xf32> -> vector<256x32xf32>
    %120 = arith.addf %113, %119 : vector<256x32xf32>
    %c5_121 = arith.constant 5 : index
    %c0_122 = arith.constant 0 : index
    %c0_123 = arith.constant 0 : index
    %121 = vector.load %arg12[%c5_121, %c0_122, %c0_123] : memref<22x16x32xf32, #tpu.memory_space<vmem>>, vector<16x16x32xf32>
    %122 = vector.shape_cast %121 : vector<16x16x32xf32> to vector<256x32xf32>
    %123 = arith.truncf %122 : vector<256x32xf32> to vector<256x32xbf16>
    %c5_124 = arith.constant 5 : index
    %c0_125 = arith.constant 0 : index
    %c0_126 = arith.constant 0 : index
    %124 = vector.load %arg6[%c5_124, %c0_125, %c0_126] : memref<7x32x32xbf16, #tpu.memory_space<vmem>>, vector<1x32x32xbf16>
    %125 = vector.shape_cast %124 : vector<1x32x32xbf16> to vector<32x32xbf16>
    %cst_127 = arith.constant dense<0.000000e+00> : vector<256x32xf32>
    %126 = tpu.matmul %123, %125, %cst_127 {dimension_numbers = #tpu.dot_dimension_numbers<[1], [0], [0], [1], [0, 0, 1, 1], [], []>} : vector<256x32xbf16>, vector<32x32xbf16>, vector<256x32xf32> -> vector<256x32xf32>
    %127 = arith.addf %120, %126 : vector<256x32xf32>
    %c6_128 = arith.constant 6 : index
    %c0_129 = arith.constant 0 : index
    %c0_130 = arith.constant 0 : index
    %128 = vector.load %arg12[%c6_128, %c0_129, %c0_130] : memref<22x16x32xf32, #tpu.memory_space<vmem>>, vector<16x16x32xf32>
    %129 = vector.shape_cast %128 : vector<16x16x32xf32> to vector<256x32xf32>
    %130 = arith.truncf %129 : vector<256x32xf32> to vector<256x32xbf16>
    %c6_131 = arith.constant 6 : index
    %c0_132 = arith.constant 0 : index
    %c0_133 = arith.constant 0 : index
    %131 = vector.load %arg6[%c6_131, %c0_132, %c0_133] : memref<7x32x32xbf16, #tpu.memory_space<vmem>>, vector<1x32x32xbf16>
    %132 = vector.shape_cast %131 : vector<1x32x32xbf16> to vector<32x32xbf16>
    %cst_134 = arith.constant dense<0.000000e+00> : vector<256x32xf32>
    %133 = tpu.matmul %130, %132, %cst_134 {dimension_numbers = #tpu.dot_dimension_numbers<[1], [0], [0], [1], [0, 0, 1, 1], [], []>} : vector<256x32xbf16>, vector<32x32xbf16>, vector<256x32xf32> -> vector<256x32xf32>
    %134 = arith.addf %127, %133 : vector<256x32xf32>
    %c0_135 = arith.constant 0 : index
    %c0_136 = arith.constant 0 : index
    %135 = vector.load %arg7[%c0_135, %c0_136] : memref<1x32xf32, #tpu.memory_space<vmem>>, vector<1x32xf32>
    %136 = vector.broadcast %135 : vector<1x32xf32> to vector<256x32xf32>
    %137 = arith.addf %134, %136 : vector<256x32xf32>
    %cst_137 = arith.constant 0.000000e+00 : f32
    %138 = vector.broadcast %cst_137 : f32 to vector<256x32xf32>
    %139 = arith.maximumf %137, %138 : vector<256x32xf32>
    %140 = vector.shape_cast %139 : vector<256x32xf32> to vector<16x16x32xf32>
    %c1_138 = arith.constant 1 : index
    %c8_139 = arith.constant 8 : index
    %c32 = arith.constant 32 : index
    %141 = vector.load %arg13[%c1_138, %c8_139, %c32] : memref<18x32x64xf32, #tpu.memory_space<vmem>>, vector<16x16x32xf32>
    tpu.vector_store %arg13[%c1_138, %c8_139, %c32], %140 {strides = array<i32>} : memref<18x32x64xf32, #tpu.memory_space<vmem>>, vector<16x16x32xf32>,
    %c0_140 = arith.constant 0 : index
    %c7_141 = arith.constant 7 : index
    %c0_142 = arith.constant 0 : index
    %142 = vector.load %arg13[%c0_140, %c7_141, %c0_142] : memref<18x32x64xf32, #tpu.memory_space<vmem>>, vector<16x16x64xf32>
    %143 = vector.shape_cast %142 : vector<16x16x64xf32> to vector<256x64xf32>
    %144 = arith.truncf %143 : vector<256x64xf32> to vector<256x64xbf16>
    %c0_143 = arith.constant 0 : index
    %c0_144 = arith.constant 0 : index
    %c0_145 = arith.constant 0 : index
    %c0_146 = arith.constant 0 : index
    %145 = vector.load %arg8[%c0_143, %c0_144, %c0_145, %c0_146] : memref<3x3x64x128xbf16, #tpu.memory_space<vmem>>, vector<1x1x64x128xbf16>
    %146 = vector.shape_cast %145 : vector<1x1x64x128xbf16> to vector<64x128xbf16>
    %cst_147 = arith.constant dense<0.000000e+00> : vector<256x128xf32>
    %147 = tpu.matmul %144, %146, %cst_147 {dimension_numbers = #tpu.dot_dimension_numbers<[1], [0], [0], [1], [0, 0, 1, 1], [], []>} : vector<256x64xbf16>, vector<64x128xbf16>, vector<256x128xf32> -> vector<256x128xf32>
    %c0_148 = arith.constant 0 : index
    %c8_149 = arith.constant 8 : index
    %c0_150 = arith.constant 0 : index
    %148 = vector.load %arg13[%c0_148, %c8_149, %c0_150] : memref<18x32x64xf32, #tpu.memory_space<vmem>>, vector<16x16x64xf32>
    %149 = vector.shape_cast %148 : vector<16x16x64xf32> to vector<256x64xf32>
    %150 = arith.truncf %149 : vector<256x64xf32> to vector<256x64xbf16>
    %c0_151 = arith.constant 0 : index
    %c1_152 = arith.constant 1 : index
    %c0_153 = arith.constant 0 : index
    %c0_154 = arith.constant 0 : index
    %151 = vector.load %arg8[%c0_151, %c1_152, %c0_153, %c0_154] : memref<3x3x64x128xbf16, #tpu.memory_space<vmem>>, vector<1x1x64x128xbf16>
    %152 = vector.shape_cast %151 : vector<1x1x64x128xbf16> to vector<64x128xbf16>
    %cst_155 = arith.constant dense<0.000000e+00> : vector<256x128xf32>
    %153 = tpu.matmul %150, %152, %cst_155 {dimension_numbers = #tpu.dot_dimension_numbers<[1], [0], [0], [1], [0, 0, 1, 1], [], []>} : vector<256x64xbf16>, vector<64x128xbf16>, vector<256x128xf32> -> vector<256x128xf32>
    %154 = arith.addf %147, %153 : vector<256x128xf32>
    %c0_156 = arith.constant 0 : index
    %c9_157 = arith.constant 9 : index
    %c0_158 = arith.constant 0 : index
    %155 = vector.load %arg13[%c0_156, %c9_157, %c0_158] : memref<18x32x64xf32, #tpu.memory_space<vmem>>, vector<16x16x64xf32>
    %156 = vector.shape_cast %155 : vector<16x16x64xf32> to vector<256x64xf32>
    %157 = arith.truncf %156 : vector<256x64xf32> to vector<256x64xbf16>
    %c0_159 = arith.constant 0 : index
    %c2_160 = arith.constant 2 : index
    %c0_161 = arith.constant 0 : index
    %c0_162 = arith.constant 0 : index
    %158 = vector.load %arg8[%c0_159, %c2_160, %c0_161, %c0_162] : memref<3x3x64x128xbf16, #tpu.memory_space<vmem>>, vector<1x1x64x128xbf16>
    %159 = vector.shape_cast %158 : vector<1x1x64x128xbf16> to vector<64x128xbf16>
    %cst_163 = arith.constant dense<0.000000e+00> : vector<256x128xf32>
    %160 = tpu.matmul %157, %159, %cst_163 {dimension_numbers = #tpu.dot_dimension_numbers<[1], [0], [0], [1], [0, 0, 1, 1], [], []>} : vector<256x64xbf16>, vector<64x128xbf16>, vector<256x128xf32> -> vector<256x128xf32>
    %161 = arith.addf %154, %160 : vector<256x128xf32>
    %c1_164 = arith.constant 1 : index
    %c7_165 = arith.constant 7 : index
    %c0_166 = arith.constant 0 : index
    %162 = vector.load %arg13[%c1_164, %c7_165, %c0_166] : memref<18x32x64xf32, #tpu.memory_space<vmem>>, vector<16x16x64xf32>
    %163 = vector.shape_cast %162 : vector<16x16x64xf32> to vector<256x64xf32>
    %164 = arith.truncf %163 : vector<256x64xf32> to vector<256x64xbf16>
    %c1_167 = arith.constant 1 : index
    %c0_168 = arith.constant 0 : index
    %c0_169 = arith.constant 0 : index
    %c0_170 = arith.constant 0 : index
    %165 = vector.load %arg8[%c1_167, %c0_168, %c0_169, %c0_170] : memref<3x3x64x128xbf16, #tpu.memory_space<vmem>>, vector<1x1x64x128xbf16>
    %166 = vector.shape_cast %165 : vector<1x1x64x128xbf16> to vector<64x128xbf16>
    %cst_171 = arith.constant dense<0.000000e+00> : vector<256x128xf32>
    %167 = tpu.matmul %164, %166, %cst_171 {dimension_numbers = #tpu.dot_dimension_numbers<[1], [0], [0], [1], [0, 0, 1, 1], [], []>} : vector<256x64xbf16>, vector<64x128xbf16>, vector<256x128xf32> -> vector<256x128xf32>
    %168 = arith.addf %161, %167 : vector<256x128xf32>
    %c1_172 = arith.constant 1 : index
    %c8_173 = arith.constant 8 : index
    %c0_174 = arith.constant 0 : index
    %169 = vector.load %arg13[%c1_172, %c8_173, %c0_174] : memref<18x32x64xf32, #tpu.memory_space<vmem>>, vector<16x16x64xf32>
    %170 = vector.shape_cast %169 : vector<16x16x64xf32> to vector<256x64xf32>
    %171 = arith.truncf %170 : vector<256x64xf32> to vector<256x64xbf16>
    %c1_175 = arith.constant 1 : index
    %c1_176 = arith.constant 1 : index
    %c0_177 = arith.constant 0 : index
    %c0_178 = arith.constant 0 : index
    %172 = vector.load %arg8[%c1_175, %c1_176, %c0_177, %c0_178] : memref<3x3x64x128xbf16, #tpu.memory_space<vmem>>, vector<1x1x64x128xbf16>
    %173 = vector.shape_cast %172 : vector<1x1x64x128xbf16> to vector<64x128xbf16>
    %cst_179 = arith.constant dense<0.000000e+00> : vector<256x128xf32>
    %174 = tpu.matmul %171, %173, %cst_179 {dimension_numbers = #tpu.dot_dimension_numbers<[1], [0], [0], [1], [0, 0, 1, 1], [], []>} : vector<256x64xbf16>, vector<64x128xbf16>, vector<256x128xf32> -> vector<256x128xf32>
    %175 = arith.addf %168, %174 : vector<256x128xf32>
    %c1_180 = arith.constant 1 : index
    %c9_181 = arith.constant 9 : index
    %c0_182 = arith.constant 0 : index
    %176 = vector.load %arg13[%c1_180, %c9_181, %c0_182] : memref<18x32x64xf32, #tpu.memory_space<vmem>>, vector<16x16x64xf32>
    %177 = vector.shape_cast %176 : vector<16x16x64xf32> to vector<256x64xf32>
    %178 = arith.truncf %177 : vector<256x64xf32> to vector<256x64xbf16>
    %c1_183 = arith.constant 1 : index
    %c2_184 = arith.constant 2 : index
    %c0_185 = arith.constant 0 : index
    %c0_186 = arith.constant 0 : index
    %179 = vector.load %arg8[%c1_183, %c2_184, %c0_185, %c0_186] : memref<3x3x64x128xbf16, #tpu.memory_space<vmem>>, vector<1x1x64x128xbf16>
    %180 = vector.shape_cast %179 : vector<1x1x64x128xbf16> to vector<64x128xbf16>
    %cst_187 = arith.constant dense<0.000000e+00> : vector<256x128xf32>
    %181 = tpu.matmul %178, %180, %cst_187 {dimension_numbers = #tpu.dot_dimension_numbers<[1], [0], [0], [1], [0, 0, 1, 1], [], []>} : vector<256x64xbf16>, vector<64x128xbf16>, vector<256x128xf32> -> vector<256x128xf32>
    %182 = arith.addf %175, %181 : vector<256x128xf32>
    %c2_188 = arith.constant 2 : index
    %c7_189 = arith.constant 7 : index
    %c0_190 = arith.constant 0 : index
    %183 = vector.load %arg13[%c2_188, %c7_189, %c0_190] : memref<18x32x64xf32, #tpu.memory_space<vmem>>, vector<16x16x64xf32>
    %184 = vector.shape_cast %183 : vector<16x16x64xf32> to vector<256x64xf32>
    %185 = arith.truncf %184 : vector<256x64xf32> to vector<256x64xbf16>
    %c2_191 = arith.constant 2 : index
    %c0_192 = arith.constant 0 : index
    %c0_193 = arith.constant 0 : index
    %c0_194 = arith.constant 0 : index
    %186 = vector.load %arg8[%c2_191, %c0_192, %c0_193, %c0_194] : memref<3x3x64x128xbf16, #tpu.memory_space<vmem>>, vector<1x1x64x128xbf16>
    %187 = vector.shape_cast %186 : vector<1x1x64x128xbf16> to vector<64x128xbf16>
    %cst_195 = arith.constant dense<0.000000e+00> : vector<256x128xf32>
    %188 = tpu.matmul %185, %187, %cst_195 {dimension_numbers = #tpu.dot_dimension_numbers<[1], [0], [0], [1], [0, 0, 1, 1], [], []>} : vector<256x64xbf16>, vector<64x128xbf16>, vector<256x128xf32> -> vector<256x128xf32>
    %189 = arith.addf %182, %188 : vector<256x128xf32>
    %c2_196 = arith.constant 2 : index
    %c8_197 = arith.constant 8 : index
    %c0_198 = arith.constant 0 : index
    %190 = vector.load %arg13[%c2_196, %c8_197, %c0_198] : memref<18x32x64xf32, #tpu.memory_space<vmem>>, vector<16x16x64xf32>
    %191 = vector.shape_cast %190 : vector<16x16x64xf32> to vector<256x64xf32>
    %192 = arith.truncf %191 : vector<256x64xf32> to vector<256x64xbf16>
    %c2_199 = arith.constant 2 : index
    %c1_200 = arith.constant 1 : index
    %c0_201 = arith.constant 0 : index
    %c0_202 = arith.constant 0 : index
    %193 = vector.load %arg8[%c2_199, %c1_200, %c0_201, %c0_202] : memref<3x3x64x128xbf16, #tpu.memory_space<vmem>>, vector<1x1x64x128xbf16>
    %194 = vector.shape_cast %193 : vector<1x1x64x128xbf16> to vector<64x128xbf16>
    %cst_203 = arith.constant dense<0.000000e+00> : vector<256x128xf32>
    %195 = tpu.matmul %192, %194, %cst_203 {dimension_numbers = #tpu.dot_dimension_numbers<[1], [0], [0], [1], [0, 0, 1, 1], [], []>} : vector<256x64xbf16>, vector<64x128xbf16>, vector<256x128xf32> -> vector<256x128xf32>
    %196 = arith.addf %189, %195 : vector<256x128xf32>
    %c2_204 = arith.constant 2 : index
    %c9_205 = arith.constant 9 : index
    %c0_206 = arith.constant 0 : index
    %197 = vector.load %arg13[%c2_204, %c9_205, %c0_206] : memref<18x32x64xf32, #tpu.memory_space<vmem>>, vector<16x16x64xf32>
    %198 = vector.shape_cast %197 : vector<16x16x64xf32> to vector<256x64xf32>
    %199 = arith.truncf %198 : vector<256x64xf32> to vector<256x64xbf16>
    %c2_207 = arith.constant 2 : index
    %c2_208 = arith.constant 2 : index
    %c0_209 = arith.constant 0 : index
    %c0_210 = arith.constant 0 : index
    %200 = vector.load %arg8[%c2_207, %c2_208, %c0_209, %c0_210] : memref<3x3x64x128xbf16, #tpu.memory_space<vmem>>, vector<1x1x64x128xbf16>
    %201 = vector.shape_cast %200 : vector<1x1x64x128xbf16> to vector<64x128xbf16>
    %cst_211 = arith.constant dense<0.000000e+00> : vector<256x128xf32>
    %202 = tpu.matmul %199, %201, %cst_211 {dimension_numbers = #tpu.dot_dimension_numbers<[1], [0], [0], [1], [0, 0, 1, 1], [], []>} : vector<256x64xbf16>, vector<64x128xbf16>, vector<256x128xf32> -> vector<256x128xf32>
    %203 = arith.addf %196, %202 : vector<256x128xf32>
    %c0_212 = arith.constant 0 : index
    %c0_213 = arith.constant 0 : index
    %204 = vector.load %arg9[%c0_212, %c0_213] : memref<1x128xf32, #tpu.memory_space<vmem>>, vector<1x128xf32>
    %205 = vector.broadcast %204 : vector<1x128xf32> to vector<256x128xf32>
    %206 = arith.addf %203, %205 : vector<256x128xf32>
    %cst_214 = arith.constant 0.000000e+00 : f32
    %207 = vector.broadcast %cst_214 : f32 to vector<256x128xf32>
    %208 = arith.maximumf %206, %207 : vector<256x128xf32>
    %209 = tpu.transpose %208, [1, 0] : vector<256x128xf32> -> vector<128x256xf32>
    %210 = vector.extract_strided_slice %209 {offsets = [0, 0], sizes = [96, 256], strides = [1, 1]} : vector<128x256xf32> to vector<96x256xf32>
    %c0_215 = arith.constant 0 : index
    %c0_216 = arith.constant 0 : index
    %c0_217 = arith.constant 0 : index
    %211 = vector.load %arg10[%c0_215, %c0_216, %c0_217] : memref<1x96x256xf32, #tpu.memory_space<vmem>>, vector<1x96x256xf32>
    %212 = vector.shape_cast %211 : vector<1x96x256xf32> to vector<96x256xf32>
    %213 = vector.shape_cast %210 : vector<96x256xf32> to vector<1x96x256xf32>
    tpu.vector_store %arg10[%c0_215, %c0_216, %c0_217], %213 {strides = array<i32>} : memref<1x96x256xf32, #tpu.memory_space<vmem>>, vector<1x96x256xf32>,
    return
  }
  func.func @transform_0(%arg0: i32) -> (i32, i32, i32) {
    %c0_i32 = arith.constant 0 : i32
    %c0_i32_0 = arith.constant 0 : i32
    %c0_i32_1 = arith.constant 0 : i32
    return %arg0, %c0_i32, %c0_i32_0 : i32, i32, i32
  }
  func.func @transform_1(%arg0: i32) -> (i32, i32) {
    %c0_i32 = arith.constant 0 : i32
    %c0_i32_0 = arith.constant 0 : i32
    %c0_i32_1 = arith.constant 0 : i32
    return %c0_i32, %c0_i32_0 : i32, i32
  }
  func.func @transform_2(%arg0: i32) -> (i32, i32) {
    %c0_i32 = arith.constant 0 : i32
    %c0_i32_0 = arith.constant 0 : i32
    %c0_i32_1 = arith.constant 0 : i32
    return %c0_i32, %c0_i32_0 : i32, i32
  }
  func.func @transform_3(%arg0: i32) -> (i32, i32, i32) {
    %c0_i32 = arith.constant 0 : i32
    %c0_i32_0 = arith.constant 0 : i32
    %c0_i32_1 = arith.constant 0 : i32
    %c0_i32_2 = arith.constant 0 : i32
    return %c0_i32, %c0_i32_0, %c0_i32_1 : i32, i32, i32
  }
  func.func @transform_4(%arg0: i32) -> (i32, i32) {
    %c0_i32 = arith.constant 0 : i32
    %c0_i32_0 = arith.constant 0 : i32
    %c0_i32_1 = arith.constant 0 : i32
    return %c0_i32, %c0_i32_0 : i32, i32
  }
  func.func @transform_5(%arg0: i32) -> (i32, i32, i32) {
    %c0_i32 = arith.constant 0 : i32
    %c0_i32_0 = arith.constant 0 : i32
    %c0_i32_1 = arith.constant 0 : i32
    %c0_i32_2 = arith.constant 0 : i32
    return %c0_i32, %c0_i32_0, %c0_i32_1 : i32, i32, i32
  }
  func.func @transform_6(%arg0: i32) -> (i32, i32) {
    %c0_i32 = arith.constant 0 : i32
    %c0_i32_0 = arith.constant 0 : i32
    %c0_i32_1 = arith.constant 0 : i32
    return %c0_i32, %c0_i32_0 : i32, i32
  }
  func.func @transform_7(%arg0: i32) -> (i32, i32, i32, i32) {
    %c0_i32 = arith.constant 0 : i32
    %c0_i32_0 = arith.constant 0 : i32
    %c0_i32_1 = arith.constant 0 : i32
    %c0_i32_2 = arith.constant 0 : i32
    %c0_i32_3 = arith.constant 0 : i32
    return %c0_i32, %c0_i32_0, %c0_i32_1, %c0_i32_2 : i32, i32, i32, i32
  }
  func.func @transform_8(%arg0: i32) -> (i32, i32) {
    %c0_i32 = arith.constant 0 : i32
    %c0_i32_0 = arith.constant 0 : i32
    %c0_i32_1 = arith.constant 0 : i32
    return %c0_i32, %c0_i32_0 : i32, i32
  }
  func.func @transform_9(%arg0: i32) -> (i32, i32, i32) {
    %c0_i32 = arith.constant 0 : i32
    %c0_i32_0 = arith.constant 0 : i32
    %c0_i32_1 = arith.constant 0 : i32
    return %arg0, %c0_i32, %c0_i32_0 : i32, i32, i32
  }
}

</mosaic_0001>

<llo_original>
// kernel: tpu_custom_call.1
$region0: #{tpu_custom_call.1}
  #allocation0 [shape = 'u32[]', space=smem, size = 0x4, offset = 0x4, fixed_abs, tag = 'smem constant byte address 0x4 - core index']
  #allocation1 [shape = 'u32[144,128]{1,0:T(1,128)}', space=vmem, size = 0x12000, scoped, tag = 'internal scratch']
  #allocation2 [shape = 'f32[16,32,32]{2,1,0:T(8,128)}', space=vmem, size = 0x40000, scoped, tag = 'scratch operand']
  #allocation3 [shape = 'f32[22,16,32]{2,1,0:T(8,128)}', space=vmem, size = 0x2c000, scoped, tag = 'scratch operand']
  #allocation4 [shape = 'f32[18,32,64]{2,1,0:T(8,128)}', space=vmem, size = 0x48000, scoped, tag = 'scratch operand']
  %s0 = inlined_call_operand.hbm [shape: f32[2,80,256], index: 0, kind: input, shape index: {}]
  %s1 = inlined_call_operand.hbm [shape: bf16[80,64], index: 1, kind: input, shape index: {}]
  %s2 = inlined_call_operand.hbm [shape: f32[1,64], index: 2, kind: input, shape index: {}]
  %s3 = inlined_call_operand.hbm [shape: bf16[7,32,32], index: 3, kind: input, shape index: {}]
  %s4 = inlined_call_operand.hbm [shape: f32[1,32], index: 4, kind: input, shape index: {}]
  %s5 = inlined_call_operand.hbm [shape: bf16[7,32,32], index: 5, kind: input, shape index: {}]
  %s6 = inlined_call_operand.hbm [shape: f32[1,32], index: 6, kind: input, shape index: {}]
  %s7 = inlined_call_operand.hbm [shape: bf16[3,3,64,128], index: 7, kind: input, shape index: {}]
  %s8 = inlined_call_operand.hbm [shape: f32[1,128], index: 8, kind: input, shape index: {}]
  %s9 = inlined_call_operand.hbm [shape: f32[2,96,256], index: 9, kind: output, shape index: {}]
  %s10 = sld [smem:[#allocation0]]
  $region105: #{tpu_custom_call.1} parent=0
    _
  %s12 = ssub.s32 1, %s10
  %s13 = scalar_select 0, %s12, %s10
  $region1: #{tpu_custom_call.1} parent=0
    #allocation5 [shape = 'u8[163840]{0}', space=vmem, size = 0x28000, scoped, tag = 'input window, operand 0']
    #allocation6 [shape = 's32[2]{0}', space=sflag, size = 0x8, scoped, tag = 'scoped memory for tpu_custom_call.1']
    #allocation7 [shape = 's32[2]{0}', space=sflag, size = 0x8, scoped, tag = 'scoped memory for tpu_custom_call.1']
    #allocation8 [shape = 'u8[20480]{0}', space=vmem, size = 0x5000, scoped, tag = 'input window, operand 1, single buffered']
    #allocation9 [shape = 's32[1]{0}', space=sflag, size = 0x4, scoped, tag = 'scoped memory for tpu_custom_call.1']
    #allocation10 [shape = 'u8[512]{0}', space=vmem, size = 0x400, scoped, tag = 'input window, operand 2, single buffered']
    #allocation11 [shape = 'u8[57344]{0}', space=vmem, size = 0xe000, scoped, tag = 'input window, operand 3, single buffered']
    #allocation12 [shape = 's32[1]{0}', space=sflag, size = 0x4, scoped, tag = 'scoped memory for tpu_custom_call.1']
    #allocation13 [shape = 'u8[512]{0}', space=vmem, size = 0x400, scoped, tag = 'input window, operand 4, single buffered']
    #allocation14 [shape = 'u8[57344]{0}', space=vmem, size = 0xe000, scoped, tag = 'input window, operand 5, single buffered']
    #allocation15 [shape = 's32[1]{0}', space=sflag, size = 0x4, scoped, tag = 'scoped memory for tpu_custom_call.1']
    #allocation16 [shape = 'u8[512]{0}', space=vmem, size = 0x400, scoped, tag = 'input window, operand 6, single buffered']
    #allocation17 [shape = 'u8[147456]{0}', space=vmem, size = 0x24000, scoped, tag = 'input window, operand 7, single buffered']
    #allocation18 [shape = 's32[1]{0}', space=sflag, size = 0x4, scoped, tag = 'scoped memory for tpu_custom_call.1']
    #allocation19 [shape = 'u8[512]{0}', space=vmem, size = 0x400, scoped, tag = 'input window, operand 8, single buffered']
    #allocation20 [shape = 'u8[196608]{0}', space=vmem, size = 0x30000, scoped, tag = 'output window, operand 0']
    %14 = vsyncpa [#allocation6], 0
    %s15 = scalar_lea.sflag [#allocation6], 1
    %16 = vsyncpa %s15, 0
    %17 = vsyncpa [#allocation9], 0
    %18 = vsyncpa [#allocation12], 0
    %19 = vsyncpa [#allocation15], 0
    %20 = vsyncpa [#allocation18], 0
    %21 = vsyncpa [#allocation7], 0
    %s22 = scalar_lea.sflag [#allocation7], 1
    %23 = vsyncpa %s22, 0
    loop: start=0, step=1, limit=4
    $region2: #{tpu_custom_call.1} parent=1 // loop_pre_header
      _
    $region3: #{tpu_custom_call.1} parent=1 // loop_header
      %s25 = sphi 0, %s29
      %p26 = scmp.ge.s32.totalorder %s25, 4
      %s35 = sphi 0, %s37
      %s38 = sphi 0, %s35
      %s39 = sphi 0, %s38
      %s55 = sphi 0, %s39
      %s59 = sphi 0, %s59
      %s61 = sphi 0, %s59
      %s62 = sphi 0, %s61
      %s76 = sphi 0, %s62
      %s80 = sphi 0, %s80
      %s82 = sphi 0, %s80
      %s83 = sphi 0, %s82
      %s97 = sphi 0, %s83
      %s101 = sphi 0, %s101
      %s103 = sphi 0, %s101
      %s104 = sphi 0, %s103
      %s118 = sphi 0, %s104
      %s122 = sphi 0, %s122
      %s124 = sphi 0, %s122
      %s125 = sphi 0, %s124
      %s139 = sphi 0, %s125
      %s143 = sphi 0, %s143
      %s145 = sphi 0, %s143
      %s146 = sphi 0, %s145
      %s160 = sphi 0, %s146
      %s164 = sphi 0, %s164
      %s166 = sphi 0, %s164
      %s167 = sphi 0, %s166
      %s181 = sphi 0, %s167
      %s185 = sphi 0, %s185
      %s187 = sphi 0, %s185
      %s188 = sphi 0, %s187
      %s202 = sphi 0, %s188
      %s206 = sphi 0, %s206
      %s208 = sphi 0, %s206
      %s209 = sphi 0, %s208
      %s223 = sphi 0, %s209
      %s229 = sphi 0, %s231
      %s232 = sphi 0, %s229
      %s233 = sphi 0, %s232
      %s249 = sphi 0, %s233
    $region4: #{tpu_custom_call.1} parent=1 // loop_header_branch
      %28 = sbr.rel (%p26) target = $region8
    $region5: #{tpu_custom_call.1} parent=1 // loop_body
      %s30 = ssub.s32 %s25, 1
      %s31 = ssub.s32 %s25, 2
      %s32 = sadd.s32 %s25, 1
      %s33 = ssub.s32 %s25, %s32
      %p34 = scmp.eq.s32.totalorder %s33, 0
      %s36 = sadd.s32 %s35, 1
      %s37 = scalar_select %p34, %s35, %s36
      %p40 = pneg %p34
      %p41 = scmp.eq.s32.totalorder %s25, 1
      %p42 = por %p40, %p41
      %p43 = scmp.ne.s32.totalorder %s35, %s38
      %p44 = scmp.eq.s32.totalorder %s25, 0
      %p45 = por %p43, %p44
      %p46 = scmp.ne.s32.totalorder %s35, %s38
      %p47 = scmp.eq.s32.totalorder %s30, 1
      %p48 = por %p46, %p47
      %p49 = scmp.ne.s32.totalorder %s38, %s39
      %p50 = scmp.eq.s32.totalorder %s30, 0
      %p51 = por %p49, %p50
      %p52 = scmp.ne.s32.totalorder %s38, %s39
      %p53 = scmp.eq.s32.totalorder %s31, 1
      %p54 = por %p52, %p53
      %p56 = scmp.ne.s32.totalorder %s39, %s55
      %p57 = scmp.eq.s32.totalorder %s31, 0
      %p58 = por %p56, %p57
      %s60 = sadd.s32 %s59, 1
      %p63 = scmp.eq.s32.totalorder %s25, 1
      %p64 = scmp.ne.s32.totalorder %s59, %s61
      %p65 = scmp.eq.s32.totalorder %s25, 0
      %p66 = por %p64, %p65
      %p67 = scmp.ne.s32.totalorder %s59, %s61
      %p68 = scmp.eq.s32.totalorder %s30, 1
      %p69 = por %p67, %p68
      %p70 = scmp.ne.s32.totalorder %s61, %s62
      %p71 = scmp.eq.s32.totalorder %s30, 0
      %p72 = por %p70, %p71
      %p73 = scmp.ne.s32.totalorder %s61, %s62
      %p74 = scmp.eq.s32.totalorder %s31, 1
      %p75 = por %p73, %p74
      %p77 = scmp.ne.s32.totalorder %s62, %s76
      %p78 = scmp.eq.s32.totalorder %s31, 0
      %p79 = por %p77, %p78
      %s81 = sadd.s32 %s80, 1
      %p84 = scmp.eq.s32.totalorder %s25, 1
      %p85 = scmp.ne.s32.totalorder %s80, %s82
      %p86 = scmp.eq.s32.totalorder %s25, 0
      %p87 = por %p85, %p86
      %p88 = scmp.ne.s32.totalorder %s80, %s82
      %p89 = scmp.eq.s32.totalorder %s30, 1
      %p90 = por %p88, %p89
      %p91 = scmp.ne.s32.totalorder %s82, %s83
      %p92 = scmp.eq.s32.totalorder %s30, 0
      %p93 = por %p91, %p92
      %p94 = scmp.ne.s32.totalorder %s82, %s83
      %p95 = scmp.eq.s32.totalorder %s31, 1
      %p96 = por %p94, %p95
      %p98 = scmp.ne.s32.totalorder %s83, %s97
      %p99 = scmp.eq.s32.totalorder %s31, 0
      %p100 = por %p98, %p99
      %s102 = sadd.s32 %s101, 1
      %p105 = scmp.eq.s32.totalorder %s25, 1
      %p106 = scmp.ne.s32.totalorder %s101, %s103
      %p107 = scmp.eq.s32.totalorder %s25, 0
      %p108 = por %p106, %p107
      %p109 = scmp.ne.s32.totalorder %s101, %s103
      %p110 = scmp.eq.s32.totalorder %s30, 1
      %p111 = por %p109, %p110
      %p112 = scmp.ne.s32.totalorder %s103, %s104
      %p113 = scmp.eq.s32.totalorder %s30, 0
      %p114 = por %p112, %p113
      %p115 = scmp.ne.s32.totalorder %s103, %s104
      %p116 = scmp.eq.s32.totalorder %s31, 1
      %p117 = por %p115, %p116
      %p119 = scmp.ne.s32.totalorder %s104, %s118
      %p120 = scmp.eq.s32.totalorder %s31, 0
      %p121 = por %p119, %p120
      %s123 = sadd.s32 %s122, 1
      %p126 = scmp.eq.s32.totalorder %s25, 1
      %p127 = scmp.ne.s32.totalorder %s122, %s124
      %p128 = scmp.eq.s32.totalorder %s25, 0
      %p129 = por %p127, %p128
      %p130 = scmp.ne.s32.totalorder %s122, %s124
      %p131 = scmp.eq.s32.totalorder %s30, 1
      %p132 = por %p130, %p131
      %p133 = scmp.ne.s32.totalorder %s124, %s125
      %p134 = scmp.eq.s32.totalorder %s30, 0
      %p135 = por %p133, %p134
      %p136 = scmp.ne.s32.totalorder %s124, %s125
      %p137 = scmp.eq.s32.totalorder %s31, 1
      %p138 = por %p136, %p137
      %p140 = scmp.ne.s32.totalorder %s125, %s139
      %p141 = scmp.eq.s32.totalorder %s31, 0
      %p142 = por %p140, %p141
      %s144 = sadd.s32 %s143, 1
      %p147 = scmp.eq.s32.totalorder %s25, 1
      %p148 = scmp.ne.s32.totalorder %s143, %s145
      %p149 = scmp.eq.s32.totalorder %s25, 0
      %p150 = por %p148, %p149
      %p151 = scmp.ne.s32.totalorder %s143, %s145
      %p152 = scmp.eq.s32.totalorder %s30, 1
      %p153 = por %p151, %p152
      %p154 = scmp.ne.s32.totalorder %s145, %s146
      %p155 = scmp.eq.s32.totalorder %s30, 0
      %p156 = por %p154, %p155
      %p157 = scmp.ne.s32.totalorder %s145, %s146
      %p158 = scmp.eq.s32.totalorder %s31, 1
      %p159 = por %p157, %p158
      %p161 = scmp.ne.s32.totalorder %s146, %s160
      %p162 = scmp.eq.s32.totalorder %s31, 0
      %p163 = por %p161, %p162
      %s165 = sadd.s32 %s164, 1
      %p168 = scmp.eq.s32.totalorder %s25, 1
      %p169 = scmp.ne.s32.totalorder %s164, %s166
      %p170 = scmp.eq.s32.totalorder %s25, 0
      %p171 = por %p169, %p170
      %p172 = scmp.ne.s32.totalorder %s164, %s166
      %p173 = scmp.eq.s32.totalorder %s30, 1
      %p174 = por %p172, %p173
      %p175 = scmp.ne.s32.totalorder %s166, %s167
      %p176 = scmp.eq.s32.totalorder %s30, 0
      %p177 = por %p175, %p176
      %p178 = scmp.ne.s32.totalorder %s166, %s167
      %p179 = scmp.eq.s32.totalorder %s31, 1
      %p180 = por %p178, %p179
      %p182 = scmp.ne.s32.totalorder %s167, %s181
      %p183 = scmp.eq.s32.totalorder %s31, 0
      %p184 = por %p182, %p183
      %s186 = sadd.s32 %s185, 1
      %p189 = scmp.eq.s32.totalorder %s25, 1
      %p190 = scmp.ne.s32.totalorder %s185, %s187
      %p191 = scmp.eq.s32.totalorder %s25, 0
      %p192 = por %p190, %p191
      %p193 = scmp.ne.s32.totalorder %s185, %s187
      %p194 = scmp.eq.s32.totalorder %s30, 1
      %p195 = por %p193, %p194
      %p196 = scmp.ne.s32.totalorder %s187, %s188
      %p197 = scmp.eq.s32.totalorder %s30, 0
      %p198 = por %p196, %p197
      %p199 = scmp.ne.s32.totalorder %s187, %s188
      %p200 = scmp.eq.s32.totalorder %s31, 1
      %p201 = por %p199, %p200
      %p203 = scmp.ne.s32.totalorder %s188, %s202
      %p204 = scmp.eq.s32.totalorder %s31, 0
      %p205 = por %p203, %p204
      %s207 = sadd.s32 %s206, 1
      %p210 = scmp.eq.s32.totalorder %s25, 1
      %p211 = scmp.ne.s32.totalorder %s206, %s208
      %p212 = scmp.eq.s32.totalorder %s25, 0
      %p213 = por %p211, %p212
      %p214 = scmp.ne.s32.totalorder %s206, %s208
      %p215 = scmp.eq.s32.totalorder %s30, 1
      %p216 = por %p214, %p215
      %p217 = scmp.ne.s32.totalorder %s208, %s209
      %p218 = scmp.eq.s32.totalorder %s30, 0
      %p219 = por %p217, %p218
      %p220 = scmp.ne.s32.totalorder %s208, %s209
      %p221 = scmp.eq.s32.totalorder %s31, 1
      %p222 = por %p220, %p221
      %p224 = scmp.ne.s32.totalorder %s209, %s223
      %p225 = scmp.eq.s32.totalorder %s31, 0
      %p226 = por %p224, %p225
      %s227 = ssub.s32 %s25, %s32
      %p228 = scmp.eq.s32.totalorder %s227, 0
      %s230 = sadd.s32 %s229, 1
      %s231 = scalar_select %p228, %s229, %s230
      %p234 = pneg %p228
      %p235 = scmp.eq.s32.totalorder %s25, 1
      %p236 = por %p234, %p235
      %p237 = scmp.ne.s32.totalorder %s229, %s232
      %p238 = scmp.eq.s32.totalorder %s25, 0
      %p239 = por %p237, %p238
      %p240 = scmp.ne.s32.totalorder %s229, %s232
      %p241 = scmp.eq.s32.totalorder %s30, 1
      %p242 = por %p240, %p241
      %p243 = scmp.ne.s32.totalorder %s232, %s233
      %p244 = scmp.eq.s32.totalorder %s30, 0
      %p245 = por %p243, %p244
      %p246 = scmp.ne.s32.totalorder %s232, %s233
      %p247 = scmp.eq.s32.totalorder %s31, 1
      %p248 = por %p246, %p247
      %p250 = scmp.ne.s32.totalorder %s233, %s249
      %p251 = scmp.eq.s32.totalorder %s31, 0
      %p252 = por %p250, %p251
      %p253 = scmp.le.s32.totalorder 1, %s25
      %p254 = scmp.lt.s32.totalorder %s25, 3
      %p255 = pnand %p253, %p254
      %p256 = pneg %p255
      // Predicated region
      $region9: #{tpu_custom_call.1} parent=5 // pred_check
        _
      $region10: #{tpu_custom_call.1} parent=5 // pred_check_branch
        %258 = sbr.rel (%p255) target = $region12
      $region11: #{tpu_custom_call.1} parent=5 // pred_region
        %s259 = ssub.s32 %s25, 1
        // Predicated region
        $region13: #{tpu_custom_call.1} parent=11 // pred_check
          %p260 = pneg %p72
        $region14: #{tpu_custom_call.1} parent=11 // pred_check_branch
          %262 = sbr.rel (%p260) target = $region16
        $region15: #{tpu_custom_call.1} parent=11 // pred_region
          %s264 = ssub.s32 640, 640
          %265 = vsyncadd [#allocation9], %s264
          %s266 = sshll.u32 [#allocation8], 4
          %s267 = int_to_ptr.vmem [resolvable:$true] %s266
          %272 = dma.hbm_to_vmem [thread:$0]  %s1, 640, %s267, [#allocation9], 64, 64, 4
        $region16: #{tpu_custom_call.1} parent=11 // pred_fallthru
          _
        // Predicated region
        $region17: #{tpu_custom_call.1} parent=11 // pred_check
          %p273 = pneg %p93
        $region18: #{tpu_custom_call.1} parent=11 // pred_check_branch
          %275 = sbr.rel (%p273) target = $region20
        $region19: #{tpu_custom_call.1} parent=11 // pred_region
          %s277 = ssub.s32 16, 16
          %278 = vsyncadd [#allocation9], %s277
          %s280 = sshll.u32 [#allocation10], 4
          %s281 = int_to_ptr.vmem [resolvable:$true] %s280
          %283 = dma.hbm_to_vmem [thread:$0]  %s2, 16, %s281, [#allocation9]
        $region20: #{tpu_custom_call.1} parent=11 // pred_fallthru
          _
        // Predicated region
        $region21: #{tpu_custom_call.1} parent=11 // pred_check
          %p284 = pneg %p114
        $region22: #{tpu_custom_call.1} parent=11 // pred_check_branch
          %286 = sbr.rel (%p284) target = $region24
        $region23: #{tpu_custom_call.1} parent=11 // pred_region
          %s288 = ssub.s32 1792, 1792
          %289 = vsyncadd [#allocation12], %s288
          %s290 = sshll.u32 [#allocation11], 4
          %s291 = int_to_ptr.vmem [resolvable:$true] %s290
          %296 = dma.hbm_to_vmem [thread:$0]  %s3, 1792, %s291, [#allocation12], 64, 64, 4
        $region24: #{tpu_custom_call.1} parent=11 // pred_fallthru
          _
        // Predicated region
        $region25: #{tpu_custom_call.1} parent=11 // pred_check
          %p297 = pneg %p135
        $region26: #{tpu_custom_call.1} parent=11 // pred_check_branch
          %299 = sbr.rel (%p297) target = $region28
        $region27: #{tpu_custom_call.1} parent=11 // pred_region
          %s301 = ssub.s32 16, 16
          %302 = vsyncadd [#allocation12], %s301
          %s304 = sshll.u32 [#allocation13], 4
          %s305 = int_to_ptr.vmem [resolvable:$true] %s304
          %307 = dma.hbm_to_vmem [thread:$0]  %s4, 16, %s305, [#allocation12]
        $region28: #{tpu_custom_call.1} parent=11 // pred_fallthru
          _
        // Predicated region
        $region29: #{tpu_custom_call.1} parent=11 // pred_check
          %p308 = pneg %p156
        $region30: #{tpu_custom_call.1} parent=11 // pred_check_branch
          %310 = sbr.rel (%p308) target = $region32
        $region31: #{tpu_custom_call.1} parent=11 // pred_region
          %s312 = ssub.s32 1792, 1792
          %313 = vsyncadd [#allocation15], %s312
          %s314 = sshll.u32 [#allocation14], 4
          %s315 = int_to_ptr.vmem [resolvable:$true] %s314
          %320 = dma.hbm_to_vmem [thread:$0]  %s5, 1792, %s315, [#allocation15], 64, 64, 4
        $region32: #{tpu_custom_call.1} parent=11 // pred_fallthru
          _
        // Predicated region
        $region33: #{tpu_custom_call.1} parent=11 // pred_check
          %p321 = pneg %p177
        $region34: #{tpu_custom_call.1} parent=11 // pred_check_branch
          %323 = sbr.rel (%p321) target = $region36
        $region35: #{tpu_custom_call.1} parent=11 // pred_region
          %s325 = ssub.s32 16, 16
          %326 = vsyncadd [#allocation15], %s325
          %s328 = sshll.u32 [#allocation16], 4
          %s329 = int_to_ptr.vmem [resolvable:$true] %s328
          %331 = dma.hbm_to_vmem [thread:$0]  %s6, 16, %s329, [#allocation15]
        $region36: #{tpu_custom_call.1} parent=11 // pred_fallthru
          _
        // Predicated region
        $region37: #{tpu_custom_call.1} parent=11 // pred_check
          %p332 = pneg %p198
        $region38: #{tpu_custom_call.1} parent=11 // pred_check_branch
          %334 = sbr.rel (%p332) target = $region40
        $region39: #{tpu_custom_call.1} parent=11 // pred_region
          %s336 = ssub.s32 4608, 4608
          %337 = vsyncadd [#allocation18], %s336
          %s338 = sshll.u32 [#allocation17], 4
          %s339 = int_to_ptr.vmem [resolvable:$true] %s338
          %344 = dma.hbm_to_vmem [thread:$0]  %s7, 4608, %s339, [#allocation18], 64, 64, 4
        $region40: #{tpu_custom_call.1} parent=11 // pred_fallthru
          _
        // Predicated region
        $region41: #{tpu_custom_call.1} parent=11 // pred_check
          %p345 = pneg %p219
        $region42: #{tpu_custom_call.1} parent=11 // pred_check_branch
          %347 = sbr.rel (%p345) target = $region44
        $region43: #{tpu_custom_call.1} parent=11 // pred_region
          %s349 = ssub.s32 16, 16
          %350 = vsyncadd [#allocation18], %s349
          %s352 = sshll.u32 [#allocation19], 4
          %s353 = int_to_ptr.vmem [resolvable:$true] %s352
          %355 = dma.hbm_to_vmem [thread:$0]  %s8, 16, %s353, [#allocation18]
        $region44: #{tpu_custom_call.1} parent=11 // pred_fallthru
          _
      $region12: #{tpu_custom_call.1} parent=5 // pred_fallthru
        _
      %p356 = scmp.lt.s32.totalorder %s25, 2
      // Predicated region
      $region45: #{tpu_custom_call.1} parent=5 // pred_check
        %p357 = pneg %p356
      $region46: #{tpu_custom_call.1} parent=5 // pred_check_branch
        %359 = sbr.rel (%p357) target = $region48
      $region47: #{tpu_custom_call.1} parent=5 // pred_region
        // Predicated region
        $region49: #{tpu_custom_call.1} parent=47 // pred_check
          %p360 = pneg %p45
        $region50: #{tpu_custom_call.1} parent=47 // pred_check_branch
          %362 = sbr.rel (%p360) target = $region52
        $region51: #{tpu_custom_call.1} parent=47 // pred_region
          %s363 = sand.u32 %s35, 1
          %s364 = scalar_lea.sflag [#allocation6], %s363
          %s365 = sand.u32 %s35, 1
          %s366 = smul.addr %s365, 160
          %s367 = scalar_lea.vmem [#allocation5], %s366
          %s369 = ssub.s32 2560, 2560
          %370 = vsyncadd %s364, %s369
          %s371 = smul.addr %s25, 20
          %s372 = smul.addr %s371, 128
          %s373 = scalar_lea.hbm %s0, %s372
          %s374 = sshll.u32 %s367, 4
          %s375 = int_to_ptr.vmem [resolvable:$true] %s374
          %380 = dma.hbm_to_vmem [thread:$0]  %s373, 2560, %s375, %s364, 256, 256, 16
        $region52: #{tpu_custom_call.1} parent=47 // pred_fallthru
          _
      $region48: #{tpu_custom_call.1} parent=5 // pred_fallthru
        _
      %p381 = scmp.le.s32.totalorder 1, %s25
      %p382 = scmp.lt.s32.totalorder %s25, 3
      %p383 = pnand %p381, %p382
      %p384 = pneg %p383
      // Predicated region
      $region53: #{tpu_custom_call.1} parent=5 // pred_check
        _
      $region54: #{tpu_custom_call.1} parent=5 // pred_check_branch
        %386 = sbr.rel (%p383) target = $region56
      $region55: #{tpu_custom_call.1} parent=5 // pred_region
        %s387 = ssub.s32 %s25, 1
        %s388 = sand.u32 %s38, 1
        %s389 = scalar_lea.sflag [#allocation6], %s388
        %s390 = sand.u32 %s38, 1
        %s391 = smul.addr %s390, 160
        %s392 = scalar_lea.vmem [#allocation5], %s391
        // Predicated region
        $region57: #{tpu_custom_call.1} parent=55 // pred_check
          %p393 = pneg %p51
        $region58: #{tpu_custom_call.1} parent=55 // pred_check_branch
          %395 = sbr.rel (%p393) target = $region60
        $region59: #{tpu_custom_call.1} parent=55 // pred_region
          %396 = dma.done %s389, 2560
        $region60: #{tpu_custom_call.1} parent=55 // pred_fallthru
          _
        // Predicated region
        $region61: #{tpu_custom_call.1} parent=55 // pred_check
          %p397 = pneg %p72
        $region62: #{tpu_custom_call.1} parent=55 // pred_check_branch
          %399 = sbr.rel (%p397) target = $region64
        $region63: #{tpu_custom_call.1} parent=55 // pred_region
          %400 = dma.done [#allocation9], 640
        $region64: #{tpu_custom_call.1} parent=55 // pred_fallthru
          _
        // Predicated region
        $region65: #{tpu_custom_call.1} parent=55 // pred_check
          %p401 = pneg %p93
        $region66: #{tpu_custom_call.1} parent=55 // pred_check_branch
          %403 = sbr.rel (%p401) target = $region68
        $region67: #{tpu_custom_call.1} parent=55 // pred_region
          %404 = dma.done [#allocation9], 16
        $region68: #{tpu_custom_call.1} parent=55 // pred_fallthru
          _
        // Predicated region
        $region69: #{tpu_custom_call.1} parent=55 // pred_check
          %p405 = pneg %p114
        $region70: #{tpu_custom_call.1} parent=55 // pred_check_branch
          %407 = sbr.rel (%p405) target = $region72
        $region71: #{tpu_custom_call.1} parent=55 // pred_region
          %408 = dma.done [#allocation12], 1792
        $region72: #{tpu_custom_call.1} parent=55 // pred_fallthru
          _
        // Predicated region
        $region73: #{tpu_custom_call.1} parent=55 // pred_check
          %p409 = pneg %p135
        $region74: #{tpu_custom_call.1} parent=55 // pred_check_branch
          %411 = sbr.rel (%p409) target = $region76
        $region75: #{tpu_custom_call.1} parent=55 // pred_region
          %412 = dma.done [#allocation12], 16
        $region76: #{tpu_custom_call.1} parent=55 // pred_fallthru
          _
        // Predicated region
        $region77: #{tpu_custom_call.1} parent=55 // pred_check
          %p413 = pneg %p156
        $region78: #{tpu_custom_call.1} parent=55 // pred_check_branch
          %415 = sbr.rel (%p413) target = $region80
        $region79: #{tpu_custom_call.1} parent=55 // pred_region
          %416 = dma.done [#allocation15], 1792
        $region80: #{tpu_custom_call.1} parent=55 // pred_fallthru
          _
        // Predicated region
        $region81: #{tpu_custom_call.1} parent=55 // pred_check
          %p417 = pneg %p177
        $region82: #{tpu_custom_call.1} parent=55 // pred_check_branch
          %419 = sbr.rel (%p417) target = $region84
        $region83: #{tpu_custom_call.1} parent=55 // pred_region
          %420 = dma.done [#allocation15], 16
        $region84: #{tpu_custom_call.1} parent=55 // pred_fallthru
          _
        // Predicated region
        $region85: #{tpu_custom_call.1} parent=55 // pred_check
          %p421 = pneg %p198
        $region86: #{tpu_custom_call.1} parent=55 // pred_check_branch
          %423 = sbr.rel (%p421) target = $region88
        $region87: #{tpu_custom_call.1} parent=55 // pred_region
          %424 = dma.done [#allocation18], 4608
        $region88: #{tpu_custom_call.1} parent=55 // pred_fallthru
          _
        // Predicated region
        $region89: #{tpu_custom_call.1} parent=55 // pred_check
          %p425 = pneg %p219
        $region90: #{tpu_custom_call.1} parent=55 // pred_check_branch
          %427 = sbr.rel (%p425) target = $region92
        $region91: #{tpu_custom_call.1} parent=55 // pred_region
          %428 = dma.done [#allocation18], 16
        $region92: #{tpu_custom_call.1} parent=55 // pred_fallthru
          _
        %s429 = sand.u32 %s38, 1
        %s430 = scalar_lea.sflag [#allocation6], %s429
        %s431 = sand.u32 %s38, 1
        %s432 = smul.addr %s431, 160
        %s433 = scalar_lea.vmem [#allocation5], %s432
        %p434 = pneg %p51
        %p435 = pneg %p48
        %p436 = pneg %p72
        %p437 = pneg %p69
        %p438 = pneg %p93
        %p439 = pneg %p90
        %p440 = pneg %p114
        %p441 = pneg %p111
        %p442 = pneg %p135
        %p443 = pneg %p132
        %p444 = pneg %p156
        %p445 = pneg %p153
        %p446 = pneg %p177
        %p447 = pneg %p174
        %p448 = pneg %p198
        %p449 = pneg %p195
        %p450 = pneg %p219
        %p451 = pneg %p216
        %p452 = pneg %p245
        %p453 = pneg %p242
        %s454 = sand.u32 %s232, 1
        %s455 = scalar_lea.sflag [#allocation7], %s454
        %s456 = sand.u32 %s232, 1
        %s457 = smul.addr %s456, 192
        %s458 = scalar_lea.vmem [#allocation20], %s457
        %v460 = vld [vmem:[%s392] sm:$0xff]
        %v461 = vld [vmem:[%s392 + $0x8] sm:$0xff]
        %v462 = vld [vmem:[%s392 + $0x10] sm:$0xff]
        %v463 = vld [vmem:[%s392 + $0x18] sm:$0xff]
        %v464 = vld [vmem:[%s392 + $0x20] sm:$0xff]
        %v465 = vld [vmem:[%s392 + $0x28] sm:$0xff]
        %v466 = vld [vmem:[%s392 + $0x30] sm:$0xff]
        %v467 = vld [vmem:[%s392 + $0x38] sm:$0xff]
        %v468 = vld [vmem:[%s392 + $0x40] sm:$0xff]
        %v469 = vld [vmem:[%s392 + $0x48] sm:$0xff]
        %v470 = vld [vmem:[%s392 + $0x50] sm:$0xff]
        %v471 = vld [vmem:[%s392 + $0x58] sm:$0xff]
        %v472 = vld [vmem:[%s392 + $0x60] sm:$0xff]
        %v473 = vld [vmem:[%s392 + $0x68] sm:$0xff]
        %v474 = vld [vmem:[%s392 + $0x70] sm:$0xff]
        %v475 = vld [vmem:[%s392 + $0x78] sm:$0xff]
        %v476 = vld [vmem:[%s392 + $0x80] sm:$0xff]
        %v477 = vld [vmem:[%s392 + $0x88] sm:$0xff]
        %v478 = vld [vmem:[%s392 + $0x90] sm:$0xff]
        %v479 = vld [vmem:[%s392 + $0x98] sm:$0xff]
        %v480 = vpack.c.bf16 %v462, %v460
        %v481 = vpack.c.bf16 %v463, %v461
        %v482 = vpack.c.bf16 %v466, %v464
        %v483 = vpack.c.bf16 %v467, %v465
        %v484 = vpack.c.bf16 %v470, %v468
        %v485 = vpack.c.bf16 %v471, %v469
        %v486 = vpack.c.bf16 %v474, %v472
        %v487 = vpack.c.bf16 %v475, %v473
        %v488 = vpack.c.bf16 %v478, %v476
        %v489 = vpack.c.bf16 %v479, %v477
        %v490 = vld [vmem:[#allocation8] sm:$0xf]
        %v491 = vld [vmem:[#allocation8 + $0x4] sm:$0xf]
        %v492 = vld [vmem:[#allocation8 + $0x8] sm:$0xf]
        %v493 = vld [vmem:[#allocation8 + $0xc] sm:$0xf]
        %v494 = vld [vmem:[#allocation8 + $0x10] sm:$0xf]
        %v495 = vld [vmem:[#allocation8 + $0x14] sm:$0xf]
        %v496 = vld [vmem:[#allocation8 + $0x18] sm:$0xf]
        %v497 = vld [vmem:[#allocation8 + $0x1c] sm:$0xf]
        %v498 = vld [vmem:[#allocation8 + $0x20] sm:$0xf]
        %v499 = vld [vmem:[#allocation8 + $0x24] sm:$0xf]
        %v500 = vld [vmem:[#allocation10] sm:$0x1]
        %v502 = vlaneseq
        %v503 = vshrl.u32 %v502, 7
        %v504 = vsub.s32 0, %v503
        %v505 = vrot.slane %v500, %v504
        %507 = vxpose.xlu0.c.b16.start [1/8] %v480, 128
        %508 = vxpose.xlu0.c.b16.cont [2/8] %v482, 128
        %509 = vxpose.xlu0.c.b16.cont [3/8] %v484, 128
        %510 = vxpose.xlu0.c.b16.cont [4/8] %v486, 128
        %511 = vxpose.xlu0.c.b16.cont [5/8] %v488, 128
        %512 = vxpose.xlu0.c.b16.cont [6/8] 0, 128
        %513 = vxpose.xlu0.c.b16.cont [7/8] 0, 128
        %514 = vxpose.xlu0.c.b16.end [8/8] 0, 128
        %v515 = vpop.trf.xlu0
        %v516 = vpop.trf.xlu0
        %v517 = vpop.trf.xlu0
        %v518 = vpop.trf.xlu0
        %v519 = vpop.trf.xlu0
        %v520 = vpop.trf.xlu0
        %v521 = vpop.trf.xlu0
        %v522 = vpop.trf.xlu0
        %523 = vxpose.xlu0.c.b16.start [1/8] %v481, 128
        %524 = vxpose.xlu0.c.b16.cont [2/8] %v483, 128
        %525 = vxpose.xlu0.c.b16.cont [3/8] %v485, 128
        %526 = vxpose.xlu0.c.b16.cont [4/8] %v487, 128
        %527 = vxpose.xlu0.c.b16.cont [5/8] %v489, 128
        %528 = vxpose.xlu0.c.b16.cont [6/8] 0, 128
        %529 = vxpose.xlu0.c.b16.cont [7/8] 0, 128
        %530 = vxpose.xlu0.c.b16.end [8/8] 0, 128
        %v531 = vpop.trf.xlu0
        %v532 = vpop.trf.xlu0
        %v533 = vpop.trf.xlu0
        %v534 = vpop.trf.xlu0
        %v535 = vpop.trf.xlu0
        %v536 = vpop.trf.xlu0
        %v537 = vpop.trf.xlu0
        %v538 = vpop.trf.xlu0
        %v549 = vunpack.c.l.b16 %v490
        %v550 = vunpack.c.l.b16 %v491
        %v551 = vunpack.c.l.b16 %v492
        %v552 = vunpack.c.l.b16 %v493
        %v553 = vunpack.c.l.b16 %v494
        %v554 = vunpack.c.l.b16 %v495
        %v555 = vunpack.c.l.b16 %v496
        %v556 = vunpack.c.l.b16 %v497
        %v557 = vunpack.c.l.b16 %v498
        %v558 = vunpack.c.l.b16 %v499
        %v559 = vpack.c.b16 %v550, %v549
        %v560 = vpack.c.b16 %v552, %v551
        %v561 = vpack.c.b16 %v554, %v553
        %v562 = vpack.c.b16 %v556, %v555
        %v563 = vpack.c.b16 %v558, %v557
        %vm569 = vcmask 654336
        %v571 = vsel %vm569, %v515, 0
        %v574 = vsel %vm569, %v516, 0
        %v577 = vsel %vm569, %v517, 0
        %v580 = vsel %vm569, %v518, 0
        %v583 = vsel %vm569, %v519, 0
        %v586 = vsel %vm569, %v520, 0
        %v589 = vsel %vm569, %v521, 0
        %v592 = vsel %vm569, %v522, 0
        %v595 = vsel %vm569, %v531, 0
        %v598 = vsel %vm569, %v532, 0
        %v601 = vsel %vm569, %v533, 0
        %v604 = vsel %vm569, %v534, 0
        %v607 = vsel %vm569, %v535, 0
        %v610 = vsel %vm569, %v536, 0
        %v613 = vsel %vm569, %v537, 0
        %v616 = vsel %vm569, %v538, 0
        %618 = vmatprep.subr.bf16.mxu0 0
        %619 = vmatpush1.bf16.msra.mxu0 %v559
        %620 = vmatprep.subr.bf16.mxu0 0
        %621 = vmatpush1.bf16.msra.mxu0 %v560
        %622 = vmatprep.subr.bf16.mxu0 0
        %623 = vmatpush1.bf16.msra.mxu0 %v561
        %624 = vmatprep.subr.bf16.mxu0 0
        %625 = vmatpush1.bf16.msra.mxu0 %v562
        %626 = vmatprep.subr.bf16.mxu0 0
        %627 = vmatpush1.bf16.msra.mxu0 %v563
        %628 = vmatprep.subr.bf16.mxu0 0
        %629 = vmatpush1.bf16.msra.mxu0 0
        %630 = vmatprep.subr.bf16.mxu0 0
        %631 = vmatpush1.bf16.msra.mxu0 0
        %632 = vmatprep.subr.bf16.mxu0 0
        %633 = vmatpush1.bf16.msra.mxu0 0
        %634 = vmatprep.subr.bf16.mxu0 0
        %635 = vmatpush1.bf16.msra.mxu0 0
        %636 = vmatprep.subr.bf16.mxu0 0
        %637 = vmatpush1.bf16.msra.mxu0 0
        %638 = vmatprep.subr.bf16.mxu0 0
        %639 = vmatpush1.bf16.msra.mxu0 0
        %640 = vmatprep.subr.bf16.mxu0 0
        %641 = vmatpush1.bf16.msra.mxu0 0
        %642 = vmatprep.subr.bf16.mxu0 0
        %643 = vmatpush1.bf16.msra.mxu0 0
        %644 = vmatprep.subr.bf16.mxu0 0
        %645 = vmatpush1.bf16.msra.mxu0 0
        %646 = vmatprep.subr.bf16.mxu0 0
        %647 = vmatpush1.bf16.msra.mxu0 0
        %648 = vmatprep.subr.bf16.mxu0 0
        %649 = vmatpush1.bf16.msra.mxu0 0
        %650 = vmatprep.mubr.bf16.mxu0 0
        %651 = vmatmul.mubr.bf16.gmra.mrb[0].mxu0 %v571
        %v652 = vpop.f32.mrb[0].mxu0
        %v653 = vadd.f32 %v505, %v652
        %v654 = vpop.f32.mrb[0].mxu0
        %v655 = vpop.f32.mrb[0].mxu0
        %v656 = vadd.f32 %v505, %v655
        %v657 = vpop.f32.mrb[0].mxu0
        %658 = vmatprep.mubr.bf16.mxu0 0
        %659 = vmatmul.mubr.bf16.gmra.mrb[0].mxu0 %v574
        %v660 = vpop.f32.mrb[0].mxu0
        %v661 = vadd.f32 %v505, %v660
        %v662 = vpop.f32.mrb[0].mxu0
        %v663 = vpop.f32.mrb[0].mxu0
        %v664 = vadd.f32 %v505, %v663
        %v665 = vpop.f32.mrb[0].mxu0
        %666 = vmatprep.mubr.bf16.mxu0 0
        %667 = vmatmul.mubr.bf16.gmra.mrb[0].mxu0 %v577
        %v668 = vpop.f32.mrb[0].mxu0
        %v669 = vadd.f32 %v505, %v668
        %v670 = vpop.f32.mrb[0].mxu0
        %v671 = vpop.f32.mrb[0].mxu0
        %v672 = vadd.f32 %v505, %v671
        %v673 = vpop.f32.mrb[0].mxu0
        %674 = vmatprep.mubr.bf16.mxu0 0
        %675 = vmatmul.mubr.bf16.gmra.mrb[0].mxu0 %v580
        %v676 = vpop.f32.mrb[0].mxu0
        %v677 = vadd.f32 %v505, %v676
        %v678 = vpop.f32.mrb[0].mxu0
        %v679 = vpop.f32.mrb[0].mxu0
        %v680 = vadd.f32 %v505, %v679
        %v681 = vpop.f32.mrb[0].mxu0
        %682 = vmatprep.mubr.bf16.mxu0 0
        %683 = vmatmul.mubr.bf16.gmra.mrb[0].mxu0 %v583
        %v684 = vpop.f32.mrb[0].mxu0
        %v685 = vadd.f32 %v505, %v684
        %v686 = vpop.f32.mrb[0].mxu0
        %v687 = vpop.f32.mrb[0].mxu0
        %v688 = vadd.f32 %v505, %v687
        %v689 = vpop.f32.mrb[0].mxu0
        %690 = vmatprep.mubr.bf16.mxu0 0
        %691 = vmatmul.mubr.bf16.gmra.mrb[0].mxu0 %v586
        %v692 = vpop.f32.mrb[0].mxu0
        %v693 = vadd.f32 %v505, %v692
        %v694 = vpop.f32.mrb[0].mxu0
        %v695 = vpop.f32.mrb[0].mxu0
        %v696 = vadd.f32 %v505, %v695
        %v697 = vpop.f32.mrb[0].mxu0
        %698 = vmatprep.mubr.bf16.mxu0 0
        %699 = vmatmul.mubr.bf16.gmra.mrb[0].mxu0 %v589
        %v700 = vpop.f32.mrb[0].mxu0
        %v701 = vadd.f32 %v505, %v700
        %v702 = vpop.f32.mrb[0].mxu0
        %v703 = vpop.f32.mrb[0].mxu0
        %v704 = vadd.f32 %v505, %v703
        %v705 = vpop.f32.mrb[0].mxu0
        %706 = vmatprep.mubr.bf16.mxu0 0
        %707 = vmatmul.mubr.bf16.gmra.mrb[0].mxu0 %v592
        %v708 = vpop.f32.mrb[0].mxu0
        %v709 = vadd.f32 %v505, %v708
        %v710 = vpop.f32.mrb[0].mxu0
        %v711 = vpop.f32.mrb[0].mxu0
        %v712 = vadd.f32 %v505, %v711
        %v713 = vpop.f32.mrb[0].mxu0
        %714 = vmatprep.mubr.bf16.mxu0 0
        %715 = vmatmul.mubr.bf16.gmra.mrb[0].mxu0 %v595
        %v716 = vpop.f32.mrb[0].mxu0
        %v717 = vadd.f32 %v505, %v716
        %v718 = vpop.f32.mrb[0].mxu0
        %v719 = vpop.f32.mrb[0].mxu0
        %v720 = vadd.f32 %v505, %v719
        %v721 = vpop.f32.mrb[0].mxu0
        %722 = vmatprep.mubr.bf16.mxu0 0
        %723 = vmatmul.mubr.bf16.gmra.mrb[0].mxu0 %v598
        %v724 = vpop.f32.mrb[0].mxu0
        %v725 = vadd.f32 %v505, %v724
        %v726 = vpop.f32.mrb[0].mxu0
        %v727 = vpop.f32.mrb[0].mxu0
        %v728 = vadd.f32 %v505, %v727
        %v729 = vpop.f32.mrb[0].mxu0
        %730 = vmatprep.mubr.bf16.mxu0 0
        %731 = vmatmul.mubr.bf16.gmra.mrb[0].mxu0 %v601
        %v732 = vpop.f32.mrb[0].mxu0
        %v733 = vadd.f32 %v505, %v732
        %v734 = vpop.f32.mrb[0].mxu0
        %v735 = vpop.f32.mrb[0].mxu0
        %v736 = vadd.f32 %v505, %v735
        %v737 = vpop.f32.mrb[0].mxu0
        %738 = vmatprep.mubr.bf16.mxu0 0
        %739 = vmatmul.mubr.bf16.gmra.mrb[0].mxu0 %v604
        %v740 = vpop.f32.mrb[0].mxu0
        %v741 = vadd.f32 %v505, %v740
        %v742 = vpop.f32.mrb[0].mxu0
        %v743 = vpop.f32.mrb[0].mxu0
        %v744 = vadd.f32 %v505, %v743
        %v745 = vpop.f32.mrb[0].mxu0
        %746 = vmatprep.mubr.bf16.mxu0 0
        %747 = vmatmul.mubr.bf16.gmra.mrb[0].mxu0 %v607
        %v748 = vpop.f32.mrb[0].mxu0
        %v749 = vadd.f32 %v505, %v748
        %v750 = vpop.f32.mrb[0].mxu0
        %v751 = vpop.f32.mrb[0].mxu0
        %v752 = vadd.f32 %v505, %v751
        %v753 = vpop.f32.mrb[0].mxu0
        %754 = vmatprep.mubr.bf16.mxu0 0
        %755 = vmatmul.mubr.bf16.gmra.mrb[0].mxu0 %v610
        %v756 = vpop.f32.mrb[0].mxu0
        %v757 = vadd.f32 %v505, %v756
        %v758 = vpop.f32.mrb[0].mxu0
        %v759 = vpop.f32.mrb[0].mxu0
        %v760 = vadd.f32 %v505, %v759
        %v761 = vpop.f32.mrb[0].mxu0
        %762 = vmatprep.mubr.bf16.mxu0 0
        %763 = vmatmul.mubr.bf16.gmra.mrb[0].mxu0 %v613
        %v764 = vpop.f32.mrb[0].mxu0
        %v765 = vadd.f32 %v505, %v764
        %v766 = vpop.f32.mrb[0].mxu0
        %v767 = vpop.f32.mrb[0].mxu0
        %v768 = vadd.f32 %v505, %v767
        %v769 = vpop.f32.mrb[0].mxu0
        %770 = vmatprep.mubr.bf16.mxu0 0
        %771 = vmatmul.mubr.bf16.gmra.mrb[0].mxu0 %v616
        %v772 = vpop.f32.mrb[0].mxu0
        %v773 = vadd.f32 %v505, %v772
        %v774 = vpop.f32.mrb[0].mxu0
        %v775 = vpop.f32.mrb[0].mxu0
        %v776 = vadd.f32 %v505, %v775
        %v777 = vpop.f32.mrb[0].mxu0
        %778 = vdwg.mxu0
        %v779 = vmax.f32 %v653, 0.0
        %v780 = vmax.f32 %v656, 0.0
        %v781 = vmax.f32 %v661, 0.0
        %v782 = vmax.f32 %v664, 0.0
        %v783 = vmax.f32 %v669, 0.0
        %v784 = vmax.f32 %v672, 0.0
        %v785 = vmax.f32 %v677, 0.0
        %v786 = vmax.f32 %v680, 0.0
        %v787 = vmax.f32 %v685, 0.0
        %v788 = vmax.f32 %v688, 0.0
        %v789 = vmax.f32 %v693, 0.0
        %v790 = vmax.f32 %v696, 0.0
        %v791 = vmax.f32 %v701, 0.0
        %v792 = vmax.f32 %v704, 0.0
        %v793 = vmax.f32 %v709, 0.0
        %v794 = vmax.f32 %v712, 0.0
        %v795 = vmax.f32 %v717, 0.0
        %v796 = vmax.f32 %v720, 0.0
        %v797 = vmax.f32 %v725, 0.0
        %v798 = vmax.f32 %v728, 0.0
        %v799 = vmax.f32 %v733, 0.0
        %v800 = vmax.f32 %v736, 0.0
        %v801 = vmax.f32 %v741, 0.0
        %v802 = vmax.f32 %v744, 0.0
        %v803 = vmax.f32 %v749, 0.0
        %v804 = vmax.f32 %v752, 0.0
        %v805 = vmax.f32 %v757, 0.0
        %v806 = vmax.f32 %v760, 0.0
        %v807 = vmax.f32 %v765, 0.0
        %v808 = vmax.f32 %v768, 0.0
        %v809 = vmax.f32 %v773, 0.0
        %v810 = vmax.f32 %v776, 0.0
        %vm811 = vcmask 256000
        %812 = vst.msk [vmem:[#allocation2 + $0x5] sm:$0x7] %vm811, 0.0
        %813 = vst.msk [vmem:[#allocation2 + $0x25] sm:$0x7] %vm811, 0.0
        %814 = vst.msk [vmem:[#allocation2 + $0x45] sm:$0x7] %vm811, 0.0
        %815 = vst.msk [vmem:[#allocation2 + $0x65] sm:$0x7] %vm811, 0.0
        %816 = vst.msk [vmem:[#allocation2 + $0x85] sm:$0x7] %vm811, 0.0
        %817 = vst.msk [vmem:[#allocation2 + $0xa5] sm:$0x7] %vm811, 0.0
        %818 = vst.msk [vmem:[#allocation2 + $0xc5] sm:$0x7] %vm811, 0.0
        %819 = vst.msk [vmem:[#allocation2 + $0xe5] sm:$0x7] %vm811, 0.0
        %820 = vst.msk [vmem:[#allocation2 + $0x105] sm:$0x7] %vm811, 0.0
        %821 = vst.msk [vmem:[#allocation2 + $0x125] sm:$0x7] %vm811, 0.0
        %822 = vst.msk [vmem:[#allocation2 + $0x145] sm:$0x7] %vm811, 0.0
        %823 = vst.msk [vmem:[#allocation2 + $0x165] sm:$0x7] %vm811, 0.0
        %824 = vst.msk [vmem:[#allocation2 + $0x185] sm:$0x7] %vm811, 0.0
        %825 = vst.msk [vmem:[#allocation2 + $0x1a5] sm:$0x7] %vm811, 0.0
        %826 = vst.msk [vmem:[#allocation2 + $0x1c5] sm:$0x7] %vm811, 0.0
        %827 = vst.msk [vmem:[#allocation2 + $0x1e5] sm:$0x7] %vm811, 0.0
        %828 = vst.msk [vmem:[#allocation2 + $0x18] sm:$0x7] %vm811, 0.0
        %829 = vst.msk [vmem:[#allocation2 + $0x38] sm:$0x7] %vm811, 0.0
        %830 = vst.msk [vmem:[#allocation2 + $0x58] sm:$0x7] %vm811, 0.0
        %831 = vst.msk [vmem:[#allocation2 + $0x78] sm:$0x7] %vm811, 0.0
        %832 = vst.msk [vmem:[#allocation2 + $0x98] sm:$0x7] %vm811, 0.0
        %833 = vst.msk [vmem:[#allocation2 + $0xb8] sm:$0x7] %vm811, 0.0
        %834 = vst.msk [vmem:[#allocation2 + $0xd8] sm:$0x7] %vm811, 0.0
        %835 = vst.msk [vmem:[#allocation2 + $0xf8] sm:$0x7] %vm811, 0.0
        %836 = vst.msk [vmem:[#allocation2 + $0x118] sm:$0x7] %vm811, 0.0
        %837 = vst.msk [vmem:[#allocation2 + $0x138] sm:$0x7] %vm811, 0.0
        %838 = vst.msk [vmem:[#allocation2 + $0x158] sm:$0x7] %vm811, 0.0
        %839 = vst.msk [vmem:[#allocation2 + $0x178] sm:$0x7] %vm811, 0.0
        %840 = vst.msk [vmem:[#allocation2 + $0x198] sm:$0x7] %vm811, 0.0
        %841 = vst.msk [vmem:[#allocation2 + $0x1b8] sm:$0x7] %vm811, 0.0
        %842 = vst.msk [vmem:[#allocation2 + $0x1d8] sm:$0x7] %vm811, 0.0
        %843 = vst.msk [vmem:[#allocation2 + $0x1f8] sm:$0x7] %vm811, 0.0
        %vm844 = vcmask 261120
        %845 = vst.msk [vmem:[#allocation3] sm:$0xff] %vm844, 0.0
        %846 = vst.msk [vmem:[#allocation3 + $0x8] sm:$0xff] %vm844, 0.0
        %847 = vst.msk [vmem:[#allocation3 + $0x10] sm:$0xff] %vm844, 0.0
        %848 = vst.msk [vmem:[#allocation3 + $0x18] sm:$0xff] %vm844, 0.0
        %849 = vst.msk [vmem:[#allocation3 + $0x20] sm:$0xff] %vm844, 0.0
        %850 = vst.msk [vmem:[#allocation3 + $0x28] sm:$0xff] %vm844, 0.0
        %s851 = scalar_lea.vmem [#allocation3], 304
        %852 = vst.msk [vmem:[%s851] sm:$0xff] %vm844, 0.0
        %853 = vst.msk [vmem:[%s851 + $0x8] sm:$0xff] %vm844, 0.0
        %854 = vst.msk [vmem:[%s851 + $0x10] sm:$0xff] %vm844, 0.0
        %855 = vst.msk [vmem:[%s851 + $0x18] sm:$0xff] %vm844, 0.0
        %856 = vst.msk [vmem:[%s851 + $0x20] sm:$0xff] %vm844, 0.0
        %857 = vst.msk [vmem:[%s851 + $0x28] sm:$0xff] %vm844, 0.0
        %vm858 = vcmask 516096
        %859 = vst.msk [vmem:[#allocation4 + $0x7] sm:$0x1] %vm858, 0.0
        %860 = vst.msk [vmem:[#allocation4 + $0x27] sm:$0x1] %vm858, 0.0
        %861 = vst.msk [vmem:[#allocation4 + $0x47] sm:$0x1] %vm858, 0.0
        %862 = vst.msk [vmem:[#allocation4 + $0x67] sm:$0x1] %vm858, 0.0
        %863 = vst.msk [vmem:[#allocation4 + $0x87] sm:$0x1] %vm858, 0.0
        %864 = vst.msk [vmem:[#allocation4 + $0xa7] sm:$0x1] %vm858, 0.0
        %865 = vst.msk [vmem:[#allocation4 + $0xc7] sm:$0x1] %vm858, 0.0
        %866 = vst.msk [vmem:[#allocation4 + $0xe7] sm:$0x1] %vm858, 0.0
        %867 = vst.msk [vmem:[#allocation4 + $0x107] sm:$0x1] %vm858, 0.0
        %868 = vst.msk [vmem:[#allocation4 + $0x127] sm:$0x1] %vm858, 0.0
        %869 = vst.msk [vmem:[#allocation4 + $0x147] sm:$0x1] %vm858, 0.0
        %870 = vst.msk [vmem:[#allocation4 + $0x167] sm:$0x1] %vm858, 0.0
        %871 = vst.msk [vmem:[#allocation4 + $0x187] sm:$0x1] %vm858, 0.0
        %872 = vst.msk [vmem:[#allocation4 + $0x1a7] sm:$0x1] %vm858, 0.0
        %873 = vst.msk [vmem:[#allocation4 + $0x1c7] sm:$0x1] %vm858, 0.0
        %874 = vst.msk [vmem:[#allocation4 + $0x1e7] sm:$0x1] %vm858, 0.0
        %875 = vst.msk [vmem:[#allocation4 + $0x207] sm:$0x1] %vm858, 0.0
        %876 = vst.msk [vmem:[#allocation4 + $0x227] sm:$0x1] %vm858, 0.0
        %877 = vst.msk [vmem:[#allocation4 + $0x18] sm:$0x1] %vm858, 0.0
        %878 = vst.msk [vmem:[#allocation4 + $0x38] sm:$0x1] %vm858, 0.0
        %879 = vst.msk [vmem:[#allocation4 + $0x58] sm:$0x1] %vm858, 0.0
        %880 = vst.msk [vmem:[#allocation4 + $0x78] sm:$0x1] %vm858, 0.0
        %881 = vst.msk [vmem:[#allocation4 + $0x98] sm:$0x1] %vm858, 0.0
        %882 = vst.msk [vmem:[#allocation4 + $0xb8] sm:$0x1] %vm858, 0.0
        %883 = vst.msk [vmem:[#allocation4 + $0xd8] sm:$0x1] %vm858, 0.0
        %884 = vst.msk [vmem:[#allocation4 + $0xf8] sm:$0x1] %vm858, 0.0
        %885 = vst.msk [vmem:[#allocation4 + $0x118] sm:$0x1] %vm858, 0.0
        %886 = vst.msk [vmem:[#allocation4 + $0x138] sm:$0x1] %vm858, 0.0
        %887 = vst.msk [vmem:[#allocation4 + $0x158] sm:$0x1] %vm858, 0.0
        %888 = vst.msk [vmem:[#allocation4 + $0x178] sm:$0x1] %vm858, 0.0
        %889 = vst.msk [vmem:[#allocation4 + $0x198] sm:$0x1] %vm858, 0.0
        %890 = vst.msk [vmem:[#allocation4 + $0x1b8] sm:$0x1] %vm858, 0.0
        %891 = vst.msk [vmem:[#allocation4 + $0x1d8] sm:$0x1] %vm858, 0.0
        %892 = vst.msk [vmem:[#allocation4 + $0x1f8] sm:$0x1] %vm858, 0.0
        %893 = vst.msk [vmem:[#allocation4 + $0x218] sm:$0x1] %vm858, 0.0
        %894 = vst.msk [vmem:[#allocation4 + $0x238] sm:$0x1] %vm858, 0.0
        %vm895 = vcmask 523264
        %896 = vst.msk [vmem:[#allocation4 + $0x7] sm:$0xff] %vm895, 0.0
        %897 = vst.msk [vmem:[#allocation4 + $0xf] sm:$0xff] %vm895, 0.0
        %vm898 = vcmask 517120
        %899 = vst.msk [vmem:[#allocation4 + $0x17] sm:$0x3] %vm898, 0.0
        %s900 = scalar_lea.vmem [#allocation4], 544
        %901 = vst.msk [vmem:[%s900 + $0x7] sm:$0xff] %vm895, 0.0
        %902 = vst.msk [vmem:[%s900 + $0xf] sm:$0xff] %vm895, 0.0
        %903 = vst.msk [vmem:[%s900 + $0x17] sm:$0x3] %vm898, 0.0
        %s904 = scalar_lea.vmem [#allocation4], 32
        %905 = vst.msk [vmem:[%s904 + $0x8] sm:$0xff] %vm844, %v779
        %906 = vst.msk [vmem:[%s904 + $0x10] sm:$0xff] %vm844, %v780
        %907 = vst.msk [vmem:[%s904 + $0x28] sm:$0xff] %vm844, %v781
        %908 = vst.msk [vmem:[%s904 + $0x30] sm:$0xff] %vm844, %v782
        %909 = vst.msk [vmem:[%s904 + $0x48] sm:$0xff] %vm844, %v783
        %910 = vst.msk [vmem:[%s904 + $0x50] sm:$0xff] %vm844, %v784
        %911 = vst.msk [vmem:[%s904 + $0x68] sm:$0xff] %vm844, %v785
        %912 = vst.msk [vmem:[%s904 + $0x70] sm:$0xff] %vm844, %v786
        %913 = vst.msk [vmem:[%s904 + $0x88] sm:$0xff] %vm844, %v787
        %914 = vst.msk [vmem:[%s904 + $0x90] sm:$0xff] %vm844, %v788
        %915 = vst.msk [vmem:[%s904 + $0xa8] sm:$0xff] %vm844, %v789
        %916 = vst.msk [vmem:[%s904 + $0xb0] sm:$0xff] %vm844, %v790
        %917 = vst.msk [vmem:[%s904 + $0xc8] sm:$0xff] %vm844, %v791
        %918 = vst.msk [vmem:[%s904 + $0xd0] sm:$0xff] %vm844, %v792
        %919 = vst.msk [vmem:[%s904 + $0xe8] sm:$0xff] %vm844, %v793
        %920 = vst.msk [vmem:[%s904 + $0xf0] sm:$0xff] %vm844, %v794
        %921 = vst.msk [vmem:[%s904 + $0x108] sm:$0xff] %vm844, %v795
        %922 = vst.msk [vmem:[%s904 + $0x110] sm:$0xff] %vm844, %v796
        %923 = vst.msk [vmem:[%s904 + $0x128] sm:$0xff] %vm844, %v797
        %924 = vst.msk [vmem:[%s904 + $0x130] sm:$0xff] %vm844, %v798
        %925 = vst.msk [vmem:[%s904 + $0x148] sm:$0xff] %vm844, %v799
        %926 = vst.msk [vmem:[%s904 + $0x150] sm:$0xff] %vm844, %v800
        %927 = vst.msk [vmem:[%s904 + $0x168] sm:$0xff] %vm844, %v801
        %928 = vst.msk [vmem:[%s904 + $0x170] sm:$0xff] %vm844, %v802
        %929 = vst.msk [vmem:[%s904 + $0x188] sm:$0xff] %vm844, %v803
        %930 = vst.msk [vmem:[%s904 + $0x190] sm:$0xff] %vm844, %v804
        %931 = vst.msk [vmem:[%s904 + $0x1a8] sm:$0xff] %vm844, %v805
        %932 = vst.msk [vmem:[%s904 + $0x1b0] sm:$0xff] %vm844, %v806
        %933 = vst.msk [vmem:[%s904 + $0x1c8] sm:$0xff] %vm844, %v807
        %934 = vst.msk [vmem:[%s904 + $0x1d0] sm:$0xff] %vm844, %v808
        %935 = vst.msk [vmem:[%s904 + $0x1e8] sm:$0xff] %vm844, %v809
        %936 = vst.msk [vmem:[%s904 + $0x1f0] sm:$0xff] %vm844, %v810
        %969 = vrot.lane.b32.xlu0 %v779, 96
        %v970 = vpop.permute.xlu0 %969
        %971 = vrot.lane.b32.xlu0 %v780, 96
        %v972 = vpop.permute.xlu0 %971
        %973 = vrot.lane.b32.xlu0 %v781, 96
        %v974 = vpop.permute.xlu0 %973
        %975 = vrot.lane.b32.xlu0 %v782, 96
        %v976 = vpop.permute.xlu0 %975
        %977 = vrot.lane.b32.xlu0 %v783, 96
        %v978 = vpop.permute.xlu0 %977
        %979 = vrot.lane.b32.xlu0 %v784, 96
        %v980 = vpop.permute.xlu0 %979
        %981 = vrot.lane.b32.xlu0 %v785, 96
        %v982 = vpop.permute.xlu0 %981
        %983 = vrot.lane.b32.xlu0 %v786, 96
        %v984 = vpop.permute.xlu0 %983
        %985 = vrot.lane.b32.xlu0 %v787, 96
        %v986 = vpop.permute.xlu0 %985
        %987 = vrot.lane.b32.xlu0 %v788, 96
        %v988 = vpop.permute.xlu0 %987
        %989 = vrot.lane.b32.xlu0 %v789, 96
        %v990 = vpop.permute.xlu0 %989
        %991 = vrot.lane.b32.xlu0 %v790, 96
        %v992 = vpop.permute.xlu0 %991
        %993 = vrot.lane.b32.xlu0 %v791, 96
        %v994 = vpop.permute.xlu0 %993
        %995 = vrot.lane.b32.xlu0 %v792, 96
        %v996 = vpop.permute.xlu0 %995
        %997 = vrot.lane.b32.xlu0 %v793, 96
        %v998 = vpop.permute.xlu0 %997
        %999 = vrot.lane.b32.xlu0 %v794, 96
        %v1000 = vpop.permute.xlu0 %999
        %1001 = vrot.lane.b32.xlu0 %v795, 96
        %v1002 = vpop.permute.xlu0 %1001
        %1003 = vrot.lane.b32.xlu0 %v796, 96
        %v1004 = vpop.permute.xlu0 %1003
        %1005 = vrot.lane.b32.xlu0 %v797, 96
        %v1006 = vpop.permute.xlu0 %1005
        %1007 = vrot.lane.b32.xlu0 %v798, 96
        %v1008 = vpop.permute.xlu0 %1007
        %1009 = vrot.lane.b32.xlu0 %v799, 96
        %v1010 = vpop.permute.xlu0 %1009
        %1011 = vrot.lane.b32.xlu0 %v800, 96
        %v1012 = vpop.permute.xlu0 %1011
        %1013 = vrot.lane.b32.xlu0 %v801, 96
        %v1014 = vpop.permute.xlu0 %1013
        %1015 = vrot.lane.b32.xlu0 %v802, 96
        %v1016 = vpop.permute.xlu0 %1015
        %1017 = vrot.lane.b32.xlu0 %v803, 96
        %v1018 = vpop.permute.xlu0 %1017
        %1019 = vrot.lane.b32.xlu0 %v804, 96
        %v1020 = vpop.permute.xlu0 %1019
        %1021 = vrot.lane.b32.xlu0 %v805, 96
        %v1022 = vpop.permute.xlu0 %1021
        %1023 = vrot.lane.b32.xlu0 %v806, 96
        %v1024 = vpop.permute.xlu0 %1023
        %1025 = vrot.lane.b32.xlu0 %v807, 96
        %v1026 = vpop.permute.xlu0 %1025
        %1027 = vrot.lane.b32.xlu0 %v808, 96
        %v1028 = vpop.permute.xlu0 %1027
        %1029 = vrot.lane.b32.xlu0 %v809, 96
        %v1030 = vpop.permute.xlu0 %1029
        %1031 = vrot.lane.b32.xlu0 %v810, 96
        %v1032 = vpop.permute.xlu0 %1031
        %1065 = vst.msk [vmem:[#allocation2 + $0x8] sm:$0xff] %vm844, %v970
        %1066 = vst.msk [vmem:[#allocation2 + $0x10] sm:$0xff] %vm844, %v972
        %1067 = vst.msk [vmem:[#allocation2 + $0x28] sm:$0xff] %vm844, %v974
        %1068 = vst.msk [vmem:[#allocation2 + $0x30] sm:$0xff] %vm844, %v976
        %1069 = vst.msk [vmem:[#allocation2 + $0x48] sm:$0xff] %vm844, %v978
        %1070 = vst.msk [vmem:[#allocation2 + $0x50] sm:$0xff] %vm844, %v980
        %1071 = vst.msk [vmem:[#allocation2 + $0x68] sm:$0xff] %vm844, %v982
        %1072 = vst.msk [vmem:[#allocation2 + $0x70] sm:$0xff] %vm844, %v984
        %1073 = vst.msk [vmem:[#allocation2 + $0x88] sm:$0xff] %vm844, %v986
        %1074 = vst.msk [vmem:[#allocation2 + $0x90] sm:$0xff] %vm844, %v988
        %1075 = vst.msk [vmem:[#allocation2 + $0xa8] sm:$0xff] %vm844, %v990
        %1076 = vst.msk [vmem:[#allocation2 + $0xb0] sm:$0xff] %vm844, %v992
        %1077 = vst.msk [vmem:[#allocation2 + $0xc8] sm:$0xff] %vm844, %v994
        %1078 = vst.msk [vmem:[#allocation2 + $0xd0] sm:$0xff] %vm844, %v996
        %1079 = vst.msk [vmem:[#allocation2 + $0xe8] sm:$0xff] %vm844, %v998
        %1080 = vst.msk [vmem:[#allocation2 + $0xf0] sm:$0xff] %vm844, %v1000
        %1081 = vst.msk [vmem:[#allocation2 + $0x108] sm:$0xff] %vm844, %v1002
        %1082 = vst.msk [vmem:[#allocation2 + $0x110] sm:$0xff] %vm844, %v1004
        %1083 = vst.msk [vmem:[#allocation2 + $0x128] sm:$0xff] %vm844, %v1006
        %1084 = vst.msk [vmem:[#allocation2 + $0x130] sm:$0xff] %vm844, %v1008
        %1085 = vst.msk [vmem:[#allocation2 + $0x148] sm:$0xff] %vm844, %v1010
        %1086 = vst.msk [vmem:[#allocation2 + $0x150] sm:$0xff] %vm844, %v1012
        %1087 = vst.msk [vmem:[#allocation2 + $0x168] sm:$0xff] %vm844, %v1014
        %1088 = vst.msk [vmem:[#allocation2 + $0x170] sm:$0xff] %vm844, %v1016
        %1089 = vst.msk [vmem:[#allocation2 + $0x188] sm:$0xff] %vm844, %v1018
        %1090 = vst.msk [vmem:[#allocation2 + $0x190] sm:$0xff] %vm844, %v1020
        %1091 = vst.msk [vmem:[#allocation2 + $0x1a8] sm:$0xff] %vm844, %v1022
        %1092 = vst.msk [vmem:[#allocation2 + $0x1b0] sm:$0xff] %vm844, %v1024
        %1093 = vst.msk [vmem:[#allocation2 + $0x1c8] sm:$0xff] %vm844, %v1026
        %1094 = vst.msk [vmem:[#allocation2 + $0x1d0] sm:$0xff] %vm844, %v1028
        %1095 = vst.msk [vmem:[#allocation2 + $0x1e8] sm:$0xff] %vm844, %v1030
        %1096 = vst.msk [vmem:[#allocation2 + $0x1f0] sm:$0xff] %vm844, %v1032
        %v1097 = vld [vmem:[#allocation2 + $0x5] sm:$0xff]
        %v1098 = vld [vmem:[#allocation2 + $0xd] sm:$0xff]
        %v1099 = vld [vmem:[#allocation2 + $0x25] sm:$0xff]
        %v1100 = vld [vmem:[#allocation2 + $0x2d] sm:$0xff]
        %v1101 = vld [vmem:[#allocation2 + $0x45] sm:$0xff]
        %v1102 = vld [vmem:[#allocation2 + $0x4d] sm:$0xff]
        %v1103 = vld [vmem:[#allocation2 + $0x65] sm:$0xff]
        %v1104 = vld [vmem:[#allocation2 + $0x6d] sm:$0xff]
        %v1105 = vld [vmem:[#allocation2 + $0x85] sm:$0xff]
        %v1106 = vld [vmem:[#allocation2 + $0x8d] sm:$0xff]
        %v1107 = vld [vmem:[#allocation2 + $0xa5] sm:$0xff]
        %v1108 = vld [vmem:[#allocation2 + $0xad] sm:$0xff]
        %v1109 = vld [vmem:[#allocation2 + $0xc5] sm:$0xff]
        %v1110 = vld [vmem:[#allocation2 + $0xcd] sm:$0xff]
        %v1111 = vld [vmem:[#allocation2 + $0xe5] sm:$0xff]
        %v1112 = vld [vmem:[#allocation2 + $0xed] sm:$0xff]
        %v1113 = vld [vmem:[#allocation2 + $0x105] sm:$0xff]
        %v1114 = vld [vmem:[#allocation2 + $0x10d] sm:$0xff]
        %v1115 = vld [vmem:[#allocation2 + $0x125] sm:$0xff]
        %v1116 = vld [vmem:[#allocation2 + $0x12d] sm:$0xff]
        %v1117 = vld [vmem:[#allocation2 + $0x145] sm:$0xff]
        %v1118 = vld [vmem:[#allocation2 + $0x14d] sm:$0xff]
        %v1119 = vld [vmem:[#allocation2 + $0x165] sm:$0xff]
        %v1120 = vld [vmem:[#allocation2 + $0x16d] sm:$0xff]
        %v1121 = vld [vmem:[#allocation2 + $0x185] sm:$0xff]
        %v1122 = vld [vmem:[#allocation2 + $0x18d] sm:$0xff]
        %v1123 = vld [vmem:[#allocation2 + $0x1a5] sm:$0xff]
        %v1124 = vld [vmem:[#allocation2 + $0x1ad] sm:$0xff]
        %v1125 = vld [vmem:[#allocation2 + $0x1c5] sm:$0xff]
        %v1126 = vld [vmem:[#allocation2 + $0x1cd] sm:$0xff]
        %v1127 = vld [vmem:[#allocation2 + $0x1e5] sm:$0xff]
        %v1128 = vld [vmem:[#allocation2 + $0x1ed] sm:$0xff]
        %v1129 = vpack.c.bf16 %v1098, %v1097
        %v1130 = vpack.c.bf16 %v1100, %v1099
        %v1131 = vpack.c.bf16 %v1102, %v1101
        %v1132 = vpack.c.bf16 %v1104, %v1103
        %v1133 = vpack.c.bf16 %v1106, %v1105
        %v1134 = vpack.c.bf16 %v1108, %v1107
        %v1135 = vpack.c.bf16 %v1110, %v1109
        %v1136 = vpack.c.bf16 %v1112, %v1111
        %v1137 = vpack.c.bf16 %v1114, %v1113
        %v1138 = vpack.c.bf16 %v1116, %v1115
        %v1139 = vpack.c.bf16 %v1118, %v1117
        %v1140 = vpack.c.bf16 %v1120, %v1119
        %v1141 = vpack.c.bf16 %v1122, %v1121
        %v1142 = vpack.c.bf16 %v1124, %v1123
        %v1143 = vpack.c.bf16 %v1126, %v1125
        %v1144 = vpack.c.bf16 %v1128, %v1127
        %v1145 = vld [vmem:[#allocation11] sm:$0xf]
        %v1146 = vld [vmem:[#allocation11 + $0x4] sm:$0xf]
        %v1147 = vld [vmem:[#allocation11 + $0x8] sm:$0xf]
        %v1148 = vld [vmem:[#allocation11 + $0xc] sm:$0xf]
        %v1149 = vld [vmem:[#allocation2 + $0x6] sm:$0xff]
        %v1150 = vld [vmem:[#allocation2 + $0xe] sm:$0xff]
        %v1151 = vld [vmem:[#allocation2 + $0x26] sm:$0xff]
        %v1152 = vld [vmem:[#allocation2 + $0x2e] sm:$0xff]
        %v1153 = vld [vmem:[#allocation2 + $0x46] sm:$0xff]
        %v1154 = vld [vmem:[#allocation2 + $0x4e] sm:$0xff]
        %v1155 = vld [vmem:[#allocation2 + $0x66] sm:$0xff]
        %v1156 = vld [vmem:[#allocation2 + $0x6e] sm:$0xff]
        %v1157 = vld [vmem:[#allocation2 + $0x86] sm:$0xff]
        %v1158 = vld [vmem:[#allocation2 + $0x8e] sm:$0xff]
        %v1159 = vld [vmem:[#allocation2 + $0xa6] sm:$0xff]
        %v1160 = vld [vmem:[#allocation2 + $0xae] sm:$0xff]
        %v1161 = vld [vmem:[#allocation2 + $0xc6] sm:$0xff]
        %v1162 = vld [vmem:[#allocation2 + $0xce] sm:$0xff]
        %v1163 = vld [vmem:[#allocation2 + $0xe6] sm:$0xff]
        %v1164 = vld [vmem:[#allocation2 + $0xee] sm:$0xff]
        %v1165 = vld [vmem:[#allocation2 + $0x106] sm:$0xff]
        %v1166 = vld [vmem:[#allocation2 + $0x10e] sm:$0xff]
        %v1167 = vld [vmem:[#allocation2 + $0x126] sm:$0xff]
        %v1168 = vld [vmem:[#allocation2 + $0x12e] sm:$0xff]
        %v1169 = vld [vmem:[#allocation2 + $0x146] sm:$0xff]
        %v1170 = vld [vmem:[#allocation2 + $0x14e] sm:$0xff]
        %v1171 = vld [vmem:[#allocation2 + $0x166] sm:$0xff]
        %v1172 = vld [vmem:[#allocation2 + $0x16e] sm:$0xff]
        %v1173 = vld [vmem:[#allocation2 + $0x186] sm:$0xff]
        %v1174 = vld [vmem:[#allocation2 + $0x18e] sm:$0xff]
        %v1175 = vld [vmem:[#allocation2 + $0x1a6] sm:$0xff]
        %v1176 = vld [vmem:[#allocation2 + $0x1ae] sm:$0xff]
        %v1177 = vld [vmem:[#allocation2 + $0x1c6] sm:$0xff]
        %v1178 = vld [vmem:[#allocation2 + $0x1ce] sm:$0xff]
        %v1179 = vld [vmem:[#allocation2 + $0x1e6] sm:$0xff]
        %v1180 = vld [vmem:[#allocation2 + $0x1ee] sm:$0xff]
        %v1181 = vpack.c.bf16 %v1150, %v1149
        %v1182 = vpack.c.bf16 %v1152, %v1151
        %v1183 = vpack.c.bf16 %v1154, %v1153
        %v1184 = vpack.c.bf16 %v1156, %v1155
        %v1185 = vpack.c.bf16 %v1158, %v1157
        %v1186 = vpack.c.bf16 %v1160, %v1159
        %v1187 = vpack.c.bf16 %v1162, %v1161
        %v1188 = vpack.c.bf16 %v1164, %v1163
        %v1189 = vpack.c.bf16 %v1166, %v1165
        %v1190 = vpack.c.bf16 %v1168, %v1167
        %v1191 = vpack.c.bf16 %v1170, %v1169
        %v1192 = vpack.c.bf16 %v1172, %v1171
        %v1193 = vpack.c.bf16 %v1174, %v1173
        %v1194 = vpack.c.bf16 %v1176, %v1175
        %v1195 = vpack.c.bf16 %v1178, %v1177
        %v1196 = vpack.c.bf16 %v1180, %v1179
        %s1197 = scalar_lea.vmem [#allocation11], 16
        %v1198 = vld [vmem:[%s1197] sm:$0xf]
        %v1199 = vld [vmem:[%s1197 + $0x4] sm:$0xf]
        %v1200 = vld [vmem:[%s1197 + $0x8] sm:$0xf]
        %v1201 = vld [vmem:[%s1197 + $0xc] sm:$0xf]
        %v1206 = vunpack.c.l.b16 %v1198
        %v1207 = vunpack.c.l.b16 %v1199
        %v1208 = vunpack.c.l.b16 %v1200
        %v1209 = vunpack.c.l.b16 %v1201
        %v1210 = vpack.c.b16 %v1207, %v1206
        %v1211 = vpack.c.b16 %v1209, %v1208
        %v1215 = vsel %vm844, %v1181, 0
        %v1218 = vsel %vm844, %v1182, 0
        %v1221 = vsel %vm844, %v1183, 0
        %v1224 = vsel %vm844, %v1184, 0
        %v1227 = vsel %vm844, %v1185, 0
        %v1230 = vsel %vm844, %v1186, 0
        %v1233 = vsel %vm844, %v1187, 0
        %v1236 = vsel %vm844, %v1188, 0
        %v1239 = vsel %vm844, %v1189, 0
        %v1242 = vsel %vm844, %v1190, 0
        %v1245 = vsel %vm844, %v1191, 0
        %v1248 = vsel %vm844, %v1192, 0
        %v1251 = vsel %vm844, %v1193, 0
        %v1254 = vsel %vm844, %v1194, 0
        %v1257 = vsel %vm844, %v1195, 0
        %v1260 = vsel %vm844, %v1196, 0
        %1262 = vmatprep.subr.bf16.mxu0 0
        %1263 = vmatpush1.bf16.msra.mxu0 %v1210
        %1264 = vmatprep.subr.bf16.mxu0 0
        %1265 = vmatpush1.bf16.msra.mxu0 %v1211
        %1266 = vmatprep.subr.bf16.mxu0 0
        %1267 = vmatpush1.bf16.msra.mxu0 0
        %1268 = vmatprep.subr.bf16.mxu0 0
        %1269 = vmatpush1.bf16.msra.mxu0 0
        %1270 = vmatprep.subr.bf16.mxu0 0
        %1271 = vmatpush1.bf16.msra.mxu0 0
        %1272 = vmatprep.subr.bf16.mxu0 0
        %1273 = vmatpush1.bf16.msra.mxu0 0
        %1274 = vmatprep.subr.bf16.mxu0 0
        %1275 = vmatpush1.bf16.msra.mxu0 0
        %1276 = vmatprep.subr.bf16.mxu0 0
        %1277 = vmatpush1.bf16.msra.mxu0 0
        %1278 = vmatprep.subr.bf16.mxu0 0
        %1279 = vmatpush1.bf16.msra.mxu0 0
        %1280 = vmatprep.subr.bf16.mxu0 0
        %1281 = vmatpush1.bf16.msra.mxu0 0
        %1282 = vmatprep.subr.bf16.mxu0 0
        %1283 = vmatpush1.bf16.msra.mxu0 0
        %1284 = vmatprep.subr.bf16.mxu0 0
        %1285 = vmatpush1.bf16.msra.mxu0 0
        %1286 = vmatprep.subr.bf16.mxu0 0
        %1287 = vmatpush1.bf16.msra.mxu0 0
        %1288 = vmatprep.subr.bf16.mxu0 0
        %1289 = vmatpush1.bf16.msra.mxu0 0
        %1290 = vmatprep.subr.bf16.mxu0 0
        %1291 = vmatpush1.bf16.msra.mxu0 0
        %1292 = vmatprep.subr.bf16.mxu0 0
        %1293 = vmatpush1.bf16.msra.mxu0 0
        %1294 = vmatprep.mubr.bf16.mxu0 0
        %1295 = vmatmul.mubr.bf16.gmra.mrb[0].mxu0 %v1215
        %v1296 = vpop.f32.mrb[0].mxu0
        %v1297 = vadd.f32 0.0, %v1296
        %v1298 = vpop.f32.mrb[0].mxu0
        %v1299 = vpop.f32.mrb[0].mxu0
        %v1300 = vadd.f32 0.0, %v1299
        %v1301 = vpop.f32.mrb[0].mxu0
        %1302 = vmatprep.mubr.bf16.mxu0 0
        %1303 = vmatmul.mubr.bf16.gmra.mrb[0].mxu0 %v1218
        %v1304 = vpop.f32.mrb[0].mxu0
        %v1305 = vadd.f32 0.0, %v1304
        %v1306 = vpop.f32.mrb[0].mxu0
        %v1307 = vpop.f32.mrb[0].mxu0
        %v1308 = vadd.f32 0.0, %v1307
        %v1309 = vpop.f32.mrb[0].mxu0
        %1310 = vmatprep.mubr.bf16.mxu0 0
        %1311 = vmatmul.mubr.bf16.gmra.mrb[0].mxu0 %v1221
        %v1312 = vpop.f32.mrb[0].mxu0
        %v1313 = vadd.f32 0.0, %v1312
        %v1314 = vpop.f32.mrb[0].mxu0
        %v1315 = vpop.f32.mrb[0].mxu0
        %v1316 = vadd.f32 0.0, %v1315
        %v1317 = vpop.f32.mrb[0].mxu0
        %1318 = vmatprep.mubr.bf16.mxu0 0
        %1319 = vmatmul.mubr.bf16.gmra.mrb[0].mxu0 %v1224
        %v1320 = vpop.f32.mrb[0].mxu0
        %v1321 = vadd.f32 0.0, %v1320
        %v1322 = vpop.f32.mrb[0].mxu0
        %v1323 = vpop.f32.mrb[0].mxu0
        %v1324 = vadd.f32 0.0, %v1323
        %v1325 = vpop.f32.mrb[0].mxu0
        %1326 = vmatprep.mubr.bf16.mxu0 0
        %1327 = vmatmul.mubr.bf16.gmra.mrb[0].mxu0 %v1227
        %v1328 = vpop.f32.mrb[0].mxu0
        %v1329 = vadd.f32 0.0, %v1328
        %v1330 = vpop.f32.mrb[0].mxu0
        %v1331 = vpop.f32.mrb[0].mxu0
        %v1332 = vadd.f32 0.0, %v1331
        %v1333 = vpop.f32.mrb[0].mxu0
        %1334 = vmatprep.mubr.bf16.mxu0 0
        %1335 = vmatmul.mubr.bf16.gmra.mrb[0].mxu0 %v1230
        %v1336 = vpop.f32.mrb[0].mxu0
        %v1337 = vadd.f32 0.0, %v1336
        %v1338 = vpop.f32.mrb[0].mxu0
        %v1339 = vpop.f32.mrb[0].mxu0
        %v1340 = vadd.f32 0.0, %v1339
        %v1341 = vpop.f32.mrb[0].mxu0
        %1342 = vmatprep.mubr.bf16.mxu0 0
        %1343 = vmatmul.mubr.bf16.gmra.mrb[0].mxu0 %v1233
        %v1344 = vpop.f32.mrb[0].mxu0
        %v1345 = vadd.f32 0.0, %v1344
        %v1346 = vpop.f32.mrb[0].mxu0
        %v1347 = vpop.f32.mrb[0].mxu0
        %v1348 = vadd.f32 0.0, %v1347
        %v1349 = vpop.f32.mrb[0].mxu0
        %1350 = vmatprep.mubr.bf16.mxu0 0
        %1351 = vmatmul.mubr.bf16.gmra.mrb[0].mxu0 %v1236
        %v1352 = vpop.f32.mrb[0].mxu0
        %v1353 = vadd.f32 0.0, %v1352
        %v1354 = vpop.f32.mrb[0].mxu0
        %v1355 = vpop.f32.mrb[0].mxu0
        %v1356 = vadd.f32 0.0, %v1355
        %v1357 = vpop.f32.mrb[0].mxu0
        %1358 = vmatprep.mubr.bf16.mxu0 0
        %1359 = vmatmul.mubr.bf16.gmra.mrb[0].mxu0 %v1239
        %v1360 = vpop.f32.mrb[0].mxu0
        %v1361 = vadd.f32 0.0, %v1360
        %v1362 = vpop.f32.mrb[0].mxu0
        %v1363 = vpop.f32.mrb[0].mxu0
        %v1364 = vadd.f32 0.0, %v1363
        %v1365 = vpop.f32.mrb[0].mxu0
        %1366 = vmatprep.mubr.bf16.mxu0 0
        %1367 = vmatmul.mubr.bf16.gmra.mrb[0].mxu0 %v1242
        %v1368 = vpop.f32.mrb[0].mxu0
        %v1369 = vadd.f32 0.0, %v1368
        %v1370 = vpop.f32.mrb[0].mxu0
        %v1371 = vpop.f32.mrb[0].mxu0
        %v1372 = vadd.f32 0.0, %v1371
        %v1373 = vpop.f32.mrb[0].mxu0
        %1374 = vmatprep.mubr.bf16.mxu0 0
        %1375 = vmatmul.mubr.bf16.gmra.mrb[0].mxu0 %v1245
        %v1376 = vpop.f32.mrb[0].mxu0
        %v1377 = vadd.f32 0.0, %v1376
        %v1378 = vpop.f32.mrb[0].mxu0
        %v1379 = vpop.f32.mrb[0].mxu0
        %v1380 = vadd.f32 0.0, %v1379
        %v1381 = vpop.f32.mrb[0].mxu0
        %1382 = vmatprep.mubr.bf16.mxu0 0
        %1383 = vmatmul.mubr.bf16.gmra.mrb[0].mxu0 %v1248
        %v1384 = vpop.f32.mrb[0].mxu0
        %v1385 = vadd.f32 0.0, %v1384
        %v1386 = vpop.f32.mrb[0].mxu0
        %v1387 = vpop.f32.mrb[0].mxu0
        %v1388 = vadd.f32 0.0, %v1387
        %v1389 = vpop.f32.mrb[0].mxu0
        %1390 = vmatprep.mubr.bf16.mxu0 0
        %1391 = vmatmul.mubr.bf16.gmra.mrb[0].mxu0 %v1251
        %v1392 = vpop.f32.mrb[0].mxu0
        %v1393 = vadd.f32 0.0, %v1392
        %v1394 = vpop.f32.mrb[0].mxu0
        %v1395 = vpop.f32.mrb[0].mxu0
        %v1396 = vadd.f32 0.0, %v1395
        %v1397 = vpop.f32.mrb[0].mxu0
        %1398 = vmatprep.mubr.bf16.mxu0 0
        %1399 = vmatmul.mubr.bf16.gmra.mrb[0].mxu0 %v1254
        %v1400 = vpop.f32.mrb[0].mxu0
        %v1401 = vadd.f32 0.0, %v1400
        %v1402 = vpop.f32.mrb[0].mxu0
        %v1403 = vpop.f32.mrb[0].mxu0
        %v1404 = vadd.f32 0.0, %v1403
        %v1405 = vpop.f32.mrb[0].mxu0
        %1406 = vmatprep.mubr.bf16.mxu0 0
        %1407 = vmatmul.mubr.bf16.gmra.mrb[0].mxu0 %v1257
        %v1408 = vpop.f32.mrb[0].mxu0
        %v1409 = vadd.f32 0.0, %v1408
        %v1410 = vpop.f32.mrb[0].mxu0
        %v1411 = vpop.f32.mrb[0].mxu0
        %v1412 = vadd.f32 0.0, %v1411
        %v1413 = vpop.f32.mrb[0].mxu0
        %1414 = vmatprep.mubr.bf16.mxu0 0
        %1415 = vmatmul.mubr.bf16.gmra.mrb[0].mxu0 %v1260
        %v1416 = vpop.f32.mrb[0].mxu0
        %v1417 = vadd.f32 0.0, %v1416
        %v1418 = vpop.f32.mrb[0].mxu0
        %v1419 = vpop.f32.mrb[0].mxu0
        %v1420 = vadd.f32 0.0, %v1419
        %v1421 = vpop.f32.mrb[0].mxu0
        %1422 = vdwg.mxu0
        %v1427 = vunpack.c.l.b16 %v1145
        %v1428 = vunpack.c.l.b16 %v1146
        %v1429 = vunpack.c.l.b16 %v1147
        %v1430 = vunpack.c.l.b16 %v1148
        %v1431 = vpack.c.b16 %v1428, %v1427
        %v1432 = vpack.c.b16 %v1430, %v1429
        %v1436 = vsel %vm844, %v1129, 0
        %v1439 = vsel %vm844, %v1130, 0
        %v1442 = vsel %vm844, %v1131, 0
        %v1445 = vsel %vm844, %v1132, 0
        %v1448 = vsel %vm844, %v1133, 0
        %v1451 = vsel %vm844, %v1134, 0
        %v1454 = vsel %vm844, %v1135, 0
        %v1457 = vsel %vm844, %v1136, 0
        %v1460 = vsel %vm844, %v1137, 0
        %v1463 = vsel %vm844, %v1138, 0
        %v1466 = vsel %vm844, %v1139, 0
        %v1469 = vsel %vm844, %v1140, 0
        %v1472 = vsel %vm844, %v1141, 0
        %v1475 = vsel %vm844, %v1142, 0
        %v1478 = vsel %vm844, %v1143, 0
        %v1481 = vsel %vm844, %v1144, 0
        %1483 = vmatprep.subr.bf16.mxu0 0
        %1484 = vmatpush1.bf16.msra.mxu0 %v1431
        %1485 = vmatprep.subr.bf16.mxu0 0
        %1486 = vmatpush1.bf16.msra.mxu0 %v1432
        %1487 = vmatprep.subr.bf16.mxu0 0
        %1488 = vmatpush1.bf16.msra.mxu0 0
        %1489 = vmatprep.subr.bf16.mxu0 0
        %1490 = vmatpush1.bf16.msra.mxu0 0
        %1491 = vmatprep.subr.bf16.mxu0 0
        %1492 = vmatpush1.bf16.msra.mxu0 0
        %1493 = vmatprep.subr.bf16.mxu0 0
        %1494 = vmatpush1.bf16.msra.mxu0 0
        %1495 = vmatprep.subr.bf16.mxu0 0
        %1496 = vmatpush1.bf16.msra.mxu0 0
        %1497 = vmatprep.subr.bf16.mxu0 0
        %1498 = vmatpush1.bf16.msra.mxu0 0
        %1499 = vmatprep.subr.bf16.mxu0 0
        %1500 = vmatpush1.bf16.msra.mxu0 0
        %1501 = vmatprep.subr.bf16.mxu0 0
        %1502 = vmatpush1.bf16.msra.mxu0 0
        %1503 = vmatprep.subr.bf16.mxu0 0
        %1504 = vmatpush1.bf16.msra.mxu0 0
        %1505 = vmatprep.subr.bf16.mxu0 0
        %1506 = vmatpush1.bf16.msra.mxu0 0
        %1507 = vmatprep.subr.bf16.mxu0 0
        %1508 = vmatpush1.bf16.msra.mxu0 0
        %1509 = vmatprep.subr.bf16.mxu0 0
        %1510 = vmatpush1.bf16.msra.mxu0 0
        %1511 = vmatprep.subr.bf16.mxu0 0
        %1512 = vmatpush1.bf16.msra.mxu0 0
        %1513 = vmatprep.subr.bf16.mxu0 0
        %1514 = vmatpush1.bf16.msra.mxu0 0
        %1515 = vmatprep.mubr.bf16.mxu0 0
        %1516 = vmatmul.mubr.bf16.gmra.mrb[0].mxu0 %v1436
        %v1517 = vpop.f32.mrb[0].mxu0
        %v1518 = vadd.f32 %v1297, %v1517
        %v1519 = vpop.f32.mrb[0].mxu0
        %v1520 = vpop.f32.mrb[0].mxu0
        %v1521 = vadd.f32 %v1300, %v1520
        %v1522 = vpop.f32.mrb[0].mxu0
        %1523 = vmatprep.mubr.bf16.mxu0 0
        %1524 = vmatmul.mubr.bf16.gmra.mrb[0].mxu0 %v1439
        %v1525 = vpop.f32.mrb[0].mxu0
        %v1526 = vadd.f32 %v1305, %v1525
        %v1527 = vpop.f32.mrb[0].mxu0
        %v1528 = vpop.f32.mrb[0].mxu0
        %v1529 = vadd.f32 %v1308, %v1528
        %v1530 = vpop.f32.mrb[0].mxu0
        %1531 = vmatprep.mubr.bf16.mxu0 0
        %1532 = vmatmul.mubr.bf16.gmra.mrb[0].mxu0 %v1442
        %v1533 = vpop.f32.mrb[0].mxu0
        %v1534 = vadd.f32 %v1313, %v1533
        %v1535 = vpop.f32.mrb[0].mxu0
        %v1536 = vpop.f32.mrb[0].mxu0
        %v1537 = vadd.f32 %v1316, %v1536
        %v1538 = vpop.f32.mrb[0].mxu0
        %1539 = vmatprep.mubr.bf16.mxu0 0
        %1540 = vmatmul.mubr.bf16.gmra.mrb[0].mxu0 %v1445
        %v1541 = vpop.f32.mrb[0].mxu0
        %v1542 = vadd.f32 %v1321, %v1541
        %v1543 = vpop.f32.mrb[0].mxu0
        %v1544 = vpop.f32.mrb[0].mxu0
        %v1545 = vadd.f32 %v1324, %v1544
        %v1546 = vpop.f32.mrb[0].mxu0
        %1547 = vmatprep.mubr.bf16.mxu0 0
        %1548 = vmatmul.mubr.bf16.gmra.mrb[0].mxu0 %v1448
        %v1549 = vpop.f32.mrb[0].mxu0
        %v1550 = vadd.f32 %v1329, %v1549
        %v1551 = vpop.f32.mrb[0].mxu0
        %v1552 = vpop.f32.mrb[0].mxu0
        %v1553 = vadd.f32 %v1332, %v1552
        %v1554 = vpop.f32.mrb[0].mxu0
        %1555 = vmatprep.mubr.bf16.mxu0 0
        %1556 = vmatmul.mubr.bf16.gmra.mrb[0].mxu0 %v1451
        %v1557 = vpop.f32.mrb[0].mxu0
        %v1558 = vadd.f32 %v1337, %v1557
        %v1559 = vpop.f32.mrb[0].mxu0
        %v1560 = vpop.f32.mrb[0].mxu0
        %v1561 = vadd.f32 %v1340, %v1560
        %v1562 = vpop.f32.mrb[0].mxu0
        %1563 = vmatprep.mubr.bf16.mxu0 0
        %1564 = vmatmul.mubr.bf16.gmra.mrb[0].mxu0 %v1454
        %v1565 = vpop.f32.mrb[0].mxu0
        %v1566 = vadd.f32 %v1345, %v1565
        %v1567 = vpop.f32.mrb[0].mxu0
        %v1568 = vpop.f32.mrb[0].mxu0
        %v1569 = vadd.f32 %v1348, %v1568
        %v1570 = vpop.f32.mrb[0].mxu0
        %1571 = vmatprep.mubr.bf16.mxu0 0
        %1572 = vmatmul.mubr.bf16.gmra.mrb[0].mxu0 %v1457
        %v1573 = vpop.f32.mrb[0].mxu0
        %v1574 = vadd.f32 %v1353, %v1573
        %v1575 = vpop.f32.mrb[0].mxu0
        %v1576 = vpop.f32.mrb[0].mxu0
        %v1577 = vadd.f32 %v1356, %v1576
        %v1578 = vpop.f32.mrb[0].mxu0
        %1579 = vmatprep.mubr.bf16.mxu0 0
        %1580 = vmatmul.mubr.bf16.gmra.mrb[0].mxu0 %v1460
        %v1581 = vpop.f32.mrb[0].mxu0
        %v1582 = vadd.f32 %v1361, %v1581
        %v1583 = vpop.f32.mrb[0].mxu0
        %v1584 = vpop.f32.mrb[0].mxu0
        %v1585 = vadd.f32 %v1364, %v1584
        %v1586 = vpop.f32.mrb[0].mxu0
        %1587 = vmatprep.mubr.bf16.mxu0 0
        %1588 = vmatmul.mubr.bf16.gmra.mrb[0].mxu0 %v1463
        %v1589 = vpop.f32.mrb[0].mxu0
        %v1590 = vadd.f32 %v1369, %v1589
        %v1591 = vpop.f32.mrb[0].mxu0
        %v1592 = vpop.f32.mrb[0].mxu0
        %v1593 = vadd.f32 %v1372, %v1592
        %v1594 = vpop.f32.mrb[0].mxu0
        %1595 = vmatprep.mubr.bf16.mxu0 0
        %1596 = vmatmul.mubr.bf16.gmra.mrb[0].mxu0 %v1466
        %v1597 = vpop.f32.mrb[0].mxu0
        %v1598 = vadd.f32 %v1377, %v1597
        %v1599 = vpop.f32.mrb[0].mxu0
        %v1600 = vpop.f32.mrb[0].mxu0
        %v1601 = vadd.f32 %v1380, %v1600
        %v1602 = vpop.f32.mrb[0].mxu0
        %1603 = vmatprep.mubr.bf16.mxu0 0
        %1604 = vmatmul.mubr.bf16.gmra.mrb[0].mxu0 %v1469
        %v1605 = vpop.f32.mrb[0].mxu0
        %v1606 = vadd.f32 %v1385, %v1605
        %v1607 = vpop.f32.mrb[0].mxu0
        %v1608 = vpop.f32.mrb[0].mxu0
        %v1609 = vadd.f32 %v1388, %v1608
        %v1610 = vpop.f32.mrb[0].mxu0
        %1611 = vmatprep.mubr.bf16.mxu0 0
        %1612 = vmatmul.mubr.bf16.gmra.mrb[0].mxu0 %v1472
        %v1613 = vpop.f32.mrb[0].mxu0
        %v1614 = vadd.f32 %v1393, %v1613
        %v1615 = vpop.f32.mrb[0].mxu0
        %v1616 = vpop.f32.mrb[0].mxu0
        %v1617 = vadd.f32 %v1396, %v1616
        %v1618 = vpop.f32.mrb[0].mxu0
        %1619 = vmatprep.mubr.bf16.mxu0 0
        %1620 = vmatmul.mubr.bf16.gmra.mrb[0].mxu0 %v1475
        %v1621 = vpop.f32.mrb[0].mxu0
        %v1622 = vadd.f32 %v1401, %v1621
        %v1623 = vpop.f32.mrb[0].mxu0
        %v1624 = vpop.f32.mrb[0].mxu0
        %v1625 = vadd.f32 %v1404, %v1624
        %v1626 = vpop.f32.mrb[0].mxu0
        %1627 = vmatprep.mubr.bf16.mxu0 0
        %1628 = vmatmul.mubr.bf16.gmra.mrb[0].mxu0 %v1478
        %v1629 = vpop.f32.mrb[0].mxu0
        %v1630 = vadd.f32 %v1409, %v1629
        %v1631 = vpop.f32.mrb[0].mxu0
        %v1632 = vpop.f32.mrb[0].mxu0
        %v1633 = vadd.f32 %v1412, %v1632
        %v1634 = vpop.f32.mrb[0].mxu0
        %1635 = vmatprep.mubr.bf16.mxu0 0
        %1636 = vmatmul.mubr.bf16.gmra.mrb[0].mxu0 %v1481
        %v1637 = vpop.f32.mrb[0].mxu0
        %v1638 = vadd.f32 %v1417, %v1637
        %v1639 = vpop.f32.mrb[0].mxu0
        %v1640 = vpop.f32.mrb[0].mxu0
        %v1641 = vadd.f32 %v1420, %v1640
        %v1642 = vpop.f32.mrb[0].mxu0
        %1643 = vdwg.mxu0
        %v1644 = vld [vmem:[#allocation2 + $0x7] sm:$0xff]
        %v1645 = vld [vmem:[#allocation2 + $0xf] sm:$0xff]
        %v1646 = vld [vmem:[#allocation2 + $0x27] sm:$0xff]
        %v1647 = vld [vmem:[#allocation2 + $0x2f] sm:$0xff]
        %v1648 = vld [vmem:[#allocation2 + $0x47] sm:$0xff]
        %v1649 = vld [vmem:[#allocation2 + $0x4f] sm:$0xff]
        %v1650 = vld [vmem:[#allocation2 + $0x67] sm:$0xff]
        %v1651 = vld [vmem:[#allocation2 + $0x6f] sm:$0xff]
        %v1652 = vld [vmem:[#allocation2 + $0x87] sm:$0xff]
        %v1653 = vld [vmem:[#allocation2 + $0x8f] sm:$0xff]
        %v1654 = vld [vmem:[#allocation2 + $0xa7] sm:$0xff]
        %v1655 = vld [vmem:[#allocation2 + $0xaf] sm:$0xff]
        %v1656 = vld [vmem:[#allocation2 + $0xc7] sm:$0xff]
        %v1657 = vld [vmem:[#allocation2 + $0xcf] sm:$0xff]
        %v1658 = vld [vmem:[#allocation2 + $0xe7] sm:$0xff]
        %v1659 = vld [vmem:[#allocation2 + $0xef] sm:$0xff]
        %v1660 = vld [vmem:[#allocation2 + $0x107] sm:$0xff]
        %v1661 = vld [vmem:[#allocation2 + $0x10f] sm:$0xff]
        %v1662 = vld [vmem:[#allocation2 + $0x127] sm:$0xff]
        %v1663 = vld [vmem:[#allocation2 + $0x12f] sm:$0xff]
        %v1664 = vld [vmem:[#allocation2 + $0x147] sm:$0xff]
        %v1665 = vld [vmem:[#allocation2 + $0x14f] sm:$0xff]
        %v1666 = vld [vmem:[#allocation2 + $0x167] sm:$0xff]
        %v1667 = vld [vmem:[#allocation2 + $0x16f] sm:$0xff]
        %v1668 = vld [vmem:[#allocation2 + $0x187] sm:$0xff]
        %v1669 = vld [vmem:[#allocation2 + $0x18f] sm:$0xff]
        %v1670 = vld [vmem:[#allocation2 + $0x1a7] sm:$0xff]
        %v1671 = vld [vmem:[#allocation2 + $0x1af] sm:$0xff]
        %v1672 = vld [vmem:[#allocation2 + $0x1c7] sm:$0xff]
        %v1673 = vld [vmem:[#allocation2 + $0x1cf] sm:$0xff]
        %v1674 = vld [vmem:[#allocation2 + $0x1e7] sm:$0xff]
        %v1675 = vld [vmem:[#allocation2 + $0x1ef] sm:$0xff]
        %v1676 = vpack.c.bf16 %v1645, %v1644
        %v1677 = vpack.c.bf16 %v1647, %v1646
        %v1678 = vpack.c.bf16 %v1649, %v1648
        %v1679 = vpack.c.bf16 %v1651, %v1650
        %v1680 = vpack.c.bf16 %v1653, %v1652
        %v1681 = vpack.c.bf16 %v1655, %v1654
        %v1682 = vpack.c.bf16 %v1657, %v1656
        %v1683 = vpack.c.bf16 %v1659, %v1658
        %v1684 = vpack.c.bf16 %v1661, %v1660
        %v1685 = vpack.c.bf16 %v1663, %v1662
        %v1686 = vpack.c.bf16 %v1665, %v1664
        %v1687 = vpack.c.bf16 %v1667, %v1666
        %v1688 = vpack.c.bf16 %v1669, %v1668
        %v1689 = vpack.c.bf16 %v1671, %v1670
        %v1690 = vpack.c.bf16 %v1673, %v1672
        %v1691 = vpack.c.bf16 %v1675, %v1674
        %s1692 = scalar_lea.vmem [#allocation11], 32
        %v1693 = vld [vmem:[%s1692] sm:$0xf]
        %v1694 = vld [vmem:[%s1692 + $0x4] sm:$0xf]
        %v1695 = vld [vmem:[%s1692 + $0x8] sm:$0xf]
        %v1696 = vld [vmem:[%s1692 + $0xc] sm:$0xf]
        %v1701 = vunpack.c.l.b16 %v1693
        %v1702 = vunpack.c.l.b16 %v1694
        %v1703 = vunpack.c.l.b16 %v1695
        %v1704 = vunpack.c.l.b16 %v1696
        %v1705 = vpack.c.b16 %v1702, %v1701
        %v1706 = vpack.c.b16 %v1704, %v1703
        %v1710 = vsel %vm844, %v1676, 0
        %v1713 = vsel %vm844, %v1677, 0
        %v1716 = vsel %vm844, %v1678, 0
        %v1719 = vsel %vm844, %v1679, 0
        %v1722 = vsel %vm844, %v1680, 0
        %v1725 = vsel %vm844, %v1681, 0
        %v1728 = vsel %vm844, %v1682, 0
        %v1731 = vsel %vm844, %v1683, 0
        %v1734 = vsel %vm844, %v1684, 0
        %v1737 = vsel %vm844, %v1685, 0
        %v1740 = vsel %vm844, %v1686, 0
        %v1743 = vsel %vm844, %v1687, 0
        %v1746 = vsel %vm844, %v1688, 0
        %v1749 = vsel %vm844, %v1689, 0
        %v1752 = vsel %vm844, %v1690, 0
        %v1755 = vsel %vm844, %v1691, 0
        %1757 = vmatprep.subr.bf16.mxu0 0
        %1758 = vmatpush1.bf16.msra.mxu0 %v1705
        %1759 = vmatprep.subr.bf16.mxu0 0
        %1760 = vmatpush1.bf16.msra.mxu0 %v1706
        %1761 = vmatprep.subr.bf16.mxu0 0
        %1762 = vmatpush1.bf16.msra.mxu0 0
        %1763 = vmatprep.subr.bf16.mxu0 0
        %1764 = vmatpush1.bf16.msra.mxu0 0
        %1765 = vmatprep.subr.bf16.mxu0 0
        %1766 = vmatpush1.bf16.msra.mxu0 0
        %1767 = vmatprep.subr.bf16.mxu0 0
        %1768 = vmatpush1.bf16.msra.mxu0 0
        %1769 = vmatprep.subr.bf16.mxu0 0
        %1770 = vmatpush1.bf16.msra.mxu0 0
        %1771 = vmatprep.subr.bf16.mxu0 0
        %1772 = vmatpush1.bf16.msra.mxu0 0
        %1773 = vmatprep.subr.bf16.mxu0 0
        %1774 = vmatpush1.bf16.msra.mxu0 0
        %1775 = vmatprep.subr.bf16.mxu0 0
        %1776 = vmatpush1.bf16.msra.mxu0 0
        %1777 = vmatprep.subr.bf16.mxu0 0
        %1778 = vmatpush1.bf16.msra.mxu0 0
        %1779 = vmatprep.subr.bf16.mxu0 0
        %1780 = vmatpush1.bf16.msra.mxu0 0
        %1781 = vmatprep.subr.bf16.mxu0 0
        %1782 = vmatpush1.bf16.msra.mxu0 0
        %1783 = vmatprep.subr.bf16.mxu0 0
        %1784 = vmatpush1.bf16.msra.mxu0 0
        %1785 = vmatprep.subr.bf16.mxu0 0
        %1786 = vmatpush1.bf16.msra.mxu0 0
        %1787 = vmatprep.subr.bf16.mxu0 0
        %1788 = vmatpush1.bf16.msra.mxu0 0
        %1789 = vmatprep.mubr.bf16.mxu0 0
        %1790 = vmatmul.mubr.bf16.gmra.mrb[0].mxu0 %v1710
        %v1791 = vpop.f32.mrb[0].mxu0
        %v1792 = vadd.f32 0.0, %v1791
        %v1793 = vpop.f32.mrb[0].mxu0
        %v1794 = vpop.f32.mrb[0].mxu0
        %v1795 = vadd.f32 0.0, %v1794
        %v1796 = vpop.f32.mrb[0].mxu0
        %1797 = vmatprep.mubr.bf16.mxu0 0
        %1798 = vmatmul.mubr.bf16.gmra.mrb[0].mxu0 %v1713
        %v1799 = vpop.f32.mrb[0].mxu0
        %v1800 = vadd.f32 0.0, %v1799
        %v1801 = vpop.f32.mrb[0].mxu0
        %v1802 = vpop.f32.mrb[0].mxu0
        %v1803 = vadd.f32 0.0, %v1802
        %v1804 = vpop.f32.mrb[0].mxu0
        %1805 = vmatprep.mubr.bf16.mxu0 0
        %1806 = vmatmul.mubr.bf16.gmra.mrb[0].mxu0 %v1716
        %v1807 = vpop.f32.mrb[0].mxu0
        %v1808 = vadd.f32 0.0, %v1807
        %v1809 = vpop.f32.mrb[0].mxu0
        %v1810 = vpop.f32.mrb[0].mxu0
        %v1811 = vadd.f32 0.0, %v1810
        %v1812 = vpop.f32.mrb[0].mxu0
        %1813 = vmatprep.mubr.bf16.mxu0 0
        %1814 = vmatmul.mubr.bf16.gmra.mrb[0].mxu0 %v1719
        %v1815 = vpop.f32.mrb[0].mxu0
        %v1816 = vadd.f32 0.0, %v1815
        %v1817 = vpop.f32.mrb[0].mxu0
        %v1818 = vpop.f32.mrb[0].mxu0
        %v1819 = vadd.f32 0.0, %v1818
        %v1820 = vpop.f32.mrb[0].mxu0
        %1821 = vmatprep.mubr.bf16.mxu0 0
        %1822 = vmatmul.mubr.bf16.gmra.mrb[0].mxu0 %v1722
        %v1823 = vpop.f32.mrb[0].mxu0
        %v1824 = vadd.f32 0.0, %v1823
        %v1825 = vpop.f32.mrb[0].mxu0
        %v1826 = vpop.f32.mrb[0].mxu0
        %v1827 = vadd.f32 0.0, %v1826
        %v1828 = vpop.f32.mrb[0].mxu0
        %1829 = vmatprep.mubr.bf16.mxu0 0
        %1830 = vmatmul.mubr.bf16.gmra.mrb[0].mxu0 %v1725
        %v1831 = vpop.f32.mrb[0].mxu0
        %v1832 = vadd.f32 0.0, %v1831
        %v1833 = vpop.f32.mrb[0].mxu0
        %v1834 = vpop.f32.mrb[0].mxu0
        %v1835 = vadd.f32 0.0, %v1834
        %v1836 = vpop.f32.mrb[0].mxu0
        %1837 = vmatprep.mubr.bf16.mxu0 0
        %1838 = vmatmul.mubr.bf16.gmra.mrb[0].mxu0 %v1728
        %v1839 = vpop.f32.mrb[0].mxu0
        %v1840 = vadd.f32 0.0, %v1839
        %v1841 = vpop.f32.mrb[0].mxu0
        %v1842 = vpop.f32.mrb[0].mxu0
        %v1843 = vadd.f32 0.0, %v1842
        %v1844 = vpop.f32.mrb[0].mxu0
        %1845 = vmatprep.mubr.bf16.mxu0 0
        %1846 = vmatmul.mubr.bf16.gmra.mrb[0].mxu0 %v1731
        %v1847 = vpop.f32.mrb[0].mxu0
        %v1848 = vadd.f32 0.0, %v1847
        %v1849 = vpop.f32.mrb[0].mxu0
        %v1850 = vpop.f32.mrb[0].mxu0
        %v1851 = vadd.f32 0.0, %v1850
        %v1852 = vpop.f32.mrb[0].mxu0
        %1853 = vmatprep.mubr.bf16.mxu0 0
        %1854 = vmatmul.mubr.bf16.gmra.mrb[0].mxu0 %v1734
        %v1855 = vpop.f32.mrb[0].mxu0
        %v1856 = vadd.f32 0.0, %v1855
        %v1857 = vpop.f32.mrb[0].mxu0
        %v1858 = vpop.f32.mrb[0].mxu0
        %v1859 = vadd.f32 0.0, %v1858
        %v1860 = vpop.f32.mrb[0].mxu0
        %1861 = vmatprep.mubr.bf16.mxu0 0
        %1862 = vmatmul.mubr.bf16.gmra.mrb[0].mxu0 %v1737
        %v1863 = vpop.f32.mrb[0].mxu0
        %v1864 = vadd.f32 0.0, %v1863
        %v1865 = vpop.f32.mrb[0].mxu0
        %v1866 = vpop.f32.mrb[0].mxu0
        %v1867 = vadd.f32 0.0, %v1866
        %v1868 = vpop.f32.mrb[0].mxu0
        %1869 = vmatprep.mubr.bf16.mxu0 0
        %1870 = vmatmul.mubr.bf16.gmra.mrb[0].mxu0 %v1740
        %v1871 = vpop.f32.mrb[0].mxu0
        %v1872 = vadd.f32 0.0, %v1871
        %v1873 = vpop.f32.mrb[0].mxu0
        %v1874 = vpop.f32.mrb[0].mxu0
        %v1875 = vadd.f32 0.0, %v1874
        %v1876 = vpop.f32.mrb[0].mxu0
        %1877 = vmatprep.mubr.bf16.mxu0 0
        %1878 = vmatmul.mubr.bf16.gmra.mrb[0].mxu0 %v1743
        %v1879 = vpop.f32.mrb[0].mxu0
        %v1880 = vadd.f32 0.0, %v1879
        %v1881 = vpop.f32.mrb[0].mxu0
        %v1882 = vpop.f32.mrb[0].mxu0
        %v1883 = vadd.f32 0.0, %v1882
        %v1884 = vpop.f32.mrb[0].mxu0
        %1885 = vmatprep.mubr.bf16.mxu0 0
        %1886 = vmatmul.mubr.bf16.gmra.mrb[0].mxu0 %v1746
        %v1887 = vpop.f32.mrb[0].mxu0
        %v1888 = vadd.f32 0.0, %v1887
        %v1889 = vpop.f32.mrb[0].mxu0
        %v1890 = vpop.f32.mrb[0].mxu0
        %v1891 = vadd.f32 0.0, %v1890
        %v1892 = vpop.f32.mrb[0].mxu0
        %1893 = vmatprep.mubr.bf16.mxu0 0
        %1894 = vmatmul.mubr.bf16.gmra.mrb[0].mxu0 %v1749
        %v1895 = vpop.f32.mrb[0].mxu0
        %v1896 = vadd.f32 0.0, %v1895
        %v1897 = vpop.f32.mrb[0].mxu0
        %v1898 = vpop.f32.mrb[0].mxu0
        %v1899 = vadd.f32 0.0, %v1898
        %v1900 = vpop.f32.mrb[0].mxu0
        %1901 = vmatprep.mubr.bf16.mxu0 0
        %1902 = vmatmul.mubr.bf16.gmra.mrb[0].mxu0 %v1752
        %v1903 = vpop.f32.mrb[0].mxu0
        %v1904 = vadd.f32 0.0, %v1903
        %v1905 = vpop.f32.mrb[0].mxu0
        %v1906 = vpop.f32.mrb[0].mxu0
        %v1907 = vadd.f32 0.0, %v1906
        %v1908 = vpop.f32.mrb[0].mxu0
        %1909 = vmatprep.mubr.bf16.mxu0 0
        %1910 = vmatmul.mubr.bf16.gmra.mrb[0].mxu0 %v1755
        %v1911 = vpop.f32.mrb[0].mxu0
        %v1912 = vadd.f32 0.0, %v1911
        %v1913 = vpop.f32.mrb[0].mxu0
        %v1914 = vpop.f32.mrb[0].mxu0
        %v1915 = vadd.f32 0.0, %v1914
        %v1916 = vpop.f32.mrb[0].mxu0
        %1917 = vdwg.mxu0
        %v1918 = vadd.f32 %v1518, %v1792
        %v1919 = vadd.f32 %v1521, %v1795
        %v1920 = vadd.f32 %v1526, %v1800
        %v1921 = vadd.f32 %v1529, %v1803
        %v1922 = vadd.f32 %v1534, %v1808
        %v1923 = vadd.f32 %v1537, %v1811
        %v1924 = vadd.f32 %v1542, %v1816
        %v1925 = vadd.f32 %v1545, %v1819
        %v1926 = vadd.f32 %v1550, %v1824
        %v1927 = vadd.f32 %v1553, %v1827
        %v1928 = vadd.f32 %v1558, %v1832
        %v1929 = vadd.f32 %v1561, %v1835
        %v1930 = vadd.f32 %v1566, %v1840
        %v1931 = vadd.f32 %v1569, %v1843
        %v1932 = vadd.f32 %v1574, %v1848
        %v1933 = vadd.f32 %v1577, %v1851
        %v1934 = vadd.f32 %v1582, %v1856
        %v1935 = vadd.f32 %v1585, %v1859
        %v1936 = vadd.f32 %v1590, %v1864
        %v1937 = vadd.f32 %v1593, %v1867
        %v1938 = vadd.f32 %v1598, %v1872
        %v1939 = vadd.f32 %v1601, %v1875
        %v1940 = vadd.f32 %v1606, %v1880
        %v1941 = vadd.f32 %v1609, %v1883
        %v1942 = vadd.f32 %v1614, %v1888
        %v1943 = vadd.f32 %v1617, %v1891
        %v1944 = vadd.f32 %v1622, %v1896
        %v1945 = vadd.f32 %v1625, %v1899
        %v1946 = vadd.f32 %v1630, %v1904
        %v1947 = vadd.f32 %v1633, %v1907
        %v1948 = vadd.f32 %v1638, %v1912
        %v1949 = vadd.f32 %v1641, %v1915
        %v1950 = vld [vmem:[#allocation2 + $0x8] sm:$0xff]
        %v1951 = vld [vmem:[#allocation2 + $0x10] sm:$0xff]
        %v1952 = vld [vmem:[#allocation2 + $0x28] sm:$0xff]
        %v1953 = vld [vmem:[#allocation2 + $0x30] sm:$0xff]
        %v1954 = vld [vmem:[#allocation2 + $0x48] sm:$0xff]
        %v1955 = vld [vmem:[#allocation2 + $0x50] sm:$0xff]
        %v1956 = vld [vmem:[#allocation2 + $0x68] sm:$0xff]
        %v1957 = vld [vmem:[#allocation2 + $0x70] sm:$0xff]
        %v1958 = vld [vmem:[#allocation2 + $0x88] sm:$0xff]
        %v1959 = vld [vmem:[#allocation2 + $0x90] sm:$0xff]
        %v1960 = vld [vmem:[#allocation2 + $0xa8] sm:$0xff]
        %v1961 = vld [vmem:[#allocation2 + $0xb0] sm:$0xff]
        %v1962 = vld [vmem:[#allocation2 + $0xc8] sm:$0xff]
        %v1963 = vld [vmem:[#allocation2 + $0xd0] sm:$0xff]
        %v1964 = vld [vmem:[#allocation2 + $0xe8] sm:$0xff]
        %v1965 = vld [vmem:[#allocation2 + $0xf0] sm:$0xff]
        %v1966 = vld [vmem:[#allocation2 + $0x108] sm:$0xff]
        %v1967 = vld [vmem:[#allocation2 + $0x110] sm:$0xff]
        %v1968 = vld [vmem:[#allocation2 + $0x128] sm:$0xff]
        %v1969 = vld [vmem:[#allocation2 + $0x130] sm:$0xff]
        %v1970 = vld [vmem:[#allocation2 + $0x148] sm:$0xff]
        %v1971 = vld [vmem:[#allocation2 + $0x150] sm:$0xff]
        %v1972 = vld [vmem:[#allocation2 + $0x168] sm:$0xff]
        %v1973 = vld [vmem:[#allocation2 + $0x170] sm:$0xff]
        %v1974 = vld [vmem:[#allocation2 + $0x188] sm:$0xff]
        %v1975 = vld [vmem:[#allocation2 + $0x190] sm:$0xff]
        %v1976 = vld [vmem:[#allocation2 + $0x1a8] sm:$0xff]
        %v1977 = vld [vmem:[#allocation2 + $0x1b0] sm:$0xff]
        %v1978 = vld [vmem:[#allocation2 + $0x1c8] sm:$0xff]
        %v1979 = vld [vmem:[#allocation2 + $0x1d0] sm:$0xff]
        %v1980 = vld [vmem:[#allocation2 + $0x1e8] sm:$0xff]
        %v1981 = vld [vmem:[#allocation2 + $0x1f0] sm:$0xff]
        %v1982 = vpack.c.bf16 %v1951, %v1950
        %v1983 = vpack.c.bf16 %v1953, %v1952
        %v1984 = vpack.c.bf16 %v1955, %v1954
        %v1985 = vpack.c.bf16 %v1957, %v1956
        %v1986 = vpack.c.bf16 %v1959, %v1958
        %v1987 = vpack.c.bf16 %v1961, %v1960
        %v1988 = vpack.c.bf16 %v1963, %v1962
        %v1989 = vpack.c.bf16 %v1965, %v1964
        %v1990 = vpack.c.bf16 %v1967, %v1966
        %v1991 = vpack.c.bf16 %v1969, %v1968
        %v1992 = vpack.c.bf16 %v1971, %v1970
        %v1993 = vpack.c.bf16 %v1973, %v1972
        %v1994 = vpack.c.bf16 %v1975, %v1974
        %v1995 = vpack.c.bf16 %v1977, %v1976
        %v1996 = vpack.c.bf16 %v1979, %v1978
        %v1997 = vpack.c.bf16 %v1981, %v1980
        %s1998 = scalar_lea.vmem [#allocation11], 48
        %v1999 = vld [vmem:[%s1998] sm:$0xf]
        %v2000 = vld [vmem:[%s1998 + $0x4] sm:$0xf]
        %v2001 = vld [vmem:[%s1998 + $0x8] sm:$0xf]
        %v2002 = vld [vmem:[%s1998 + $0xc] sm:$0xf]
        %v2007 = vunpack.c.l.b16 %v1999
        %v2008 = vunpack.c.l.b16 %v2000
        %v2009 = vunpack.c.l.b16 %v2001
        %v2010 = vunpack.c.l.b16 %v2002
        %v2011 = vpack.c.b16 %v2008, %v2007
        %v2012 = vpack.c.b16 %v2010, %v2009
        %v2016 = vsel %vm844, %v1982, 0
        %v2019 = vsel %vm844, %v1983, 0
        %v2022 = vsel %vm844, %v1984, 0
        %v2025 = vsel %vm844, %v1985, 0
        %v2028 = vsel %vm844, %v1986, 0
        %v2031 = vsel %vm844, %v1987, 0
        %v2034 = vsel %vm844, %v1988, 0
        %v2037 = vsel %vm844, %v1989, 0
        %v2040 = vsel %vm844, %v1990, 0
        %v2043 = vsel %vm844, %v1991, 0
        %v2046 = vsel %vm844, %v1992, 0
        %v2049 = vsel %vm844, %v1993, 0
        %v2052 = vsel %vm844, %v1994, 0
        %v2055 = vsel %vm844, %v1995, 0
        %v2058 = vsel %vm844, %v1996, 0
        %v2061 = vsel %vm844, %v1997, 0
        %2063 = vmatprep.subr.bf16.mxu0 0
        %2064 = vmatpush1.bf16.msra.mxu0 %v2011
        %2065 = vmatprep.subr.bf16.mxu0 0
        %2066 = vmatpush1.bf16.msra.mxu0 %v2012
        %2067 = vmatprep.subr.bf16.mxu0 0
        %2068 = vmatpush1.bf16.msra.mxu0 0
        %2069 = vmatprep.subr.bf16.mxu0 0
        %2070 = vmatpush1.bf16.msra.mxu0 0
        %2071 = vmatprep.subr.bf16.mxu0 0
        %2072 = vmatpush1.bf16.msra.mxu0 0
        %2073 = vmatprep.subr.bf16.mxu0 0
        %2074 = vmatpush1.bf16.msra.mxu0 0
        %2075 = vmatprep.subr.bf16.mxu0 0
        %2076 = vmatpush1.bf16.msra.mxu0 0
        %2077 = vmatprep.subr.bf16.mxu0 0
        %2078 = vmatpush1.bf16.msra.mxu0 0
        %2079 = vmatprep.subr.bf16.mxu0 0
        %2080 = vmatpush1.bf16.msra.mxu0 0
        %2081 = vmatprep.subr.bf16.mxu0 0
        %2082 = vmatpush1.bf16.msra.mxu0 0
        %2083 = vmatprep.subr.bf16.mxu0 0
        %2084 = vmatpush1.bf16.msra.mxu0 0
        %2085 = vmatprep.subr.bf16.mxu0 0
        %2086 = vmatpush1.bf16.msra.mxu0 0
        %2087 = vmatprep.subr.bf16.mxu0 0
        %2088 = vmatpush1.bf16.msra.mxu0 0
        %2089 = vmatprep.subr.bf16.mxu0 0
        %2090 = vmatpush1.bf16.msra.mxu0 0
        %2091 = vmatprep.subr.bf16.mxu0 0
        %2092 = vmatpush1.bf16.msra.mxu0 0
        %2093 = vmatprep.subr.bf16.mxu0 0
        %2094 = vmatpush1.bf16.msra.mxu0 0
        %2095 = vmatprep.mubr.bf16.mxu0 0
        %2096 = vmatmul.mubr.bf16.gmra.mrb[0].mxu0 %v2016
        %v2097 = vpop.f32.mrb[0].mxu0
        %v2098 = vadd.f32 0.0, %v2097
        %v2099 = vpop.f32.mrb[0].mxu0
        %v2100 = vpop.f32.mrb[0].mxu0
        %v2101 = vadd.f32 0.0, %v2100
        %v2102 = vpop.f32.mrb[0].mxu0
        %2103 = vmatprep.mubr.bf16.mxu0 0
        %2104 = vmatmul.mubr.bf16.gmra.mrb[0].mxu0 %v2019
        %v2105 = vpop.f32.mrb[0].mxu0
        %v2106 = vadd.f32 0.0, %v2105
        %v2107 = vpop.f32.mrb[0].mxu0
        %v2108 = vpop.f32.mrb[0].mxu0
        %v2109 = vadd.f32 0.0, %v2108
        %v2110 = vpop.f32.mrb[0].mxu0
        %2111 = vmatprep.mubr.bf16.mxu0 0
        %2112 = vmatmul.mubr.bf16.gmra.mrb[0].mxu0 %v2022
        %v2113 = vpop.f32.mrb[0].mxu0
        %v2114 = vadd.f32 0.0, %v2113
        %v2115 = vpop.f32.mrb[0].mxu0
        %v2116 = vpop.f32.mrb[0].mxu0
        %v2117 = vadd.f32 0.0, %v2116
        %v2118 = vpop.f32.mrb[0].mxu0
        %2119 = vmatprep.mubr.bf16.mxu0 0
        %2120 = vmatmul.mubr.bf16.gmra.mrb[0].mxu0 %v2025
        %v2121 = vpop.f32.mrb[0].mxu0
        %v2122 = vadd.f32 0.0, %v2121
        %v2123 = vpop.f32.mrb[0].mxu0
        %v2124 = vpop.f32.mrb[0].mxu0
        %v2125 = vadd.f32 0.0, %v2124
        %v2126 = vpop.f32.mrb[0].mxu0
        %2127 = vmatprep.mubr.bf16.mxu0 0
        %2128 = vmatmul.mubr.bf16.gmra.mrb[0].mxu0 %v2028
        %v2129 = vpop.f32.mrb[0].mxu0
        %v2130 = vadd.f32 0.0, %v2129
        %v2131 = vpop.f32.mrb[0].mxu0
        %v2132 = vpop.f32.mrb[0].mxu0
        %v2133 = vadd.f32 0.0, %v2132
        %v2134 = vpop.f32.mrb[0].mxu0
        %2135 = vmatprep.mubr.bf16.mxu0 0
        %2136 = vmatmul.mubr.bf16.gmra.mrb[0].mxu0 %v2031
        %v2137 = vpop.f32.mrb[0].mxu0
        %v2138 = vadd.f32 0.0, %v2137
        %v2139 = vpop.f32.mrb[0].mxu0
        %v2140 = vpop.f32.mrb[0].mxu0
        %v2141 = vadd.f32 0.0, %v2140
        %v2142 = vpop.f32.mrb[0].mxu0
        %2143 = vmatprep.mubr.bf16.mxu0 0
        %2144 = vmatmul.mubr.bf16.gmra.mrb[0].mxu0 %v2034
        %v2145 = vpop.f32.mrb[0].mxu0
        %v2146 = vadd.f32 0.0, %v2145
        %v2147 = vpop.f32.mrb[0].mxu0
        %v2148 = vpop.f32.mrb[0].mxu0
        %v2149 = vadd.f32 0.0, %v2148
        %v2150 = vpop.f32.mrb[0].mxu0
        %2151 = vmatprep.mubr.bf16.mxu0 0
        %2152 = vmatmul.mubr.bf16.gmra.mrb[0].mxu0 %v2037
        %v2153 = vpop.f32.mrb[0].mxu0
        %v2154 = vadd.f32 0.0, %v2153
        %v2155 = vpop.f32.mrb[0].mxu0
        %v2156 = vpop.f32.mrb[0].mxu0
        %v2157 = vadd.f32 0.0, %v2156
        %v2158 = vpop.f32.mrb[0].mxu0
        %2159 = vmatprep.mubr.bf16.mxu0 0
        %2160 = vmatmul.mubr.bf16.gmra.mrb[0].mxu0 %v2040
        %v2161 = vpop.f32.mrb[0].mxu0
        %v2162 = vadd.f32 0.0, %v2161
        %v2163 = vpop.f32.mrb[0].mxu0
        %v2164 = vpop.f32.mrb[0].mxu0
        %v2165 = vadd.f32 0.0, %v2164
        %v2166 = vpop.f32.mrb[0].mxu0
        %2167 = vmatprep.mubr.bf16.mxu0 0
        %2168 = vmatmul.mubr.bf16.gmra.mrb[0].mxu0 %v2043
        %v2169 = vpop.f32.mrb[0].mxu0
        %v2170 = vadd.f32 0.0, %v2169
        %v2171 = vpop.f32.mrb[0].mxu0
        %v2172 = vpop.f32.mrb[0].mxu0
        %v2173 = vadd.f32 0.0, %v2172
        %v2174 = vpop.f32.mrb[0].mxu0
        %2175 = vmatprep.mubr.bf16.mxu0 0
        %2176 = vmatmul.mubr.bf16.gmra.mrb[0].mxu0 %v2046
        %v2177 = vpop.f32.mrb[0].mxu0
        %v2178 = vadd.f32 0.0, %v2177
        %v2179 = vpop.f32.mrb[0].mxu0
        %v2180 = vpop.f32.mrb[0].mxu0
        %v2181 = vadd.f32 0.0, %v2180
        %v2182 = vpop.f32.mrb[0].mxu0
        %2183 = vmatprep.mubr.bf16.mxu0 0
        %2184 = vmatmul.mubr.bf16.gmra.mrb[0].mxu0 %v2049
        %v2185 = vpop.f32.mrb[0].mxu0
        %v2186 = vadd.f32 0.0, %v2185
        %v2187 = vpop.f32.mrb[0].mxu0
        %v2188 = vpop.f32.mrb[0].mxu0
        %v2189 = vadd.f32 0.0, %v2188
        %v2190 = vpop.f32.mrb[0].mxu0
        %2191 = vmatprep.mubr.bf16.mxu0 0
        %2192 = vmatmul.mubr.bf16.gmra.mrb[0].mxu0 %v2052
        %v2193 = vpop.f32.mrb[0].mxu0
        %v2194 = vadd.f32 0.0, %v2193
        %v2195 = vpop.f32.mrb[0].mxu0
        %v2196 = vpop.f32.mrb[0].mxu0
        %v2197 = vadd.f32 0.0, %v2196
        %v2198 = vpop.f32.mrb[0].mxu0
        %2199 = vmatprep.mubr.bf16.mxu0 0
        %2200 = vmatmul.mubr.bf16.gmra.mrb[0].mxu0 %v2055
        %v2201 = vpop.f32.mrb[0].mxu0
        %v2202 = vadd.f32 0.0, %v2201
        %v2203 = vpop.f32.mrb[0].mxu0
        %v2204 = vpop.f32.mrb[0].mxu0
        %v2205 = vadd.f32 0.0, %v2204
        %v2206 = vpop.f32.mrb[0].mxu0
        %2207 = vmatprep.mubr.bf16.mxu0 0
        %2208 = vmatmul.mubr.bf16.gmra.mrb[0].mxu0 %v2058
        %v2209 = vpop.f32.mrb[0].mxu0
        %v2210 = vadd.f32 0.0, %v2209
        %v2211 = vpop.f32.mrb[0].mxu0
        %v2212 = vpop.f32.mrb[0].mxu0
        %v2213 = vadd.f32 0.0, %v2212
        %v2214 = vpop.f32.mrb[0].mxu0
        %2215 = vmatprep.mubr.bf16.mxu0 0
        %2216 = vmatmul.mubr.bf16.gmra.mrb[0].mxu0 %v2061
        %v2217 = vpop.f32.mrb[0].mxu0
        %v2218 = vadd.f32 0.0, %v2217
        %v2219 = vpop.f32.mrb[0].mxu0
        %v2220 = vpop.f32.mrb[0].mxu0
        %v2221 = vadd.f32 0.0, %v2220
        %v2222 = vpop.f32.mrb[0].mxu0
        %2223 = vdwg.mxu0
        %v2224 = vadd.f32 %v1918, %v2098
        %v2225 = vadd.f32 %v1919, %v2101
        %v2226 = vadd.f32 %v1920, %v2106
        %v2227 = vadd.f32 %v1921, %v2109
        %v2228 = vadd.f32 %v1922, %v2114
        %v2229 = vadd.f32 %v1923, %v2117
        %v2230 = vadd.f32 %v1924, %v2122
        %v2231 = vadd.f32 %v1925, %v2125
        %v2232 = vadd.f32 %v1926, %v2130
        %v2233 = vadd.f32 %v1927, %v2133
        %v2234 = vadd.f32 %v1928, %v2138
        %v2235 = vadd.f32 %v1929, %v2141
        %v2236 = vadd.f32 %v1930, %v2146
        %v2237 = vadd.f32 %v1931, %v2149
        %v2238 = vadd.f32 %v1932, %v2154
        %v2239 = vadd.f32 %v1933, %v2157
        %v2240 = vadd.f32 %v1934, %v2162
        %v2241 = vadd.f32 %v1935, %v2165
        %v2242 = vadd.f32 %v1936, %v2170
        %v2243 = vadd.f32 %v1937, %v2173
        %v2244 = vadd.f32 %v1938, %v2178
        %v2245 = vadd.f32 %v1939, %v2181
        %v2246 = vadd.f32 %v1940, %v2186
        %v2247 = vadd.f32 %v1941, %v2189
        %v2248 = vadd.f32 %v1942, %v2194
        %v2249 = vadd.f32 %v1943, %v2197
        %v2250 = vadd.f32 %v1944, %v2202
        %v2251 = vadd.f32 %v1945, %v2205
        %v2252 = vadd.f32 %v1946, %v2210
        %v2253 = vadd.f32 %v1947, %v2213
        %v2254 = vadd.f32 %v1948, %v2218
        %v2255 = vadd.f32 %v1949, %v2221
        %v2256 = vld [vmem:[#allocation2 + $0x9] sm:$0xff]
        %v2257 = vld [vmem:[#allocation2 + $0x11] sm:$0xff]
        %v2258 = vld [vmem:[#allocation2 + $0x29] sm:$0xff]
        %v2259 = vld [vmem:[#allocation2 + $0x31] sm:$0xff]
        %v2260 = vld [vmem:[#allocation2 + $0x49] sm:$0xff]
        %v2261 = vld [vmem:[#allocation2 + $0x51] sm:$0xff]
        %v2262 = vld [vmem:[#allocation2 + $0x69] sm:$0xff]
        %v2263 = vld [vmem:[#allocation2 + $0x71] sm:$0xff]
        %v2264 = vld [vmem:[#allocation2 + $0x89] sm:$0xff]
        %v2265 = vld [vmem:[#allocation2 + $0x91] sm:$0xff]
        %v2266 = vld [vmem:[#allocation2 + $0xa9] sm:$0xff]
        %v2267 = vld [vmem:[#allocation2 + $0xb1] sm:$0xff]
        %v2268 = vld [vmem:[#allocation2 + $0xc9] sm:$0xff]
        %v2269 = vld [vmem:[#allocation2 + $0xd1] sm:$0xff]
        %v2270 = vld [vmem:[#allocation2 + $0xe9] sm:$0xff]
        %v2271 = vld [vmem:[#allocation2 + $0xf1] sm:$0xff]
        %v2272 = vld [vmem:[#allocation2 + $0x109] sm:$0xff]
        %v2273 = vld [vmem:[#allocation2 + $0x111] sm:$0xff]
        %v2274 = vld [vmem:[#allocation2 + $0x129] sm:$0xff]
        %v2275 = vld [vmem:[#allocation2 + $0x131] sm:$0xff]
        %v2276 = vld [vmem:[#allocation2 + $0x149] sm:$0xff]
        %v2277 = vld [vmem:[#allocation2 + $0x151] sm:$0xff]
        %v2278 = vld [vmem:[#allocation2 + $0x169] sm:$0xff]
        %v2279 = vld [vmem:[#allocation2 + $0x171] sm:$0xff]
        %v2280 = vld [vmem:[#allocation2 + $0x189] sm:$0xff]
        %v2281 = vld [vmem:[#allocation2 + $0x191] sm:$0xff]
        %v2282 = vld [vmem:[#allocation2 + $0x1a9] sm:$0xff]
        %v2283 = vld [vmem:[#allocation2 + $0x1b1] sm:$0xff]
        %v2284 = vld [vmem:[#allocation2 + $0x1c9] sm:$0xff]
        %v2285 = vld [vmem:[#allocation2 + $0x1d1] sm:$0xff]
        %v2286 = vld [vmem:[#allocation2 + $0x1e9] sm:$0xff]
        %v2287 = vld [vmem:[#allocation2 + $0x1f1] sm:$0xff]
        %v2288 = vpack.c.bf16 %v2257, %v2256
        %v2289 = vpack.c.bf16 %v2259, %v2258
        %v2290 = vpack.c.bf16 %v2261, %v2260
        %v2291 = vpack.c.bf16 %v2263, %v2262
        %v2292 = vpack.c.bf16 %v2265, %v2264
        %v2293 = vpack.c.bf16 %v2267, %v2266
        %v2294 = vpack.c.bf16 %v2269, %v2268
        %v2295 = vpack.c.bf16 %v2271, %v2270
        %v2296 = vpack.c.bf16 %v2273, %v2272
        %v2297 = vpack.c.bf16 %v2275, %v2274
        %v2298 = vpack.c.bf16 %v2277, %v2276
        %v2299 = vpack.c.bf16 %v2279, %v2278
        %v2300 = vpack.c.bf16 %v2281, %v2280
        %v2301 = vpack.c.bf16 %v2283, %v2282
        %v2302 = vpack.c.bf16 %v2285, %v2284
        %v2303 = vpack.c.bf16 %v2287, %v2286
        %s2304 = scalar_lea.vmem [#allocation11], 64
        %v2305 = vld [vmem:[%s2304] sm:$0xf]
        %v2306 = vld [vmem:[%s2304 + $0x4] sm:$0xf]
        %v2307 = vld [vmem:[%s2304 + $0x8] sm:$0xf]
        %v2308 = vld [vmem:[%s2304 + $0xc] sm:$0xf]
        %v2313 = vunpack.c.l.b16 %v2305
        %v2314 = vunpack.c.l.b16 %v2306
        %v2315 = vunpack.c.l.b16 %v2307
        %v2316 = vunpack.c.l.b16 %v2308
        %v2317 = vpack.c.b16 %v2314, %v2313
        %v2318 = vpack.c.b16 %v2316, %v2315
        %v2322 = vsel %vm844, %v2288, 0
        %v2325 = vsel %vm844, %v2289, 0
        %v2328 = vsel %vm844, %v2290, 0
        %v2331 = vsel %vm844, %v2291, 0
        %v2334 = vsel %vm844, %v2292, 0
        %v2337 = vsel %vm844, %v2293, 0
        %v2340 = vsel %vm844, %v2294, 0
        %v2343 = vsel %vm844, %v2295, 0
        %v2346 = vsel %vm844, %v2296, 0
        %v2349 = vsel %vm844, %v2297, 0
        %v2352 = vsel %vm844, %v2298, 0
        %v2355 = vsel %vm844, %v2299, 0
        %v2358 = vsel %vm844, %v2300, 0
        %v2361 = vsel %vm844, %v2301, 0
        %v2364 = vsel %vm844, %v2302, 0
        %v2367 = vsel %vm844, %v2303, 0
        %2369 = vmatprep.subr.bf16.mxu0 0
        %2370 = vmatpush1.bf16.msra.mxu0 %v2317
        %2371 = vmatprep.subr.bf16.mxu0 0
        %2372 = vmatpush1.bf16.msra.mxu0 %v2318
        %2373 = vmatprep.subr.bf16.mxu0 0
        %2374 = vmatpush1.bf16.msra.mxu0 0
        %2375 = vmatprep.subr.bf16.mxu0 0
        %2376 = vmatpush1.bf16.msra.mxu0 0
        %2377 = vmatprep.subr.bf16.mxu0 0
        %2378 = vmatpush1.bf16.msra.mxu0 0
        %2379 = vmatprep.subr.bf16.mxu0 0
        %2380 = vmatpush1.bf16.msra.mxu0 0
        %2381 = vmatprep.subr.bf16.mxu0 0
        %2382 = vmatpush1.bf16.msra.mxu0 0
        %2383 = vmatprep.subr.bf16.mxu0 0
        %2384 = vmatpush1.bf16.msra.mxu0 0
        %2385 = vmatprep.subr.bf16.mxu0 0
        %2386 = vmatpush1.bf16.msra.mxu0 0
        %2387 = vmatprep.subr.bf16.mxu0 0
        %2388 = vmatpush1.bf16.msra.mxu0 0
        %2389 = vmatprep.subr.bf16.mxu0 0
        %2390 = vmatpush1.bf16.msra.mxu0 0
        %2391 = vmatprep.subr.bf16.mxu0 0
        %2392 = vmatpush1.bf16.msra.mxu0 0
        %2393 = vmatprep.subr.bf16.mxu0 0
        %2394 = vmatpush1.bf16.msra.mxu0 0
        %2395 = vmatprep.subr.bf16.mxu0 0
        %2396 = vmatpush1.bf16.msra.mxu0 0
        %2397 = vmatprep.subr.bf16.mxu0 0
        %2398 = vmatpush1.bf16.msra.mxu0 0
        %2399 = vmatprep.subr.bf16.mxu0 0
        %2400 = vmatpush1.bf16.msra.mxu0 0
        %2401 = vmatprep.mubr.bf16.mxu0 0
        %2402 = vmatmul.mubr.bf16.gmra.mrb[0].mxu0 %v2322
        %v2403 = vpop.f32.mrb[0].mxu0
        %v2404 = vadd.f32 0.0, %v2403
        %v2405 = vpop.f32.mrb[0].mxu0
        %v2406 = vpop.f32.mrb[0].mxu0
        %v2407 = vadd.f32 0.0, %v2406
        %v2408 = vpop.f32.mrb[0].mxu0
        %2409 = vmatprep.mubr.bf16.mxu0 0
        %2410 = vmatmul.mubr.bf16.gmra.mrb[0].mxu0 %v2325
        %v2411 = vpop.f32.mrb[0].mxu0
        %v2412 = vadd.f32 0.0, %v2411
        %v2413 = vpop.f32.mrb[0].mxu0
        %v2414 = vpop.f32.mrb[0].mxu0
        %v2415 = vadd.f32 0.0, %v2414
        %v2416 = vpop.f32.mrb[0].mxu0
        %2417 = vmatprep.mubr.bf16.mxu0 0
        %2418 = vmatmul.mubr.bf16.gmra.mrb[0].mxu0 %v2328
        %v2419 = vpop.f32.mrb[0].mxu0
        %v2420 = vadd.f32 0.0, %v2419
        %v2421 = vpop.f32.mrb[0].mxu0
        %v2422 = vpop.f32.mrb[0].mxu0
        %v2423 = vadd.f32 0.0, %v2422
        %v2424 = vpop.f32.mrb[0].mxu0
        %2425 = vmatprep.mubr.bf16.mxu0 0
        %2426 = vmatmul.mubr.bf16.gmra.mrb[0].mxu0 %v2331
        %v2427 = vpop.f32.mrb[0].mxu0
        %v2428 = vadd.f32 0.0, %v2427
        %v2429 = vpop.f32.mrb[0].mxu0
        %v2430 = vpop.f32.mrb[0].mxu0
        %v2431 = vadd.f32 0.0, %v2430
        %v2432 = vpop.f32.mrb[0].mxu0
        %2433 = vmatprep.mubr.bf16.mxu0 0
        %2434 = vmatmul.mubr.bf16.gmra.mrb[0].mxu0 %v2334
        %v2435 = vpop.f32.mrb[0].mxu0
        %v2436 = vadd.f32 0.0, %v2435
        %v2437 = vpop.f32.mrb[0].mxu0
        %v2438 = vpop.f32.mrb[0].mxu0
        %v2439 = vadd.f32 0.0, %v2438
        %v2440 = vpop.f32.mrb[0].mxu0
        %2441 = vmatprep.mubr.bf16.mxu0 0
        %2442 = vmatmul.mubr.bf16.gmra.mrb[0].mxu0 %v2337
        %v2443 = vpop.f32.mrb[0].mxu0
        %v2444 = vadd.f32 0.0, %v2443
        %v2445 = vpop.f32.mrb[0].mxu0
        %v2446 = vpop.f32.mrb[0].mxu0
        %v2447 = vadd.f32 0.0, %v2446
        %v2448 = vpop.f32.mrb[0].mxu0
        %2449 = vmatprep.mubr.bf16.mxu0 0
        %2450 = vmatmul.mubr.bf16.gmra.mrb[0].mxu0 %v2340
        %v2451 = vpop.f32.mrb[0].mxu0
        %v2452 = vadd.f32 0.0, %v2451
        %v2453 = vpop.f32.mrb[0].mxu0
        %v2454 = vpop.f32.mrb[0].mxu0
        %v2455 = vadd.f32 0.0, %v2454
        %v2456 = vpop.f32.mrb[0].mxu0
        %2457 = vmatprep.mubr.bf16.mxu0 0
        %2458 = vmatmul.mubr.bf16.gmra.mrb[0].mxu0 %v2343
        %v2459 = vpop.f32.mrb[0].mxu0
        %v2460 = vadd.f32 0.0, %v2459
        %v2461 = vpop.f32.mrb[0].mxu0
        %v2462 = vpop.f32.mrb[0].mxu0
        %v2463 = vadd.f32 0.0, %v2462
        %v2464 = vpop.f32.mrb[0].mxu0
        %2465 = vmatprep.mubr.bf16.mxu0 0
        %2466 = vmatmul.mubr.bf16.gmra.mrb[0].mxu0 %v2346
        %v2467 = vpop.f32.mrb[0].mxu0
        %v2468 = vadd.f32 0.0, %v2467
        %v2469 = vpop.f32.mrb[0].mxu0
        %v2470 = vpop.f32.mrb[0].mxu0
        %v2471 = vadd.f32 0.0, %v2470
        %v2472 = vpop.f32.mrb[0].mxu0
        %2473 = vmatprep.mubr.bf16.mxu0 0
        %2474 = vmatmul.mubr.bf16.gmra.mrb[0].mxu0 %v2349
        %v2475 = vpop.f32.mrb[0].mxu0
        %v2476 = vadd.f32 0.0, %v2475
        %v2477 = vpop.f32.mrb[0].mxu0
        %v2478 = vpop.f32.mrb[0].mxu0
        %v2479 = vadd.f32 0.0, %v2478
        %v2480 = vpop.f32.mrb[0].mxu0
        %2481 = vmatprep.mubr.bf16.mxu0 0
        %2482 = vmatmul.mubr.bf16.gmra.mrb[0].mxu0 %v2352
        %v2483 = vpop.f32.mrb[0].mxu0
        %v2484 = vadd.f32 0.0, %v2483
        %v2485 = vpop.f32.mrb[0].mxu0
        %v2486 = vpop.f32.mrb[0].mxu0
        %v2487 = vadd.f32 0.0, %v2486
        %v2488 = vpop.f32.mrb[0].mxu0
        %2489 = vmatprep.mubr.bf16.mxu0 0
        %2490 = vmatmul.mubr.bf16.gmra.mrb[0].mxu0 %v2355
        %v2491 = vpop.f32.mrb[0].mxu0
        %v2492 = vadd.f32 0.0, %v2491
        %v2493 = vpop.f32.mrb[0].mxu0
        %v2494 = vpop.f32.mrb[0].mxu0
        %v2495 = vadd.f32 0.0, %v2494
        %v2496 = vpop.f32.mrb[0].mxu0
        %2497 = vmatprep.mubr.bf16.mxu0 0
        %2498 = vmatmul.mubr.bf16.gmra.mrb[0].mxu0 %v2358
        %v2499 = vpop.f32.mrb[0].mxu0
        %v2500 = vadd.f32 0.0, %v2499
        %v2501 = vpop.f32.mrb[0].mxu0
        %v2502 = vpop.f32.mrb[0].mxu0
        %v2503 = vadd.f32 0.0, %v2502
        %v2504 = vpop.f32.mrb[0].mxu0
        %2505 = vmatprep.mubr.bf16.mxu0 0
        %2506 = vmatmul.mubr.bf16.gmra.mrb[0].mxu0 %v2361
        %v2507 = vpop.f32.mrb[0].mxu0
        %v2508 = vadd.f32 0.0, %v2507
        %v2509 = vpop.f32.mrb[0].mxu0
        %v2510 = vpop.f32.mrb[0].mxu0
        %v2511 = vadd.f32 0.0, %v2510
        %v2512 = vpop.f32.mrb[0].mxu0
        %2513 = vmatprep.mubr.bf16.mxu0 0
        %2514 = vmatmul.mubr.bf16.gmra.mrb[0].mxu0 %v2364
        %v2515 = vpop.f32.mrb[0].mxu0
        %v2516 = vadd.f32 0.0, %v2515
        %v2517 = vpop.f32.mrb[0].mxu0
        %v2518 = vpop.f32.mrb[0].mxu0
        %v2519 = vadd.f32 0.0, %v2518
        %v2520 = vpop.f32.mrb[0].mxu0
        %2521 = vmatprep.mubr.bf16.mxu0 0
        %2522 = vmatmul.mubr.bf16.gmra.mrb[0].mxu0 %v2367
        %v2523 = vpop.f32.mrb[0].mxu0
        %v2524 = vadd.f32 0.0, %v2523
        %v2525 = vpop.f32.mrb[0].mxu0
        %v2526 = vpop.f32.mrb[0].mxu0
        %v2527 = vadd.f32 0.0, %v2526
        %v2528 = vpop.f32.mrb[0].mxu0
        %2529 = vdwg.mxu0
        %v2530 = vadd.f32 %v2224, %v2404
        %v2531 = vadd.f32 %v2225, %v2407
        %v2532 = vadd.f32 %v2226, %v2412
        %v2533 = vadd.f32 %v2227, %v2415
        %v2534 = vadd.f32 %v2228, %v2420
        %v2535 = vadd.f32 %v2229, %v2423
        %v2536 = vadd.f32 %v2230, %v2428
        %v2537 = vadd.f32 %v2231, %v2431
        %v2538 = vadd.f32 %v2232, %v2436
        %v2539 = vadd.f32 %v2233, %v2439
        %v2540 = vadd.f32 %v2234, %v2444
        %v2541 = vadd.f32 %v2235, %v2447
        %v2542 = vadd.f32 %v2236, %v2452
        %v2543 = vadd.f32 %v2237, %v2455
        %v2544 = vadd.f32 %v2238, %v2460
        %v2545 = vadd.f32 %v2239, %v2463
        %v2546 = vadd.f32 %v2240, %v2468
        %v2547 = vadd.f32 %v2241, %v2471
        %v2548 = vadd.f32 %v2242, %v2476
        %v2549 = vadd.f32 %v2243, %v2479
        %v2550 = vadd.f32 %v2244, %v2484
        %v2551 = vadd.f32 %v2245, %v2487
        %v2552 = vadd.f32 %v2246, %v2492
        %v2553 = vadd.f32 %v2247, %v2495
        %v2554 = vadd.f32 %v2248, %v2500
        %v2555 = vadd.f32 %v2249, %v2503
        %v2556 = vadd.f32 %v2250, %v2508
        %v2557 = vadd.f32 %v2251, %v2511
        %v2558 = vadd.f32 %v2252, %v2516
        %v2559 = vadd.f32 %v2253, %v2519
        %v2560 = vadd.f32 %v2254, %v2524
        %v2561 = vadd.f32 %v2255, %v2527
        %v2562 = vld [vmem:[#allocation2 + $0xa] sm:$0xff]
        %v2563 = vld [vmem:[#allocation2 + $0x12] sm:$0xff]
        %v2564 = vld [vmem:[#allocation2 + $0x2a] sm:$0xff]
        %v2565 = vld [vmem:[#allocation2 + $0x32] sm:$0xff]
        %v2566 = vld [vmem:[#allocation2 + $0x4a] sm:$0xff]
        %v2567 = vld [vmem:[#allocation2 + $0x52] sm:$0xff]
        %v2568 = vld [vmem:[#allocation2 + $0x6a] sm:$0xff]
        %v2569 = vld [vmem:[#allocation2 + $0x72] sm:$0xff]
        %v2570 = vld [vmem:[#allocation2 + $0x8a] sm:$0xff]
        %v2571 = vld [vmem:[#allocation2 + $0x92] sm:$0xff]
        %v2572 = vld [vmem:[#allocation2 + $0xaa] sm:$0xff]
        %v2573 = vld [vmem:[#allocation2 + $0xb2] sm:$0xff]
        %v2574 = vld [vmem:[#allocation2 + $0xca] sm:$0xff]
        %v2575 = vld [vmem:[#allocation2 + $0xd2] sm:$0xff]
        %v2576 = vld [vmem:[#allocation2 + $0xea] sm:$0xff]
        %v2577 = vld [vmem:[#allocation2 + $0xf2] sm:$0xff]
        %v2578 = vld [vmem:[#allocation2 + $0x10a] sm:$0xff]
        %v2579 = vld [vmem:[#allocation2 + $0x112] sm:$0xff]
        %v2580 = vld [vmem:[#allocation2 + $0x12a] sm:$0xff]
        %v2581 = vld [vmem:[#allocation2 + $0x132] sm:$0xff]
        %v2582 = vld [vmem:[#allocation2 + $0x14a] sm:$0xff]
        %v2583 = vld [vmem:[#allocation2 + $0x152] sm:$0xff]
        %v2584 = vld [vmem:[#allocation2 + $0x16a] sm:$0xff]
        %v2585 = vld [vmem:[#allocation2 + $0x172] sm:$0xff]
        %v2586 = vld [vmem:[#allocation2 + $0x18a] sm:$0xff]
        %v2587 = vld [vmem:[#allocation2 + $0x192] sm:$0xff]
        %v2588 = vld [vmem:[#allocation2 + $0x1aa] sm:$0xff]
        %v2589 = vld [vmem:[#allocation2 + $0x1b2] sm:$0xff]
        %v2590 = vld [vmem:[#allocation2 + $0x1ca] sm:$0xff]
        %v2591 = vld [vmem:[#allocation2 + $0x1d2] sm:$0xff]
        %v2592 = vld [vmem:[#allocation2 + $0x1ea] sm:$0xff]
        %v2593 = vld [vmem:[#allocation2 + $0x1f2] sm:$0xff]
        %v2594 = vpack.c.bf16 %v2563, %v2562
        %v2595 = vpack.c.bf16 %v2565, %v2564
        %v2596 = vpack.c.bf16 %v2567, %v2566
        %v2597 = vpack.c.bf16 %v2569, %v2568
        %v2598 = vpack.c.bf16 %v2571, %v2570
        %v2599 = vpack.c.bf16 %v2573, %v2572
        %v2600 = vpack.c.bf16 %v2575, %v2574
        %v2601 = vpack.c.bf16 %v2577, %v2576
        %v2602 = vpack.c.bf16 %v2579, %v2578
        %v2603 = vpack.c.bf16 %v2581, %v2580
        %v2604 = vpack.c.bf16 %v2583, %v2582
        %v2605 = vpack.c.bf16 %v2585, %v2584
        %v2606 = vpack.c.bf16 %v2587, %v2586
        %v2607 = vpack.c.bf16 %v2589, %v2588
        %v2608 = vpack.c.bf16 %v2591, %v2590
        %v2609 = vpack.c.bf16 %v2593, %v2592
        %s2610 = scalar_lea.vmem [#allocation11], 80
        %v2611 = vld [vmem:[%s2610] sm:$0xf]
        %v2612 = vld [vmem:[%s2610 + $0x4] sm:$0xf]
        %v2613 = vld [vmem:[%s2610 + $0x8] sm:$0xf]
        %v2614 = vld [vmem:[%s2610 + $0xc] sm:$0xf]
        %v2619 = vunpack.c.l.b16 %v2611
        %v2620 = vunpack.c.l.b16 %v2612
        %v2621 = vunpack.c.l.b16 %v2613
        %v2622 = vunpack.c.l.b16 %v2614
        %v2623 = vpack.c.b16 %v2620, %v2619
        %v2624 = vpack.c.b16 %v2622, %v2621
        %v2628 = vsel %vm844, %v2594, 0
        %v2631 = vsel %vm844, %v2595, 0
        %v2634 = vsel %vm844, %v2596, 0
        %v2637 = vsel %vm844, %v2597, 0
        %v2640 = vsel %vm844, %v2598, 0
        %v2643 = vsel %vm844, %v2599, 0
        %v2646 = vsel %vm844, %v2600, 0
        %v2649 = vsel %vm844, %v2601, 0
        %v2652 = vsel %vm844, %v2602, 0
        %v2655 = vsel %vm844, %v2603, 0
        %v2658 = vsel %vm844, %v2604, 0
        %v2661 = vsel %vm844, %v2605, 0
        %v2664 = vsel %vm844, %v2606, 0
        %v2667 = vsel %vm844, %v2607, 0
        %v2670 = vsel %vm844, %v2608, 0
        %v2673 = vsel %vm844, %v2609, 0
        %2675 = vmatprep.subr.bf16.mxu0 0
        %2676 = vmatpush1.bf16.msra.mxu0 %v2623
        %2677 = vmatprep.subr.bf16.mxu0 0
        %2678 = vmatpush1.bf16.msra.mxu0 %v2624
        %2679 = vmatprep.subr.bf16.mxu0 0
        %2680 = vmatpush1.bf16.msra.mxu0 0
        %2681 = vmatprep.subr.bf16.mxu0 0
        %2682 = vmatpush1.bf16.msra.mxu0 0
        %2683 = vmatprep.subr.bf16.mxu0 0
        %2684 = vmatpush1.bf16.msra.mxu0 0
        %2685 = vmatprep.subr.bf16.mxu0 0
        %2686 = vmatpush1.bf16.msra.mxu0 0
        %2687 = vmatprep.subr.bf16.mxu0 0
        %2688 = vmatpush1.bf16.msra.mxu0 0
        %2689 = vmatprep.subr.bf16.mxu0 0
        %2690 = vmatpush1.bf16.msra.mxu0 0
        %2691 = vmatprep.subr.bf16.mxu0 0
        %2692 = vmatpush1.bf16.msra.mxu0 0
        %2693 = vmatprep.subr.bf16.mxu0 0
        %2694 = vmatpush1.bf16.msra.mxu0 0
        %2695 = vmatprep.subr.bf16.mxu0 0
        %2696 = vmatpush1.bf16.msra.mxu0 0
        %2697 = vmatprep.subr.bf16.mxu0 0
        %2698 = vmatpush1.bf16.msra.mxu0 0
        %2699 = vmatprep.subr.bf16.mxu0 0
        %2700 = vmatpush1.bf16.msra.mxu0 0
        %2701 = vmatprep.subr.bf16.mxu0 0
        %2702 = vmatpush1.bf16.msra.mxu0 0
        %2703 = vmatprep.subr.bf16.mxu0 0
        %2704 = vmatpush1.bf16.msra.mxu0 0
        %2705 = vmatprep.subr.bf16.mxu0 0
        %2706 = vmatpush1.bf16.msra.mxu0 0
        %2707 = vmatprep.mubr.bf16.mxu0 0
        %2708 = vmatmul.mubr.bf16.gmra.mrb[0].mxu0 %v2628
        %v2709 = vpop.f32.mrb[0].mxu0
        %v2710 = vadd.f32 0.0, %v2709
        %v2711 = vpop.f32.mrb[0].mxu0
        %v2712 = vpop.f32.mrb[0].mxu0
        %v2713 = vadd.f32 0.0, %v2712
        %v2714 = vpop.f32.mrb[0].mxu0
        %2715 = vmatprep.mubr.bf16.mxu0 0
        %2716 = vmatmul.mubr.bf16.gmra.mrb[0].mxu0 %v2631
        %v2717 = vpop.f32.mrb[0].mxu0
        %v2718 = vadd.f32 0.0, %v2717
        %v2719 = vpop.f32.mrb[0].mxu0
        %v2720 = vpop.f32.mrb[0].mxu0
        %v2721 = vadd.f32 0.0, %v2720
        %v2722 = vpop.f32.mrb[0].mxu0
        %2723 = vmatprep.mubr.bf16.mxu0 0
        %2724 = vmatmul.mubr.bf16.gmra.mrb[0].mxu0 %v2634
        %v2725 = vpop.f32.mrb[0].mxu0
        %v2726 = vadd.f32 0.0, %v2725
        %v2727 = vpop.f32.mrb[0].mxu0
        %v2728 = vpop.f32.mrb[0].mxu0
        %v2729 = vadd.f32 0.0, %v2728
        %v2730 = vpop.f32.mrb[0].mxu0
        %2731 = vmatprep.mubr.bf16.mxu0 0
        %2732 = vmatmul.mubr.bf16.gmra.mrb[0].mxu0 %v2637
        %v2733 = vpop.f32.mrb[0].mxu0
        %v2734 = vadd.f32 0.0, %v2733
        %v2735 = vpop.f32.mrb[0].mxu0
        %v2736 = vpop.f32.mrb[0].mxu0
        %v2737 = vadd.f32 0.0, %v2736
        %v2738 = vpop.f32.mrb[0].mxu0
        %2739 = vmatprep.mubr.bf16.mxu0 0
        %2740 = vmatmul.mubr.bf16.gmra.mrb[0].mxu0 %v2640
        %v2741 = vpop.f32.mrb[0].mxu0
        %v2742 = vadd.f32 0.0, %v2741
        %v2743 = vpop.f32.mrb[0].mxu0
        %v2744 = vpop.f32.mrb[0].mxu0
        %v2745 = vadd.f32 0.0, %v2744
        %v2746 = vpop.f32.mrb[0].mxu0
        %2747 = vmatprep.mubr.bf16.mxu0 0
        %2748 = vmatmul.mubr.bf16.gmra.mrb[0].mxu0 %v2643
        %v2749 = vpop.f32.mrb[0].mxu0
        %v2750 = vadd.f32 0.0, %v2749
        %v2751 = vpop.f32.mrb[0].mxu0
        %v2752 = vpop.f32.mrb[0].mxu0
        %v2753 = vadd.f32 0.0, %v2752
        %v2754 = vpop.f32.mrb[0].mxu0
        %2755 = vmatprep.mubr.bf16.mxu0 0
        %2756 = vmatmul.mubr.bf16.gmra.mrb[0].mxu0 %v2646
        %v2757 = vpop.f32.mrb[0].mxu0
        %v2758 = vadd.f32 0.0, %v2757
        %v2759 = vpop.f32.mrb[0].mxu0
        %v2760 = vpop.f32.mrb[0].mxu0
        %v2761 = vadd.f32 0.0, %v2760
        %v2762 = vpop.f32.mrb[0].mxu0
        %2763 = vmatprep.mubr.bf16.mxu0 0
        %2764 = vmatmul.mubr.bf16.gmra.mrb[0].mxu0 %v2649
        %v2765 = vpop.f32.mrb[0].mxu0
        %v2766 = vadd.f32 0.0, %v2765
        %v2767 = vpop.f32.mrb[0].mxu0
        %v2768 = vpop.f32.mrb[0].mxu0
        %v2769 = vadd.f32 0.0, %v2768
        %v2770 = vpop.f32.mrb[0].mxu0
        %2771 = vmatprep.mubr.bf16.mxu0 0
        %2772 = vmatmul.mubr.bf16.gmra.mrb[0].mxu0 %v2652
        %v2773 = vpop.f32.mrb[0].mxu0
        %v2774 = vadd.f32 0.0, %v2773
        %v2775 = vpop.f32.mrb[0].mxu0
        %v2776 = vpop.f32.mrb[0].mxu0
        %v2777 = vadd.f32 0.0, %v2776
        %v2778 = vpop.f32.mrb[0].mxu0
        %2779 = vmatprep.mubr.bf16.mxu0 0
        %2780 = vmatmul.mubr.bf16.gmra.mrb[0].mxu0 %v2655
        %v2781 = vpop.f32.mrb[0].mxu0
        %v2782 = vadd.f32 0.0, %v2781
        %v2783 = vpop.f32.mrb[0].mxu0
        %v2784 = vpop.f32.mrb[0].mxu0
        %v2785 = vadd.f32 0.0, %v2784
        %v2786 = vpop.f32.mrb[0].mxu0
        %2787 = vmatprep.mubr.bf16.mxu0 0
        %2788 = vmatmul.mubr.bf16.gmra.mrb[0].mxu0 %v2658
        %v2789 = vpop.f32.mrb[0].mxu0
        %v2790 = vadd.f32 0.0, %v2789
        %v2791 = vpop.f32.mrb[0].mxu0
        %v2792 = vpop.f32.mrb[0].mxu0
        %v2793 = vadd.f32 0.0, %v2792
        %v2794 = vpop.f32.mrb[0].mxu0
        %2795 = vmatprep.mubr.bf16.mxu0 0
        %2796 = vmatmul.mubr.bf16.gmra.mrb[0].mxu0 %v2661
        %v2797 = vpop.f32.mrb[0].mxu0
        %v2798 = vadd.f32 0.0, %v2797
        %v2799 = vpop.f32.mrb[0].mxu0
        %v2800 = vpop.f32.mrb[0].mxu0
        %v2801 = vadd.f32 0.0, %v2800
        %v2802 = vpop.f32.mrb[0].mxu0
        %2803 = vmatprep.mubr.bf16.mxu0 0
        %2804 = vmatmul.mubr.bf16.gmra.mrb[0].mxu0 %v2664
        %v2805 = vpop.f32.mrb[0].mxu0
        %v2806 = vadd.f32 0.0, %v2805
        %v2807 = vpop.f32.mrb[0].mxu0
        %v2808 = vpop.f32.mrb[0].mxu0
        %v2809 = vadd.f32 0.0, %v2808
        %v2810 = vpop.f32.mrb[0].mxu0
        %2811 = vmatprep.mubr.bf16.mxu0 0
        %2812 = vmatmul.mubr.bf16.gmra.mrb[0].mxu0 %v2667
        %v2813 = vpop.f32.mrb[0].mxu0
        %v2814 = vadd.f32 0.0, %v2813
        %v2815 = vpop.f32.mrb[0].mxu0
        %v2816 = vpop.f32.mrb[0].mxu0
        %v2817 = vadd.f32 0.0, %v2816
        %v2818 = vpop.f32.mrb[0].mxu0
        %2819 = vmatprep.mubr.bf16.mxu0 0
        %2820 = vmatmul.mubr.bf16.gmra.mrb[0].mxu0 %v2670
        %v2821 = vpop.f32.mrb[0].mxu0
        %v2822 = vadd.f32 0.0, %v2821
        %v2823 = vpop.f32.mrb[0].mxu0
        %v2824 = vpop.f32.mrb[0].mxu0
        %v2825 = vadd.f32 0.0, %v2824
        %v2826 = vpop.f32.mrb[0].mxu0
        %2827 = vmatprep.mubr.bf16.mxu0 0
        %2828 = vmatmul.mubr.bf16.gmra.mrb[0].mxu0 %v2673
        %v2829 = vpop.f32.mrb[0].mxu0
        %v2830 = vadd.f32 0.0, %v2829
        %v2831 = vpop.f32.mrb[0].mxu0
        %v2832 = vpop.f32.mrb[0].mxu0
        %v2833 = vadd.f32 0.0, %v2832
        %v2834 = vpop.f32.mrb[0].mxu0
        %2835 = vdwg.mxu0
        %v2836 = vadd.f32 %v2530, %v2710
        %v2837 = vadd.f32 %v2531, %v2713
        %v2838 = vadd.f32 %v2532, %v2718
        %v2839 = vadd.f32 %v2533, %v2721
        %v2840 = vadd.f32 %v2534, %v2726
        %v2841 = vadd.f32 %v2535, %v2729
        %v2842 = vadd.f32 %v2536, %v2734
        %v2843 = vadd.f32 %v2537, %v2737
        %v2844 = vadd.f32 %v2538, %v2742
        %v2845 = vadd.f32 %v2539, %v2745
        %v2846 = vadd.f32 %v2540, %v2750
        %v2847 = vadd.f32 %v2541, %v2753
        %v2848 = vadd.f32 %v2542, %v2758
        %v2849 = vadd.f32 %v2543, %v2761
        %v2850 = vadd.f32 %v2544, %v2766
        %v2851 = vadd.f32 %v2545, %v2769
        %v2852 = vadd.f32 %v2546, %v2774
        %v2853 = vadd.f32 %v2547, %v2777
        %v2854 = vadd.f32 %v2548, %v2782
        %v2855 = vadd.f32 %v2549, %v2785
        %v2856 = vadd.f32 %v2550, %v2790
        %v2857 = vadd.f32 %v2551, %v2793
        %v2858 = vadd.f32 %v2552, %v2798
        %v2859 = vadd.f32 %v2553, %v2801
        %v2860 = vadd.f32 %v2554, %v2806
        %v2861 = vadd.f32 %v2555, %v2809
        %v2862 = vadd.f32 %v2556, %v2814
        %v2863 = vadd.f32 %v2557, %v2817
        %v2864 = vadd.f32 %v2558, %v2822
        %v2865 = vadd.f32 %v2559, %v2825
        %v2866 = vadd.f32 %v2560, %v2830
        %v2867 = vadd.f32 %v2561, %v2833
        %v2868 = vld [vmem:[#allocation2 + $0xb] sm:$0xff]
        %v2869 = vld [vmem:[#allocation2 + $0x13] sm:$0xff]
        %v2870 = vld [vmem:[#allocation2 + $0x2b] sm:$0xff]
        %v2871 = vld [vmem:[#allocation2 + $0x33] sm:$0xff]
        %v2872 = vld [vmem:[#allocation2 + $0x4b] sm:$0xff]
        %v2873 = vld [vmem:[#allocation2 + $0x53] sm:$0xff]
        %v2874 = vld [vmem:[#allocation2 + $0x6b] sm:$0xff]
        %v2875 = vld [vmem:[#allocation2 + $0x73] sm:$0xff]
        %v2876 = vld [vmem:[#allocation2 + $0x8b] sm:$0xff]
        %v2877 = vld [vmem:[#allocation2 + $0x93] sm:$0xff]
        %v2878 = vld [vmem:[#allocation2 + $0xab] sm:$0xff]
        %v2879 = vld [vmem:[#allocation2 + $0xb3] sm:$0xff]
        %v2880 = vld [vmem:[#allocation2 + $0xcb] sm:$0xff]
        %v2881 = vld [vmem:[#allocation2 + $0xd3] sm:$0xff]
        %v2882 = vld [vmem:[#allocation2 + $0xeb] sm:$0xff]
        %v2883 = vld [vmem:[#allocation2 + $0xf3] sm:$0xff]
        %v2884 = vld [vmem:[#allocation2 + $0x10b] sm:$0xff]
        %v2885 = vld [vmem:[#allocation2 + $0x113] sm:$0xff]
        %v2886 = vld [vmem:[#allocation2 + $0x12b] sm:$0xff]
        %v2887 = vld [vmem:[#allocation2 + $0x133] sm:$0xff]
        %v2888 = vld [vmem:[#allocation2 + $0x14b] sm:$0xff]
        %v2889 = vld [vmem:[#allocation2 + $0x153] sm:$0xff]
        %v2890 = vld [vmem:[#allocation2 + $0x16b] sm:$0xff]
        %v2891 = vld [vmem:[#allocation2 + $0x173] sm:$0xff]
        %v2892 = vld [vmem:[#allocation2 + $0x18b] sm:$0xff]
        %v2893 = vld [vmem:[#allocation2 + $0x193] sm:$0xff]
        %v2894 = vld [vmem:[#allocation2 + $0x1ab] sm:$0xff]
        %v2895 = vld [vmem:[#allocation2 + $0x1b3] sm:$0xff]
        %v2896 = vld [vmem:[#allocation2 + $0x1cb] sm:$0xff]
        %v2897 = vld [vmem:[#allocation2 + $0x1d3] sm:$0xff]
        %v2898 = vld [vmem:[#allocation2 + $0x1eb] sm:$0xff]
        %v2899 = vld [vmem:[#allocation2 + $0x1f3] sm:$0xff]
        %v2900 = vpack.c.bf16 %v2869, %v2868
        %v2901 = vpack.c.bf16 %v2871, %v2870
        %v2902 = vpack.c.bf16 %v2873, %v2872
        %v2903 = vpack.c.bf16 %v2875, %v2874
        %v2904 = vpack.c.bf16 %v2877, %v2876
        %v2905 = vpack.c.bf16 %v2879, %v2878
        %v2906 = vpack.c.bf16 %v2881, %v2880
        %v2907 = vpack.c.bf16 %v2883, %v2882
        %v2908 = vpack.c.bf16 %v2885, %v2884
        %v2909 = vpack.c.bf16 %v2887, %v2886
        %v2910 = vpack.c.bf16 %v2889, %v2888
        %v2911 = vpack.c.bf16 %v2891, %v2890
        %v2912 = vpack.c.bf16 %v2893, %v2892
        %v2913 = vpack.c.bf16 %v2895, %v2894
        %v2914 = vpack.c.bf16 %v2897, %v2896
        %v2915 = vpack.c.bf16 %v2899, %v2898
        %s2916 = scalar_lea.vmem [#allocation11], 96
        %v2917 = vld [vmem:[%s2916] sm:$0xf]
        %v2918 = vld [vmem:[%s2916 + $0x4] sm:$0xf]
        %v2919 = vld [vmem:[%s2916 + $0x8] sm:$0xf]
        %v2920 = vld [vmem:[%s2916 + $0xc] sm:$0xf]
        %v2925 = vunpack.c.l.b16 %v2917
        %v2926 = vunpack.c.l.b16 %v2918
        %v2927 = vunpack.c.l.b16 %v2919
        %v2928 = vunpack.c.l.b16 %v2920
        %v2929 = vpack.c.b16 %v2926, %v2925
        %v2930 = vpack.c.b16 %v2928, %v2927
        %v2934 = vsel %vm844, %v2900, 0
        %v2937 = vsel %vm844, %v2901, 0
        %v2940 = vsel %vm844, %v2902, 0
        %v2943 = vsel %vm844, %v2903, 0
        %v2946 = vsel %vm844, %v2904, 0
        %v2949 = vsel %vm844, %v2905, 0
        %v2952 = vsel %vm844, %v2906, 0
        %v2955 = vsel %vm844, %v2907, 0
        %v2958 = vsel %vm844, %v2908, 0
        %v2961 = vsel %vm844, %v2909, 0
        %v2964 = vsel %vm844, %v2910, 0
        %v2967 = vsel %vm844, %v2911, 0
        %v2970 = vsel %vm844, %v2912, 0
        %v2973 = vsel %vm844, %v2913, 0
        %v2976 = vsel %vm844, %v2914, 0
        %v2979 = vsel %vm844, %v2915, 0
        %2981 = vmatprep.subr.bf16.mxu0 0
        %2982 = vmatpush1.bf16.msra.mxu0 %v2929
        %2983 = vmatprep.subr.bf16.mxu0 0
        %2984 = vmatpush1.bf16.msra.mxu0 %v2930
        %2985 = vmatprep.subr.bf16.mxu0 0
        %2986 = vmatpush1.bf16.msra.mxu0 0
        %2987 = vmatprep.subr.bf16.mxu0 0
        %2988 = vmatpush1.bf16.msra.mxu0 0
        %2989 = vmatprep.subr.bf16.mxu0 0
        %2990 = vmatpush1.bf16.msra.mxu0 0
        %2991 = vmatprep.subr.bf16.mxu0 0
        %2992 = vmatpush1.bf16.msra.mxu0 0
        %2993 = vmatprep.subr.bf16.mxu0 0
        %2994 = vmatpush1.bf16.msra.mxu0 0
        %2995 = vmatprep.subr.bf16.mxu0 0
        %2996 = vmatpush1.bf16.msra.mxu0 0
        %2997 = vmatprep.subr.bf16.mxu0 0
        %2998 = vmatpush1.bf16.msra.mxu0 0
        %2999 = vmatprep.subr.bf16.mxu0 0
        %3000 = vmatpush1.bf16.msra.mxu0 0
        %3001 = vmatprep.subr.bf16.mxu0 0
        %3002 = vmatpush1.bf16.msra.mxu0 0
        %3003 = vmatprep.subr.bf16.mxu0 0
        %3004 = vmatpush1.bf16.msra.mxu0 0
        %3005 = vmatprep.subr.bf16.mxu0 0
        %3006 = vmatpush1.bf16.msra.mxu0 0
        %3007 = vmatprep.subr.bf16.mxu0 0
        %3008 = vmatpush1.bf16.msra.mxu0 0
        %3009 = vmatprep.subr.bf16.mxu0 0
        %3010 = vmatpush1.bf16.msra.mxu0 0
        %3011 = vmatprep.subr.bf16.mxu0 0
        %3012 = vmatpush1.bf16.msra.mxu0 0
        %3013 = vmatprep.mubr.bf16.mxu0 0
        %3014 = vmatmul.mubr.bf16.gmra.mrb[0].mxu0 %v2934
        %v3015 = vpop.f32.mrb[0].mxu0
        %v3016 = vadd.f32 0.0, %v3015
        %v3017 = vpop.f32.mrb[0].mxu0
        %v3018 = vpop.f32.mrb[0].mxu0
        %v3019 = vadd.f32 0.0, %v3018
        %v3020 = vpop.f32.mrb[0].mxu0
        %3021 = vmatprep.mubr.bf16.mxu0 0
        %3022 = vmatmul.mubr.bf16.gmra.mrb[0].mxu0 %v2937
        %v3023 = vpop.f32.mrb[0].mxu0
        %v3024 = vadd.f32 0.0, %v3023
        %v3025 = vpop.f32.mrb[0].mxu0
        %v3026 = vpop.f32.mrb[0].mxu0
        %v3027 = vadd.f32 0.0, %v3026
        %v3028 = vpop.f32.mrb[0].mxu0
        %3029 = vmatprep.mubr.bf16.mxu0 0
        %3030 = vmatmul.mubr.bf16.gmra.mrb[0].mxu0 %v2940
        %v3031 = vpop.f32.mrb[0].mxu0
        %v3032 = vadd.f32 0.0, %v3031
        %v3033 = vpop.f32.mrb[0].mxu0
        %v3034 = vpop.f32.mrb[0].mxu0
        %v3035 = vadd.f32 0.0, %v3034
        %v3036 = vpop.f32.mrb[0].mxu0
        %3037 = vmatprep.mubr.bf16.mxu0 0
        %3038 = vmatmul.mubr.bf16.gmra.mrb[0].mxu0 %v2943
        %v3039 = vpop.f32.mrb[0].mxu0
        %v3040 = vadd.f32 0.0, %v3039
        %v3041 = vpop.f32.mrb[0].mxu0
        %v3042 = vpop.f32.mrb[0].mxu0
        %v3043 = vadd.f32 0.0, %v3042
        %v3044 = vpop.f32.mrb[0].mxu0
        %3045 = vmatprep.mubr.bf16.mxu0 0
        %3046 = vmatmul.mubr.bf16.gmra.mrb[0].mxu0 %v2946
        %v3047 = vpop.f32.mrb[0].mxu0
        %v3048 = vadd.f32 0.0, %v3047
        %v3049 = vpop.f32.mrb[0].mxu0
        %v3050 = vpop.f32.mrb[0].mxu0
        %v3051 = vadd.f32 0.0, %v3050
        %v3052 = vpop.f32.mrb[0].mxu0
        %3053 = vmatprep.mubr.bf16.mxu0 0
        %3054 = vmatmul.mubr.bf16.gmra.mrb[0].mxu0 %v2949
        %v3055 = vpop.f32.mrb[0].mxu0
        %v3056 = vadd.f32 0.0, %v3055
        %v3057 = vpop.f32.mrb[0].mxu0
        %v3058 = vpop.f32.mrb[0].mxu0
        %v3059 = vadd.f32 0.0, %v3058
        %v3060 = vpop.f32.mrb[0].mxu0
        %3061 = vmatprep.mubr.bf16.mxu0 0
        %3062 = vmatmul.mubr.bf16.gmra.mrb[0].mxu0 %v2952
        %v3063 = vpop.f32.mrb[0].mxu0
        %v3064 = vadd.f32 0.0, %v3063
        %v3065 = vpop.f32.mrb[0].mxu0
        %v3066 = vpop.f32.mrb[0].mxu0
        %v3067 = vadd.f32 0.0, %v3066
        %v3068 = vpop.f32.mrb[0].mxu0
        %3069 = vmatprep.mubr.bf16.mxu0 0
        %3070 = vmatmul.mubr.bf16.gmra.mrb[0].mxu0 %v2955
        %v3071 = vpop.f32.mrb[0].mxu0
        %v3072 = vadd.f32 0.0, %v3071
        %v3073 = vpop.f32.mrb[0].mxu0
        %v3074 = vpop.f32.mrb[0].mxu0
        %v3075 = vadd.f32 0.0, %v3074
        %v3076 = vpop.f32.mrb[0].mxu0
        %3077 = vmatprep.mubr.bf16.mxu0 0
        %3078 = vmatmul.mubr.bf16.gmra.mrb[0].mxu0 %v2958
        %v3079 = vpop.f32.mrb[0].mxu0
        %v3080 = vadd.f32 0.0, %v3079
        %v3081 = vpop.f32.mrb[0].mxu0
        %v3082 = vpop.f32.mrb[0].mxu0
        %v3083 = vadd.f32 0.0, %v3082
        %v3084 = vpop.f32.mrb[0].mxu0
        %3085 = vmatprep.mubr.bf16.mxu0 0
        %3086 = vmatmul.mubr.bf16.gmra.mrb[0].mxu0 %v2961
        %v3087 = vpop.f32.mrb[0].mxu0
        %v3088 = vadd.f32 0.0, %v3087
        %v3089 = vpop.f32.mrb[0].mxu0
        %v3090 = vpop.f32.mrb[0].mxu0
        %v3091 = vadd.f32 0.0, %v3090
        %v3092 = vpop.f32.mrb[0].mxu0
        %3093 = vmatprep.mubr.bf16.mxu0 0
        %3094 = vmatmul.mubr.bf16.gmra.mrb[0].mxu0 %v2964
        %v3095 = vpop.f32.mrb[0].mxu0
        %v3096 = vadd.f32 0.0, %v3095
        %v3097 = vpop.f32.mrb[0].mxu0
        %v3098 = vpop.f32.mrb[0].mxu0
        %v3099 = vadd.f32 0.0, %v3098
        %v3100 = vpop.f32.mrb[0].mxu0
        %3101 = vmatprep.mubr.bf16.mxu0 0
        %3102 = vmatmul.mubr.bf16.gmra.mrb[0].mxu0 %v2967
        %v3103 = vpop.f32.mrb[0].mxu0
        %v3104 = vadd.f32 0.0, %v3103
        %v3105 = vpop.f32.mrb[0].mxu0
        %v3106 = vpop.f32.mrb[0].mxu0
        %v3107 = vadd.f32 0.0, %v3106
        %v3108 = vpop.f32.mrb[0].mxu0
        %3109 = vmatprep.mubr.bf16.mxu0 0
        %3110 = vmatmul.mubr.bf16.gmra.mrb[0].mxu0 %v2970
        %v3111 = vpop.f32.mrb[0].mxu0
        %v3112 = vadd.f32 0.0, %v3111
        %v3113 = vpop.f32.mrb[0].mxu0
        %v3114 = vpop.f32.mrb[0].mxu0
        %v3115 = vadd.f32 0.0, %v3114
        %v3116 = vpop.f32.mrb[0].mxu0
        %3117 = vmatprep.mubr.bf16.mxu0 0
        %3118 = vmatmul.mubr.bf16.gmra.mrb[0].mxu0 %v2973
        %v3119 = vpop.f32.mrb[0].mxu0
        %v3120 = vadd.f32 0.0, %v3119
        %v3121 = vpop.f32.mrb[0].mxu0
        %v3122 = vpop.f32.mrb[0].mxu0
        %v3123 = vadd.f32 0.0, %v3122
        %v3124 = vpop.f32.mrb[0].mxu0
        %3125 = vmatprep.mubr.bf16.mxu0 0
        %3126 = vmatmul.mubr.bf16.gmra.mrb[0].mxu0 %v2976
        %v3127 = vpop.f32.mrb[0].mxu0
        %v3128 = vadd.f32 0.0, %v3127
        %v3129 = vpop.f32.mrb[0].mxu0
        %v3130 = vpop.f32.mrb[0].mxu0
        %v3131 = vadd.f32 0.0, %v3130
        %v3132 = vpop.f32.mrb[0].mxu0
        %3133 = vmatprep.mubr.bf16.mxu0 0
        %3134 = vmatmul.mubr.bf16.gmra.mrb[0].mxu0 %v2979
        %v3135 = vpop.f32.mrb[0].mxu0
        %v3136 = vadd.f32 0.0, %v3135
        %v3137 = vpop.f32.mrb[0].mxu0
        %v3138 = vpop.f32.mrb[0].mxu0
        %v3139 = vadd.f32 0.0, %v3138
        %v3140 = vpop.f32.mrb[0].mxu0
        %3141 = vdwg.mxu0
        %v3142 = vadd.f32 %v2836, %v3016
        %v3143 = vadd.f32 %v2837, %v3019
        %v3144 = vadd.f32 %v2838, %v3024
        %v3145 = vadd.f32 %v2839, %v3027
        %v3146 = vadd.f32 %v2840, %v3032
        %v3147 = vadd.f32 %v2841, %v3035
        %v3148 = vadd.f32 %v2842, %v3040
        %v3149 = vadd.f32 %v2843, %v3043
        %v3150 = vadd.f32 %v2844, %v3048
        %v3151 = vadd.f32 %v2845, %v3051
        %v3152 = vadd.f32 %v2846, %v3056
        %v3153 = vadd.f32 %v2847, %v3059
        %v3154 = vadd.f32 %v2848, %v3064
        %v3155 = vadd.f32 %v2849, %v3067
        %v3156 = vadd.f32 %v2850, %v3072
        %v3157 = vadd.f32 %v2851, %v3075
        %v3158 = vadd.f32 %v2852, %v3080
        %v3159 = vadd.f32 %v2853, %v3083
        %v3160 = vadd.f32 %v2854, %v3088
        %v3161 = vadd.f32 %v2855, %v3091
        %v3162 = vadd.f32 %v2856, %v3096
        %v3163 = vadd.f32 %v2857, %v3099
        %v3164 = vadd.f32 %v2858, %v3104
        %v3165 = vadd.f32 %v2859, %v3107
        %v3166 = vadd.f32 %v2860, %v3112
        %v3167 = vadd.f32 %v2861, %v3115
        %v3168 = vadd.f32 %v2862, %v3120
        %v3169 = vadd.f32 %v2863, %v3123
        %v3170 = vadd.f32 %v2864, %v3128
        %v3171 = vadd.f32 %v2865, %v3131
        %v3172 = vadd.f32 %v2866, %v3136
        %v3173 = vadd.f32 %v2867, %v3139
        %v3174 = vld [vmem:[#allocation13] sm:$0x1]
        %v3176 = vlaneseq
        %v3177 = vshrl.u32 %v3176, 7
        %v3178 = vsub.s32 0, %v3177
        %v3179 = vrot.slane %v3174, %v3178
        %v3181 = vadd.f32 %v3142, %v3179
        %v3182 = vadd.f32 %v3143, %v3179
        %v3183 = vadd.f32 %v3144, %v3179
        %v3184 = vadd.f32 %v3145, %v3179
        %v3185 = vadd.f32 %v3146, %v3179
        %v3186 = vadd.f32 %v3147, %v3179
        %v3187 = vadd.f32 %v3148, %v3179
        %v3188 = vadd.f32 %v3149, %v3179
        %v3189 = vadd.f32 %v3150, %v3179
        %v3190 = vadd.f32 %v3151, %v3179
        %v3191 = vadd.f32 %v3152, %v3179
        %v3192 = vadd.f32 %v3153, %v3179
        %v3193 = vadd.f32 %v3154, %v3179
        %v3194 = vadd.f32 %v3155, %v3179
        %v3195 = vadd.f32 %v3156, %v3179
        %v3196 = vadd.f32 %v3157, %v3179
        %v3197 = vadd.f32 %v3158, %v3179
        %v3198 = vadd.f32 %v3159, %v3179
        %v3199 = vadd.f32 %v3160, %v3179
        %v3200 = vadd.f32 %v3161, %v3179
        %v3201 = vadd.f32 %v3162, %v3179
        %v3202 = vadd.f32 %v3163, %v3179
        %v3203 = vadd.f32 %v3164, %v3179
        %v3204 = vadd.f32 %v3165, %v3179
        %v3205 = vadd.f32 %v3166, %v3179
        %v3206 = vadd.f32 %v3167, %v3179
        %v3207 = vadd.f32 %v3168, %v3179
        %v3208 = vadd.f32 %v3169, %v3179
        %v3209 = vadd.f32 %v3170, %v3179
        %v3210 = vadd.f32 %v3171, %v3179
        %v3211 = vadd.f32 %v3172, %v3179
        %v3212 = vadd.f32 %v3173, %v3179
        %v3213 = vmax.f32 %v3181, 0.0
        %v3214 = vmax.f32 %v3182, 0.0
        %v3215 = vmax.f32 %v3183, 0.0
        %v3216 = vmax.f32 %v3184, 0.0
        %v3217 = vmax.f32 %v3185, 0.0
        %v3218 = vmax.f32 %v3186, 0.0
        %v3219 = vmax.f32 %v3187, 0.0
        %v3220 = vmax.f32 %v3188, 0.0
        %v3221 = vmax.f32 %v3189, 0.0
        %v3222 = vmax.f32 %v3190, 0.0
        %v3223 = vmax.f32 %v3191, 0.0
        %v3224 = vmax.f32 %v3192, 0.0
        %v3225 = vmax.f32 %v3193, 0.0
        %v3226 = vmax.f32 %v3194, 0.0
        %v3227 = vmax.f32 %v3195, 0.0
        %v3228 = vmax.f32 %v3196, 0.0
        %v3229 = vmax.f32 %v3197, 0.0
        %v3230 = vmax.f32 %v3198, 0.0
        %v3231 = vmax.f32 %v3199, 0.0
        %v3232 = vmax.f32 %v3200, 0.0
        %v3233 = vmax.f32 %v3201, 0.0
        %v3234 = vmax.f32 %v3202, 0.0
        %v3235 = vmax.f32 %v3203, 0.0
        %v3236 = vmax.f32 %v3204, 0.0
        %v3237 = vmax.f32 %v3205, 0.0
        %v3238 = vmax.f32 %v3206, 0.0
        %v3239 = vmax.f32 %v3207, 0.0
        %v3240 = vmax.f32 %v3208, 0.0
        %v3241 = vmax.f32 %v3209, 0.0
        %v3242 = vmax.f32 %v3210, 0.0
        %v3243 = vmax.f32 %v3211, 0.0
        %v3244 = vmax.f32 %v3212, 0.0
        %s3245 = scalar_lea.vmem [#allocation3], 48
        %3246 = vst.msk [vmem:[%s3245] sm:$0xff] %vm844, %v3213
        %3247 = vst.msk [vmem:[%s3245 + $0x8] sm:$0xff] %vm844, %v3214
        %3248 = vst.msk [vmem:[%s3245 + $0x10] sm:$0xff] %vm844, %v3215
        %3249 = vst.msk [vmem:[%s3245 + $0x18] sm:$0xff] %vm844, %v3216
        %3250 = vst.msk [vmem:[%s3245 + $0x20] sm:$0xff] %vm844, %v3217
        %3251 = vst.msk [vmem:[%s3245 + $0x28] sm:$0xff] %vm844, %v3218
        %3252 = vst.msk [vmem:[%s3245 + $0x30] sm:$0xff] %vm844, %v3219
        %3253 = vst.msk [vmem:[%s3245 + $0x38] sm:$0xff] %vm844, %v3220
        %3254 = vst.msk [vmem:[%s3245 + $0x40] sm:$0xff] %vm844, %v3221
        %3255 = vst.msk [vmem:[%s3245 + $0x48] sm:$0xff] %vm844, %v3222
        %3256 = vst.msk [vmem:[%s3245 + $0x50] sm:$0xff] %vm844, %v3223
        %3257 = vst.msk [vmem:[%s3245 + $0x58] sm:$0xff] %vm844, %v3224
        %3258 = vst.msk [vmem:[%s3245 + $0x60] sm:$0xff] %vm844, %v3225
        %3259 = vst.msk [vmem:[%s3245 + $0x68] sm:$0xff] %vm844, %v3226
        %3260 = vst.msk [vmem:[%s3245 + $0x70] sm:$0xff] %vm844, %v3227
        %3261 = vst.msk [vmem:[%s3245 + $0x78] sm:$0xff] %vm844, %v3228
        %3262 = vst.msk [vmem:[%s3245 + $0x80] sm:$0xff] %vm844, %v3229
        %3263 = vst.msk [vmem:[%s3245 + $0x88] sm:$0xff] %vm844, %v3230
        %3264 = vst.msk [vmem:[%s3245 + $0x90] sm:$0xff] %vm844, %v3231
        %3265 = vst.msk [vmem:[%s3245 + $0x98] sm:$0xff] %vm844, %v3232
        %3266 = vst.msk [vmem:[%s3245 + $0xa0] sm:$0xff] %vm844, %v3233
        %3267 = vst.msk [vmem:[%s3245 + $0xa8] sm:$0xff] %vm844, %v3234
        %3268 = vst.msk [vmem:[%s3245 + $0xb0] sm:$0xff] %vm844, %v3235
        %3269 = vst.msk [vmem:[%s3245 + $0xb8] sm:$0xff] %vm844, %v3236
        %3270 = vst.msk [vmem:[%s3245 + $0xc0] sm:$0xff] %vm844, %v3237
        %3271 = vst.msk [vmem:[%s3245 + $0xc8] sm:$0xff] %vm844, %v3238
        %3272 = vst.msk [vmem:[%s3245 + $0xd0] sm:$0xff] %vm844, %v3239
        %3273 = vst.msk [vmem:[%s3245 + $0xd8] sm:$0xff] %vm844, %v3240
        %3274 = vst.msk [vmem:[%s3245 + $0xe0] sm:$0xff] %vm844, %v3241
        %3275 = vst.msk [vmem:[%s3245 + $0xe8] sm:$0xff] %vm844, %v3242
        %3276 = vst.msk [vmem:[%s3245 + $0xf0] sm:$0xff] %vm844, %v3243
        %3277 = vst.msk [vmem:[%s3245 + $0xf8] sm:$0xff] %vm844, %v3244
        %v3278 = vld [vmem:[#allocation3] sm:$0xff]
        %v3279 = vld [vmem:[#allocation3 + $0x8] sm:$0xff]
        %v3280 = vld [vmem:[#allocation3 + $0x10] sm:$0xff]
        %v3281 = vld [vmem:[#allocation3 + $0x18] sm:$0xff]
        %v3282 = vld [vmem:[#allocation3 + $0x20] sm:$0xff]
        %v3283 = vld [vmem:[#allocation3 + $0x28] sm:$0xff]
        %v3284 = vld [vmem:[#allocation3 + $0x30] sm:$0xff]
        %v3285 = vld [vmem:[#allocation3 + $0x38] sm:$0xff]
        %v3286 = vld [vmem:[#allocation3 + $0x40] sm:$0xff]
        %v3287 = vld [vmem:[#allocation3 + $0x48] sm:$0xff]
        %v3288 = vld [vmem:[#allocation3 + $0x50] sm:$0xff]
        %v3289 = vld [vmem:[#allocation3 + $0x58] sm:$0xff]
        %v3290 = vld [vmem:[#allocation3 + $0x60] sm:$0xff]
        %v3291 = vld [vmem:[#allocation3 + $0x68] sm:$0xff]
        %v3292 = vld [vmem:[#allocation3 + $0x70] sm:$0xff]
        %v3293 = vld [vmem:[#allocation3 + $0x78] sm:$0xff]
        %v3294 = vld [vmem:[#allocation3 + $0x80] sm:$0xff]
        %v3295 = vld [vmem:[#allocation3 + $0x88] sm:$0xff]
        %v3296 = vld [vmem:[#allocation3 + $0x90] sm:$0xff]
        %v3297 = vld [vmem:[#allocation3 + $0x98] sm:$0xff]
        %v3298 = vld [vmem:[#allocation3 + $0xa0] sm:$0xff]
        %v3299 = vld [vmem:[#allocation3 + $0xa8] sm:$0xff]
        %v3300 = vld [vmem:[#allocation3 + $0xb0] sm:$0xff]
        %v3301 = vld [vmem:[#allocation3 + $0xb8] sm:$0xff]
        %v3302 = vld [vmem:[#allocation3 + $0xc0] sm:$0xff]
        %v3303 = vld [vmem:[#allocation3 + $0xc8] sm:$0xff]
        %v3304 = vld [vmem:[#allocation3 + $0xd0] sm:$0xff]
        %v3305 = vld [vmem:[#allocation3 + $0xd8] sm:$0xff]
        %v3306 = vld [vmem:[#allocation3 + $0xe0] sm:$0xff]
        %v3307 = vld [vmem:[#allocation3 + $0xe8] sm:$0xff]
        %v3308 = vld [vmem:[#allocation3 + $0xf0] sm:$0xff]
        %v3309 = vld [vmem:[#allocation3 + $0xf8] sm:$0xff]
        %v3310 = vpack.c.bf16 %v3279, %v3278
        %v3311 = vpack.c.bf16 %v3281, %v3280
        %v3312 = vpack.c.bf16 %v3283, %v3282
        %v3313 = vpack.c.bf16 %v3285, %v3284
        %v3314 = vpack.c.bf16 %v3287, %v3286
        %v3315 = vpack.c.bf16 %v3289, %v3288
        %v3316 = vpack.c.bf16 %v3291, %v3290
        %v3317 = vpack.c.bf16 %v3293, %v3292
        %v3318 = vpack.c.bf16 %v3295, %v3294
        %v3319 = vpack.c.bf16 %v3297, %v3296
        %v3320 = vpack.c.bf16 %v3299, %v3298
        %v3321 = vpack.c.bf16 %v3301, %v3300
        %v3322 = vpack.c.bf16 %v3303, %v3302
        %v3323 = vpack.c.bf16 %v3305, %v3304
        %v3324 = vpack.c.bf16 %v3307, %v3306
        %v3325 = vpack.c.bf16 %v3309, %v3308
        %v3326 = vld [vmem:[#allocation14] sm:$0xf]
        %v3327 = vld [vmem:[#allocation14 + $0x4] sm:$0xf]
        %v3328 = vld [vmem:[#allocation14 + $0x8] sm:$0xf]
        %v3329 = vld [vmem:[#allocation14 + $0xc] sm:$0xf]
        %s3330 = scalar_lea.vmem [#allocation3], 16
        %v3331 = vld [vmem:[%s3330] sm:$0xff]
        %v3332 = vld [vmem:[%s3330 + $0x8] sm:$0xff]
        %v3333 = vld [vmem:[%s3330 + $0x10] sm:$0xff]
        %v3334 = vld [vmem:[%s3330 + $0x18] sm:$0xff]
        %v3335 = vld [vmem:[%s3330 + $0x20] sm:$0xff]
        %v3336 = vld [vmem:[%s3330 + $0x28] sm:$0xff]
        %v3337 = vld [vmem:[%s3330 + $0x30] sm:$0xff]
        %v3338 = vld [vmem:[%s3330 + $0x38] sm:$0xff]
        %v3339 = vld [vmem:[%s3330 + $0x40] sm:$0xff]
        %v3340 = vld [vmem:[%s3330 + $0x48] sm:$0xff]
        %v3341 = vld [vmem:[%s3330 + $0x50] sm:$0xff]
        %v3342 = vld [vmem:[%s3330 + $0x58] sm:$0xff]
        %v3343 = vld [vmem:[%s3330 + $0x60] sm:$0xff]
        %v3344 = vld [vmem:[%s3330 + $0x68] sm:$0xff]
        %v3345 = vld [vmem:[%s3330 + $0x70] sm:$0xff]
        %v3346 = vld [vmem:[%s3330 + $0x78] sm:$0xff]
        %v3347 = vld [vmem:[%s3330 + $0x80] sm:$0xff]
        %v3348 = vld [vmem:[%s3330 + $0x88] sm:$0xff]
        %v3349 = vld [vmem:[%s3330 + $0x90] sm:$0xff]
        %v3350 = vld [vmem:[%s3330 + $0x98] sm:$0xff]
        %v3351 = vld [vmem:[%s3330 + $0xa0] sm:$0xff]
        %v3352 = vld [vmem:[%s3330 + $0xa8] sm:$0xff]
        %v3353 = vld [vmem:[%s3330 + $0xb0] sm:$0xff]
        %v3354 = vld [vmem:[%s3330 + $0xb8] sm:$0xff]
        %v3355 = vld [vmem:[%s3330 + $0xc0] sm:$0xff]
        %v3356 = vld [vmem:[%s3330 + $0xc8] sm:$0xff]
        %v3357 = vld [vmem:[%s3330 + $0xd0] sm:$0xff]
        %v3358 = vld [vmem:[%s3330 + $0xd8] sm:$0xff]
        %v3359 = vld [vmem:[%s3330 + $0xe0] sm:$0xff]
        %v3360 = vld [vmem:[%s3330 + $0xe8] sm:$0xff]
        %v3361 = vld [vmem:[%s3330 + $0xf0] sm:$0xff]
        %v3362 = vld [vmem:[%s3330 + $0xf8] sm:$0xff]
        %v3363 = vpack.c.bf16 %v3332, %v3331
        %v3364 = vpack.c.bf16 %v3334, %v3333
        %v3365 = vpack.c.bf16 %v3336, %v3335
        %v3366 = vpack.c.bf16 %v3338, %v3337
        %v3367 = vpack.c.bf16 %v3340, %v3339
        %v3368 = vpack.c.bf16 %v3342, %v3341
        %v3369 = vpack.c.bf16 %v3344, %v3343
        %v3370 = vpack.c.bf16 %v3346, %v3345
        %v3371 = vpack.c.bf16 %v3348, %v3347
        %v3372 = vpack.c.bf16 %v3350, %v3349
        %v3373 = vpack.c.bf16 %v3352, %v3351
        %v3374 = vpack.c.bf16 %v3354, %v3353
        %v3375 = vpack.c.bf16 %v3356, %v3355
        %v3376 = vpack.c.bf16 %v3358, %v3357
        %v3377 = vpack.c.bf16 %v3360, %v3359
        %v3378 = vpack.c.bf16 %v3362, %v3361
        %s3379 = scalar_lea.vmem [#allocation14], 16
        %v3380 = vld [vmem:[%s3379] sm:$0xf]
        %v3381 = vld [vmem:[%s3379 + $0x4] sm:$0xf]
        %v3382 = vld [vmem:[%s3379 + $0x8] sm:$0xf]
        %v3383 = vld [vmem:[%s3379 + $0xc] sm:$0xf]
        %v3388 = vunpack.c.l.b16 %v3380
        %v3389 = vunpack.c.l.b16 %v3381
        %v3390 = vunpack.c.l.b16 %v3382
        %v3391 = vunpack.c.l.b16 %v3383
        %v3392 = vpack.c.b16 %v3389, %v3388
        %v3393 = vpack.c.b16 %v3391, %v3390
        %v3397 = vsel %vm844, %v3363, 0
        %v3400 = vsel %vm844, %v3364, 0
        %v3403 = vsel %vm844, %v3365, 0
        %v3406 = vsel %vm844, %v3366, 0
        %v3409 = vsel %vm844, %v3367, 0
        %v3412 = vsel %vm844, %v3368, 0
        %v3415 = vsel %vm844, %v3369, 0
        %v3418 = vsel %vm844, %v3370, 0
        %v3421 = vsel %vm844, %v3371, 0
        %v3424 = vsel %vm844, %v3372, 0
        %v3427 = vsel %vm844, %v3373, 0
        %v3430 = vsel %vm844, %v3374, 0
        %v3433 = vsel %vm844, %v3375, 0
        %v3436 = vsel %vm844, %v3376, 0
        %v3439 = vsel %vm844, %v3377, 0
        %v3442 = vsel %vm844, %v3378, 0
        %3444 = vmatprep.subr.bf16.mxu0 0
        %3445 = vmatpush1.bf16.msra.mxu0 %v3392
        %3446 = vmatprep.subr.bf16.mxu0 0
        %3447 = vmatpush1.bf16.msra.mxu0 %v3393
        %3448 = vmatprep.subr.bf16.mxu0 0
        %3449 = vmatpush1.bf16.msra.mxu0 0
        %3450 = vmatprep.subr.bf16.mxu0 0
        %3451 = vmatpush1.bf16.msra.mxu0 0
        %3452 = vmatprep.subr.bf16.mxu0 0
        %3453 = vmatpush1.bf16.msra.mxu0 0
        %3454 = vmatprep.subr.bf16.mxu0 0
        %3455 = vmatpush1.bf16.msra.mxu0 0
        %3456 = vmatprep.subr.bf16.mxu0 0
        %3457 = vmatpush1.bf16.msra.mxu0 0
        %3458 = vmatprep.subr.bf16.mxu0 0
        %3459 = vmatpush1.bf16.msra.mxu0 0
        %3460 = vmatprep.subr.bf16.mxu0 0
        %3461 = vmatpush1.bf16.msra.mxu0 0
        %3462 = vmatprep.subr.bf16.mxu0 0
        %3463 = vmatpush1.bf16.msra.mxu0 0
        %3464 = vmatprep.subr.bf16.mxu0 0
        %3465 = vmatpush1.bf16.msra.mxu0 0
        %3466 = vmatprep.subr.bf16.mxu0 0
        %3467 = vmatpush1.bf16.msra.mxu0 0
        %3468 = vmatprep.subr.bf16.mxu0 0
        %3469 = vmatpush1.bf16.msra.mxu0 0
        %3470 = vmatprep.subr.bf16.mxu0 0
        %3471 = vmatpush1.bf16.msra.mxu0 0
        %3472 = vmatprep.subr.bf16.mxu0 0
        %3473 = vmatpush1.bf16.msra.mxu0 0
        %3474 = vmatprep.subr.bf16.mxu0 0
        %3475 = vmatpush1.bf16.msra.mxu0 0
        %3476 = vmatprep.mubr.bf16.mxu0 0
        %3477 = vmatmul.mubr.bf16.gmra.mrb[0].mxu0 %v3397
        %v3478 = vpop.f32.mrb[0].mxu0
        %v3479 = vadd.f32 0.0, %v3478
        %v3480 = vpop.f32.mrb[0].mxu0
        %v3481 = vpop.f32.mrb[0].mxu0
        %v3482 = vadd.f32 0.0, %v3481
        %v3483 = vpop.f32.mrb[0].mxu0
        %3484 = vmatprep.mubr.bf16.mxu0 0
        %3485 = vmatmul.mubr.bf16.gmra.mrb[0].mxu0 %v3400
        %v3486 = vpop.f32.mrb[0].mxu0
        %v3487 = vadd.f32 0.0, %v3486
        %v3488 = vpop.f32.mrb[0].mxu0
        %v3489 = vpop.f32.mrb[0].mxu0
        %v3490 = vadd.f32 0.0, %v3489
        %v3491 = vpop.f32.mrb[0].mxu0
        %3492 = vmatprep.mubr.bf16.mxu0 0
        %3493 = vmatmul.mubr.bf16.gmra.mrb[0].mxu0 %v3403
        %v3494 = vpop.f32.mrb[0].mxu0
        %v3495 = vadd.f32 0.0, %v3494
        %v3496 = vpop.f32.mrb[0].mxu0
        %v3497 = vpop.f32.mrb[0].mxu0
        %v3498 = vadd.f32 0.0, %v3497
        %v3499 = vpop.f32.mrb[0].mxu0
        %3500 = vmatprep.mubr.bf16.mxu0 0
        %3501 = vmatmul.mubr.bf16.gmra.mrb[0].mxu0 %v3406
        %v3502 = vpop.f32.mrb[0].mxu0
        %v3503 = vadd.f32 0.0, %v3502
        %v3504 = vpop.f32.mrb[0].mxu0
        %v3505 = vpop.f32.mrb[0].mxu0
        %v3506 = vadd.f32 0.0, %v3505
        %v3507 = vpop.f32.mrb[0].mxu0
        %3508 = vmatprep.mubr.bf16.mxu0 0
        %3509 = vmatmul.mubr.bf16.gmra.mrb[0].mxu0 %v3409
        %v3510 = vpop.f32.mrb[0].mxu0
        %v3511 = vadd.f32 0.0, %v3510
        %v3512 = vpop.f32.mrb[0].mxu0
        %v3513 = vpop.f32.mrb[0].mxu0
        %v3514 = vadd.f32 0.0, %v3513
        %v3515 = vpop.f32.mrb[0].mxu0
        %3516 = vmatprep.mubr.bf16.mxu0 0
        %3517 = vmatmul.mubr.bf16.gmra.mrb[0].mxu0 %v3412
        %v3518 = vpop.f32.mrb[0].mxu0
        %v3519 = vadd.f32 0.0, %v3518
        %v3520 = vpop.f32.mrb[0].mxu0
        %v3521 = vpop.f32.mrb[0].mxu0
        %v3522 = vadd.f32 0.0, %v3521
        %v3523 = vpop.f32.mrb[0].mxu0
        %3524 = vmatprep.mubr.bf16.mxu0 0
        %3525 = vmatmul.mubr.bf16.gmra.mrb[0].mxu0 %v3415
        %v3526 = vpop.f32.mrb[0].mxu0
        %v3527 = vadd.f32 0.0, %v3526
        %v3528 = vpop.f32.mrb[0].mxu0
        %v3529 = vpop.f32.mrb[0].mxu0
        %v3530 = vadd.f32 0.0, %v3529
        %v3531 = vpop.f32.mrb[0].mxu0
        %3532 = vmatprep.mubr.bf16.mxu0 0
        %3533 = vmatmul.mubr.bf16.gmra.mrb[0].mxu0 %v3418
        %v3534 = vpop.f32.mrb[0].mxu0
        %v3535 = vadd.f32 0.0, %v3534
        %v3536 = vpop.f32.mrb[0].mxu0
        %v3537 = vpop.f32.mrb[0].mxu0
        %v3538 = vadd.f32 0.0, %v3537
        %v3539 = vpop.f32.mrb[0].mxu0
        %3540 = vmatprep.mubr.bf16.mxu0 0
        %3541 = vmatmul.mubr.bf16.gmra.mrb[0].mxu0 %v3421
        %v3542 = vpop.f32.mrb[0].mxu0
        %v3543 = vadd.f32 0.0, %v3542
        %v3544 = vpop.f32.mrb[0].mxu0
        %v3545 = vpop.f32.mrb[0].mxu0
        %v3546 = vadd.f32 0.0, %v3545
        %v3547 = vpop.f32.mrb[0].mxu0
        %3548 = vmatprep.mubr.bf16.mxu0 0
        %3549 = vmatmul.mubr.bf16.gmra.mrb[0].mxu0 %v3424
        %v3550 = vpop.f32.mrb[0].mxu0
        %v3551 = vadd.f32 0.0, %v3550
        %v3552 = vpop.f32.mrb[0].mxu0
        %v3553 = vpop.f32.mrb[0].mxu0
        %v3554 = vadd.f32 0.0, %v3553
        %v3555 = vpop.f32.mrb[0].mxu0
        %3556 = vmatprep.mubr.bf16.mxu0 0
        %3557 = vmatmul.mubr.bf16.gmra.mrb[0].mxu0 %v3427
        %v3558 = vpop.f32.mrb[0].mxu0
        %v3559 = vadd.f32 0.0, %v3558
        %v3560 = vpop.f32.mrb[0].mxu0
        %v3561 = vpop.f32.mrb[0].mxu0
        %v3562 = vadd.f32 0.0, %v3561
        %v3563 = vpop.f32.mrb[0].mxu0
        %3564 = vmatprep.mubr.bf16.mxu0 0
        %3565 = vmatmul.mubr.bf16.gmra.mrb[0].mxu0 %v3430
        %v3566 = vpop.f32.mrb[0].mxu0
        %v3567 = vadd.f32 0.0, %v3566
        %v3568 = vpop.f32.mrb[0].mxu0
        %v3569 = vpop.f32.mrb[0].mxu0
        %v3570 = vadd.f32 0.0, %v3569
        %v3571 = vpop.f32.mrb[0].mxu0
        %3572 = vmatprep.mubr.bf16.mxu0 0
        %3573 = vmatmul.mubr.bf16.gmra.mrb[0].mxu0 %v3433
        %v3574 = vpop.f32.mrb[0].mxu0
        %v3575 = vadd.f32 0.0, %v3574
        %v3576 = vpop.f32.mrb[0].mxu0
        %v3577 = vpop.f32.mrb[0].mxu0
        %v3578 = vadd.f32 0.0, %v3577
        %v3579 = vpop.f32.mrb[0].mxu0
        %3580 = vmatprep.mubr.bf16.mxu0 0
        %3581 = vmatmul.mubr.bf16.gmra.mrb[0].mxu0 %v3436
        %v3582 = vpop.f32.mrb[0].mxu0
        %v3583 = vadd.f32 0.0, %v3582
        %v3584 = vpop.f32.mrb[0].mxu0
        %v3585 = vpop.f32.mrb[0].mxu0
        %v3586 = vadd.f32 0.0, %v3585
        %v3587 = vpop.f32.mrb[0].mxu0
        %3588 = vmatprep.mubr.bf16.mxu0 0
        %3589 = vmatmul.mubr.bf16.gmra.mrb[0].mxu0 %v3439
        %v3590 = vpop.f32.mrb[0].mxu0
        %v3591 = vadd.f32 0.0, %v3590
        %v3592 = vpop.f32.mrb[0].mxu0
        %v3593 = vpop.f32.mrb[0].mxu0
        %v3594 = vadd.f32 0.0, %v3593
        %v3595 = vpop.f32.mrb[0].mxu0
        %3596 = vmatprep.mubr.bf16.mxu0 0
        %3597 = vmatmul.mubr.bf16.gmra.mrb[0].mxu0 %v3442
        %v3598 = vpop.f32.mrb[0].mxu0
        %v3599 = vadd.f32 0.0, %v3598
        %v3600 = vpop.f32.mrb[0].mxu0
        %v3601 = vpop.f32.mrb[0].mxu0
        %v3602 = vadd.f32 0.0, %v3601
        %v3603 = vpop.f32.mrb[0].mxu0
        %3604 = vdwg.mxu0
        %v3609 = vunpack.c.l.b16 %v3326
        %v3610 = vunpack.c.l.b16 %v3327
        %v3611 = vunpack.c.l.b16 %v3328
        %v3612 = vunpack.c.l.b16 %v3329
        %v3613 = vpack.c.b16 %v3610, %v3609
        %v3614 = vpack.c.b16 %v3612, %v3611
        %v3618 = vsel %vm844, %v3310, 0
        %v3621 = vsel %vm844, %v3311, 0
        %v3624 = vsel %vm844, %v3312, 0
        %v3627 = vsel %vm844, %v3313, 0
        %v3630 = vsel %vm844, %v3314, 0
        %v3633 = vsel %vm844, %v3315, 0
        %v3636 = vsel %vm844, %v3316, 0
        %v3639 = vsel %vm844, %v3317, 0
        %v3642 = vsel %vm844, %v3318, 0
        %v3645 = vsel %vm844, %v3319, 0
        %v3648 = vsel %vm844, %v3320, 0
        %v3651 = vsel %vm844, %v3321, 0
        %v3654 = vsel %vm844, %v3322, 0
        %v3657 = vsel %vm844, %v3323, 0
        %v3660 = vsel %vm844, %v3324, 0
        %v3663 = vsel %vm844, %v3325, 0
        %3665 = vmatprep.subr.bf16.mxu0 0
        %3666 = vmatpush1.bf16.msra.mxu0 %v3613
        %3667 = vmatprep.subr.bf16.mxu0 0
        %3668 = vmatpush1.bf16.msra.mxu0 %v3614
        %3669 = vmatprep.subr.bf16.mxu0 0
        %3670 = vmatpush1.bf16.msra.mxu0 0
        %3671 = vmatprep.subr.bf16.mxu0 0
        %3672 = vmatpush1.bf16.msra.mxu0 0
        %3673 = vmatprep.subr.bf16.mxu0 0
        %3674 = vmatpush1.bf16.msra.mxu0 0
        %3675 = vmatprep.subr.bf16.mxu0 0
        %3676 = vmatpush1.bf16.msra.mxu0 0
        %3677 = vmatprep.subr.bf16.mxu0 0
        %3678 = vmatpush1.bf16.msra.mxu0 0
        %3679 = vmatprep.subr.bf16.mxu0 0
        %3680 = vmatpush1.bf16.msra.mxu0 0
        %3681 = vmatprep.subr.bf16.mxu0 0
        %3682 = vmatpush1.bf16.msra.mxu0 0
        %3683 = vmatprep.subr.bf16.mxu0 0
        %3684 = vmatpush1.bf16.msra.mxu0 0
        %3685 = vmatprep.subr.bf16.mxu0 0
        %3686 = vmatpush1.bf16.msra.mxu0 0
        %3687 = vmatprep.subr.bf16.mxu0 0
        %3688 = vmatpush1.bf16.msra.mxu0 0
        %3689 = vmatprep.subr.bf16.mxu0 0
        %3690 = vmatpush1.bf16.msra.mxu0 0
        %3691 = vmatprep.subr.bf16.mxu0 0
        %3692 = vmatpush1.bf16.msra.mxu0 0
        %3693 = vmatprep.subr.bf16.mxu0 0
        %3694 = vmatpush1.bf16.msra.mxu0 0
        %3695 = vmatprep.subr.bf16.mxu0 0
        %3696 = vmatpush1.bf16.msra.mxu0 0
        %3697 = vmatprep.mubr.bf16.mxu0 0
        %3698 = vmatmul.mubr.bf16.gmra.mrb[0].mxu0 %v3618
        %v3699 = vpop.f32.mrb[0].mxu0
        %v3700 = vadd.f32 %v3479, %v3699
        %v3701 = vpop.f32.mrb[0].mxu0
        %v3702 = vpop.f32.mrb[0].mxu0
        %v3703 = vadd.f32 %v3482, %v3702
        %v3704 = vpop.f32.mrb[0].mxu0
        %3705 = vmatprep.mubr.bf16.mxu0 0
        %3706 = vmatmul.mubr.bf16.gmra.mrb[0].mxu0 %v3621
        %v3707 = vpop.f32.mrb[0].mxu0
        %v3708 = vadd.f32 %v3487, %v3707
        %v3709 = vpop.f32.mrb[0].mxu0
        %v3710 = vpop.f32.mrb[0].mxu0
        %v3711 = vadd.f32 %v3490, %v3710
        %v3712 = vpop.f32.mrb[0].mxu0
        %3713 = vmatprep.mubr.bf16.mxu0 0
        %3714 = vmatmul.mubr.bf16.gmra.mrb[0].mxu0 %v3624
        %v3715 = vpop.f32.mrb[0].mxu0
        %v3716 = vadd.f32 %v3495, %v3715
        %v3717 = vpop.f32.mrb[0].mxu0
        %v3718 = vpop.f32.mrb[0].mxu0
        %v3719 = vadd.f32 %v3498, %v3718
        %v3720 = vpop.f32.mrb[0].mxu0
        %3721 = vmatprep.mubr.bf16.mxu0 0
        %3722 = vmatmul.mubr.bf16.gmra.mrb[0].mxu0 %v3627
        %v3723 = vpop.f32.mrb[0].mxu0
        %v3724 = vadd.f32 %v3503, %v3723
        %v3725 = vpop.f32.mrb[0].mxu0
        %v3726 = vpop.f32.mrb[0].mxu0
        %v3727 = vadd.f32 %v3506, %v3726
        %v3728 = vpop.f32.mrb[0].mxu0
        %3729 = vmatprep.mubr.bf16.mxu0 0
        %3730 = vmatmul.mubr.bf16.gmra.mrb[0].mxu0 %v3630
        %v3731 = vpop.f32.mrb[0].mxu0
        %v3732 = vadd.f32 %v3511, %v3731
        %v3733 = vpop.f32.mrb[0].mxu0
        %v3734 = vpop.f32.mrb[0].mxu0
        %v3735 = vadd.f32 %v3514, %v3734
        %v3736 = vpop.f32.mrb[0].mxu0
        %3737 = vmatprep.mubr.bf16.mxu0 0
        %3738 = vmatmul.mubr.bf16.gmra.mrb[0].mxu0 %v3633
        %v3739 = vpop.f32.mrb[0].mxu0
        %v3740 = vadd.f32 %v3519, %v3739
        %v3741 = vpop.f32.mrb[0].mxu0
        %v3742 = vpop.f32.mrb[0].mxu0
        %v3743 = vadd.f32 %v3522, %v3742
        %v3744 = vpop.f32.mrb[0].mxu0
        %3745 = vmatprep.mubr.bf16.mxu0 0
        %3746 = vmatmul.mubr.bf16.gmra.mrb[0].mxu0 %v3636
        %v3747 = vpop.f32.mrb[0].mxu0
        %v3748 = vadd.f32 %v3527, %v3747
        %v3749 = vpop.f32.mrb[0].mxu0
        %v3750 = vpop.f32.mrb[0].mxu0
        %v3751 = vadd.f32 %v3530, %v3750
        %v3752 = vpop.f32.mrb[0].mxu0
        %3753 = vmatprep.mubr.bf16.mxu0 0
        %3754 = vmatmul.mubr.bf16.gmra.mrb[0].mxu0 %v3639
        %v3755 = vpop.f32.mrb[0].mxu0
        %v3756 = vadd.f32 %v3535, %v3755
        %v3757 = vpop.f32.mrb[0].mxu0
        %v3758 = vpop.f32.mrb[0].mxu0
        %v3759 = vadd.f32 %v3538, %v3758
        %v3760 = vpop.f32.mrb[0].mxu0
        %3761 = vmatprep.mubr.bf16.mxu0 0
        %3762 = vmatmul.mubr.bf16.gmra.mrb[0].mxu0 %v3642
        %v3763 = vpop.f32.mrb[0].mxu0
        %v3764 = vadd.f32 %v3543, %v3763
        %v3765 = vpop.f32.mrb[0].mxu0
        %v3766 = vpop.f32.mrb[0].mxu0
        %v3767 = vadd.f32 %v3546, %v3766
        %v3768 = vpop.f32.mrb[0].mxu0
        %3769 = vmatprep.mubr.bf16.mxu0 0
        %3770 = vmatmul.mubr.bf16.gmra.mrb[0].mxu0 %v3645
        %v3771 = vpop.f32.mrb[0].mxu0
        %v3772 = vadd.f32 %v3551, %v3771
        %v3773 = vpop.f32.mrb[0].mxu0
        %v3774 = vpop.f32.mrb[0].mxu0
        %v3775 = vadd.f32 %v3554, %v3774
        %v3776 = vpop.f32.mrb[0].mxu0
        %3777 = vmatprep.mubr.bf16.mxu0 0
        %3778 = vmatmul.mubr.bf16.gmra.mrb[0].mxu0 %v3648
        %v3779 = vpop.f32.mrb[0].mxu0
        %v3780 = vadd.f32 %v3559, %v3779
        %v3781 = vpop.f32.mrb[0].mxu0
        %v3782 = vpop.f32.mrb[0].mxu0
        %v3783 = vadd.f32 %v3562, %v3782
        %v3784 = vpop.f32.mrb[0].mxu0
        %3785 = vmatprep.mubr.bf16.mxu0 0
        %3786 = vmatmul.mubr.bf16.gmra.mrb[0].mxu0 %v3651
        %v3787 = vpop.f32.mrb[0].mxu0
        %v3788 = vadd.f32 %v3567, %v3787
        %v3789 = vpop.f32.mrb[0].mxu0
        %v3790 = vpop.f32.mrb[0].mxu0
        %v3791 = vadd.f32 %v3570, %v3790
        %v3792 = vpop.f32.mrb[0].mxu0
        %3793 = vmatprep.mubr.bf16.mxu0 0
        %3794 = vmatmul.mubr.bf16.gmra.mrb[0].mxu0 %v3654
        %v3795 = vpop.f32.mrb[0].mxu0
        %v3796 = vadd.f32 %v3575, %v3795
        %v3797 = vpop.f32.mrb[0].mxu0
        %v3798 = vpop.f32.mrb[0].mxu0
        %v3799 = vadd.f32 %v3578, %v3798
        %v3800 = vpop.f32.mrb[0].mxu0
        %3801 = vmatprep.mubr.bf16.mxu0 0
        %3802 = vmatmul.mubr.bf16.gmra.mrb[0].mxu0 %v3657
        %v3803 = vpop.f32.mrb[0].mxu0
        %v3804 = vadd.f32 %v3583, %v3803
        %v3805 = vpop.f32.mrb[0].mxu0
        %v3806 = vpop.f32.mrb[0].mxu0
        %v3807 = vadd.f32 %v3586, %v3806
        %v3808 = vpop.f32.mrb[0].mxu0
        %3809 = vmatprep.mubr.bf16.mxu0 0
        %3810 = vmatmul.mubr.bf16.gmra.mrb[0].mxu0 %v3660
        %v3811 = vpop.f32.mrb[0].mxu0
        %v3812 = vadd.f32 %v3591, %v3811
        %v3813 = vpop.f32.mrb[0].mxu0
        %v3814 = vpop.f32.mrb[0].mxu0
        %v3815 = vadd.f32 %v3594, %v3814
        %v3816 = vpop.f32.mrb[0].mxu0
        %3817 = vmatprep.mubr.bf16.mxu0 0
        %3818 = vmatmul.mubr.bf16.gmra.mrb[0].mxu0 %v3663
        %v3819 = vpop.f32.mrb[0].mxu0
        %v3820 = vadd.f32 %v3599, %v3819
        %v3821 = vpop.f32.mrb[0].mxu0
        %v3822 = vpop.f32.mrb[0].mxu0
        %v3823 = vadd.f32 %v3602, %v3822
        %v3824 = vpop.f32.mrb[0].mxu0
        %3825 = vdwg.mxu0
        %s3826 = scalar_lea.vmem [#allocation3], 32
        %v3827 = vld [vmem:[%s3826] sm:$0xff]
        %v3828 = vld [vmem:[%s3826 + $0x8] sm:$0xff]
        %v3829 = vld [vmem:[%s3826 + $0x10] sm:$0xff]
        %v3830 = vld [vmem:[%s3826 + $0x18] sm:$0xff]
        %v3831 = vld [vmem:[%s3826 + $0x20] sm:$0xff]
        %v3832 = vld [vmem:[%s3826 + $0x28] sm:$0xff]
        %v3833 = vld [vmem:[%s3826 + $0x30] sm:$0xff]
        %v3834 = vld [vmem:[%s3826 + $0x38] sm:$0xff]
        %v3835 = vld [vmem:[%s3826 + $0x40] sm:$0xff]
        %v3836 = vld [vmem:[%s3826 + $0x48] sm:$0xff]
        %v3837 = vld [vmem:[%s3826 + $0x50] sm:$0xff]
        %v3838 = vld [vmem:[%s3826 + $0x58] sm:$0xff]
        %v3839 = vld [vmem:[%s3826 + $0x60] sm:$0xff]
        %v3840 = vld [vmem:[%s3826 + $0x68] sm:$0xff]
        %v3841 = vld [vmem:[%s3826 + $0x70] sm:$0xff]
        %v3842 = vld [vmem:[%s3826 + $0x78] sm:$0xff]
        %v3843 = vld [vmem:[%s3826 + $0x80] sm:$0xff]
        %v3844 = vld [vmem:[%s3826 + $0x88] sm:$0xff]
        %v3845 = vld [vmem:[%s3826 + $0x90] sm:$0xff]
        %v3846 = vld [vmem:[%s3826 + $0x98] sm:$0xff]
        %v3847 = vld [vmem:[%s3826 + $0xa0] sm:$0xff]
        %v3848 = vld [vmem:[%s3826 + $0xa8] sm:$0xff]
        %v3849 = vld [vmem:[%s3826 + $0xb0] sm:$0xff]
        %v3850 = vld [vmem:[%s3826 + $0xb8] sm:$0xff]
        %v3851 = vld [vmem:[%s3826 + $0xc0] sm:$0xff]
        %v3852 = vld [vmem:[%s3826 + $0xc8] sm:$0xff]
        %v3853 = vld [vmem:[%s3826 + $0xd0] sm:$0xff]
        %v3854 = vld [vmem:[%s3826 + $0xd8] sm:$0xff]
        %v3855 = vld [vmem:[%s3826 + $0xe0] sm:$0xff]
        %v3856 = vld [vmem:[%s3826 + $0xe8] sm:$0xff]
        %v3857 = vld [vmem:[%s3826 + $0xf0] sm:$0xff]
        %v3858 = vld [vmem:[%s3826 + $0xf8] sm:$0xff]
        %v3859 = vpack.c.bf16 %v3828, %v3827
        %v3860 = vpack.c.bf16 %v3830, %v3829
        %v3861 = vpack.c.bf16 %v3832, %v3831
        %v3862 = vpack.c.bf16 %v3834, %v3833
        %v3863 = vpack.c.bf16 %v3836, %v3835
        %v3864 = vpack.c.bf16 %v3838, %v3837
        %v3865 = vpack.c.bf16 %v3840, %v3839
        %v3866 = vpack.c.bf16 %v3842, %v3841
        %v3867 = vpack.c.bf16 %v3844, %v3843
        %v3868 = vpack.c.bf16 %v3846, %v3845
        %v3869 = vpack.c.bf16 %v3848, %v3847
        %v3870 = vpack.c.bf16 %v3850, %v3849
        %v3871 = vpack.c.bf16 %v3852, %v3851
        %v3872 = vpack.c.bf16 %v3854, %v3853
        %v3873 = vpack.c.bf16 %v3856, %v3855
        %v3874 = vpack.c.bf16 %v3858, %v3857
        %s3875 = scalar_lea.vmem [#allocation14], 32
        %v3876 = vld [vmem:[%s3875] sm:$0xf]
        %v3877 = vld [vmem:[%s3875 + $0x4] sm:$0xf]
        %v3878 = vld [vmem:[%s3875 + $0x8] sm:$0xf]
        %v3879 = vld [vmem:[%s3875 + $0xc] sm:$0xf]
        %v3884 = vunpack.c.l.b16 %v3876
        %v3885 = vunpack.c.l.b16 %v3877
        %v3886 = vunpack.c.l.b16 %v3878
        %v3887 = vunpack.c.l.b16 %v3879
        %v3888 = vpack.c.b16 %v3885, %v3884
        %v3889 = vpack.c.b16 %v3887, %v3886
        %v3893 = vsel %vm844, %v3859, 0
        %v3896 = vsel %vm844, %v3860, 0
        %v3899 = vsel %vm844, %v3861, 0
        %v3902 = vsel %vm844, %v3862, 0
        %v3905 = vsel %vm844, %v3863, 0
        %v3908 = vsel %vm844, %v3864, 0
        %v3911 = vsel %vm844, %v3865, 0
        %v3914 = vsel %vm844, %v3866, 0
        %v3917 = vsel %vm844, %v3867, 0
        %v3920 = vsel %vm844, %v3868, 0
        %v3923 = vsel %vm844, %v3869, 0
        %v3926 = vsel %vm844, %v3870, 0
        %v3929 = vsel %vm844, %v3871, 0
        %v3932 = vsel %vm844, %v3872, 0
        %v3935 = vsel %vm844, %v3873, 0
        %v3938 = vsel %vm844, %v3874, 0
        %3940 = vmatprep.subr.bf16.mxu0 0
        %3941 = vmatpush1.bf16.msra.mxu0 %v3888
        %3942 = vmatprep.subr.bf16.mxu0 0
        %3943 = vmatpush1.bf16.msra.mxu0 %v3889
        %3944 = vmatprep.subr.bf16.mxu0 0
        %3945 = vmatpush1.bf16.msra.mxu0 0
        %3946 = vmatprep.subr.bf16.mxu0 0
        %3947 = vmatpush1.bf16.msra.mxu0 0
        %3948 = vmatprep.subr.bf16.mxu0 0
        %3949 = vmatpush1.bf16.msra.mxu0 0
        %3950 = vmatprep.subr.bf16.mxu0 0
        %3951 = vmatpush1.bf16.msra.mxu0 0
        %3952 = vmatprep.subr.bf16.mxu0 0
        %3953 = vmatpush1.bf16.msra.mxu0 0
        %3954 = vmatprep.subr.bf16.mxu0 0
        %3955 = vmatpush1.bf16.msra.mxu0 0
        %3956 = vmatprep.subr.bf16.mxu0 0
        %3957 = vmatpush1.bf16.msra.mxu0 0
        %3958 = vmatprep.subr.bf16.mxu0 0
        %3959 = vmatpush1.bf16.msra.mxu0 0
        %3960 = vmatprep.subr.bf16.mxu0 0
        %3961 = vmatpush1.bf16.msra.mxu0 0
        %3962 = vmatprep.subr.bf16.mxu0 0
        %3963 = vmatpush1.bf16.msra.mxu0 0
        %3964 = vmatprep.subr.bf16.mxu0 0
        %3965 = vmatpush1.bf16.msra.mxu0 0
        %3966 = vmatprep.subr.bf16.mxu0 0
        %3967 = vmatpush1.bf16.msra.mxu0 0
        %3968 = vmatprep.subr.bf16.mxu0 0
        %3969 = vmatpush1.bf16.msra.mxu0 0
        %3970 = vmatprep.subr.bf16.mxu0 0
        %3971 = vmatpush1.bf16.msra.mxu0 0
        %3972 = vmatprep.mubr.bf16.mxu0 0
        %3973 = vmatmul.mubr.bf16.gmra.mrb[0].mxu0 %v3893
        %v3974 = vpop.f32.mrb[0].mxu0
        %v3975 = vadd.f32 0.0, %v3974
        %v3976 = vpop.f32.mrb[0].mxu0
        %v3977 = vpop.f32.mrb[0].mxu0
        %v3978 = vadd.f32 0.0, %v3977
        %v3979 = vpop.f32.mrb[0].mxu0
        %3980 = vmatprep.mubr.bf16.mxu0 0
        %3981 = vmatmul.mubr.bf16.gmra.mrb[0].mxu0 %v3896
        %v3982 = vpop.f32.mrb[0].mxu0
        %v3983 = vadd.f32 0.0, %v3982
        %v3984 = vpop.f32.mrb[0].mxu0
        %v3985 = vpop.f32.mrb[0].mxu0
        %v3986 = vadd.f32 0.0, %v3985
        %v3987 = vpop.f32.mrb[0].mxu0
        %3988 = vmatprep.mubr.bf16.mxu0 0
        %3989 = vmatmul.mubr.bf16.gmra.mrb[0].mxu0 %v3899
        %v3990 = vpop.f32.mrb[0].mxu0
        %v3991 = vadd.f32 0.0, %v3990
        %v3992 = vpop.f32.mrb[0].mxu0
        %v3993 = vpop.f32.mrb[0].mxu0
        %v3994 = vadd.f32 0.0, %v3993
        %v3995 = vpop.f32.mrb[0].mxu0
        %3996 = vmatprep.mubr.bf16.mxu0 0
        %3997 = vmatmul.mubr.bf16.gmra.mrb[0].mxu0 %v3902
        %v3998 = vpop.f32.mrb[0].mxu0
        %v3999 = vadd.f32 0.0, %v3998
        %v4000 = vpop.f32.mrb[0].mxu0
        %v4001 = vpop.f32.mrb[0].mxu0
        %v4002 = vadd.f32 0.0, %v4001
        %v4003 = vpop.f32.mrb[0].mxu0
        %4004 = vmatprep.mubr.bf16.mxu0 0
        %4005 = vmatmul.mubr.bf16.gmra.mrb[0].mxu0 %v3905
        %v4006 = vpop.f32.mrb[0].mxu0
        %v4007 = vadd.f32 0.0, %v4006
        %v4008 = vpop.f32.mrb[0].mxu0
        %v4009 = vpop.f32.mrb[0].mxu0
        %v4010 = vadd.f32 0.0, %v4009
        %v4011 = vpop.f32.mrb[0].mxu0
        %4012 = vmatprep.mubr.bf16.mxu0 0
        %4013 = vmatmul.mubr.bf16.gmra.mrb[0].mxu0 %v3908
        %v4014 = vpop.f32.mrb[0].mxu0
        %v4015 = vadd.f32 0.0, %v4014
        %v4016 = vpop.f32.mrb[0].mxu0
        %v4017 = vpop.f32.mrb[0].mxu0
        %v4018 = vadd.f32 0.0, %v4017
        %v4019 = vpop.f32.mrb[0].mxu0
        %4020 = vmatprep.mubr.bf16.mxu0 0
        %4021 = vmatmul.mubr.bf16.gmra.mrb[0].mxu0 %v3911
        %v4022 = vpop.f32.mrb[0].mxu0
        %v4023 = vadd.f32 0.0, %v4022
        %v4024 = vpop.f32.mrb[0].mxu0
        %v4025 = vpop.f32.mrb[0].mxu0
        %v4026 = vadd.f32 0.0, %v4025
        %v4027 = vpop.f32.mrb[0].mxu0
        %4028 = vmatprep.mubr.bf16.mxu0 0
        %4029 = vmatmul.mubr.bf16.gmra.mrb[0].mxu0 %v3914
        %v4030 = vpop.f32.mrb[0].mxu0
        %v4031 = vadd.f32 0.0, %v4030
        %v4032 = vpop.f32.mrb[0].mxu0
        %v4033 = vpop.f32.mrb[0].mxu0
        %v4034 = vadd.f32 0.0, %v4033
        %v4035 = vpop.f32.mrb[0].mxu0
        %4036 = vmatprep.mubr.bf16.mxu0 0
        %4037 = vmatmul.mubr.bf16.gmra.mrb[0].mxu0 %v3917
        %v4038 = vpop.f32.mrb[0].mxu0
        %v4039 = vadd.f32 0.0, %v4038
        %v4040 = vpop.f32.mrb[0].mxu0
        %v4041 = vpop.f32.mrb[0].mxu0
        %v4042 = vadd.f32 0.0, %v4041
        %v4043 = vpop.f32.mrb[0].mxu0
        %4044 = vmatprep.mubr.bf16.mxu0 0
        %4045 = vmatmul.mubr.bf16.gmra.mrb[0].mxu0 %v3920
        %v4046 = vpop.f32.mrb[0].mxu0
        %v4047 = vadd.f32 0.0, %v4046
        %v4048 = vpop.f32.mrb[0].mxu0
        %v4049 = vpop.f32.mrb[0].mxu0
        %v4050 = vadd.f32 0.0, %v4049
        %v4051 = vpop.f32.mrb[0].mxu0
        %4052 = vmatprep.mubr.bf16.mxu0 0
        %4053 = vmatmul.mubr.bf16.gmra.mrb[0].mxu0 %v3923
        %v4054 = vpop.f32.mrb[0].mxu0
        %v4055 = vadd.f32 0.0, %v4054
        %v4056 = vpop.f32.mrb[0].mxu0
        %v4057 = vpop.f32.mrb[0].mxu0
        %v4058 = vadd.f32 0.0, %v4057
        %v4059 = vpop.f32.mrb[0].mxu0
        %4060 = vmatprep.mubr.bf16.mxu0 0
        %4061 = vmatmul.mubr.bf16.gmra.mrb[0].mxu0 %v3926
        %v4062 = vpop.f32.mrb[0].mxu0
        %v4063 = vadd.f32 0.0, %v4062
        %v4064 = vpop.f32.mrb[0].mxu0
        %v4065 = vpop.f32.mrb[0].mxu0
        %v4066 = vadd.f32 0.0, %v4065
        %v4067 = vpop.f32.mrb[0].mxu0
        %4068 = vmatprep.mubr.bf16.mxu0 0
        %4069 = vmatmul.mubr.bf16.gmra.mrb[0].mxu0 %v3929
        %v4070 = vpop.f32.mrb[0].mxu0
        %v4071 = vadd.f32 0.0, %v4070
        %v4072 = vpop.f32.mrb[0].mxu0
        %v4073 = vpop.f32.mrb[0].mxu0
        %v4074 = vadd.f32 0.0, %v4073
        %v4075 = vpop.f32.mrb[0].mxu0
        %4076 = vmatprep.mubr.bf16.mxu0 0
        %4077 = vmatmul.mubr.bf16.gmra.mrb[0].mxu0 %v3932
        %v4078 = vpop.f32.mrb[0].mxu0
        %v4079 = vadd.f32 0.0, %v4078
        %v4080 = vpop.f32.mrb[0].mxu0
        %v4081 = vpop.f32.mrb[0].mxu0
        %v4082 = vadd.f32 0.0, %v4081
        %v4083 = vpop.f32.mrb[0].mxu0
        %4084 = vmatprep.mubr.bf16.mxu0 0
        %4085 = vmatmul.mubr.bf16.gmra.mrb[0].mxu0 %v3935
        %v4086 = vpop.f32.mrb[0].mxu0
        %v4087 = vadd.f32 0.0, %v4086
        %v4088 = vpop.f32.mrb[0].mxu0
        %v4089 = vpop.f32.mrb[0].mxu0
        %v4090 = vadd.f32 0.0, %v4089
        %v4091 = vpop.f32.mrb[0].mxu0
        %4092 = vmatprep.mubr.bf16.mxu0 0
        %4093 = vmatmul.mubr.bf16.gmra.mrb[0].mxu0 %v3938
        %v4094 = vpop.f32.mrb[0].mxu0
        %v4095 = vadd.f32 0.0, %v4094
        %v4096 = vpop.f32.mrb[0].mxu0
        %v4097 = vpop.f32.mrb[0].mxu0
        %v4098 = vadd.f32 0.0, %v4097
        %v4099 = vpop.f32.mrb[0].mxu0
        %4100 = vdwg.mxu0
        %v4101 = vadd.f32 %v3700, %v3975
        %v4102 = vadd.f32 %v3703, %v3978
        %v4103 = vadd.f32 %v3708, %v3983
        %v4104 = vadd.f32 %v3711, %v3986
        %v4105 = vadd.f32 %v3716, %v3991
        %v4106 = vadd.f32 %v3719, %v3994
        %v4107 = vadd.f32 %v3724, %v3999
        %v4108 = vadd.f32 %v3727, %v4002
        %v4109 = vadd.f32 %v3732, %v4007
        %v4110 = vadd.f32 %v3735, %v4010
        %v4111 = vadd.f32 %v3740, %v4015
        %v4112 = vadd.f32 %v3743, %v4018
        %v4113 = vadd.f32 %v3748, %v4023
        %v4114 = vadd.f32 %v3751, %v4026
        %v4115 = vadd.f32 %v3756, %v4031
        %v4116 = vadd.f32 %v3759, %v4034
        %v4117 = vadd.f32 %v3764, %v4039
        %v4118 = vadd.f32 %v3767, %v4042
        %v4119 = vadd.f32 %v3772, %v4047
        %v4120 = vadd.f32 %v3775, %v4050
        %v4121 = vadd.f32 %v3780, %v4055
        %v4122 = vadd.f32 %v3783, %v4058
        %v4123 = vadd.f32 %v3788, %v4063
        %v4124 = vadd.f32 %v3791, %v4066
        %v4125 = vadd.f32 %v3796, %v4071
        %v4126 = vadd.f32 %v3799, %v4074
        %v4127 = vadd.f32 %v3804, %v4079
        %v4128 = vadd.f32 %v3807, %v4082
        %v4129 = vadd.f32 %v3812, %v4087
        %v4130 = vadd.f32 %v3815, %v4090
        %v4131 = vadd.f32 %v3820, %v4095
        %v4132 = vadd.f32 %v3823, %v4098
        %v4133 = vld [vmem:[%s3245] sm:$0xff]
        %v4134 = vld [vmem:[%s3245 + $0x8] sm:$0xff]
        %v4135 = vld [vmem:[%s3245 + $0x10] sm:$0xff]
        %v4136 = vld [vmem:[%s3245 + $0x18] sm:$0xff]
        %v4137 = vld [vmem:[%s3245 + $0x20] sm:$0xff]
        %v4138 = vld [vmem:[%s3245 + $0x28] sm:$0xff]
        %v4139 = vld [vmem:[%s3245 + $0x30] sm:$0xff]
        %v4140 = vld [vmem:[%s3245 + $0x38] sm:$0xff]
        %v4141 = vld [vmem:[%s3245 + $0x40] sm:$0xff]
        %v4142 = vld [vmem:[%s3245 + $0x48] sm:$0xff]
        %v4143 = vld [vmem:[%s3245 + $0x50] sm:$0xff]
        %v4144 = vld [vmem:[%s3245 + $0x58] sm:$0xff]
        %v4145 = vld [vmem:[%s3245 + $0x60] sm:$0xff]
        %v4146 = vld [vmem:[%s3245 + $0x68] sm:$0xff]
        %v4147 = vld [vmem:[%s3245 + $0x70] sm:$0xff]
        %v4148 = vld [vmem:[%s3245 + $0x78] sm:$0xff]
        %v4149 = vld [vmem:[%s3245 + $0x80] sm:$0xff]
        %v4150 = vld [vmem:[%s3245 + $0x88] sm:$0xff]
        %v4151 = vld [vmem:[%s3245 + $0x90] sm:$0xff]
        %v4152 = vld [vmem:[%s3245 + $0x98] sm:$0xff]
        %v4153 = vld [vmem:[%s3245 + $0xa0] sm:$0xff]
        %v4154 = vld [vmem:[%s3245 + $0xa8] sm:$0xff]
        %v4155 = vld [vmem:[%s3245 + $0xb0] sm:$0xff]
        %v4156 = vld [vmem:[%s3245 + $0xb8] sm:$0xff]
        %v4157 = vld [vmem:[%s3245 + $0xc0] sm:$0xff]
        %v4158 = vld [vmem:[%s3245 + $0xc8] sm:$0xff]
        %v4159 = vld [vmem:[%s3245 + $0xd0] sm:$0xff]
        %v4160 = vld [vmem:[%s3245 + $0xd8] sm:$0xff]
        %v4161 = vld [vmem:[%s3245 + $0xe0] sm:$0xff]
        %v4162 = vld [vmem:[%s3245 + $0xe8] sm:$0xff]
        %v4163 = vld [vmem:[%s3245 + $0xf0] sm:$0xff]
        %v4164 = vld [vmem:[%s3245 + $0xf8] sm:$0xff]
        %v4165 = vpack.c.bf16 %v4134, %v4133
        %v4166 = vpack.c.bf16 %v4136, %v4135
        %v4167 = vpack.c.bf16 %v4138, %v4137
        %v4168 = vpack.c.bf16 %v4140, %v4139
        %v4169 = vpack.c.bf16 %v4142, %v4141
        %v4170 = vpack.c.bf16 %v4144, %v4143
        %v4171 = vpack.c.bf16 %v4146, %v4145
        %v4172 = vpack.c.bf16 %v4148, %v4147
        %v4173 = vpack.c.bf16 %v4150, %v4149
        %v4174 = vpack.c.bf16 %v4152, %v4151
        %v4175 = vpack.c.bf16 %v4154, %v4153
        %v4176 = vpack.c.bf16 %v4156, %v4155
        %v4177 = vpack.c.bf16 %v4158, %v4157
        %v4178 = vpack.c.bf16 %v4160, %v4159
        %v4179 = vpack.c.bf16 %v4162, %v4161
        %v4180 = vpack.c.bf16 %v4164, %v4163
        %s4181 = scalar_lea.vmem [#allocation14], 48
        %v4182 = vld [vmem:[%s4181] sm:$0xf]
        %v4183 = vld [vmem:[%s4181 + $0x4] sm:$0xf]
        %v4184 = vld [vmem:[%s4181 + $0x8] sm:$0xf]
        %v4185 = vld [vmem:[%s4181 + $0xc] sm:$0xf]
        %v4190 = vunpack.c.l.b16 %v4182
        %v4191 = vunpack.c.l.b16 %v4183
        %v4192 = vunpack.c.l.b16 %v4184
        %v4193 = vunpack.c.l.b16 %v4185
        %v4194 = vpack.c.b16 %v4191, %v4190
        %v4195 = vpack.c.b16 %v4193, %v4192
        %v4199 = vsel %vm844, %v4165, 0
        %v4202 = vsel %vm844, %v4166, 0
        %v4205 = vsel %vm844, %v4167, 0
        %v4208 = vsel %vm844, %v4168, 0
        %v4211 = vsel %vm844, %v4169, 0
        %v4214 = vsel %vm844, %v4170, 0
        %v4217 = vsel %vm844, %v4171, 0
        %v4220 = vsel %vm844, %v4172, 0
        %v4223 = vsel %vm844, %v4173, 0
        %v4226 = vsel %vm844, %v4174, 0
        %v4229 = vsel %vm844, %v4175, 0
        %v4232 = vsel %vm844, %v4176, 0
        %v4235 = vsel %vm844, %v4177, 0
        %v4238 = vsel %vm844, %v4178, 0
        %v4241 = vsel %vm844, %v4179, 0
        %v4244 = vsel %vm844, %v4180, 0
        %4246 = vmatprep.subr.bf16.mxu0 0
        %4247 = vmatpush1.bf16.msra.mxu0 %v4194
        %4248 = vmatprep.subr.bf16.mxu0 0
        %4249 = vmatpush1.bf16.msra.mxu0 %v4195
        %4250 = vmatprep.subr.bf16.mxu0 0
        %4251 = vmatpush1.bf16.msra.mxu0 0
        %4252 = vmatprep.subr.bf16.mxu0 0
        %4253 = vmatpush1.bf16.msra.mxu0 0
        %4254 = vmatprep.subr.bf16.mxu0 0
        %4255 = vmatpush1.bf16.msra.mxu0 0
        %4256 = vmatprep.subr.bf16.mxu0 0
        %4257 = vmatpush1.bf16.msra.mxu0 0
        %4258 = vmatprep.subr.bf16.mxu0 0
        %4259 = vmatpush1.bf16.msra.mxu0 0
        %4260 = vmatprep.subr.bf16.mxu0 0
        %4261 = vmatpush1.bf16.msra.mxu0 0
        %4262 = vmatprep.subr.bf16.mxu0 0
        %4263 = vmatpush1.bf16.msra.mxu0 0
        %4264 = vmatprep.subr.bf16.mxu0 0
        %4265 = vmatpush1.bf16.msra.mxu0 0
        %4266 = vmatprep.subr.bf16.mxu0 0
        %4267 = vmatpush1.bf16.msra.mxu0 0
        %4268 = vmatprep.subr.bf16.mxu0 0
        %4269 = vmatpush1.bf16.msra.mxu0 0
        %4270 = vmatprep.subr.bf16.mxu0 0
        %4271 = vmatpush1.bf16.msra.mxu0 0
        %4272 = vmatprep.subr.bf16.mxu0 0
        %4273 = vmatpush1.bf16.msra.mxu0 0
        %4274 = vmatprep.subr.bf16.mxu0 0
        %4275 = vmatpush1.bf16.msra.mxu0 0
        %4276 = vmatprep.subr.bf16.mxu0 0
        %4277 = vmatpush1.bf16.msra.mxu0 0
        %4278 = vmatprep.mubr.bf16.mxu0 0
        %4279 = vmatmul.mubr.bf16.gmra.mrb[0].mxu0 %v4199
        %v4280 = vpop.f32.mrb[0].mxu0
        %v4281 = vadd.f32 0.0, %v4280
        %v4282 = vpop.f32.mrb[0].mxu0
        %v4283 = vpop.f32.mrb[0].mxu0
        %v4284 = vadd.f32 0.0, %v4283
        %v4285 = vpop.f32.mrb[0].mxu0
        %4286 = vmatprep.mubr.bf16.mxu0 0
        %4287 = vmatmul.mubr.bf16.gmra.mrb[0].mxu0 %v4202
        %v4288 = vpop.f32.mrb[0].mxu0
        %v4289 = vadd.f32 0.0, %v4288
        %v4290 = vpop.f32.mrb[0].mxu0
        %v4291 = vpop.f32.mrb[0].mxu0
        %v4292 = vadd.f32 0.0, %v4291
        %v4293 = vpop.f32.mrb[0].mxu0
        %4294 = vmatprep.mubr.bf16.mxu0 0
        %4295 = vmatmul.mubr.bf16.gmra.mrb[0].mxu0 %v4205
        %v4296 = vpop.f32.mrb[0].mxu0
        %v4297 = vadd.f32 0.0, %v4296
        %v4298 = vpop.f32.mrb[0].mxu0
        %v4299 = vpop.f32.mrb[0].mxu0
        %v4300 = vadd.f32 0.0, %v4299
        %v4301 = vpop.f32.mrb[0].mxu0
        %4302 = vmatprep.mubr.bf16.mxu0 0
        %4303 = vmatmul.mubr.bf16.gmra.mrb[0].mxu0 %v4208
        %v4304 = vpop.f32.mrb[0].mxu0
        %v4305 = vadd.f32 0.0, %v4304
        %v4306 = vpop.f32.mrb[0].mxu0
        %v4307 = vpop.f32.mrb[0].mxu0
        %v4308 = vadd.f32 0.0, %v4307
        %v4309 = vpop.f32.mrb[0].mxu0
        %4310 = vmatprep.mubr.bf16.mxu0 0
        %4311 = vmatmul.mubr.bf16.gmra.mrb[0].mxu0 %v4211
        %v4312 = vpop.f32.mrb[0].mxu0
        %v4313 = vadd.f32 0.0, %v4312
        %v4314 = vpop.f32.mrb[0].mxu0
        %v4315 = vpop.f32.mrb[0].mxu0
        %v4316 = vadd.f32 0.0, %v4315
        %v4317 = vpop.f32.mrb[0].mxu0
        %4318 = vmatprep.mubr.bf16.mxu0 0
        %4319 = vmatmul.mubr.bf16.gmra.mrb[0].mxu0 %v4214
        %v4320 = vpop.f32.mrb[0].mxu0
        %v4321 = vadd.f32 0.0, %v4320
        %v4322 = vpop.f32.mrb[0].mxu0
        %v4323 = vpop.f32.mrb[0].mxu0
        %v4324 = vadd.f32 0.0, %v4323
        %v4325 = vpop.f32.mrb[0].mxu0
        %4326 = vmatprep.mubr.bf16.mxu0 0
        %4327 = vmatmul.mubr.bf16.gmra.mrb[0].mxu0 %v4217
        %v4328 = vpop.f32.mrb[0].mxu0
        %v4329 = vadd.f32 0.0, %v4328
        %v4330 = vpop.f32.mrb[0].mxu0
        %v4331 = vpop.f32.mrb[0].mxu0
        %v4332 = vadd.f32 0.0, %v4331
        %v4333 = vpop.f32.mrb[0].mxu0
        %4334 = vmatprep.mubr.bf16.mxu0 0
        %4335 = vmatmul.mubr.bf16.gmra.mrb[0].mxu0 %v4220
        %v4336 = vpop.f32.mrb[0].mxu0
        %v4337 = vadd.f32 0.0, %v4336
        %v4338 = vpop.f32.mrb[0].mxu0
        %v4339 = vpop.f32.mrb[0].mxu0
        %v4340 = vadd.f32 0.0, %v4339
        %v4341 = vpop.f32.mrb[0].mxu0
        %4342 = vmatprep.mubr.bf16.mxu0 0
        %4343 = vmatmul.mubr.bf16.gmra.mrb[0].mxu0 %v4223
        %v4344 = vpop.f32.mrb[0].mxu0
        %v4345 = vadd.f32 0.0, %v4344
        %v4346 = vpop.f32.mrb[0].mxu0
        %v4347 = vpop.f32.mrb[0].mxu0
        %v4348 = vadd.f32 0.0, %v4347
        %v4349 = vpop.f32.mrb[0].mxu0
        %4350 = vmatprep.mubr.bf16.mxu0 0
        %4351 = vmatmul.mubr.bf16.gmra.mrb[0].mxu0 %v4226
        %v4352 = vpop.f32.mrb[0].mxu0
        %v4353 = vadd.f32 0.0, %v4352
        %v4354 = vpop.f32.mrb[0].mxu0
        %v4355 = vpop.f32.mrb[0].mxu0
        %v4356 = vadd.f32 0.0, %v4355
        %v4357 = vpop.f32.mrb[0].mxu0
        %4358 = vmatprep.mubr.bf16.mxu0 0
        %4359 = vmatmul.mubr.bf16.gmra.mrb[0].mxu0 %v4229
        %v4360 = vpop.f32.mrb[0].mxu0
        %v4361 = vadd.f32 0.0, %v4360
        %v4362 = vpop.f32.mrb[0].mxu0
        %v4363 = vpop.f32.mrb[0].mxu0
        %v4364 = vadd.f32 0.0, %v4363
        %v4365 = vpop.f32.mrb[0].mxu0
        %4366 = vmatprep.mubr.bf16.mxu0 0
        %4367 = vmatmul.mubr.bf16.gmra.mrb[0].mxu0 %v4232
        %v4368 = vpop.f32.mrb[0].mxu0
        %v4369 = vadd.f32 0.0, %v4368
        %v4370 = vpop.f32.mrb[0].mxu0
        %v4371 = vpop.f32.mrb[0].mxu0
        %v4372 = vadd.f32 0.0, %v4371
        %v4373 = vpop.f32.mrb[0].mxu0
        %4374 = vmatprep.mubr.bf16.mxu0 0
        %4375 = vmatmul.mubr.bf16.gmra.mrb[0].mxu0 %v4235
        %v4376 = vpop.f32.mrb[0].mxu0
        %v4377 = vadd.f32 0.0, %v4376
        %v4378 = vpop.f32.mrb[0].mxu0
        %v4379 = vpop.f32.mrb[0].mxu0
        %v4380 = vadd.f32 0.0, %v4379
        %v4381 = vpop.f32.mrb[0].mxu0
        %4382 = vmatprep.mubr.bf16.mxu0 0
        %4383 = vmatmul.mubr.bf16.gmra.mrb[0].mxu0 %v4238
        %v4384 = vpop.f32.mrb[0].mxu0
        %v4385 = vadd.f32 0.0, %v4384
        %v4386 = vpop.f32.mrb[0].mxu0
        %v4387 = vpop.f32.mrb[0].mxu0
        %v4388 = vadd.f32 0.0, %v4387
        %v4389 = vpop.f32.mrb[0].mxu0
        %4390 = vmatprep.mubr.bf16.mxu0 0
        %4391 = vmatmul.mubr.bf16.gmra.mrb[0].mxu0 %v4241
        %v4392 = vpop.f32.mrb[0].mxu0
        %v4393 = vadd.f32 0.0, %v4392
        %v4394 = vpop.f32.mrb[0].mxu0
        %v4395 = vpop.f32.mrb[0].mxu0
        %v4396 = vadd.f32 0.0, %v4395
        %v4397 = vpop.f32.mrb[0].mxu0
        %4398 = vmatprep.mubr.bf16.mxu0 0
        %4399 = vmatmul.mubr.bf16.gmra.mrb[0].mxu0 %v4244
        %v4400 = vpop.f32.mrb[0].mxu0
        %v4401 = vadd.f32 0.0, %v4400
        %v4402 = vpop.f32.mrb[0].mxu0
        %v4403 = vpop.f32.mrb[0].mxu0
        %v4404 = vadd.f32 0.0, %v4403
        %v4405 = vpop.f32.mrb[0].mxu0
        %4406 = vdwg.mxu0
        %v4407 = vadd.f32 %v4101, %v4281
        %v4408 = vadd.f32 %v4102, %v4284
        %v4409 = vadd.f32 %v4103, %v4289
        %v4410 = vadd.f32 %v4104, %v4292
        %v4411 = vadd.f32 %v4105, %v4297
        %v4412 = vadd.f32 %v4106, %v4300
        %v4413 = vadd.f32 %v4107, %v4305
        %v4414 = vadd.f32 %v4108, %v4308
        %v4415 = vadd.f32 %v4109, %v4313
        %v4416 = vadd.f32 %v4110, %v4316
        %v4417 = vadd.f32 %v4111, %v4321
        %v4418 = vadd.f32 %v4112, %v4324
        %v4419 = vadd.f32 %v4113, %v4329
        %v4420 = vadd.f32 %v4114, %v4332
        %v4421 = vadd.f32 %v4115, %v4337
        %v4422 = vadd.f32 %v4116, %v4340
        %v4423 = vadd.f32 %v4117, %v4345
        %v4424 = vadd.f32 %v4118, %v4348
        %v4425 = vadd.f32 %v4119, %v4353
        %v4426 = vadd.f32 %v4120, %v4356
        %v4427 = vadd.f32 %v4121, %v4361
        %v4428 = vadd.f32 %v4122, %v4364
        %v4429 = vadd.f32 %v4123, %v4369
        %v4430 = vadd.f32 %v4124, %v4372
        %v4431 = vadd.f32 %v4125, %v4377
        %v4432 = vadd.f32 %v4126, %v4380
        %v4433 = vadd.f32 %v4127, %v4385
        %v4434 = vadd.f32 %v4128, %v4388
        %v4435 = vadd.f32 %v4129, %v4393
        %v4436 = vadd.f32 %v4130, %v4396
        %v4437 = vadd.f32 %v4131, %v4401
        %v4438 = vadd.f32 %v4132, %v4404
        %s4439 = scalar_lea.vmem [#allocation3], 64
        %v4440 = vld [vmem:[%s4439] sm:$0xff]
        %v4441 = vld [vmem:[%s4439 + $0x8] sm:$0xff]
        %v4442 = vld [vmem:[%s4439 + $0x10] sm:$0xff]
        %v4443 = vld [vmem:[%s4439 + $0x18] sm:$0xff]
        %v4444 = vld [vmem:[%s4439 + $0x20] sm:$0xff]
        %v4445 = vld [vmem:[%s4439 + $0x28] sm:$0xff]
        %v4446 = vld [vmem:[%s4439 + $0x30] sm:$0xff]
        %v4447 = vld [vmem:[%s4439 + $0x38] sm:$0xff]
        %v4448 = vld [vmem:[%s4439 + $0x40] sm:$0xff]
        %v4449 = vld [vmem:[%s4439 + $0x48] sm:$0xff]
        %v4450 = vld [vmem:[%s4439 + $0x50] sm:$0xff]
        %v4451 = vld [vmem:[%s4439 + $0x58] sm:$0xff]
        %v4452 = vld [vmem:[%s4439 + $0x60] sm:$0xff]
        %v4453 = vld [vmem:[%s4439 + $0x68] sm:$0xff]
        %v4454 = vld [vmem:[%s4439 + $0x70] sm:$0xff]
        %v4455 = vld [vmem:[%s4439 + $0x78] sm:$0xff]
        %v4456 = vld [vmem:[%s4439 + $0x80] sm:$0xff]
        %v4457 = vld [vmem:[%s4439 + $0x88] sm:$0xff]
        %v4458 = vld [vmem:[%s4439 + $0x90] sm:$0xff]
        %v4459 = vld [vmem:[%s4439 + $0x98] sm:$0xff]
        %v4460 = vld [vmem:[%s4439 + $0xa0] sm:$0xff]
        %v4461 = vld [vmem:[%s4439 + $0xa8] sm:$0xff]
        %v4462 = vld [vmem:[%s4439 + $0xb0] sm:$0xff]
        %v4463 = vld [vmem:[%s4439 + $0xb8] sm:$0xff]
        %v4464 = vld [vmem:[%s4439 + $0xc0] sm:$0xff]
        %v4465 = vld [vmem:[%s4439 + $0xc8] sm:$0xff]
        %v4466 = vld [vmem:[%s4439 + $0xd0] sm:$0xff]
        %v4467 = vld [vmem:[%s4439 + $0xd8] sm:$0xff]
        %v4468 = vld [vmem:[%s4439 + $0xe0] sm:$0xff]
        %v4469 = vld [vmem:[%s4439 + $0xe8] sm:$0xff]
        %v4470 = vld [vmem:[%s4439 + $0xf0] sm:$0xff]
        %v4471 = vld [vmem:[%s4439 + $0xf8] sm:$0xff]
        %v4472 = vpack.c.bf16 %v4441, %v4440
        %v4473 = vpack.c.bf16 %v4443, %v4442
        %v4474 = vpack.c.bf16 %v4445, %v4444
        %v4475 = vpack.c.bf16 %v4447, %v4446
        %v4476 = vpack.c.bf16 %v4449, %v4448
        %v4477 = vpack.c.bf16 %v4451, %v4450
        %v4478 = vpack.c.bf16 %v4453, %v4452
        %v4479 = vpack.c.bf16 %v4455, %v4454
        %v4480 = vpack.c.bf16 %v4457, %v4456
        %v4481 = vpack.c.bf16 %v4459, %v4458
        %v4482 = vpack.c.bf16 %v4461, %v4460
        %v4483 = vpack.c.bf16 %v4463, %v4462
        %v4484 = vpack.c.bf16 %v4465, %v4464
        %v4485 = vpack.c.bf16 %v4467, %v4466
        %v4486 = vpack.c.bf16 %v4469, %v4468
        %v4487 = vpack.c.bf16 %v4471, %v4470
        %s4488 = scalar_lea.vmem [#allocation14], 64
        %v4489 = vld [vmem:[%s4488] sm:$0xf]
        %v4490 = vld [vmem:[%s4488 + $0x4] sm:$0xf]
        %v4491 = vld [vmem:[%s4488 + $0x8] sm:$0xf]
        %v4492 = vld [vmem:[%s4488 + $0xc] sm:$0xf]
        %v4497 = vunpack.c.l.b16 %v4489
        %v4498 = vunpack.c.l.b16 %v4490
        %v4499 = vunpack.c.l.b16 %v4491
        %v4500 = vunpack.c.l.b16 %v4492
        %v4501 = vpack.c.b16 %v4498, %v4497
        %v4502 = vpack.c.b16 %v4500, %v4499
        %v4506 = vsel %vm844, %v4472, 0
        %v4509 = vsel %vm844, %v4473, 0
        %v4512 = vsel %vm844, %v4474, 0
        %v4515 = vsel %vm844, %v4475, 0
        %v4518 = vsel %vm844, %v4476, 0
        %v4521 = vsel %vm844, %v4477, 0
        %v4524 = vsel %vm844, %v4478, 0
        %v4527 = vsel %vm844, %v4479, 0
        %v4530 = vsel %vm844, %v4480, 0
        %v4533 = vsel %vm844, %v4481, 0
        %v4536 = vsel %vm844, %v4482, 0
        %v4539 = vsel %vm844, %v4483, 0
        %v4542 = vsel %vm844, %v4484, 0
        %v4545 = vsel %vm844, %v4485, 0
        %v4548 = vsel %vm844, %v4486, 0
        %v4551 = vsel %vm844, %v4487, 0
        %4553 = vmatprep.subr.bf16.mxu0 0
        %4554 = vmatpush1.bf16.msra.mxu0 %v4501
        %4555 = vmatprep.subr.bf16.mxu0 0
        %4556 = vmatpush1.bf16.msra.mxu0 %v4502
        %4557 = vmatprep.subr.bf16.mxu0 0
        %4558 = vmatpush1.bf16.msra.mxu0 0
        %4559 = vmatprep.subr.bf16.mxu0 0
        %4560 = vmatpush1.bf16.msra.mxu0 0
        %4561 = vmatprep.subr.bf16.mxu0 0
        %4562 = vmatpush1.bf16.msra.mxu0 0
        %4563 = vmatprep.subr.bf16.mxu0 0
        %4564 = vmatpush1.bf16.msra.mxu0 0
        %4565 = vmatprep.subr.bf16.mxu0 0
        %4566 = vmatpush1.bf16.msra.mxu0 0
        %4567 = vmatprep.subr.bf16.mxu0 0
        %4568 = vmatpush1.bf16.msra.mxu0 0
        %4569 = vmatprep.subr.bf16.mxu0 0
        %4570 = vmatpush1.bf16.msra.mxu0 0
        %4571 = vmatprep.subr.bf16.mxu0 0
        %4572 = vmatpush1.bf16.msra.mxu0 0
        %4573 = vmatprep.subr.bf16.mxu0 0
        %4574 = vmatpush1.bf16.msra.mxu0 0
        %4575 = vmatprep.subr.bf16.mxu0 0
        %4576 = vmatpush1.bf16.msra.mxu0 0
        %4577 = vmatprep.subr.bf16.mxu0 0
        %4578 = vmatpush1.bf16.msra.mxu0 0
        %4579 = vmatprep.subr.bf16.mxu0 0
        %4580 = vmatpush1.bf16.msra.mxu0 0
        %4581 = vmatprep.subr.bf16.mxu0 0
        %4582 = vmatpush1.bf16.msra.mxu0 0
        %4583 = vmatprep.subr.bf16.mxu0 0
        %4584 = vmatpush1.bf16.msra.mxu0 0
        %4585 = vmatprep.mubr.bf16.mxu0 0
        %4586 = vmatmul.mubr.bf16.gmra.mrb[0].mxu0 %v4506
        %v4587 = vpop.f32.mrb[0].mxu0
        %v4588 = vadd.f32 0.0, %v4587
        %v4589 = vpop.f32.mrb[0].mxu0
        %v4590 = vpop.f32.mrb[0].mxu0
        %v4591 = vadd.f32 0.0, %v4590
        %v4592 = vpop.f32.mrb[0].mxu0
        %4593 = vmatprep.mubr.bf16.mxu0 0
        %4594 = vmatmul.mubr.bf16.gmra.mrb[0].mxu0 %v4509
        %v4595 = vpop.f32.mrb[0].mxu0
        %v4596 = vadd.f32 0.0, %v4595
        %v4597 = vpop.f32.mrb[0].mxu0
        %v4598 = vpop.f32.mrb[0].mxu0
        %v4599 = vadd.f32 0.0, %v4598
        %v4600 = vpop.f32.mrb[0].mxu0
        %4601 = vmatprep.mubr.bf16.mxu0 0
        %4602 = vmatmul.mubr.bf16.gmra.mrb[0].mxu0 %v4512
        %v4603 = vpop.f32.mrb[0].mxu0
        %v4604 = vadd.f32 0.0, %v4603
        %v4605 = vpop.f32.mrb[0].mxu0
        %v4606 = vpop.f32.mrb[0].mxu0
        %v4607 = vadd.f32 0.0, %v4606
        %v4608 = vpop.f32.mrb[0].mxu0
        %4609 = vmatprep.mubr.bf16.mxu0 0
        %4610 = vmatmul.mubr.bf16.gmra.mrb[0].mxu0 %v4515
        %v4611 = vpop.f32.mrb[0].mxu0
        %v4612 = vadd.f32 0.0, %v4611
        %v4613 = vpop.f32.mrb[0].mxu0
        %v4614 = vpop.f32.mrb[0].mxu0
        %v4615 = vadd.f32 0.0, %v4614
        %v4616 = vpop.f32.mrb[0].mxu0
        %4617 = vmatprep.mubr.bf16.mxu0 0
        %4618 = vmatmul.mubr.bf16.gmra.mrb[0].mxu0 %v4518
        %v4619 = vpop.f32.mrb[0].mxu0
        %v4620 = vadd.f32 0.0, %v4619
        %v4621 = vpop.f32.mrb[0].mxu0
        %v4622 = vpop.f32.mrb[0].mxu0
        %v4623 = vadd.f32 0.0, %v4622
        %v4624 = vpop.f32.mrb[0].mxu0
        %4625 = vmatprep.mubr.bf16.mxu0 0
        %4626 = vmatmul.mubr.bf16.gmra.mrb[0].mxu0 %v4521
        %v4627 = vpop.f32.mrb[0].mxu0
        %v4628 = vadd.f32 0.0, %v4627
        %v4629 = vpop.f32.mrb[0].mxu0
        %v4630 = vpop.f32.mrb[0].mxu0
        %v4631 = vadd.f32 0.0, %v4630
        %v4632 = vpop.f32.mrb[0].mxu0
        %4633 = vmatprep.mubr.bf16.mxu0 0
        %4634 = vmatmul.mubr.bf16.gmra.mrb[0].mxu0 %v4524
        %v4635 = vpop.f32.mrb[0].mxu0
        %v4636 = vadd.f32 0.0, %v4635
        %v4637 = vpop.f32.mrb[0].mxu0
        %v4638 = vpop.f32.mrb[0].mxu0
        %v4639 = vadd.f32 0.0, %v4638
        %v4640 = vpop.f32.mrb[0].mxu0
        %4641 = vmatprep.mubr.bf16.mxu0 0
        %4642 = vmatmul.mubr.bf16.gmra.mrb[0].mxu0 %v4527
        %v4643 = vpop.f32.mrb[0].mxu0
        %v4644 = vadd.f32 0.0, %v4643
        %v4645 = vpop.f32.mrb[0].mxu0
        %v4646 = vpop.f32.mrb[0].mxu0
        %v4647 = vadd.f32 0.0, %v4646
        %v4648 = vpop.f32.mrb[0].mxu0
        %4649 = vmatprep.mubr.bf16.mxu0 0
        %4650 = vmatmul.mubr.bf16.gmra.mrb[0].mxu0 %v4530
        %v4651 = vpop.f32.mrb[0].mxu0
        %v4652 = vadd.f32 0.0, %v4651
        %v4653 = vpop.f32.mrb[0].mxu0
        %v4654 = vpop.f32.mrb[0].mxu0
        %v4655 = vadd.f32 0.0, %v4654
        %v4656 = vpop.f32.mrb[0].mxu0
        %4657 = vmatprep.mubr.bf16.mxu0 0
        %4658 = vmatmul.mubr.bf16.gmra.mrb[0].mxu0 %v4533
        %v4659 = vpop.f32.mrb[0].mxu0
        %v4660 = vadd.f32 0.0, %v4659
        %v4661 = vpop.f32.mrb[0].mxu0
        %v4662 = vpop.f32.mrb[0].mxu0
        %v4663 = vadd.f32 0.0, %v4662
        %v4664 = vpop.f32.mrb[0].mxu0
        %4665 = vmatprep.mubr.bf16.mxu0 0
        %4666 = vmatmul.mubr.bf16.gmra.mrb[0].mxu0 %v4536
        %v4667 = vpop.f32.mrb[0].mxu0
        %v4668 = vadd.f32 0.0, %v4667
        %v4669 = vpop.f32.mrb[0].mxu0
        %v4670 = vpop.f32.mrb[0].mxu0
        %v4671 = vadd.f32 0.0, %v4670
        %v4672 = vpop.f32.mrb[0].mxu0
        %4673 = vmatprep.mubr.bf16.mxu0 0
        %4674 = vmatmul.mubr.bf16.gmra.mrb[0].mxu0 %v4539
        %v4675 = vpop.f32.mrb[0].mxu0
        %v4676 = vadd.f32 0.0, %v4675
        %v4677 = vpop.f32.mrb[0].mxu0
        %v4678 = vpop.f32.mrb[0].mxu0
        %v4679 = vadd.f32 0.0, %v4678
        %v4680 = vpop.f32.mrb[0].mxu0
        %4681 = vmatprep.mubr.bf16.mxu0 0
        %4682 = vmatmul.mubr.bf16.gmra.mrb[0].mxu0 %v4542
        %v4683 = vpop.f32.mrb[0].mxu0
        %v4684 = vadd.f32 0.0, %v4683
        %v4685 = vpop.f32.mrb[0].mxu0
        %v4686 = vpop.f32.mrb[0].mxu0
        %v4687 = vadd.f32 0.0, %v4686
        %v4688 = vpop.f32.mrb[0].mxu0
        %4689 = vmatprep.mubr.bf16.mxu0 0
        %4690 = vmatmul.mubr.bf16.gmra.mrb[0].mxu0 %v4545
        %v4691 = vpop.f32.mrb[0].mxu0
        %v4692 = vadd.f32 0.0, %v4691
        %v4693 = vpop.f32.mrb[0].mxu0
        %v4694 = vpop.f32.mrb[0].mxu0
        %v4695 = vadd.f32 0.0, %v4694
        %v4696 = vpop.f32.mrb[0].mxu0
        %4697 = vmatprep.mubr.bf16.mxu0 0
        %4698 = vmatmul.mubr.bf16.gmra.mrb[0].mxu0 %v4548
        %v4699 = vpop.f32.mrb[0].mxu0
        %v4700 = vadd.f32 0.0, %v4699
        %v4701 = vpop.f32.mrb[0].mxu0
        %v4702 = vpop.f32.mrb[0].mxu0
        %v4703 = vadd.f32 0.0, %v4702
        %v4704 = vpop.f32.mrb[0].mxu0
        %4705 = vmatprep.mubr.bf16.mxu0 0
        %4706 = vmatmul.mubr.bf16.gmra.mrb[0].mxu0 %v4551
        %v4707 = vpop.f32.mrb[0].mxu0
        %v4708 = vadd.f32 0.0, %v4707
        %v4709 = vpop.f32.mrb[0].mxu0
        %v4710 = vpop.f32.mrb[0].mxu0
        %v4711 = vadd.f32 0.0, %v4710
        %v4712 = vpop.f32.mrb[0].mxu0
        %4713 = vdwg.mxu0
        %v4714 = vadd.f32 %v4407, %v4588
        %v4715 = vadd.f32 %v4408, %v4591
        %v4716 = vadd.f32 %v4409, %v4596
        %v4717 = vadd.f32 %v4410, %v4599
        %v4718 = vadd.f32 %v4411, %v4604
        %v4719 = vadd.f32 %v4412, %v4607
        %v4720 = vadd.f32 %v4413, %v4612
        %v4721 = vadd.f32 %v4414, %v4615
        %v4722 = vadd.f32 %v4415, %v4620
        %v4723 = vadd.f32 %v4416, %v4623
        %v4724 = vadd.f32 %v4417, %v4628
        %v4725 = vadd.f32 %v4418, %v4631
        %v4726 = vadd.f32 %v4419, %v4636
        %v4727 = vadd.f32 %v4420, %v4639
        %v4728 = vadd.f32 %v4421, %v4644
        %v4729 = vadd.f32 %v4422, %v4647
        %v4730 = vadd.f32 %v4423, %v4652
        %v4731 = vadd.f32 %v4424, %v4655
        %v4732 = vadd.f32 %v4425, %v4660
        %v4733 = vadd.f32 %v4426, %v4663
        %v4734 = vadd.f32 %v4427, %v4668
        %v4735 = vadd.f32 %v4428, %v4671
        %v4736 = vadd.f32 %v4429, %v4676
        %v4737 = vadd.f32 %v4430, %v4679
        %v4738 = vadd.f32 %v4431, %v4684
        %v4739 = vadd.f32 %v4432, %v4687
        %v4740 = vadd.f32 %v4433, %v4692
        %v4741 = vadd.f32 %v4434, %v4695
        %v4742 = vadd.f32 %v4435, %v4700
        %v4743 = vadd.f32 %v4436, %v4703
        %v4744 = vadd.f32 %v4437, %v4708
        %v4745 = vadd.f32 %v4438, %v4711
        %s4746 = scalar_lea.vmem [#allocation3], 80
        %v4747 = vld [vmem:[%s4746] sm:$0xff]
        %v4748 = vld [vmem:[%s4746 + $0x8] sm:$0xff]
        %v4749 = vld [vmem:[%s4746 + $0x10] sm:$0xff]
        %v4750 = vld [vmem:[%s4746 + $0x18] sm:$0xff]
        %v4751 = vld [vmem:[%s4746 + $0x20] sm:$0xff]
        %v4752 = vld [vmem:[%s4746 + $0x28] sm:$0xff]
        %v4753 = vld [vmem:[%s4746 + $0x30] sm:$0xff]
        %v4754 = vld [vmem:[%s4746 + $0x38] sm:$0xff]
        %v4755 = vld [vmem:[%s4746 + $0x40] sm:$0xff]
        %v4756 = vld [vmem:[%s4746 + $0x48] sm:$0xff]
        %v4757 = vld [vmem:[%s4746 + $0x50] sm:$0xff]
        %v4758 = vld [vmem:[%s4746 + $0x58] sm:$0xff]
        %v4759 = vld [vmem:[%s4746 + $0x60] sm:$0xff]
        %v4760 = vld [vmem:[%s4746 + $0x68] sm:$0xff]
        %v4761 = vld [vmem:[%s4746 + $0x70] sm:$0xff]
        %v4762 = vld [vmem:[%s4746 + $0x78] sm:$0xff]
        %v4763 = vld [vmem:[%s4746 + $0x80] sm:$0xff]
        %v4764 = vld [vmem:[%s4746 + $0x88] sm:$0xff]
        %v4765 = vld [vmem:[%s4746 + $0x90] sm:$0xff]
        %v4766 = vld [vmem:[%s4746 + $0x98] sm:$0xff]
        %v4767 = vld [vmem:[%s4746 + $0xa0] sm:$0xff]
        %v4768 = vld [vmem:[%s4746 + $0xa8] sm:$0xff]
        %v4769 = vld [vmem:[%s4746 + $0xb0] sm:$0xff]
        %v4770 = vld [vmem:[%s4746 + $0xb8] sm:$0xff]
        %v4771 = vld [vmem:[%s4746 + $0xc0] sm:$0xff]
        %v4772 = vld [vmem:[%s4746 + $0xc8] sm:$0xff]
        %v4773 = vld [vmem:[%s4746 + $0xd0] sm:$0xff]
        %v4774 = vld [vmem:[%s4746 + $0xd8] sm:$0xff]
        %v4775 = vld [vmem:[%s4746 + $0xe0] sm:$0xff]
        %v4776 = vld [vmem:[%s4746 + $0xe8] sm:$0xff]
        %v4777 = vld [vmem:[%s4746 + $0xf0] sm:$0xff]
        %v4778 = vld [vmem:[%s4746 + $0xf8] sm:$0xff]
        %v4779 = vpack.c.bf16 %v4748, %v4747
        %v4780 = vpack.c.bf16 %v4750, %v4749
        %v4781 = vpack.c.bf16 %v4752, %v4751
        %v4782 = vpack.c.bf16 %v4754, %v4753
        %v4783 = vpack.c.bf16 %v4756, %v4755
        %v4784 = vpack.c.bf16 %v4758, %v4757
        %v4785 = vpack.c.bf16 %v4760, %v4759
        %v4786 = vpack.c.bf16 %v4762, %v4761
        %v4787 = vpack.c.bf16 %v4764, %v4763
        %v4788 = vpack.c.bf16 %v4766, %v4765
        %v4789 = vpack.c.bf16 %v4768, %v4767
        %v4790 = vpack.c.bf16 %v4770, %v4769
        %v4791 = vpack.c.bf16 %v4772, %v4771
        %v4792 = vpack.c.bf16 %v4774, %v4773
        %v4793 = vpack.c.bf16 %v4776, %v4775
        %v4794 = vpack.c.bf16 %v4778, %v4777
        %s4795 = scalar_lea.vmem [#allocation14], 80
        %v4796 = vld [vmem:[%s4795] sm:$0xf]
        %v4797 = vld [vmem:[%s4795 + $0x4] sm:$0xf]
        %v4798 = vld [vmem:[%s4795 + $0x8] sm:$0xf]
        %v4799 = vld [vmem:[%s4795 + $0xc] sm:$0xf]
        %v4804 = vunpack.c.l.b16 %v4796
        %v4805 = vunpack.c.l.b16 %v4797
        %v4806 = vunpack.c.l.b16 %v4798
        %v4807 = vunpack.c.l.b16 %v4799
        %v4808 = vpack.c.b16 %v4805, %v4804
        %v4809 = vpack.c.b16 %v4807, %v4806
        %v4813 = vsel %vm844, %v4779, 0
        %v4816 = vsel %vm844, %v4780, 0
        %v4819 = vsel %vm844, %v4781, 0
        %v4822 = vsel %vm844, %v4782, 0
        %v4825 = vsel %vm844, %v4783, 0
        %v4828 = vsel %vm844, %v4784, 0
        %v4831 = vsel %vm844, %v4785, 0
        %v4834 = vsel %vm844, %v4786, 0
        %v4837 = vsel %vm844, %v4787, 0
        %v4840 = vsel %vm844, %v4788, 0
        %v4843 = vsel %vm844, %v4789, 0
        %v4846 = vsel %vm844, %v4790, 0
        %v4849 = vsel %vm844, %v4791, 0
        %v4852 = vsel %vm844, %v4792, 0
        %v4855 = vsel %vm844, %v4793, 0
        %v4858 = vsel %vm844, %v4794, 0
        %4860 = vmatprep.subr.bf16.mxu0 0
        %4861 = vmatpush1.bf16.msra.mxu0 %v4808
        %4862 = vmatprep.subr.bf16.mxu0 0
        %4863 = vmatpush1.bf16.msra.mxu0 %v4809
        %4864 = vmatprep.subr.bf16.mxu0 0
        %4865 = vmatpush1.bf16.msra.mxu0 0
        %4866 = vmatprep.subr.bf16.mxu0 0
        %4867 = vmatpush1.bf16.msra.mxu0 0
        %4868 = vmatprep.subr.bf16.mxu0 0
        %4869 = vmatpush1.bf16.msra.mxu0 0
        %4870 = vmatprep.subr.bf16.mxu0 0
        %4871 = vmatpush1.bf16.msra.mxu0 0
        %4872 = vmatprep.subr.bf16.mxu0 0
        %4873 = vmatpush1.bf16.msra.mxu0 0
        %4874 = vmatprep.subr.bf16.mxu0 0
        %4875 = vmatpush1.bf16.msra.mxu0 0
        %4876 = vmatprep.subr.bf16.mxu0 0
        %4877 = vmatpush1.bf16.msra.mxu0 0
        %4878 = vmatprep.subr.bf16.mxu0 0
        %4879 = vmatpush1.bf16.msra.mxu0 0
        %4880 = vmatprep.subr.bf16.mxu0 0
        %4881 = vmatpush1.bf16.msra.mxu0 0
        %4882 = vmatprep.subr.bf16.mxu0 0
        %4883 = vmatpush1.bf16.msra.mxu0 0
        %4884 = vmatprep.subr.bf16.mxu0 0
        %4885 = vmatpush1.bf16.msra.mxu0 0
        %4886 = vmatprep.subr.bf16.mxu0 0
        %4887 = vmatpush1.bf16.msra.mxu0 0
        %4888 = vmatprep.subr.bf16.mxu0 0
        %4889 = vmatpush1.bf16.msra.mxu0 0
        %4890 = vmatprep.subr.bf16.mxu0 0
        %4891 = vmatpush1.bf16.msra.mxu0 0
        %4892 = vmatprep.mubr.bf16.mxu0 0
        %4893 = vmatmul.mubr.bf16.gmra.mrb[0].mxu0 %v4813
        %v4894 = vpop.f32.mrb[0].mxu0
        %v4895 = vadd.f32 0.0, %v4894
        %v4896 = vpop.f32.mrb[0].mxu0
        %v4897 = vpop.f32.mrb[0].mxu0
        %v4898 = vadd.f32 0.0, %v4897
        %v4899 = vpop.f32.mrb[0].mxu0
        %4900 = vmatprep.mubr.bf16.mxu0 0
        %4901 = vmatmul.mubr.bf16.gmra.mrb[0].mxu0 %v4816
        %v4902 = vpop.f32.mrb[0].mxu0
        %v4903 = vadd.f32 0.0, %v4902
        %v4904 = vpop.f32.mrb[0].mxu0
        %v4905 = vpop.f32.mrb[0].mxu0
        %v4906 = vadd.f32 0.0, %v4905
        %v4907 = vpop.f32.mrb[0].mxu0
        %4908 = vmatprep.mubr.bf16.mxu0 0
        %4909 = vmatmul.mubr.bf16.gmra.mrb[0].mxu0 %v4819
        %v4910 = vpop.f32.mrb[0].mxu0
        %v4911 = vadd.f32 0.0, %v4910
        %v4912 = vpop.f32.mrb[0].mxu0
        %v4913 = vpop.f32.mrb[0].mxu0
        %v4914 = vadd.f32 0.0, %v4913
        %v4915 = vpop.f32.mrb[0].mxu0
        %4916 = vmatprep.mubr.bf16.mxu0 0
        %4917 = vmatmul.mubr.bf16.gmra.mrb[0].mxu0 %v4822
        %v4918 = vpop.f32.mrb[0].mxu0
        %v4919 = vadd.f32 0.0, %v4918
        %v4920 = vpop.f32.mrb[0].mxu0
        %v4921 = vpop.f32.mrb[0].mxu0
        %v4922 = vadd.f32 0.0, %v4921
        %v4923 = vpop.f32.mrb[0].mxu0
        %4924 = vmatprep.mubr.bf16.mxu0 0
        %4925 = vmatmul.mubr.bf16.gmra.mrb[0].mxu0 %v4825
        %v4926 = vpop.f32.mrb[0].mxu0
        %v4927 = vadd.f32 0.0, %v4926
        %v4928 = vpop.f32.mrb[0].mxu0
        %v4929 = vpop.f32.mrb[0].mxu0
        %v4930 = vadd.f32 0.0, %v4929
        %v4931 = vpop.f32.mrb[0].mxu0
        %4932 = vmatprep.mubr.bf16.mxu0 0
        %4933 = vmatmul.mubr.bf16.gmra.mrb[0].mxu0 %v4828
        %v4934 = vpop.f32.mrb[0].mxu0
        %v4935 = vadd.f32 0.0, %v4934
        %v4936 = vpop.f32.mrb[0].mxu0
        %v4937 = vpop.f32.mrb[0].mxu0
        %v4938 = vadd.f32 0.0, %v4937
        %v4939 = vpop.f32.mrb[0].mxu0
        %4940 = vmatprep.mubr.bf16.mxu0 0
        %4941 = vmatmul.mubr.bf16.gmra.mrb[0].mxu0 %v4831
        %v4942 = vpop.f32.mrb[0].mxu0
        %v4943 = vadd.f32 0.0, %v4942
        %v4944 = vpop.f32.mrb[0].mxu0
        %v4945 = vpop.f32.mrb[0].mxu0
        %v4946 = vadd.f32 0.0, %v4945
        %v4947 = vpop.f32.mrb[0].mxu0
        %4948 = vmatprep.mubr.bf16.mxu0 0
        %4949 = vmatmul.mubr.bf16.gmra.mrb[0].mxu0 %v4834
        %v4950 = vpop.f32.mrb[0].mxu0
        %v4951 = vadd.f32 0.0, %v4950
        %v4952 = vpop.f32.mrb[0].mxu0
        %v4953 = vpop.f32.mrb[0].mxu0
        %v4954 = vadd.f32 0.0, %v4953
        %v4955 = vpop.f32.mrb[0].mxu0
        %4956 = vmatprep.mubr.bf16.mxu0 0
        %4957 = vmatmul.mubr.bf16.gmra.mrb[0].mxu0 %v4837
        %v4958 = vpop.f32.mrb[0].mxu0
        %v4959 = vadd.f32 0.0, %v4958
        %v4960 = vpop.f32.mrb[0].mxu0
        %v4961 = vpop.f32.mrb[0].mxu0
        %v4962 = vadd.f32 0.0, %v4961
        %v4963 = vpop.f32.mrb[0].mxu0
        %4964 = vmatprep.mubr.bf16.mxu0 0
        %4965 = vmatmul.mubr.bf16.gmra.mrb[0].mxu0 %v4840
        %v4966 = vpop.f32.mrb[0].mxu0
        %v4967 = vadd.f32 0.0, %v4966
        %v4968 = vpop.f32.mrb[0].mxu0
        %v4969 = vpop.f32.mrb[0].mxu0
        %v4970 = vadd.f32 0.0, %v4969
        %v4971 = vpop.f32.mrb[0].mxu0
        %4972 = vmatprep.mubr.bf16.mxu0 0
        %4973 = vmatmul.mubr.bf16.gmra.mrb[0].mxu0 %v4843
        %v4974 = vpop.f32.mrb[0].mxu0
        %v4975 = vadd.f32 0.0, %v4974
        %v4976 = vpop.f32.mrb[0].mxu0
        %v4977 = vpop.f32.mrb[0].mxu0
        %v4978 = vadd.f32 0.0, %v4977
        %v4979 = vpop.f32.mrb[0].mxu0
        %4980 = vmatprep.mubr.bf16.mxu0 0
        %4981 = vmatmul.mubr.bf16.gmra.mrb[0].mxu0 %v4846
        %v4982 = vpop.f32.mrb[0].mxu0
        %v4983 = vadd.f32 0.0, %v4982
        %v4984 = vpop.f32.mrb[0].mxu0
        %v4985 = vpop.f32.mrb[0].mxu0
        %v4986 = vadd.f32 0.0, %v4985
        %v4987 = vpop.f32.mrb[0].mxu0
        %4988 = vmatprep.mubr.bf16.mxu0 0
        %4989 = vmatmul.mubr.bf16.gmra.mrb[0].mxu0 %v4849
        %v4990 = vpop.f32.mrb[0].mxu0
        %v4991 = vadd.f32 0.0, %v4990
        %v4992 = vpop.f32.mrb[0].mxu0
        %v4993 = vpop.f32.mrb[0].mxu0
        %v4994 = vadd.f32 0.0, %v4993
        %v4995 = vpop.f32.mrb[0].mxu0
        %4996 = vmatprep.mubr.bf16.mxu0 0
        %4997 = vmatmul.mubr.bf16.gmra.mrb[0].mxu0 %v4852
        %v4998 = vpop.f32.mrb[0].mxu0
        %v4999 = vadd.f32 0.0, %v4998
        %v5000 = vpop.f32.mrb[0].mxu0
        %v5001 = vpop.f32.mrb[0].mxu0
        %v5002 = vadd.f32 0.0, %v5001
        %v5003 = vpop.f32.mrb[0].mxu0
        %5004 = vmatprep.mubr.bf16.mxu0 0
        %5005 = vmatmul.mubr.bf16.gmra.mrb[0].mxu0 %v4855
        %v5006 = vpop.f32.mrb[0].mxu0
        %v5007 = vadd.f32 0.0, %v5006
        %v5008 = vpop.f32.mrb[0].mxu0
        %v5009 = vpop.f32.mrb[0].mxu0
        %v5010 = vadd.f32 0.0, %v5009
        %v5011 = vpop.f32.mrb[0].mxu0
        %5012 = vmatprep.mubr.bf16.mxu0 0
        %5013 = vmatmul.mubr.bf16.gmra.mrb[0].mxu0 %v4858
        %v5014 = vpop.f32.mrb[0].mxu0
        %v5015 = vadd.f32 0.0, %v5014
        %v5016 = vpop.f32.mrb[0].mxu0
        %v5017 = vpop.f32.mrb[0].mxu0
        %v5018 = vadd.f32 0.0, %v5017
        %v5019 = vpop.f32.mrb[0].mxu0
        %5020 = vdwg.mxu0
        %v5021 = vadd.f32 %v4714, %v4895
        %v5022 = vadd.f32 %v4715, %v4898
        %v5023 = vadd.f32 %v4716, %v4903
        %v5024 = vadd.f32 %v4717, %v4906
        %v5025 = vadd.f32 %v4718, %v4911
        %v5026 = vadd.f32 %v4719, %v4914
        %v5027 = vadd.f32 %v4720, %v4919
        %v5028 = vadd.f32 %v4721, %v4922
        %v5029 = vadd.f32 %v4722, %v4927
        %v5030 = vadd.f32 %v4723, %v4930
        %v5031 = vadd.f32 %v4724, %v4935
        %v5032 = vadd.f32 %v4725, %v4938
        %v5033 = vadd.f32 %v4726, %v4943
        %v5034 = vadd.f32 %v4727, %v4946
        %v5035 = vadd.f32 %v4728, %v4951
        %v5036 = vadd.f32 %v4729, %v4954
        %v5037 = vadd.f32 %v4730, %v4959
        %v5038 = vadd.f32 %v4731, %v4962
        %v5039 = vadd.f32 %v4732, %v4967
        %v5040 = vadd.f32 %v4733, %v4970
        %v5041 = vadd.f32 %v4734, %v4975
        %v5042 = vadd.f32 %v4735, %v4978
        %v5043 = vadd.f32 %v4736, %v4983
        %v5044 = vadd.f32 %v4737, %v4986
        %v5045 = vadd.f32 %v4738, %v4991
        %v5046 = vadd.f32 %v4739, %v4994
        %v5047 = vadd.f32 %v4740, %v4999
        %v5048 = vadd.f32 %v4741, %v5002
        %v5049 = vadd.f32 %v4742, %v5007
        %v5050 = vadd.f32 %v4743, %v5010
        %v5051 = vadd.f32 %v4744, %v5015
        %v5052 = vadd.f32 %v4745, %v5018
        %s5053 = scalar_lea.vmem [#allocation3], 96
        %v5054 = vld [vmem:[%s5053] sm:$0xff]
        %v5055 = vld [vmem:[%s5053 + $0x8] sm:$0xff]
        %v5056 = vld [vmem:[%s5053 + $0x10] sm:$0xff]
        %v5057 = vld [vmem:[%s5053 + $0x18] sm:$0xff]
        %v5058 = vld [vmem:[%s5053 + $0x20] sm:$0xff]
        %v5059 = vld [vmem:[%s5053 + $0x28] sm:$0xff]
        %v5060 = vld [vmem:[%s5053 + $0x30] sm:$0xff]
        %v5061 = vld [vmem:[%s5053 + $0x38] sm:$0xff]
        %v5062 = vld [vmem:[%s5053 + $0x40] sm:$0xff]
        %v5063 = vld [vmem:[%s5053 + $0x48] sm:$0xff]
        %v5064 = vld [vmem:[%s5053 + $0x50] sm:$0xff]
        %v5065 = vld [vmem:[%s5053 + $0x58] sm:$0xff]
        %v5066 = vld [vmem:[%s5053 + $0x60] sm:$0xff]
        %v5067 = vld [vmem:[%s5053 + $0x68] sm:$0xff]
        %v5068 = vld [vmem:[%s5053 + $0x70] sm:$0xff]
        %v5069 = vld [vmem:[%s5053 + $0x78] sm:$0xff]
        %v5070 = vld [vmem:[%s5053 + $0x80] sm:$0xff]
        %v5071 = vld [vmem:[%s5053 + $0x88] sm:$0xff]
        %v5072 = vld [vmem:[%s5053 + $0x90] sm:$0xff]
        %v5073 = vld [vmem:[%s5053 + $0x98] sm:$0xff]
        %v5074 = vld [vmem:[%s5053 + $0xa0] sm:$0xff]
        %v5075 = vld [vmem:[%s5053 + $0xa8] sm:$0xff]
        %v5076 = vld [vmem:[%s5053 + $0xb0] sm:$0xff]
        %v5077 = vld [vmem:[%s5053 + $0xb8] sm:$0xff]
        %v5078 = vld [vmem:[%s5053 + $0xc0] sm:$0xff]
        %v5079 = vld [vmem:[%s5053 + $0xc8] sm:$0xff]
        %v5080 = vld [vmem:[%s5053 + $0xd0] sm:$0xff]
        %v5081 = vld [vmem:[%s5053 + $0xd8] sm:$0xff]
        %v5082 = vld [vmem:[%s5053 + $0xe0] sm:$0xff]
        %v5083 = vld [vmem:[%s5053 + $0xe8] sm:$0xff]
        %v5084 = vld [vmem:[%s5053 + $0xf0] sm:$0xff]
        %v5085 = vld [vmem:[%s5053 + $0xf8] sm:$0xff]
        %v5086 = vpack.c.bf16 %v5055, %v5054
        %v5087 = vpack.c.bf16 %v5057, %v5056
        %v5088 = vpack.c.bf16 %v5059, %v5058
        %v5089 = vpack.c.bf16 %v5061, %v5060
        %v5090 = vpack.c.bf16 %v5063, %v5062
        %v5091 = vpack.c.bf16 %v5065, %v5064
        %v5092 = vpack.c.bf16 %v5067, %v5066
        %v5093 = vpack.c.bf16 %v5069, %v5068
        %v5094 = vpack.c.bf16 %v5071, %v5070
        %v5095 = vpack.c.bf16 %v5073, %v5072
        %v5096 = vpack.c.bf16 %v5075, %v5074
        %v5097 = vpack.c.bf16 %v5077, %v5076
        %v5098 = vpack.c.bf16 %v5079, %v5078
        %v5099 = vpack.c.bf16 %v5081, %v5080
        %v5100 = vpack.c.bf16 %v5083, %v5082
        %v5101 = vpack.c.bf16 %v5085, %v5084
        %s5102 = scalar_lea.vmem [#allocation14], 96
        %v5103 = vld [vmem:[%s5102] sm:$0xf]
        %v5104 = vld [vmem:[%s5102 + $0x4] sm:$0xf]
        %v5105 = vld [vmem:[%s5102 + $0x8] sm:$0xf]
        %v5106 = vld [vmem:[%s5102 + $0xc] sm:$0xf]
        %v5111 = vunpack.c.l.b16 %v5103
        %v5112 = vunpack.c.l.b16 %v5104
        %v5113 = vunpack.c.l.b16 %v5105
        %v5114 = vunpack.c.l.b16 %v5106
        %v5115 = vpack.c.b16 %v5112, %v5111
        %v5116 = vpack.c.b16 %v5114, %v5113
        %v5120 = vsel %vm844, %v5086, 0
        %v5123 = vsel %vm844, %v5087, 0
        %v5126 = vsel %vm844, %v5088, 0
        %v5129 = vsel %vm844, %v5089, 0
        %v5132 = vsel %vm844, %v5090, 0
        %v5135 = vsel %vm844, %v5091, 0
        %v5138 = vsel %vm844, %v5092, 0
        %v5141 = vsel %vm844, %v5093, 0
        %v5144 = vsel %vm844, %v5094, 0
        %v5147 = vsel %vm844, %v5095, 0
        %v5150 = vsel %vm844, %v5096, 0
        %v5153 = vsel %vm844, %v5097, 0
        %v5156 = vsel %vm844, %v5098, 0
        %v5159 = vsel %vm844, %v5099, 0
        %v5162 = vsel %vm844, %v5100, 0
        %v5165 = vsel %vm844, %v5101, 0
        %5167 = vmatprep.subr.bf16.mxu0 0
        %5168 = vmatpush1.bf16.msra.mxu0 %v5115
        %5169 = vmatprep.subr.bf16.mxu0 0
        %5170 = vmatpush1.bf16.msra.mxu0 %v5116
        %5171 = vmatprep.subr.bf16.mxu0 0
        %5172 = vmatpush1.bf16.msra.mxu0 0
        %5173 = vmatprep.subr.bf16.mxu0 0
        %5174 = vmatpush1.bf16.msra.mxu0 0
        %5175 = vmatprep.subr.bf16.mxu0 0
        %5176 = vmatpush1.bf16.msra.mxu0 0
        %5177 = vmatprep.subr.bf16.mxu0 0
        %5178 = vmatpush1.bf16.msra.mxu0 0
        %5179 = vmatprep.subr.bf16.mxu0 0
        %5180 = vmatpush1.bf16.msra.mxu0 0
        %5181 = vmatprep.subr.bf16.mxu0 0
        %5182 = vmatpush1.bf16.msra.mxu0 0
        %5183 = vmatprep.subr.bf16.mxu0 0
        %5184 = vmatpush1.bf16.msra.mxu0 0
        %5185 = vmatprep.subr.bf16.mxu0 0
        %5186 = vmatpush1.bf16.msra.mxu0 0
        %5187 = vmatprep.subr.bf16.mxu0 0
        %5188 = vmatpush1.bf16.msra.mxu0 0
        %5189 = vmatprep.subr.bf16.mxu0 0
        %5190 = vmatpush1.bf16.msra.mxu0 0
        %5191 = vmatprep.subr.bf16.mxu0 0
        %5192 = vmatpush1.bf16.msra.mxu0 0
        %5193 = vmatprep.subr.bf16.mxu0 0
        %5194 = vmatpush1.bf16.msra.mxu0 0
        %5195 = vmatprep.subr.bf16.mxu0 0
        %5196 = vmatpush1.bf16.msra.mxu0 0
        %5197 = vmatprep.subr.bf16.mxu0 0
        %5198 = vmatpush1.bf16.msra.mxu0 0
        %5199 = vmatprep.mubr.bf16.mxu0 0
        %5200 = vmatmul.mubr.bf16.gmra.mrb[0].mxu0 %v5120
        %v5201 = vpop.f32.mrb[0].mxu0
        %v5202 = vadd.f32 0.0, %v5201
        %v5203 = vpop.f32.mrb[0].mxu0
        %v5204 = vpop.f32.mrb[0].mxu0
        %v5205 = vadd.f32 0.0, %v5204
        %v5206 = vpop.f32.mrb[0].mxu0
        %5207 = vmatprep.mubr.bf16.mxu0 0
        %5208 = vmatmul.mubr.bf16.gmra.mrb[0].mxu0 %v5123
        %v5209 = vpop.f32.mrb[0].mxu0
        %v5210 = vadd.f32 0.0, %v5209
        %v5211 = vpop.f32.mrb[0].mxu0
        %v5212 = vpop.f32.mrb[0].mxu0
        %v5213 = vadd.f32 0.0, %v5212
        %v5214 = vpop.f32.mrb[0].mxu0
        %5215 = vmatprep.mubr.bf16.mxu0 0
        %5216 = vmatmul.mubr.bf16.gmra.mrb[0].mxu0 %v5126
        %v5217 = vpop.f32.mrb[0].mxu0
        %v5218 = vadd.f32 0.0, %v5217
        %v5219 = vpop.f32.mrb[0].mxu0
        %v5220 = vpop.f32.mrb[0].mxu0
        %v5221 = vadd.f32 0.0, %v5220
        %v5222 = vpop.f32.mrb[0].mxu0
        %5223 = vmatprep.mubr.bf16.mxu0 0
        %5224 = vmatmul.mubr.bf16.gmra.mrb[0].mxu0 %v5129
        %v5225 = vpop.f32.mrb[0].mxu0
        %v5226 = vadd.f32 0.0, %v5225
        %v5227 = vpop.f32.mrb[0].mxu0
        %v5228 = vpop.f32.mrb[0].mxu0
        %v5229 = vadd.f32 0.0, %v5228
        %v5230 = vpop.f32.mrb[0].mxu0
        %5231 = vmatprep.mubr.bf16.mxu0 0
        %5232 = vmatmul.mubr.bf16.gmra.mrb[0].mxu0 %v5132
        %v5233 = vpop.f32.mrb[0].mxu0
        %v5234 = vadd.f32 0.0, %v5233
        %v5235 = vpop.f32.mrb[0].mxu0
        %v5236 = vpop.f32.mrb[0].mxu0
        %v5237 = vadd.f32 0.0, %v5236
        %v5238 = vpop.f32.mrb[0].mxu0
        %5239 = vmatprep.mubr.bf16.mxu0 0
        %5240 = vmatmul.mubr.bf16.gmra.mrb[0].mxu0 %v5135
        %v5241 = vpop.f32.mrb[0].mxu0
        %v5242 = vadd.f32 0.0, %v5241
        %v5243 = vpop.f32.mrb[0].mxu0
        %v5244 = vpop.f32.mrb[0].mxu0
        %v5245 = vadd.f32 0.0, %v5244
        %v5246 = vpop.f32.mrb[0].mxu0
        %5247 = vmatprep.mubr.bf16.mxu0 0
        %5248 = vmatmul.mubr.bf16.gmra.mrb[0].mxu0 %v5138
        %v5249 = vpop.f32.mrb[0].mxu0
        %v5250 = vadd.f32 0.0, %v5249
        %v5251 = vpop.f32.mrb[0].mxu0
        %v5252 = vpop.f32.mrb[0].mxu0
        %v5253 = vadd.f32 0.0, %v5252
        %v5254 = vpop.f32.mrb[0].mxu0
        %5255 = vmatprep.mubr.bf16.mxu0 0
        %5256 = vmatmul.mubr.bf16.gmra.mrb[0].mxu0 %v5141
        %v5257 = vpop.f32.mrb[0].mxu0
        %v5258 = vadd.f32 0.0, %v5257
        %v5259 = vpop.f32.mrb[0].mxu0
        %v5260 = vpop.f32.mrb[0].mxu0
        %v5261 = vadd.f32 0.0, %v5260
        %v5262 = vpop.f32.mrb[0].mxu0
        %5263 = vmatprep.mubr.bf16.mxu0 0
        %5264 = vmatmul.mubr.bf16.gmra.mrb[0].mxu0 %v5144
        %v5265 = vpop.f32.mrb[0].mxu0
        %v5266 = vadd.f32 0.0, %v5265
        %v5267 = vpop.f32.mrb[0].mxu0
        %v5268 = vpop.f32.mrb[0].mxu0
        %v5269 = vadd.f32 0.0, %v5268
        %v5270 = vpop.f32.mrb[0].mxu0
        %5271 = vmatprep.mubr.bf16.mxu0 0
        %5272 = vmatmul.mubr.bf16.gmra.mrb[0].mxu0 %v5147
        %v5273 = vpop.f32.mrb[0].mxu0
        %v5274 = vadd.f32 0.0, %v5273
        %v5275 = vpop.f32.mrb[0].mxu0
        %v5276 = vpop.f32.mrb[0].mxu0
        %v5277 = vadd.f32 0.0, %v5276
        %v5278 = vpop.f32.mrb[0].mxu0
        %5279 = vmatprep.mubr.bf16.mxu0 0
        %5280 = vmatmul.mubr.bf16.gmra.mrb[0].mxu0 %v5150
        %v5281 = vpop.f32.mrb[0].mxu0
        %v5282 = vadd.f32 0.0, %v5281
        %v5283 = vpop.f32.mrb[0].mxu0
        %v5284 = vpop.f32.mrb[0].mxu0
        %v5285 = vadd.f32 0.0, %v5284
        %v5286 = vpop.f32.mrb[0].mxu0
        %5287 = vmatprep.mubr.bf16.mxu0 0
        %5288 = vmatmul.mubr.bf16.gmra.mrb[0].mxu0 %v5153
        %v5289 = vpop.f32.mrb[0].mxu0
        %v5290 = vadd.f32 0.0, %v5289
        %v5291 = vpop.f32.mrb[0].mxu0
        %v5292 = vpop.f32.mrb[0].mxu0
        %v5293 = vadd.f32 0.0, %v5292
        %v5294 = vpop.f32.mrb[0].mxu0
        %5295 = vmatprep.mubr.bf16.mxu0 0
        %5296 = vmatmul.mubr.bf16.gmra.mrb[0].mxu0 %v5156
        %v5297 = vpop.f32.mrb[0].mxu0
        %v5298 = vadd.f32 0.0, %v5297
        %v5299 = vpop.f32.mrb[0].mxu0
        %v5300 = vpop.f32.mrb[0].mxu0
        %v5301 = vadd.f32 0.0, %v5300
        %v5302 = vpop.f32.mrb[0].mxu0
        %5303 = vmatprep.mubr.bf16.mxu0 0
        %5304 = vmatmul.mubr.bf16.gmra.mrb[0].mxu0 %v5159
        %v5305 = vpop.f32.mrb[0].mxu0
        %v5306 = vadd.f32 0.0, %v5305
        %v5307 = vpop.f32.mrb[0].mxu0
        %v5308 = vpop.f32.mrb[0].mxu0
        %v5309 = vadd.f32 0.0, %v5308
        %v5310 = vpop.f32.mrb[0].mxu0
        %5311 = vmatprep.mubr.bf16.mxu0 0
        %5312 = vmatmul.mubr.bf16.gmra.mrb[0].mxu0 %v5162
        %v5313 = vpop.f32.mrb[0].mxu0
        %v5314 = vadd.f32 0.0, %v5313
        %v5315 = vpop.f32.mrb[0].mxu0
        %v5316 = vpop.f32.mrb[0].mxu0
        %v5317 = vadd.f32 0.0, %v5316
        %v5318 = vpop.f32.mrb[0].mxu0
        %5319 = vmatprep.mubr.bf16.mxu0 0
        %5320 = vmatmul.mubr.bf16.gmra.mrb[0].mxu0 %v5165
        %v5321 = vpop.f32.mrb[0].mxu0
        %v5322 = vadd.f32 0.0, %v5321
        %v5323 = vpop.f32.mrb[0].mxu0
        %v5324 = vpop.f32.mrb[0].mxu0
        %v5325 = vadd.f32 0.0, %v5324
        %v5326 = vpop.f32.mrb[0].mxu0
        %5327 = vdwg.mxu0
        %v5328 = vadd.f32 %v5021, %v5202
        %v5329 = vadd.f32 %v5022, %v5205
        %v5330 = vadd.f32 %v5023, %v5210
        %v5331 = vadd.f32 %v5024, %v5213
        %v5332 = vadd.f32 %v5025, %v5218
        %v5333 = vadd.f32 %v5026, %v5221
        %v5334 = vadd.f32 %v5027, %v5226
        %v5335 = vadd.f32 %v5028, %v5229
        %v5336 = vadd.f32 %v5029, %v5234
        %v5337 = vadd.f32 %v5030, %v5237
        %v5338 = vadd.f32 %v5031, %v5242
        %v5339 = vadd.f32 %v5032, %v5245
        %v5340 = vadd.f32 %v5033, %v5250
        %v5341 = vadd.f32 %v5034, %v5253
        %v5342 = vadd.f32 %v5035, %v5258
        %v5343 = vadd.f32 %v5036, %v5261
        %v5344 = vadd.f32 %v5037, %v5266
        %v5345 = vadd.f32 %v5038, %v5269
        %v5346 = vadd.f32 %v5039, %v5274
        %v5347 = vadd.f32 %v5040, %v5277
        %v5348 = vadd.f32 %v5041, %v5282
        %v5349 = vadd.f32 %v5042, %v5285
        %v5350 = vadd.f32 %v5043, %v5290
        %v5351 = vadd.f32 %v5044, %v5293
        %v5352 = vadd.f32 %v5045, %v5298
        %v5353 = vadd.f32 %v5046, %v5301
        %v5354 = vadd.f32 %v5047, %v5306
        %v5355 = vadd.f32 %v5048, %v5309
        %v5356 = vadd.f32 %v5049, %v5314
        %v5357 = vadd.f32 %v5050, %v5317
        %v5358 = vadd.f32 %v5051, %v5322
        %v5359 = vadd.f32 %v5052, %v5325
        %v5360 = vld [vmem:[#allocation16] sm:$0x1]
        %v5362 = vlaneseq
        %v5363 = vshrl.u32 %v5362, 7
        %v5364 = vsub.s32 0, %v5363
        %v5365 = vrot.slane %v5360, %v5364
        %v5367 = vadd.f32 %v5328, %v5365
        %v5368 = vadd.f32 %v5329, %v5365
        %v5369 = vadd.f32 %v5330, %v5365
        %v5370 = vadd.f32 %v5331, %v5365
        %v5371 = vadd.f32 %v5332, %v5365
        %v5372 = vadd.f32 %v5333, %v5365
        %v5373 = vadd.f32 %v5334, %v5365
        %v5374 = vadd.f32 %v5335, %v5365
        %v5375 = vadd.f32 %v5336, %v5365
        %v5376 = vadd.f32 %v5337, %v5365
        %v5377 = vadd.f32 %v5338, %v5365
        %v5378 = vadd.f32 %v5339, %v5365
        %v5379 = vadd.f32 %v5340, %v5365
        %v5380 = vadd.f32 %v5341, %v5365
        %v5381 = vadd.f32 %v5342, %v5365
        %v5382 = vadd.f32 %v5343, %v5365
        %v5383 = vadd.f32 %v5344, %v5365
        %v5384 = vadd.f32 %v5345, %v5365
        %v5385 = vadd.f32 %v5346, %v5365
        %v5386 = vadd.f32 %v5347, %v5365
        %v5387 = vadd.f32 %v5348, %v5365
        %v5388 = vadd.f32 %v5349, %v5365
        %v5389 = vadd.f32 %v5350, %v5365
        %v5390 = vadd.f32 %v5351, %v5365
        %v5391 = vadd.f32 %v5352, %v5365
        %v5392 = vadd.f32 %v5353, %v5365
        %v5393 = vadd.f32 %v5354, %v5365
        %v5394 = vadd.f32 %v5355, %v5365
        %v5395 = vadd.f32 %v5356, %v5365
        %v5396 = vadd.f32 %v5357, %v5365
        %v5397 = vadd.f32 %v5358, %v5365
        %v5398 = vadd.f32 %v5359, %v5365
        %v5399 = vmax.f32 %v5367, 0.0
        %v5400 = vmax.f32 %v5368, 0.0
        %v5401 = vmax.f32 %v5369, 0.0
        %v5402 = vmax.f32 %v5370, 0.0
        %v5403 = vmax.f32 %v5371, 0.0
        %v5404 = vmax.f32 %v5372, 0.0
        %v5405 = vmax.f32 %v5373, 0.0
        %v5406 = vmax.f32 %v5374, 0.0
        %v5407 = vmax.f32 %v5375, 0.0
        %v5408 = vmax.f32 %v5376, 0.0
        %v5409 = vmax.f32 %v5377, 0.0
        %v5410 = vmax.f32 %v5378, 0.0
        %v5411 = vmax.f32 %v5379, 0.0
        %v5412 = vmax.f32 %v5380, 0.0
        %v5413 = vmax.f32 %v5381, 0.0
        %v5414 = vmax.f32 %v5382, 0.0
        %v5415 = vmax.f32 %v5383, 0.0
        %v5416 = vmax.f32 %v5384, 0.0
        %v5417 = vmax.f32 %v5385, 0.0
        %v5418 = vmax.f32 %v5386, 0.0
        %v5419 = vmax.f32 %v5387, 0.0
        %v5420 = vmax.f32 %v5388, 0.0
        %v5421 = vmax.f32 %v5389, 0.0
        %v5422 = vmax.f32 %v5390, 0.0
        %v5423 = vmax.f32 %v5391, 0.0
        %v5424 = vmax.f32 %v5392, 0.0
        %v5425 = vmax.f32 %v5393, 0.0
        %v5426 = vmax.f32 %v5394, 0.0
        %v5427 = vmax.f32 %v5395, 0.0
        %v5428 = vmax.f32 %v5396, 0.0
        %v5429 = vmax.f32 %v5397, 0.0
        %v5430 = vmax.f32 %v5398, 0.0
        %5463 = vrot.lane.b32.xlu0 %v5399, 32
        %v5464 = vpop.permute.xlu0 %5463
        %5465 = vrot.lane.b32.xlu0 %v5400, 32
        %v5466 = vpop.permute.xlu0 %5465
        %5467 = vrot.lane.b32.xlu0 %v5401, 32
        %v5468 = vpop.permute.xlu0 %5467
        %5469 = vrot.lane.b32.xlu0 %v5402, 32
        %v5470 = vpop.permute.xlu0 %5469
        %5471 = vrot.lane.b32.xlu0 %v5403, 32
        %v5472 = vpop.permute.xlu0 %5471
        %5473 = vrot.lane.b32.xlu0 %v5404, 32
        %v5474 = vpop.permute.xlu0 %5473
        %5475 = vrot.lane.b32.xlu0 %v5405, 32
        %v5476 = vpop.permute.xlu0 %5475
        %5477 = vrot.lane.b32.xlu0 %v5406, 32
        %v5478 = vpop.permute.xlu0 %5477
        %5479 = vrot.lane.b32.xlu0 %v5407, 32
        %v5480 = vpop.permute.xlu0 %5479
        %5481 = vrot.lane.b32.xlu0 %v5408, 32
        %v5482 = vpop.permute.xlu0 %5481
        %5483 = vrot.lane.b32.xlu0 %v5409, 32
        %v5484 = vpop.permute.xlu0 %5483
        %5485 = vrot.lane.b32.xlu0 %v5410, 32
        %v5486 = vpop.permute.xlu0 %5485
        %5487 = vrot.lane.b32.xlu0 %v5411, 32
        %v5488 = vpop.permute.xlu0 %5487
        %5489 = vrot.lane.b32.xlu0 %v5412, 32
        %v5490 = vpop.permute.xlu0 %5489
        %5491 = vrot.lane.b32.xlu0 %v5413, 32
        %v5492 = vpop.permute.xlu0 %5491
        %5493 = vrot.lane.b32.xlu0 %v5414, 32
        %v5494 = vpop.permute.xlu0 %5493
        %5495 = vrot.lane.b32.xlu0 %v5415, 32
        %v5496 = vpop.permute.xlu0 %5495
        %5497 = vrot.lane.b32.xlu0 %v5416, 32
        %v5498 = vpop.permute.xlu0 %5497
        %5499 = vrot.lane.b32.xlu0 %v5417, 32
        %v5500 = vpop.permute.xlu0 %5499
        %5501 = vrot.lane.b32.xlu0 %v5418, 32
        %v5502 = vpop.permute.xlu0 %5501
        %5503 = vrot.lane.b32.xlu0 %v5419, 32
        %v5504 = vpop.permute.xlu0 %5503
        %5505 = vrot.lane.b32.xlu0 %v5420, 32
        %v5506 = vpop.permute.xlu0 %5505
        %5507 = vrot.lane.b32.xlu0 %v5421, 32
        %v5508 = vpop.permute.xlu0 %5507
        %5509 = vrot.lane.b32.xlu0 %v5422, 32
        %v5510 = vpop.permute.xlu0 %5509
        %5511 = vrot.lane.b32.xlu0 %v5423, 32
        %v5512 = vpop.permute.xlu0 %5511
        %5513 = vrot.lane.b32.xlu0 %v5424, 32
        %v5514 = vpop.permute.xlu0 %5513
        %5515 = vrot.lane.b32.xlu0 %v5425, 32
        %v5516 = vpop.permute.xlu0 %5515
        %5517 = vrot.lane.b32.xlu0 %v5426, 32
        %v5518 = vpop.permute.xlu0 %5517
        %5519 = vrot.lane.b32.xlu0 %v5427, 32
        %v5520 = vpop.permute.xlu0 %5519
        %5521 = vrot.lane.b32.xlu0 %v5428, 32
        %v5522 = vpop.permute.xlu0 %5521
        %5523 = vrot.lane.b32.xlu0 %v5429, 32
        %v5524 = vpop.permute.xlu0 %5523
        %5525 = vrot.lane.b32.xlu0 %v5430, 32
        %v5526 = vpop.permute.xlu0 %5525
        %vm5559 = vcmask 523520
        %5560 = vst.msk [vmem:[%s904 + $0x8] sm:$0xff] %vm5559, %v5464
        %5561 = vst.msk [vmem:[%s904 + $0x10] sm:$0xff] %vm5559, %v5466
        %5562 = vst.msk [vmem:[%s904 + $0x28] sm:$0xff] %vm5559, %v5468
        %5563 = vst.msk [vmem:[%s904 + $0x30] sm:$0xff] %vm5559, %v5470
        %5564 = vst.msk [vmem:[%s904 + $0x48] sm:$0xff] %vm5559, %v5472
        %5565 = vst.msk [vmem:[%s904 + $0x50] sm:$0xff] %vm5559, %v5474
        %5566 = vst.msk [vmem:[%s904 + $0x68] sm:$0xff] %vm5559, %v5476
        %5567 = vst.msk [vmem:[%s904 + $0x70] sm:$0xff] %vm5559, %v5478
        %5568 = vst.msk [vmem:[%s904 + $0x88] sm:$0xff] %vm5559, %v5480
        %5569 = vst.msk [vmem:[%s904 + $0x90] sm:$0xff] %vm5559, %v5482
        %5570 = vst.msk [vmem:[%s904 + $0xa8] sm:$0xff] %vm5559, %v5484
        %5571 = vst.msk [vmem:[%s904 + $0xb0] sm:$0xff] %vm5559, %v5486
        %5572 = vst.msk [vmem:[%s904 + $0xc8] sm:$0xff] %vm5559, %v5488
        %5573 = vst.msk [vmem:[%s904 + $0xd0] sm:$0xff] %vm5559, %v5490
        %5574 = vst.msk [vmem:[%s904 + $0xe8] sm:$0xff] %vm5559, %v5492
        %5575 = vst.msk [vmem:[%s904 + $0xf0] sm:$0xff] %vm5559, %v5494
        %5576 = vst.msk [vmem:[%s904 + $0x108] sm:$0xff] %vm5559, %v5496
        %5577 = vst.msk [vmem:[%s904 + $0x110] sm:$0xff] %vm5559, %v5498
        %5578 = vst.msk [vmem:[%s904 + $0x128] sm:$0xff] %vm5559, %v5500
        %5579 = vst.msk [vmem:[%s904 + $0x130] sm:$0xff] %vm5559, %v5502
        %5580 = vst.msk [vmem:[%s904 + $0x148] sm:$0xff] %vm5559, %v5504
        %5581 = vst.msk [vmem:[%s904 + $0x150] sm:$0xff] %vm5559, %v5506
        %5582 = vst.msk [vmem:[%s904 + $0x168] sm:$0xff] %vm5559, %v5508
        %5583 = vst.msk [vmem:[%s904 + $0x170] sm:$0xff] %vm5559, %v5510
        %5584 = vst.msk [vmem:[%s904 + $0x188] sm:$0xff] %vm5559, %v5512
        %5585 = vst.msk [vmem:[%s904 + $0x190] sm:$0xff] %vm5559, %v5514
        %5586 = vst.msk [vmem:[%s904 + $0x1a8] sm:$0xff] %vm5559, %v5516
        %5587 = vst.msk [vmem:[%s904 + $0x1b0] sm:$0xff] %vm5559, %v5518
        %5588 = vst.msk [vmem:[%s904 + $0x1c8] sm:$0xff] %vm5559, %v5520
        %5589 = vst.msk [vmem:[%s904 + $0x1d0] sm:$0xff] %vm5559, %v5522
        %5590 = vst.msk [vmem:[%s904 + $0x1e8] sm:$0xff] %vm5559, %v5524
        %5591 = vst.msk [vmem:[%s904 + $0x1f0] sm:$0xff] %vm5559, %v5526
        %v5592 = vld [vmem:[#allocation4 + $0x7] sm:$0xff]
        %v5593 = vld [vmem:[#allocation4 + $0xf] sm:$0xff]
        %v5594 = vld [vmem:[#allocation4 + $0x27] sm:$0xff]
        %v5595 = vld [vmem:[#allocation4 + $0x2f] sm:$0xff]
        %v5596 = vld [vmem:[#allocation4 + $0x47] sm:$0xff]
        %v5597 = vld [vmem:[#allocation4 + $0x4f] sm:$0xff]
        %v5598 = vld [vmem:[#allocation4 + $0x67] sm:$0xff]
        %v5599 = vld [vmem:[#allocation4 + $0x6f] sm:$0xff]
        %v5600 = vld [vmem:[#allocation4 + $0x87] sm:$0xff]
        %v5601 = vld [vmem:[#allocation4 + $0x8f] sm:$0xff]
        %v5602 = vld [vmem:[#allocation4 + $0xa7] sm:$0xff]
        %v5603 = vld [vmem:[#allocation4 + $0xaf] sm:$0xff]
        %v5604 = vld [vmem:[#allocation4 + $0xc7] sm:$0xff]
        %v5605 = vld [vmem:[#allocation4 + $0xcf] sm:$0xff]
        %v5606 = vld [vmem:[#allocation4 + $0xe7] sm:$0xff]
        %v5607 = vld [vmem:[#allocation4 + $0xef] sm:$0xff]
        %v5608 = vld [vmem:[#allocation4 + $0x107] sm:$0xff]
        %v5609 = vld [vmem:[#allocation4 + $0x10f] sm:$0xff]
        %v5610 = vld [vmem:[#allocation4 + $0x127] sm:$0xff]
        %v5611 = vld [vmem:[#allocation4 + $0x12f] sm:$0xff]
        %v5612 = vld [vmem:[#allocation4 + $0x147] sm:$0xff]
        %v5613 = vld [vmem:[#allocation4 + $0x14f] sm:$0xff]
        %v5614 = vld [vmem:[#allocation4 + $0x167] sm:$0xff]
        %v5615 = vld [vmem:[#allocation4 + $0x16f] sm:$0xff]
        %v5616 = vld [vmem:[#allocation4 + $0x187] sm:$0xff]
        %v5617 = vld [vmem:[#allocation4 + $0x18f] sm:$0xff]
        %v5618 = vld [vmem:[#allocation4 + $0x1a7] sm:$0xff]
        %v5619 = vld [vmem:[#allocation4 + $0x1af] sm:$0xff]
        %v5620 = vld [vmem:[#allocation4 + $0x1c7] sm:$0xff]
        %v5621 = vld [vmem:[#allocation4 + $0x1cf] sm:$0xff]
        %v5622 = vld [vmem:[#allocation4 + $0x1e7] sm:$0xff]
        %v5623 = vld [vmem:[#allocation4 + $0x1ef] sm:$0xff]
        %v5624 = vpack.c.bf16 %v5593, %v5592
        %v5625 = vpack.c.bf16 %v5595, %v5594
        %v5626 = vpack.c.bf16 %v5597, %v5596
        %v5627 = vpack.c.bf16 %v5599, %v5598
        %v5628 = vpack.c.bf16 %v5601, %v5600
        %v5629 = vpack.c.bf16 %v5603, %v5602
        %v5630 = vpack.c.bf16 %v5605, %v5604
        %v5631 = vpack.c.bf16 %v5607, %v5606
        %v5632 = vpack.c.bf16 %v5609, %v5608
        %v5633 = vpack.c.bf16 %v5611, %v5610
        %v5634 = vpack.c.bf16 %v5613, %v5612
        %v5635 = vpack.c.bf16 %v5615, %v5614
        %v5636 = vpack.c.bf16 %v5617, %v5616
        %v5637 = vpack.c.bf16 %v5619, %v5618
        %v5638 = vpack.c.bf16 %v5621, %v5620
        %v5639 = vpack.c.bf16 %v5623, %v5622
        %v5640 = vld [vmem:[#allocation17] sm:$0xf]
        %v5641 = vld [vmem:[#allocation17 + $0x4] sm:$0xf]
        %v5642 = vld [vmem:[#allocation17 + $0x8] sm:$0xf]
        %v5643 = vld [vmem:[#allocation17 + $0xc] sm:$0xf]
        %v5644 = vld [vmem:[#allocation17 + $0x10] sm:$0xf]
        %v5645 = vld [vmem:[#allocation17 + $0x14] sm:$0xf]
        %v5646 = vld [vmem:[#allocation17 + $0x18] sm:$0xf]
        %v5647 = vld [vmem:[#allocation17 + $0x1c] sm:$0xf]
        %v5648 = vld [vmem:[#allocation4 + $0x8] sm:$0xff]
        %v5649 = vld [vmem:[#allocation4 + $0x10] sm:$0xff]
        %v5650 = vld [vmem:[#allocation4 + $0x28] sm:$0xff]
        %v5651 = vld [vmem:[#allocation4 + $0x30] sm:$0xff]
        %v5652 = vld [vmem:[#allocation4 + $0x48] sm:$0xff]
        %v5653 = vld [vmem:[#allocation4 + $0x50] sm:$0xff]
        %v5654 = vld [vmem:[#allocation4 + $0x68] sm:$0xff]
        %v5655 = vld [vmem:[#allocation4 + $0x70] sm:$0xff]
        %v5656 = vld [vmem:[#allocation4 + $0x88] sm:$0xff]
        %v5657 = vld [vmem:[#allocation4 + $0x90] sm:$0xff]
        %v5658 = vld [vmem:[#allocation4 + $0xa8] sm:$0xff]
        %v5659 = vld [vmem:[#allocation4 + $0xb0] sm:$0xff]
        %v5660 = vld [vmem:[#allocation4 + $0xc8] sm:$0xff]
        %v5661 = vld [vmem:[#allocation4 + $0xd0] sm:$0xff]
        %v5662 = vld [vmem:[#allocation4 + $0xe8] sm:$0xff]
        %v5663 = vld [vmem:[#allocation4 + $0xf0] sm:$0xff]
        %v5664 = vld [vmem:[#allocation4 + $0x108] sm:$0xff]
        %v5665 = vld [vmem:[#allocation4 + $0x110] sm:$0xff]
        %v5666 = vld [vmem:[#allocation4 + $0x128] sm:$0xff]
        %v5667 = vld [vmem:[#allocation4 + $0x130] sm:$0xff]
        %v5668 = vld [vmem:[#allocation4 + $0x148] sm:$0xff]
        %v5669 = vld [vmem:[#allocation4 + $0x150] sm:$0xff]
        %v5670 = vld [vmem:[#allocation4 + $0x168] sm:$0xff]
        %v5671 = vld [vmem:[#allocation4 + $0x170] sm:$0xff]
        %v5672 = vld [vmem:[#allocation4 + $0x188] sm:$0xff]
        %v5673 = vld [vmem:[#allocation4 + $0x190] sm:$0xff]
        %v5674 = vld [vmem:[#allocation4 + $0x1a8] sm:$0xff]
        %v5675 = vld [vmem:[#allocation4 + $0x1b0] sm:$0xff]
        %v5676 = vld [vmem:[#allocation4 + $0x1c8] sm:$0xff]
        %v5677 = vld [vmem:[#allocation4 + $0x1d0] sm:$0xff]
        %v5678 = vld [vmem:[#allocation4 + $0x1e8] sm:$0xff]
        %v5679 = vld [vmem:[#allocation4 + $0x1f0] sm:$0xff]
        %v5680 = vpack.c.bf16 %v5649, %v5648
        %v5681 = vpack.c.bf16 %v5651, %v5650
        %v5682 = vpack.c.bf16 %v5653, %v5652
        %v5683 = vpack.c.bf16 %v5655, %v5654
        %v5684 = vpack.c.bf16 %v5657, %v5656
        %v5685 = vpack.c.bf16 %v5659, %v5658
        %v5686 = vpack.c.bf16 %v5661, %v5660
        %v5687 = vpack.c.bf16 %v5663, %v5662
        %v5688 = vpack.c.bf16 %v5665, %v5664
        %v5689 = vpack.c.bf16 %v5667, %v5666
        %v5690 = vpack.c.bf16 %v5669, %v5668
        %v5691 = vpack.c.bf16 %v5671, %v5670
        %v5692 = vpack.c.bf16 %v5673, %v5672
        %v5693 = vpack.c.bf16 %v5675, %v5674
        %v5694 = vpack.c.bf16 %v5677, %v5676
        %v5695 = vpack.c.bf16 %v5679, %v5678
        %s5696 = scalar_lea.vmem [#allocation17], 32
        %v5697 = vld [vmem:[%s5696] sm:$0xf]
        %v5698 = vld [vmem:[%s5696 + $0x4] sm:$0xf]
        %v5699 = vld [vmem:[%s5696 + $0x8] sm:$0xf]
        %v5700 = vld [vmem:[%s5696 + $0xc] sm:$0xf]
        %v5701 = vld [vmem:[%s5696 + $0x10] sm:$0xf]
        %v5702 = vld [vmem:[%s5696 + $0x14] sm:$0xf]
        %v5703 = vld [vmem:[%s5696 + $0x18] sm:$0xf]
        %v5704 = vld [vmem:[%s5696 + $0x1c] sm:$0xf]
        %v5713 = vunpack.c.l.b16 %v5697
        %v5714 = vunpack.c.l.b16 %v5698
        %v5715 = vunpack.c.l.b16 %v5699
        %v5716 = vunpack.c.l.b16 %v5700
        %v5717 = vunpack.c.l.b16 %v5701
        %v5718 = vunpack.c.l.b16 %v5702
        %v5719 = vunpack.c.l.b16 %v5703
        %v5720 = vunpack.c.l.b16 %v5704
        %v5721 = vpack.c.b16 %v5714, %v5713
        %v5722 = vpack.c.b16 %v5716, %v5715
        %v5723 = vpack.c.b16 %v5718, %v5717
        %v5724 = vpack.c.b16 %v5720, %v5719
        %v5730 = vsel %vm895, %v5680, 0
        %v5733 = vsel %vm895, %v5681, 0
        %v5736 = vsel %vm895, %v5682, 0
        %v5739 = vsel %vm895, %v5683, 0
        %v5742 = vsel %vm895, %v5684, 0
        %v5745 = vsel %vm895, %v5685, 0
        %v5748 = vsel %vm895, %v5686, 0
        %v5751 = vsel %vm895, %v5687, 0
        %v5754 = vsel %vm895, %v5688, 0
        %v5757 = vsel %vm895, %v5689, 0
        %v5760 = vsel %vm895, %v5690, 0
        %v5763 = vsel %vm895, %v5691, 0
        %v5766 = vsel %vm895, %v5692, 0
        %v5769 = vsel %vm895, %v5693, 0
        %v5772 = vsel %vm895, %v5694, 0
        %v5775 = vsel %vm895, %v5695, 0
        %5777 = vmatprep.subr.bf16.mxu0 0
        %5778 = vmatpush1.bf16.msra.mxu0 %v5721
        %5779 = vmatprep.subr.bf16.mxu0 0
        %5780 = vmatpush1.bf16.msra.mxu0 %v5722
        %5781 = vmatprep.subr.bf16.mxu0 0
        %5782 = vmatpush1.bf16.msra.mxu0 %v5723
        %5783 = vmatprep.subr.bf16.mxu0 0
        %5784 = vmatpush1.bf16.msra.mxu0 %v5724
        %5785 = vmatprep.subr.bf16.mxu0 0
        %5786 = vmatpush1.bf16.msra.mxu0 0
        %5787 = vmatprep.subr.bf16.mxu0 0
        %5788 = vmatpush1.bf16.msra.mxu0 0
        %5789 = vmatprep.subr.bf16.mxu0 0
        %5790 = vmatpush1.bf16.msra.mxu0 0
        %5791 = vmatprep.subr.bf16.mxu0 0
        %5792 = vmatpush1.bf16.msra.mxu0 0
        %5793 = vmatprep.subr.bf16.mxu0 0
        %5794 = vmatpush1.bf16.msra.mxu0 0
        %5795 = vmatprep.subr.bf16.mxu0 0
        %5796 = vmatpush1.bf16.msra.mxu0 0
        %5797 = vmatprep.subr.bf16.mxu0 0
        %5798 = vmatpush1.bf16.msra.mxu0 0
        %5799 = vmatprep.subr.bf16.mxu0 0
        %5800 = vmatpush1.bf16.msra.mxu0 0
        %5801 = vmatprep.subr.bf16.mxu0 0
        %5802 = vmatpush1.bf16.msra.mxu0 0
        %5803 = vmatprep.subr.bf16.mxu0 0
        %5804 = vmatpush1.bf16.msra.mxu0 0
        %5805 = vmatprep.subr.bf16.mxu0 0
        %5806 = vmatpush1.bf16.msra.mxu0 0
        %5807 = vmatprep.subr.bf16.mxu0 0
        %5808 = vmatpush1.bf16.msra.mxu0 0
        %5809 = vmatprep.mubr.bf16.mxu0 0
        %5810 = vmatmul.mubr.bf16.gmra.mrb[0].mxu0 %v5730
        %v5811 = vpop.f32.mrb[0].mxu0
        %v5812 = vadd.f32 0.0, %v5811
        %v5813 = vpop.f32.mrb[0].mxu0
        %v5814 = vpop.f32.mrb[0].mxu0
        %v5815 = vadd.f32 0.0, %v5814
        %v5816 = vpop.f32.mrb[0].mxu0
        %5817 = vmatprep.mubr.bf16.mxu0 0
        %5818 = vmatmul.mubr.bf16.gmra.mrb[0].mxu0 %v5733
        %v5819 = vpop.f32.mrb[0].mxu0
        %v5820 = vadd.f32 0.0, %v5819
        %v5821 = vpop.f32.mrb[0].mxu0
        %v5822 = vpop.f32.mrb[0].mxu0
        %v5823 = vadd.f32 0.0, %v5822
        %v5824 = vpop.f32.mrb[0].mxu0
        %5825 = vmatprep.mubr.bf16.mxu0 0
        %5826 = vmatmul.mubr.bf16.gmra.mrb[0].mxu0 %v5736
        %v5827 = vpop.f32.mrb[0].mxu0
        %v5828 = vadd.f32 0.0, %v5827
        %v5829 = vpop.f32.mrb[0].mxu0
        %v5830 = vpop.f32.mrb[0].mxu0
        %v5831 = vadd.f32 0.0, %v5830
        %v5832 = vpop.f32.mrb[0].mxu0
        %5833 = vmatprep.mubr.bf16.mxu0 0
        %5834 = vmatmul.mubr.bf16.gmra.mrb[0].mxu0 %v5739
        %v5835 = vpop.f32.mrb[0].mxu0
        %v5836 = vadd.f32 0.0, %v5835
        %v5837 = vpop.f32.mrb[0].mxu0
        %v5838 = vpop.f32.mrb[0].mxu0
        %v5839 = vadd.f32 0.0, %v5838
        %v5840 = vpop.f32.mrb[0].mxu0
        %5841 = vmatprep.mubr.bf16.mxu0 0
        %5842 = vmatmul.mubr.bf16.gmra.mrb[0].mxu0 %v5742
        %v5843 = vpop.f32.mrb[0].mxu0
        %v5844 = vadd.f32 0.0, %v5843
        %v5845 = vpop.f32.mrb[0].mxu0
        %v5846 = vpop.f32.mrb[0].mxu0
        %v5847 = vadd.f32 0.0, %v5846
        %v5848 = vpop.f32.mrb[0].mxu0
        %5849 = vmatprep.mubr.bf16.mxu0 0
        %5850 = vmatmul.mubr.bf16.gmra.mrb[0].mxu0 %v5745
        %v5851 = vpop.f32.mrb[0].mxu0
        %v5852 = vadd.f32 0.0, %v5851
        %v5853 = vpop.f32.mrb[0].mxu0
        %v5854 = vpop.f32.mrb[0].mxu0
        %v5855 = vadd.f32 0.0, %v5854
        %v5856 = vpop.f32.mrb[0].mxu0
        %5857 = vmatprep.mubr.bf16.mxu0 0
        %5858 = vmatmul.mubr.bf16.gmra.mrb[0].mxu0 %v5748
        %v5859 = vpop.f32.mrb[0].mxu0
        %v5860 = vadd.f32 0.0, %v5859
        %v5861 = vpop.f32.mrb[0].mxu0
        %v5862 = vpop.f32.mrb[0].mxu0
        %v5863 = vadd.f32 0.0, %v5862
        %v5864 = vpop.f32.mrb[0].mxu0
        %5865 = vmatprep.mubr.bf16.mxu0 0
        %5866 = vmatmul.mubr.bf16.gmra.mrb[0].mxu0 %v5751
        %v5867 = vpop.f32.mrb[0].mxu0
        %v5868 = vadd.f32 0.0, %v5867
        %v5869 = vpop.f32.mrb[0].mxu0
        %v5870 = vpop.f32.mrb[0].mxu0
        %v5871 = vadd.f32 0.0, %v5870
        %v5872 = vpop.f32.mrb[0].mxu0
        %5873 = vmatprep.mubr.bf16.mxu0 0
        %5874 = vmatmul.mubr.bf16.gmra.mrb[0].mxu0 %v5754
        %v5875 = vpop.f32.mrb[0].mxu0
        %v5876 = vadd.f32 0.0, %v5875
        %v5877 = vpop.f32.mrb[0].mxu0
        %v5878 = vpop.f32.mrb[0].mxu0
        %v5879 = vadd.f32 0.0, %v5878
        %v5880 = vpop.f32.mrb[0].mxu0
        %5881 = vmatprep.mubr.bf16.mxu0 0
        %5882 = vmatmul.mubr.bf16.gmra.mrb[0].mxu0 %v5757
        %v5883 = vpop.f32.mrb[0].mxu0
        %v5884 = vadd.f32 0.0, %v5883
        %v5885 = vpop.f32.mrb[0].mxu0
        %v5886 = vpop.f32.mrb[0].mxu0
        %v5887 = vadd.f32 0.0, %v5886
        %v5888 = vpop.f32.mrb[0].mxu0
        %5889 = vmatprep.mubr.bf16.mxu0 0
        %5890 = vmatmul.mubr.bf16.gmra.mrb[0].mxu0 %v5760
        %v5891 = vpop.f32.mrb[0].mxu0
        %v5892 = vadd.f32 0.0, %v5891
        %v5893 = vpop.f32.mrb[0].mxu0
        %v5894 = vpop.f32.mrb[0].mxu0
        %v5895 = vadd.f32 0.0, %v5894
        %v5896 = vpop.f32.mrb[0].mxu0
        %5897 = vmatprep.mubr.bf16.mxu0 0
        %5898 = vmatmul.mubr.bf16.gmra.mrb[0].mxu0 %v5763
        %v5899 = vpop.f32.mrb[0].mxu0
        %v5900 = vadd.f32 0.0, %v5899
        %v5901 = vpop.f32.mrb[0].mxu0
        %v5902 = vpop.f32.mrb[0].mxu0
        %v5903 = vadd.f32 0.0, %v5902
        %v5904 = vpop.f32.mrb[0].mxu0
        %5905 = vmatprep.mubr.bf16.mxu0 0
        %5906 = vmatmul.mubr.bf16.gmra.mrb[0].mxu0 %v5766
        %v5907 = vpop.f32.mrb[0].mxu0
        %v5908 = vadd.f32 0.0, %v5907
        %v5909 = vpop.f32.mrb[0].mxu0
        %v5910 = vpop.f32.mrb[0].mxu0
        %v5911 = vadd.f32 0.0, %v5910
        %v5912 = vpop.f32.mrb[0].mxu0
        %5913 = vmatprep.mubr.bf16.mxu0 0
        %5914 = vmatmul.mubr.bf16.gmra.mrb[0].mxu0 %v5769
        %v5915 = vpop.f32.mrb[0].mxu0
        %v5916 = vadd.f32 0.0, %v5915
        %v5917 = vpop.f32.mrb[0].mxu0
        %v5918 = vpop.f32.mrb[0].mxu0
        %v5919 = vadd.f32 0.0, %v5918
        %v5920 = vpop.f32.mrb[0].mxu0
        %5921 = vmatprep.mubr.bf16.mxu0 0
        %5922 = vmatmul.mubr.bf16.gmra.mrb[0].mxu0 %v5772
        %v5923 = vpop.f32.mrb[0].mxu0
        %v5924 = vadd.f32 0.0, %v5923
        %v5925 = vpop.f32.mrb[0].mxu0
        %v5926 = vpop.f32.mrb[0].mxu0
        %v5927 = vadd.f32 0.0, %v5926
        %v5928 = vpop.f32.mrb[0].mxu0
        %5929 = vmatprep.mubr.bf16.mxu0 0
        %5930 = vmatmul.mubr.bf16.gmra.mrb[0].mxu0 %v5775
        %v5931 = vpop.f32.mrb[0].mxu0
        %v5932 = vadd.f32 0.0, %v5931
        %v5933 = vpop.f32.mrb[0].mxu0
        %v5934 = vpop.f32.mrb[0].mxu0
        %v5935 = vadd.f32 0.0, %v5934
        %v5936 = vpop.f32.mrb[0].mxu0
        %5937 = vdwg.mxu0
        %v5946 = vunpack.c.l.b16 %v5640
        %v5947 = vunpack.c.l.b16 %v5641
        %v5948 = vunpack.c.l.b16 %v5642
        %v5949 = vunpack.c.l.b16 %v5643
        %v5950 = vunpack.c.l.b16 %v5644
        %v5951 = vunpack.c.l.b16 %v5645
        %v5952 = vunpack.c.l.b16 %v5646
        %v5953 = vunpack.c.l.b16 %v5647
        %v5954 = vpack.c.b16 %v5947, %v5946
        %v5955 = vpack.c.b16 %v5949, %v5948
        %v5956 = vpack.c.b16 %v5951, %v5950
        %v5957 = vpack.c.b16 %v5953, %v5952
        %v5963 = vsel %vm895, %v5624, 0
        %v5966 = vsel %vm895, %v5625, 0
        %v5969 = vsel %vm895, %v5626, 0
        %v5972 = vsel %vm895, %v5627, 0
        %v5975 = vsel %vm895, %v5628, 0
        %v5978 = vsel %vm895, %v5629, 0
        %v5981 = vsel %vm895, %v5630, 0
        %v5984 = vsel %vm895, %v5631, 0
        %v5987 = vsel %vm895, %v5632, 0
        %v5990 = vsel %vm895, %v5633, 0
        %v5993 = vsel %vm895, %v5634, 0
        %v5996 = vsel %vm895, %v5635, 0
        %v5999 = vsel %vm895, %v5636, 0
        %v6002 = vsel %vm895, %v5637, 0
        %v6005 = vsel %vm895, %v5638, 0
        %v6008 = vsel %vm895, %v5639, 0
        %6010 = vmatprep.subr.bf16.mxu0 0
        %6011 = vmatpush1.bf16.msra.mxu0 %v5954
        %6012 = vmatprep.subr.bf16.mxu0 0
        %6013 = vmatpush1.bf16.msra.mxu0 %v5955
        %6014 = vmatprep.subr.bf16.mxu0 0
        %6015 = vmatpush1.bf16.msra.mxu0 %v5956
        %6016 = vmatprep.subr.bf16.mxu0 0
        %6017 = vmatpush1.bf16.msra.mxu0 %v5957
        %6018 = vmatprep.subr.bf16.mxu0 0
        %6019 = vmatpush1.bf16.msra.mxu0 0
        %6020 = vmatprep.subr.bf16.mxu0 0
        %6021 = vmatpush1.bf16.msra.mxu0 0
        %6022 = vmatprep.subr.bf16.mxu0 0
        %6023 = vmatpush1.bf16.msra.mxu0 0
        %6024 = vmatprep.subr.bf16.mxu0 0
        %6025 = vmatpush1.bf16.msra.mxu0 0
        %6026 = vmatprep.subr.bf16.mxu0 0
        %6027 = vmatpush1.bf16.msra.mxu0 0
        %6028 = vmatprep.subr.bf16.mxu0 0
        %6029 = vmatpush1.bf16.msra.mxu0 0
        %6030 = vmatprep.subr.bf16.mxu0 0
        %6031 = vmatpush1.bf16.msra.mxu0 0
        %6032 = vmatprep.subr.bf16.mxu0 0
        %6033 = vmatpush1.bf16.msra.mxu0 0
        %6034 = vmatprep.subr.bf16.mxu0 0
        %6035 = vmatpush1.bf16.msra.mxu0 0
        %6036 = vmatprep.subr.bf16.mxu0 0
        %6037 = vmatpush1.bf16.msra.mxu0 0
        %6038 = vmatprep.subr.bf16.mxu0 0
        %6039 = vmatpush1.bf16.msra.mxu0 0
        %6040 = vmatprep.subr.bf16.mxu0 0
        %6041 = vmatpush1.bf16.msra.mxu0 0
        %6042 = vmatprep.mubr.bf16.mxu0 0
        %6043 = vmatmul.mubr.bf16.gmra.mrb[0].mxu0 %v5963
        %v6044 = vpop.f32.mrb[0].mxu0
        %v6045 = vadd.f32 %v5812, %v6044
        %v6046 = vpop.f32.mrb[0].mxu0
        %v6047 = vpop.f32.mrb[0].mxu0
        %v6048 = vadd.f32 %v5815, %v6047
        %v6049 = vpop.f32.mrb[0].mxu0
        %6050 = vmatprep.mubr.bf16.mxu0 0
        %6051 = vmatmul.mubr.bf16.gmra.mrb[0].mxu0 %v5966
        %v6052 = vpop.f32.mrb[0].mxu0
        %v6053 = vadd.f32 %v5820, %v6052
        %v6054 = vpop.f32.mrb[0].mxu0
        %v6055 = vpop.f32.mrb[0].mxu0
        %v6056 = vadd.f32 %v5823, %v6055
        %v6057 = vpop.f32.mrb[0].mxu0
        %6058 = vmatprep.mubr.bf16.mxu0 0
        %6059 = vmatmul.mubr.bf16.gmra.mrb[0].mxu0 %v5969
        %v6060 = vpop.f32.mrb[0].mxu0
        %v6061 = vadd.f32 %v5828, %v6060
        %v6062 = vpop.f32.mrb[0].mxu0
        %v6063 = vpop.f32.mrb[0].mxu0
        %v6064 = vadd.f32 %v5831, %v6063
        %v6065 = vpop.f32.mrb[0].mxu0
        %6066 = vmatprep.mubr.bf16.mxu0 0
        %6067 = vmatmul.mubr.bf16.gmra.mrb[0].mxu0 %v5972
        %v6068 = vpop.f32.mrb[0].mxu0
        %v6069 = vadd.f32 %v5836, %v6068
        %v6070 = vpop.f32.mrb[0].mxu0
        %v6071 = vpop.f32.mrb[0].mxu0
        %v6072 = vadd.f32 %v5839, %v6071
        %v6073 = vpop.f32.mrb[0].mxu0
        %6074 = vmatprep.mubr.bf16.mxu0 0
        %6075 = vmatmul.mubr.bf16.gmra.mrb[0].mxu0 %v5975
        %v6076 = vpop.f32.mrb[0].mxu0
        %v6077 = vadd.f32 %v5844, %v6076
        %v6078 = vpop.f32.mrb[0].mxu0
        %v6079 = vpop.f32.mrb[0].mxu0
        %v6080 = vadd.f32 %v5847, %v6079
        %v6081 = vpop.f32.mrb[0].mxu0
        %6082 = vmatprep.mubr.bf16.mxu0 0
        %6083 = vmatmul.mubr.bf16.gmra.mrb[0].mxu0 %v5978
        %v6084 = vpop.f32.mrb[0].mxu0
        %v6085 = vadd.f32 %v5852, %v6084
        %v6086 = vpop.f32.mrb[0].mxu0
        %v6087 = vpop.f32.mrb[0].mxu0
        %v6088 = vadd.f32 %v5855, %v6087
        %v6089 = vpop.f32.mrb[0].mxu0
        %6090 = vmatprep.mubr.bf16.mxu0 0
        %6091 = vmatmul.mubr.bf16.gmra.mrb[0].mxu0 %v5981
        %v6092 = vpop.f32.mrb[0].mxu0
        %v6093 = vadd.f32 %v5860, %v6092
        %v6094 = vpop.f32.mrb[0].mxu0
        %v6095 = vpop.f32.mrb[0].mxu0
        %v6096 = vadd.f32 %v5863, %v6095
        %v6097 = vpop.f32.mrb[0].mxu0
        %6098 = vmatprep.mubr.bf16.mxu0 0
        %6099 = vmatmul.mubr.bf16.gmra.mrb[0].mxu0 %v5984
        %v6100 = vpop.f32.mrb[0].mxu0
        %v6101 = vadd.f32 %v5868, %v6100
        %v6102 = vpop.f32.mrb[0].mxu0
        %v6103 = vpop.f32.mrb[0].mxu0
        %v6104 = vadd.f32 %v5871, %v6103
        %v6105 = vpop.f32.mrb[0].mxu0
        %6106 = vmatprep.mubr.bf16.mxu0 0
        %6107 = vmatmul.mubr.bf16.gmra.mrb[0].mxu0 %v5987
        %v6108 = vpop.f32.mrb[0].mxu0
        %v6109 = vadd.f32 %v5876, %v6108
        %v6110 = vpop.f32.mrb[0].mxu0
        %v6111 = vpop.f32.mrb[0].mxu0
        %v6112 = vadd.f32 %v5879, %v6111
        %v6113 = vpop.f32.mrb[0].mxu0
        %6114 = vmatprep.mubr.bf16.mxu0 0
        %6115 = vmatmul.mubr.bf16.gmra.mrb[0].mxu0 %v5990
        %v6116 = vpop.f32.mrb[0].mxu0
        %v6117 = vadd.f32 %v5884, %v6116
        %v6118 = vpop.f32.mrb[0].mxu0
        %v6119 = vpop.f32.mrb[0].mxu0
        %v6120 = vadd.f32 %v5887, %v6119
        %v6121 = vpop.f32.mrb[0].mxu0
        %6122 = vmatprep.mubr.bf16.mxu0 0
        %6123 = vmatmul.mubr.bf16.gmra.mrb[0].mxu0 %v5993
        %v6124 = vpop.f32.mrb[0].mxu0
        %v6125 = vadd.f32 %v5892, %v6124
        %v6126 = vpop.f32.mrb[0].mxu0
        %v6127 = vpop.f32.mrb[0].mxu0
        %v6128 = vadd.f32 %v5895, %v6127
        %v6129 = vpop.f32.mrb[0].mxu0
        %6130 = vmatprep.mubr.bf16.mxu0 0
        %6131 = vmatmul.mubr.bf16.gmra.mrb[0].mxu0 %v5996
        %v6132 = vpop.f32.mrb[0].mxu0
        %v6133 = vadd.f32 %v5900, %v6132
        %v6134 = vpop.f32.mrb[0].mxu0
        %v6135 = vpop.f32.mrb[0].mxu0
        %v6136 = vadd.f32 %v5903, %v6135
        %v6137 = vpop.f32.mrb[0].mxu0
        %6138 = vmatprep.mubr.bf16.mxu0 0
        %6139 = vmatmul.mubr.bf16.gmra.mrb[0].mxu0 %v5999
        %v6140 = vpop.f32.mrb[0].mxu0
        %v6141 = vadd.f32 %v5908, %v6140
        %v6142 = vpop.f32.mrb[0].mxu0
        %v6143 = vpop.f32.mrb[0].mxu0
        %v6144 = vadd.f32 %v5911, %v6143
        %v6145 = vpop.f32.mrb[0].mxu0
        %6146 = vmatprep.mubr.bf16.mxu0 0
        %6147 = vmatmul.mubr.bf16.gmra.mrb[0].mxu0 %v6002
        %v6148 = vpop.f32.mrb[0].mxu0
        %v6149 = vadd.f32 %v5916, %v6148
        %v6150 = vpop.f32.mrb[0].mxu0
        %v6151 = vpop.f32.mrb[0].mxu0
        %v6152 = vadd.f32 %v5919, %v6151
        %v6153 = vpop.f32.mrb[0].mxu0
        %6154 = vmatprep.mubr.bf16.mxu0 0
        %6155 = vmatmul.mubr.bf16.gmra.mrb[0].mxu0 %v6005
        %v6156 = vpop.f32.mrb[0].mxu0
        %v6157 = vadd.f32 %v5924, %v6156
        %v6158 = vpop.f32.mrb[0].mxu0
        %v6159 = vpop.f32.mrb[0].mxu0
        %v6160 = vadd.f32 %v5927, %v6159
        %v6161 = vpop.f32.mrb[0].mxu0
        %6162 = vmatprep.mubr.bf16.mxu0 0
        %6163 = vmatmul.mubr.bf16.gmra.mrb[0].mxu0 %v6008
        %v6164 = vpop.f32.mrb[0].mxu0
        %v6165 = vadd.f32 %v5932, %v6164
        %v6166 = vpop.f32.mrb[0].mxu0
        %v6167 = vpop.f32.mrb[0].mxu0
        %v6168 = vadd.f32 %v5935, %v6167
        %v6169 = vpop.f32.mrb[0].mxu0
        %6170 = vdwg.mxu0
        %v6171 = vld [vmem:[#allocation4 + $0x9] sm:$0xff]
        %v6172 = vld [vmem:[#allocation4 + $0x11] sm:$0xff]
        %v6173 = vld [vmem:[#allocation4 + $0x29] sm:$0xff]
        %v6174 = vld [vmem:[#allocation4 + $0x31] sm:$0xff]
        %v6175 = vld [vmem:[#allocation4 + $0x49] sm:$0xff]
        %v6176 = vld [vmem:[#allocation4 + $0x51] sm:$0xff]
        %v6177 = vld [vmem:[#allocation4 + $0x69] sm:$0xff]
        %v6178 = vld [vmem:[#allocation4 + $0x71] sm:$0xff]
        %v6179 = vld [vmem:[#allocation4 + $0x89] sm:$0xff]
        %v6180 = vld [vmem:[#allocation4 + $0x91] sm:$0xff]
        %v6181 = vld [vmem:[#allocation4 + $0xa9] sm:$0xff]
        %v6182 = vld [vmem:[#allocation4 + $0xb1] sm:$0xff]
        %v6183 = vld [vmem:[#allocation4 + $0xc9] sm:$0xff]
        %v6184 = vld [vmem:[#allocation4 + $0xd1] sm:$0xff]
        %v6185 = vld [vmem:[#allocation4 + $0xe9] sm:$0xff]
        %v6186 = vld [vmem:[#allocation4 + $0xf1] sm:$0xff]
        %v6187 = vld [vmem:[#allocation4 + $0x109] sm:$0xff]
        %v6188 = vld [vmem:[#allocation4 + $0x111] sm:$0xff]
        %v6189 = vld [vmem:[#allocation4 + $0x129] sm:$0xff]
        %v6190 = vld [vmem:[#allocation4 + $0x131] sm:$0xff]
        %v6191 = vld [vmem:[#allocation4 + $0x149] sm:$0xff]
        %v6192 = vld [vmem:[#allocation4 + $0x151] sm:$0xff]
        %v6193 = vld [vmem:[#allocation4 + $0x169] sm:$0xff]
        %v6194 = vld [vmem:[#allocation4 + $0x171] sm:$0xff]
        %v6195 = vld [vmem:[#allocation4 + $0x189] sm:$0xff]
        %v6196 = vld [vmem:[#allocation4 + $0x191] sm:$0xff]
        %v6197 = vld [vmem:[#allocation4 + $0x1a9] sm:$0xff]
        %v6198 = vld [vmem:[#allocation4 + $0x1b1] sm:$0xff]
        %v6199 = vld [vmem:[#allocation4 + $0x1c9] sm:$0xff]
        %v6200 = vld [vmem:[#allocation4 + $0x1d1] sm:$0xff]
        %v6201 = vld [vmem:[#allocation4 + $0x1e9] sm:$0xff]
        %v6202 = vld [vmem:[#allocation4 + $0x1f1] sm:$0xff]
        %v6203 = vpack.c.bf16 %v6172, %v6171
        %v6204 = vpack.c.bf16 %v6174, %v6173
        %v6205 = vpack.c.bf16 %v6176, %v6175
        %v6206 = vpack.c.bf16 %v6178, %v6177
        %v6207 = vpack.c.bf16 %v6180, %v6179
        %v6208 = vpack.c.bf16 %v6182, %v6181
        %v6209 = vpack.c.bf16 %v6184, %v6183
        %v6210 = vpack.c.bf16 %v6186, %v6185
        %v6211 = vpack.c.bf16 %v6188, %v6187
        %v6212 = vpack.c.bf16 %v6190, %v6189
        %v6213 = vpack.c.bf16 %v6192, %v6191
        %v6214 = vpack.c.bf16 %v6194, %v6193
        %v6215 = vpack.c.bf16 %v6196, %v6195
        %v6216 = vpack.c.bf16 %v6198, %v6197
        %v6217 = vpack.c.bf16 %v6200, %v6199
        %v6218 = vpack.c.bf16 %v6202, %v6201
        %s6219 = scalar_lea.vmem [#allocation17], 64
        %v6220 = vld [vmem:[%s6219] sm:$0xf]
        %v6221 = vld [vmem:[%s6219 + $0x4] sm:$0xf]
        %v6222 = vld [vmem:[%s6219 + $0x8] sm:$0xf]
        %v6223 = vld [vmem:[%s6219 + $0xc] sm:$0xf]
        %v6224 = vld [vmem:[%s6219 + $0x10] sm:$0xf]
        %v6225 = vld [vmem:[%s6219 + $0x14] sm:$0xf]
        %v6226 = vld [vmem:[%s6219 + $0x18] sm:$0xf]
        %v6227 = vld [vmem:[%s6219 + $0x1c] sm:$0xf]
        %v6236 = vunpack.c.l.b16 %v6220
        %v6237 = vunpack.c.l.b16 %v6221
        %v6238 = vunpack.c.l.b16 %v6222
        %v6239 = vunpack.c.l.b16 %v6223
        %v6240 = vunpack.c.l.b16 %v6224
        %v6241 = vunpack.c.l.b16 %v6225
        %v6242 = vunpack.c.l.b16 %v6226
        %v6243 = vunpack.c.l.b16 %v6227
        %v6244 = vpack.c.b16 %v6237, %v6236
        %v6245 = vpack.c.b16 %v6239, %v6238
        %v6246 = vpack.c.b16 %v6241, %v6240
        %v6247 = vpack.c.b16 %v6243, %v6242
        %v6253 = vsel %vm895, %v6203, 0
        %v6256 = vsel %vm895, %v6204, 0
        %v6259 = vsel %vm895, %v6205, 0
        %v6262 = vsel %vm895, %v6206, 0
        %v6265 = vsel %vm895, %v6207, 0
        %v6268 = vsel %vm895, %v6208, 0
        %v6271 = vsel %vm895, %v6209, 0
        %v6274 = vsel %vm895, %v6210, 0
        %v6277 = vsel %vm895, %v6211, 0
        %v6280 = vsel %vm895, %v6212, 0
        %v6283 = vsel %vm895, %v6213, 0
        %v6286 = vsel %vm895, %v6214, 0
        %v6289 = vsel %vm895, %v6215, 0
        %v6292 = vsel %vm895, %v6216, 0
        %v6295 = vsel %vm895, %v6217, 0
        %v6298 = vsel %vm895, %v6218, 0
        %6300 = vmatprep.subr.bf16.mxu0 0
        %6301 = vmatpush1.bf16.msra.mxu0 %v6244
        %6302 = vmatprep.subr.bf16.mxu0 0
        %6303 = vmatpush1.bf16.msra.mxu0 %v6245
        %6304 = vmatprep.subr.bf16.mxu0 0
        %6305 = vmatpush1.bf16.msra.mxu0 %v6246
        %6306 = vmatprep.subr.bf16.mxu0 0
        %6307 = vmatpush1.bf16.msra.mxu0 %v6247
        %6308 = vmatprep.subr.bf16.mxu0 0
        %6309 = vmatpush1.bf16.msra.mxu0 0
        %6310 = vmatprep.subr.bf16.mxu0 0
        %6311 = vmatpush1.bf16.msra.mxu0 0
        %6312 = vmatprep.subr.bf16.mxu0 0
        %6313 = vmatpush1.bf16.msra.mxu0 0
        %6314 = vmatprep.subr.bf16.mxu0 0
        %6315 = vmatpush1.bf16.msra.mxu0 0
        %6316 = vmatprep.subr.bf16.mxu0 0
        %6317 = vmatpush1.bf16.msra.mxu0 0
        %6318 = vmatprep.subr.bf16.mxu0 0
        %6319 = vmatpush1.bf16.msra.mxu0 0
        %6320 = vmatprep.subr.bf16.mxu0 0
        %6321 = vmatpush1.bf16.msra.mxu0 0
        %6322 = vmatprep.subr.bf16.mxu0 0
        %6323 = vmatpush1.bf16.msra.mxu0 0
        %6324 = vmatprep.subr.bf16.mxu0 0
        %6325 = vmatpush1.bf16.msra.mxu0 0
        %6326 = vmatprep.subr.bf16.mxu0 0
        %6327 = vmatpush1.bf16.msra.mxu0 0
        %6328 = vmatprep.subr.bf16.mxu0 0
        %6329 = vmatpush1.bf16.msra.mxu0 0
        %6330 = vmatprep.subr.bf16.mxu0 0
        %6331 = vmatpush1.bf16.msra.mxu0 0
        %6332 = vmatprep.mubr.bf16.mxu0 0
        %6333 = vmatmul.mubr.bf16.gmra.mrb[0].mxu0 %v6253
        %v6334 = vpop.f32.mrb[0].mxu0
        %v6335 = vadd.f32 0.0, %v6334
        %v6336 = vpop.f32.mrb[0].mxu0
        %v6337 = vpop.f32.mrb[0].mxu0
        %v6338 = vadd.f32 0.0, %v6337
        %v6339 = vpop.f32.mrb[0].mxu0
        %6340 = vmatprep.mubr.bf16.mxu0 0
        %6341 = vmatmul.mubr.bf16.gmra.mrb[0].mxu0 %v6256
        %v6342 = vpop.f32.mrb[0].mxu0
        %v6343 = vadd.f32 0.0, %v6342
        %v6344 = vpop.f32.mrb[0].mxu0
        %v6345 = vpop.f32.mrb[0].mxu0
        %v6346 = vadd.f32 0.0, %v6345
        %v6347 = vpop.f32.mrb[0].mxu0
        %6348 = vmatprep.mubr.bf16.mxu0 0
        %6349 = vmatmul.mubr.bf16.gmra.mrb[0].mxu0 %v6259
        %v6350 = vpop.f32.mrb[0].mxu0
        %v6351 = vadd.f32 0.0, %v6350
        %v6352 = vpop.f32.mrb[0].mxu0
        %v6353 = vpop.f32.mrb[0].mxu0
        %v6354 = vadd.f32 0.0, %v6353
        %v6355 = vpop.f32.mrb[0].mxu0
        %6356 = vmatprep.mubr.bf16.mxu0 0
        %6357 = vmatmul.mubr.bf16.gmra.mrb[0].mxu0 %v6262
        %v6358 = vpop.f32.mrb[0].mxu0
        %v6359 = vadd.f32 0.0, %v6358
        %v6360 = vpop.f32.mrb[0].mxu0
        %v6361 = vpop.f32.mrb[0].mxu0
        %v6362 = vadd.f32 0.0, %v6361
        %v6363 = vpop.f32.mrb[0].mxu0
        %6364 = vmatprep.mubr.bf16.mxu0 0
        %6365 = vmatmul.mubr.bf16.gmra.mrb[0].mxu0 %v6265
        %v6366 = vpop.f32.mrb[0].mxu0
        %v6367 = vadd.f32 0.0, %v6366
        %v6368 = vpop.f32.mrb[0].mxu0
        %v6369 = vpop.f32.mrb[0].mxu0
        %v6370 = vadd.f32 0.0, %v6369
        %v6371 = vpop.f32.mrb[0].mxu0
        %6372 = vmatprep.mubr.bf16.mxu0 0
        %6373 = vmatmul.mubr.bf16.gmra.mrb[0].mxu0 %v6268
        %v6374 = vpop.f32.mrb[0].mxu0
        %v6375 = vadd.f32 0.0, %v6374
        %v6376 = vpop.f32.mrb[0].mxu0
        %v6377 = vpop.f32.mrb[0].mxu0
        %v6378 = vadd.f32 0.0, %v6377
        %v6379 = vpop.f32.mrb[0].mxu0
        %6380 = vmatprep.mubr.bf16.mxu0 0
        %6381 = vmatmul.mubr.bf16.gmra.mrb[0].mxu0 %v6271
        %v6382 = vpop.f32.mrb[0].mxu0
        %v6383 = vadd.f32 0.0, %v6382
        %v6384 = vpop.f32.mrb[0].mxu0
        %v6385 = vpop.f32.mrb[0].mxu0
        %v6386 = vadd.f32 0.0, %v6385
        %v6387 = vpop.f32.mrb[0].mxu0
        %6388 = vmatprep.mubr.bf16.mxu0 0
        %6389 = vmatmul.mubr.bf16.gmra.mrb[0].mxu0 %v6274
        %v6390 = vpop.f32.mrb[0].mxu0
        %v6391 = vadd.f32 0.0, %v6390
        %v6392 = vpop.f32.mrb[0].mxu0
        %v6393 = vpop.f32.mrb[0].mxu0
        %v6394 = vadd.f32 0.0, %v6393
        %v6395 = vpop.f32.mrb[0].mxu0
        %6396 = vmatprep.mubr.bf16.mxu0 0
        %6397 = vmatmul.mubr.bf16.gmra.mrb[0].mxu0 %v6277
        %v6398 = vpop.f32.mrb[0].mxu0
        %v6399 = vadd.f32 0.0, %v6398
        %v6400 = vpop.f32.mrb[0].mxu0
        %v6401 = vpop.f32.mrb[0].mxu0
        %v6402 = vadd.f32 0.0, %v6401
        %v6403 = vpop.f32.mrb[0].mxu0
        %6404 = vmatprep.mubr.bf16.mxu0 0
        %6405 = vmatmul.mubr.bf16.gmra.mrb[0].mxu0 %v6280
        %v6406 = vpop.f32.mrb[0].mxu0
        %v6407 = vadd.f32 0.0, %v6406
        %v6408 = vpop.f32.mrb[0].mxu0
        %v6409 = vpop.f32.mrb[0].mxu0
        %v6410 = vadd.f32 0.0, %v6409
        %v6411 = vpop.f32.mrb[0].mxu0
        %6412 = vmatprep.mubr.bf16.mxu0 0
        %6413 = vmatmul.mubr.bf16.gmra.mrb[0].mxu0 %v6283
        %v6414 = vpop.f32.mrb[0].mxu0
        %v6415 = vadd.f32 0.0, %v6414
        %v6416 = vpop.f32.mrb[0].mxu0
        %v6417 = vpop.f32.mrb[0].mxu0
        %v6418 = vadd.f32 0.0, %v6417
        %v6419 = vpop.f32.mrb[0].mxu0
        %6420 = vmatprep.mubr.bf16.mxu0 0
        %6421 = vmatmul.mubr.bf16.gmra.mrb[0].mxu0 %v6286
        %v6422 = vpop.f32.mrb[0].mxu0
        %v6423 = vadd.f32 0.0, %v6422
        %v6424 = vpop.f32.mrb[0].mxu0
        %v6425 = vpop.f32.mrb[0].mxu0
        %v6426 = vadd.f32 0.0, %v6425
        %v6427 = vpop.f32.mrb[0].mxu0
        %6428 = vmatprep.mubr.bf16.mxu0 0
        %6429 = vmatmul.mubr.bf16.gmra.mrb[0].mxu0 %v6289
        %v6430 = vpop.f32.mrb[0].mxu0
        %v6431 = vadd.f32 0.0, %v6430
        %v6432 = vpop.f32.mrb[0].mxu0
        %v6433 = vpop.f32.mrb[0].mxu0
        %v6434 = vadd.f32 0.0, %v6433
        %v6435 = vpop.f32.mrb[0].mxu0
        %6436 = vmatprep.mubr.bf16.mxu0 0
        %6437 = vmatmul.mubr.bf16.gmra.mrb[0].mxu0 %v6292
        %v6438 = vpop.f32.mrb[0].mxu0
        %v6439 = vadd.f32 0.0, %v6438
        %v6440 = vpop.f32.mrb[0].mxu0
        %v6441 = vpop.f32.mrb[0].mxu0
        %v6442 = vadd.f32 0.0, %v6441
        %v6443 = vpop.f32.mrb[0].mxu0
        %6444 = vmatprep.mubr.bf16.mxu0 0
        %6445 = vmatmul.mubr.bf16.gmra.mrb[0].mxu0 %v6295
        %v6446 = vpop.f32.mrb[0].mxu0
        %v6447 = vadd.f32 0.0, %v6446
        %v6448 = vpop.f32.mrb[0].mxu0
        %v6449 = vpop.f32.mrb[0].mxu0
        %v6450 = vadd.f32 0.0, %v6449
        %v6451 = vpop.f32.mrb[0].mxu0
        %6452 = vmatprep.mubr.bf16.mxu0 0
        %6453 = vmatmul.mubr.bf16.gmra.mrb[0].mxu0 %v6298
        %v6454 = vpop.f32.mrb[0].mxu0
        %v6455 = vadd.f32 0.0, %v6454
        %v6456 = vpop.f32.mrb[0].mxu0
        %v6457 = vpop.f32.mrb[0].mxu0
        %v6458 = vadd.f32 0.0, %v6457
        %v6459 = vpop.f32.mrb[0].mxu0
        %6460 = vdwg.mxu0
        %v6461 = vadd.f32 %v6045, %v6335
        %v6462 = vadd.f32 %v6048, %v6338
        %v6463 = vadd.f32 %v6053, %v6343
        %v6464 = vadd.f32 %v6056, %v6346
        %v6465 = vadd.f32 %v6061, %v6351
        %v6466 = vadd.f32 %v6064, %v6354
        %v6467 = vadd.f32 %v6069, %v6359
        %v6468 = vadd.f32 %v6072, %v6362
        %v6469 = vadd.f32 %v6077, %v6367
        %v6470 = vadd.f32 %v6080, %v6370
        %v6471 = vadd.f32 %v6085, %v6375
        %v6472 = vadd.f32 %v6088, %v6378
        %v6473 = vadd.f32 %v6093, %v6383
        %v6474 = vadd.f32 %v6096, %v6386
        %v6475 = vadd.f32 %v6101, %v6391
        %v6476 = vadd.f32 %v6104, %v6394
        %v6477 = vadd.f32 %v6109, %v6399
        %v6478 = vadd.f32 %v6112, %v6402
        %v6479 = vadd.f32 %v6117, %v6407
        %v6480 = vadd.f32 %v6120, %v6410
        %v6481 = vadd.f32 %v6125, %v6415
        %v6482 = vadd.f32 %v6128, %v6418
        %v6483 = vadd.f32 %v6133, %v6423
        %v6484 = vadd.f32 %v6136, %v6426
        %v6485 = vadd.f32 %v6141, %v6431
        %v6486 = vadd.f32 %v6144, %v6434
        %v6487 = vadd.f32 %v6149, %v6439
        %v6488 = vadd.f32 %v6152, %v6442
        %v6489 = vadd.f32 %v6157, %v6447
        %v6490 = vadd.f32 %v6160, %v6450
        %v6491 = vadd.f32 %v6165, %v6455
        %v6492 = vadd.f32 %v6168, %v6458
        %v6493 = vld [vmem:[%s904 + $0x7] sm:$0xff]
        %v6494 = vld [vmem:[%s904 + $0xf] sm:$0xff]
        %v6495 = vld [vmem:[%s904 + $0x27] sm:$0xff]
        %v6496 = vld [vmem:[%s904 + $0x2f] sm:$0xff]
        %v6497 = vld [vmem:[%s904 + $0x47] sm:$0xff]
        %v6498 = vld [vmem:[%s904 + $0x4f] sm:$0xff]
        %v6499 = vld [vmem:[%s904 + $0x67] sm:$0xff]
        %v6500 = vld [vmem:[%s904 + $0x6f] sm:$0xff]
        %v6501 = vld [vmem:[%s904 + $0x87] sm:$0xff]
        %v6502 = vld [vmem:[%s904 + $0x8f] sm:$0xff]
        %v6503 = vld [vmem:[%s904 + $0xa7] sm:$0xff]
        %v6504 = vld [vmem:[%s904 + $0xaf] sm:$0xff]
        %v6505 = vld [vmem:[%s904 + $0xc7] sm:$0xff]
        %v6506 = vld [vmem:[%s904 + $0xcf] sm:$0xff]
        %v6507 = vld [vmem:[%s904 + $0xe7] sm:$0xff]
        %v6508 = vld [vmem:[%s904 + $0xef] sm:$0xff]
        %v6509 = vld [vmem:[%s904 + $0x107] sm:$0xff]
        %v6510 = vld [vmem:[%s904 + $0x10f] sm:$0xff]
        %v6511 = vld [vmem:[%s904 + $0x127] sm:$0xff]
        %v6512 = vld [vmem:[%s904 + $0x12f] sm:$0xff]
        %v6513 = vld [vmem:[%s904 + $0x147] sm:$0xff]
        %v6514 = vld [vmem:[%s904 + $0x14f] sm:$0xff]
        %v6515 = vld [vmem:[%s904 + $0x167] sm:$0xff]
        %v6516 = vld [vmem:[%s904 + $0x16f] sm:$0xff]
        %v6517 = vld [vmem:[%s904 + $0x187] sm:$0xff]
        %v6518 = vld [vmem:[%s904 + $0x18f] sm:$0xff]
        %v6519 = vld [vmem:[%s904 + $0x1a7] sm:$0xff]
        %v6520 = vld [vmem:[%s904 + $0x1af] sm:$0xff]
        %v6521 = vld [vmem:[%s904 + $0x1c7] sm:$0xff]
        %v6522 = vld [vmem:[%s904 + $0x1cf] sm:$0xff]
        %v6523 = vld [vmem:[%s904 + $0x1e7] sm:$0xff]
        %v6524 = vld [vmem:[%s904 + $0x1ef] sm:$0xff]
        %v6525 = vpack.c.bf16 %v6494, %v6493
        %v6526 = vpack.c.bf16 %v6496, %v6495
        %v6527 = vpack.c.bf16 %v6498, %v6497
        %v6528 = vpack.c.bf16 %v6500, %v6499
        %v6529 = vpack.c.bf16 %v6502, %v6501
        %v6530 = vpack.c.bf16 %v6504, %v6503
        %v6531 = vpack.c.bf16 %v6506, %v6505
        %v6532 = vpack.c.bf16 %v6508, %v6507
        %v6533 = vpack.c.bf16 %v6510, %v6509
        %v6534 = vpack.c.bf16 %v6512, %v6511
        %v6535 = vpack.c.bf16 %v6514, %v6513
        %v6536 = vpack.c.bf16 %v6516, %v6515
        %v6537 = vpack.c.bf16 %v6518, %v6517
        %v6538 = vpack.c.bf16 %v6520, %v6519
        %v6539 = vpack.c.bf16 %v6522, %v6521
        %v6540 = vpack.c.bf16 %v6524, %v6523
        %s6541 = scalar_lea.vmem [#allocation17], 96
        %v6542 = vld [vmem:[%s6541] sm:$0xf]
        %v6543 = vld [vmem:[%s6541 + $0x4] sm:$0xf]
        %v6544 = vld [vmem:[%s6541 + $0x8] sm:$0xf]
        %v6545 = vld [vmem:[%s6541 + $0xc] sm:$0xf]
        %v6546 = vld [vmem:[%s6541 + $0x10] sm:$0xf]
        %v6547 = vld [vmem:[%s6541 + $0x14] sm:$0xf]
        %v6548 = vld [vmem:[%s6541 + $0x18] sm:$0xf]
        %v6549 = vld [vmem:[%s6541 + $0x1c] sm:$0xf]
        %v6558 = vunpack.c.l.b16 %v6542
        %v6559 = vunpack.c.l.b16 %v6543
        %v6560 = vunpack.c.l.b16 %v6544
        %v6561 = vunpack.c.l.b16 %v6545
        %v6562 = vunpack.c.l.b16 %v6546
        %v6563 = vunpack.c.l.b16 %v6547
        %v6564 = vunpack.c.l.b16 %v6548
        %v6565 = vunpack.c.l.b16 %v6549
        %v6566 = vpack.c.b16 %v6559, %v6558
        %v6567 = vpack.c.b16 %v6561, %v6560
        %v6568 = vpack.c.b16 %v6563, %v6562
        %v6569 = vpack.c.b16 %v6565, %v6564
        %v6575 = vsel %vm895, %v6525, 0
        %v6578 = vsel %vm895, %v6526, 0
        %v6581 = vsel %vm895, %v6527, 0
        %v6584 = vsel %vm895, %v6528, 0
        %v6587 = vsel %vm895, %v6529, 0
        %v6590 = vsel %vm895, %v6530, 0
        %v6593 = vsel %vm895, %v6531, 0
        %v6596 = vsel %vm895, %v6532, 0
        %v6599 = vsel %vm895, %v6533, 0
        %v6602 = vsel %vm895, %v6534, 0
        %v6605 = vsel %vm895, %v6535, 0
        %v6608 = vsel %vm895, %v6536, 0
        %v6611 = vsel %vm895, %v6537, 0
        %v6614 = vsel %vm895, %v6538, 0
        %v6617 = vsel %vm895, %v6539, 0
        %v6620 = vsel %vm895, %v6540, 0
        %6622 = vmatprep.subr.bf16.mxu0 0
        %6623 = vmatpush1.bf16.msra.mxu0 %v6566
        %6624 = vmatprep.subr.bf16.mxu0 0
        %6625 = vmatpush1.bf16.msra.mxu0 %v6567
        %6626 = vmatprep.subr.bf16.mxu0 0
        %6627 = vmatpush1.bf16.msra.mxu0 %v6568
        %6628 = vmatprep.subr.bf16.mxu0 0
        %6629 = vmatpush1.bf16.msra.mxu0 %v6569
        %6630 = vmatprep.subr.bf16.mxu0 0
        %6631 = vmatpush1.bf16.msra.mxu0 0
        %6632 = vmatprep.subr.bf16.mxu0 0
        %6633 = vmatpush1.bf16.msra.mxu0 0
        %6634 = vmatprep.subr.bf16.mxu0 0
        %6635 = vmatpush1.bf16.msra.mxu0 0
        %6636 = vmatprep.subr.bf16.mxu0 0
        %6637 = vmatpush1.bf16.msra.mxu0 0
        %6638 = vmatprep.subr.bf16.mxu0 0
        %6639 = vmatpush1.bf16.msra.mxu0 0
        %6640 = vmatprep.subr.bf16.mxu0 0
        %6641 = vmatpush1.bf16.msra.mxu0 0
        %6642 = vmatprep.subr.bf16.mxu0 0
        %6643 = vmatpush1.bf16.msra.mxu0 0
        %6644 = vmatprep.subr.bf16.mxu0 0
        %6645 = vmatpush1.bf16.msra.mxu0 0
        %6646 = vmatprep.subr.bf16.mxu0 0
        %6647 = vmatpush1.bf16.msra.mxu0 0
        %6648 = vmatprep.subr.bf16.mxu0 0
        %6649 = vmatpush1.bf16.msra.mxu0 0
        %6650 = vmatprep.subr.bf16.mxu0 0
        %6651 = vmatpush1.bf16.msra.mxu0 0
        %6652 = vmatprep.subr.bf16.mxu0 0
        %6653 = vmatpush1.bf16.msra.mxu0 0
        %6654 = vmatprep.mubr.bf16.mxu0 0
        %6655 = vmatmul.mubr.bf16.gmra.mrb[0].mxu0 %v6575
        %v6656 = vpop.f32.mrb[0].mxu0
        %v6657 = vadd.f32 0.0, %v6656
        %v6658 = vpop.f32.mrb[0].mxu0
        %v6659 = vpop.f32.mrb[0].mxu0
        %v6660 = vadd.f32 0.0, %v6659
        %v6661 = vpop.f32.mrb[0].mxu0
        %6662 = vmatprep.mubr.bf16.mxu0 0
        %6663 = vmatmul.mubr.bf16.gmra.mrb[0].mxu0 %v6578
        %v6664 = vpop.f32.mrb[0].mxu0
        %v6665 = vadd.f32 0.0, %v6664
        %v6666 = vpop.f32.mrb[0].mxu0
        %v6667 = vpop.f32.mrb[0].mxu0
        %v6668 = vadd.f32 0.0, %v6667
        %v6669 = vpop.f32.mrb[0].mxu0
        %6670 = vmatprep.mubr.bf16.mxu0 0
        %6671 = vmatmul.mubr.bf16.gmra.mrb[0].mxu0 %v6581
        %v6672 = vpop.f32.mrb[0].mxu0
        %v6673 = vadd.f32 0.0, %v6672
        %v6674 = vpop.f32.mrb[0].mxu0
        %v6675 = vpop.f32.mrb[0].mxu0
        %v6676 = vadd.f32 0.0, %v6675
        %v6677 = vpop.f32.mrb[0].mxu0
        %6678 = vmatprep.mubr.bf16.mxu0 0
        %6679 = vmatmul.mubr.bf16.gmra.mrb[0].mxu0 %v6584
        %v6680 = vpop.f32.mrb[0].mxu0
        %v6681 = vadd.f32 0.0, %v6680
        %v6682 = vpop.f32.mrb[0].mxu0
        %v6683 = vpop.f32.mrb[0].mxu0
        %v6684 = vadd.f32 0.0, %v6683
        %v6685 = vpop.f32.mrb[0].mxu0
        %6686 = vmatprep.mubr.bf16.mxu0 0
        %6687 = vmatmul.mubr.bf16.gmra.mrb[0].mxu0 %v6587
        %v6688 = vpop.f32.mrb[0].mxu0
        %v6689 = vadd.f32 0.0, %v6688
        %v6690 = vpop.f32.mrb[0].mxu0
        %v6691 = vpop.f32.mrb[0].mxu0
        %v6692 = vadd.f32 0.0, %v6691
        %v6693 = vpop.f32.mrb[0].mxu0
        %6694 = vmatprep.mubr.bf16.mxu0 0
        %6695 = vmatmul.mubr.bf16.gmra.mrb[0].mxu0 %v6590
        %v6696 = vpop.f32.mrb[0].mxu0
        %v6697 = vadd.f32 0.0, %v6696
        %v6698 = vpop.f32.mrb[0].mxu0
        %v6699 = vpop.f32.mrb[0].mxu0
        %v6700 = vadd.f32 0.0, %v6699
        %v6701 = vpop.f32.mrb[0].mxu0
        %6702 = vmatprep.mubr.bf16.mxu0 0
        %6703 = vmatmul.mubr.bf16.gmra.mrb[0].mxu0 %v6593
        %v6704 = vpop.f32.mrb[0].mxu0
        %v6705 = vadd.f32 0.0, %v6704
        %v6706 = vpop.f32.mrb[0].mxu0
        %v6707 = vpop.f32.mrb[0].mxu0
        %v6708 = vadd.f32 0.0, %v6707
        %v6709 = vpop.f32.mrb[0].mxu0
        %6710 = vmatprep.mubr.bf16.mxu0 0
        %6711 = vmatmul.mubr.bf16.gmra.mrb[0].mxu0 %v6596
        %v6712 = vpop.f32.mrb[0].mxu0
        %v6713 = vadd.f32 0.0, %v6712
        %v6714 = vpop.f32.mrb[0].mxu0
        %v6715 = vpop.f32.mrb[0].mxu0
        %v6716 = vadd.f32 0.0, %v6715
        %v6717 = vpop.f32.mrb[0].mxu0
        %6718 = vmatprep.mubr.bf16.mxu0 0
        %6719 = vmatmul.mubr.bf16.gmra.mrb[0].mxu0 %v6599
        %v6720 = vpop.f32.mrb[0].mxu0
        %v6721 = vadd.f32 0.0, %v6720
        %v6722 = vpop.f32.mrb[0].mxu0
        %v6723 = vpop.f32.mrb[0].mxu0
        %v6724 = vadd.f32 0.0, %v6723
        %v6725 = vpop.f32.mrb[0].mxu0
        %6726 = vmatprep.mubr.bf16.mxu0 0
        %6727 = vmatmul.mubr.bf16.gmra.mrb[0].mxu0 %v6602
        %v6728 = vpop.f32.mrb[0].mxu0
        %v6729 = vadd.f32 0.0, %v6728
        %v6730 = vpop.f32.mrb[0].mxu0
        %v6731 = vpop.f32.mrb[0].mxu0
        %v6732 = vadd.f32 0.0, %v6731
        %v6733 = vpop.f32.mrb[0].mxu0
        %6734 = vmatprep.mubr.bf16.mxu0 0
        %6735 = vmatmul.mubr.bf16.gmra.mrb[0].mxu0 %v6605
        %v6736 = vpop.f32.mrb[0].mxu0
        %v6737 = vadd.f32 0.0, %v6736
        %v6738 = vpop.f32.mrb[0].mxu0
        %v6739 = vpop.f32.mrb[0].mxu0
        %v6740 = vadd.f32 0.0, %v6739
        %v6741 = vpop.f32.mrb[0].mxu0
        %6742 = vmatprep.mubr.bf16.mxu0 0
        %6743 = vmatmul.mubr.bf16.gmra.mrb[0].mxu0 %v6608
        %v6744 = vpop.f32.mrb[0].mxu0
        %v6745 = vadd.f32 0.0, %v6744
        %v6746 = vpop.f32.mrb[0].mxu0
        %v6747 = vpop.f32.mrb[0].mxu0
        %v6748 = vadd.f32 0.0, %v6747
        %v6749 = vpop.f32.mrb[0].mxu0
        %6750 = vmatprep.mubr.bf16.mxu0 0
        %6751 = vmatmul.mubr.bf16.gmra.mrb[0].mxu0 %v6611
        %v6752 = vpop.f32.mrb[0].mxu0
        %v6753 = vadd.f32 0.0, %v6752
        %v6754 = vpop.f32.mrb[0].mxu0
        %v6755 = vpop.f32.mrb[0].mxu0
        %v6756 = vadd.f32 0.0, %v6755
        %v6757 = vpop.f32.mrb[0].mxu0
        %6758 = vmatprep.mubr.bf16.mxu0 0
        %6759 = vmatmul.mubr.bf16.gmra.mrb[0].mxu0 %v6614
        %v6760 = vpop.f32.mrb[0].mxu0
        %v6761 = vadd.f32 0.0, %v6760
        %v6762 = vpop.f32.mrb[0].mxu0
        %v6763 = vpop.f32.mrb[0].mxu0
        %v6764 = vadd.f32 0.0, %v6763
        %v6765 = vpop.f32.mrb[0].mxu0
        %6766 = vmatprep.mubr.bf16.mxu0 0
        %6767 = vmatmul.mubr.bf16.gmra.mrb[0].mxu0 %v6617
        %v6768 = vpop.f32.mrb[0].mxu0
        %v6769 = vadd.f32 0.0, %v6768
        %v6770 = vpop.f32.mrb[0].mxu0
        %v6771 = vpop.f32.mrb[0].mxu0
        %v6772 = vadd.f32 0.0, %v6771
        %v6773 = vpop.f32.mrb[0].mxu0
        %6774 = vmatprep.mubr.bf16.mxu0 0
        %6775 = vmatmul.mubr.bf16.gmra.mrb[0].mxu0 %v6620
        %v6776 = vpop.f32.mrb[0].mxu0
        %v6777 = vadd.f32 0.0, %v6776
        %v6778 = vpop.f32.mrb[0].mxu0
        %v6779 = vpop.f32.mrb[0].mxu0
        %v6780 = vadd.f32 0.0, %v6779
        %v6781 = vpop.f32.mrb[0].mxu0
        %6782 = vdwg.mxu0
        %v6783 = vadd.f32 %v6461, %v6657
        %v6784 = vadd.f32 %v6462, %v6660
        %v6785 = vadd.f32 %v6463, %v6665
        %v6786 = vadd.f32 %v6464, %v6668
        %v6787 = vadd.f32 %v6465, %v6673
        %v6788 = vadd.f32 %v6466, %v6676
        %v6789 = vadd.f32 %v6467, %v6681
        %v6790 = vadd.f32 %v6468, %v6684
        %v6791 = vadd.f32 %v6469, %v6689
        %v6792 = vadd.f32 %v6470, %v6692
        %v6793 = vadd.f32 %v6471, %v6697
        %v6794 = vadd.f32 %v6472, %v6700
        %v6795 = vadd.f32 %v6473, %v6705
        %v6796 = vadd.f32 %v6474, %v6708
        %v6797 = vadd.f32 %v6475, %v6713
        %v6798 = vadd.f32 %v6476, %v6716
        %v6799 = vadd.f32 %v6477, %v6721
        %v6800 = vadd.f32 %v6478, %v6724
        %v6801 = vadd.f32 %v6479, %v6729
        %v6802 = vadd.f32 %v6480, %v6732
        %v6803 = vadd.f32 %v6481, %v6737
        %v6804 = vadd.f32 %v6482, %v6740
        %v6805 = vadd.f32 %v6483, %v6745
        %v6806 = vadd.f32 %v6484, %v6748
        %v6807 = vadd.f32 %v6485, %v6753
        %v6808 = vadd.f32 %v6486, %v6756
        %v6809 = vadd.f32 %v6487, %v6761
        %v6810 = vadd.f32 %v6488, %v6764
        %v6811 = vadd.f32 %v6489, %v6769
        %v6812 = vadd.f32 %v6490, %v6772
        %v6813 = vadd.f32 %v6491, %v6777
        %v6814 = vadd.f32 %v6492, %v6780
        %v6815 = vld [vmem:[%s904 + $0x8] sm:$0xff]
        %v6816 = vld [vmem:[%s904 + $0x10] sm:$0xff]
        %v6817 = vld [vmem:[%s904 + $0x28] sm:$0xff]
        %v6818 = vld [vmem:[%s904 + $0x30] sm:$0xff]
        %v6819 = vld [vmem:[%s904 + $0x48] sm:$0xff]
        %v6820 = vld [vmem:[%s904 + $0x50] sm:$0xff]
        %v6821 = vld [vmem:[%s904 + $0x68] sm:$0xff]
        %v6822 = vld [vmem:[%s904 + $0x70] sm:$0xff]
        %v6823 = vld [vmem:[%s904 + $0x88] sm:$0xff]
        %v6824 = vld [vmem:[%s904 + $0x90] sm:$0xff]
        %v6825 = vld [vmem:[%s904 + $0xa8] sm:$0xff]
        %v6826 = vld [vmem:[%s904 + $0xb0] sm:$0xff]
        %v6827 = vld [vmem:[%s904 + $0xc8] sm:$0xff]
        %v6828 = vld [vmem:[%s904 + $0xd0] sm:$0xff]
        %v6829 = vld [vmem:[%s904 + $0xe8] sm:$0xff]
        %v6830 = vld [vmem:[%s904 + $0xf0] sm:$0xff]
        %v6831 = vld [vmem:[%s904 + $0x108] sm:$0xff]
        %v6832 = vld [vmem:[%s904 + $0x110] sm:$0xff]
        %v6833 = vld [vmem:[%s904 + $0x128] sm:$0xff]
        %v6834 = vld [vmem:[%s904 + $0x130] sm:$0xff]
        %v6835 = vld [vmem:[%s904 + $0x148] sm:$0xff]
        %v6836 = vld [vmem:[%s904 + $0x150] sm:$0xff]
        %v6837 = vld [vmem:[%s904 + $0x168] sm:$0xff]
        %v6838 = vld [vmem:[%s904 + $0x170] sm:$0xff]
        %v6839 = vld [vmem:[%s904 + $0x188] sm:$0xff]
        %v6840 = vld [vmem:[%s904 + $0x190] sm:$0xff]
        %v6841 = vld [vmem:[%s904 + $0x1a8] sm:$0xff]
        %v6842 = vld [vmem:[%s904 + $0x1b0] sm:$0xff]
        %v6843 = vld [vmem:[%s904 + $0x1c8] sm:$0xff]
        %v6844 = vld [vmem:[%s904 + $0x1d0] sm:$0xff]
        %v6845 = vld [vmem:[%s904 + $0x1e8] sm:$0xff]
        %v6846 = vld [vmem:[%s904 + $0x1f0] sm:$0xff]
        %v6847 = vpack.c.bf16 %v6816, %v6815
        %v6848 = vpack.c.bf16 %v6818, %v6817
        %v6849 = vpack.c.bf16 %v6820, %v6819
        %v6850 = vpack.c.bf16 %v6822, %v6821
        %v6851 = vpack.c.bf16 %v6824, %v6823
        %v6852 = vpack.c.bf16 %v6826, %v6825
        %v6853 = vpack.c.bf16 %v6828, %v6827
        %v6854 = vpack.c.bf16 %v6830, %v6829
        %v6855 = vpack.c.bf16 %v6832, %v6831
        %v6856 = vpack.c.bf16 %v6834, %v6833
        %v6857 = vpack.c.bf16 %v6836, %v6835
        %v6858 = vpack.c.bf16 %v6838, %v6837
        %v6859 = vpack.c.bf16 %v6840, %v6839
        %v6860 = vpack.c.bf16 %v6842, %v6841
        %v6861 = vpack.c.bf16 %v6844, %v6843
        %v6862 = vpack.c.bf16 %v6846, %v6845
        %s6863 = scalar_lea.vmem [#allocation17], 128
        %v6864 = vld [vmem:[%s6863] sm:$0xf]
        %v6865 = vld [vmem:[%s6863 + $0x4] sm:$0xf]
        %v6866 = vld [vmem:[%s6863 + $0x8] sm:$0xf]
        %v6867 = vld [vmem:[%s6863 + $0xc] sm:$0xf]
        %v6868 = vld [vmem:[%s6863 + $0x10] sm:$0xf]
        %v6869 = vld [vmem:[%s6863 + $0x14] sm:$0xf]
        %v6870 = vld [vmem:[%s6863 + $0x18] sm:$0xf]
        %v6871 = vld [vmem:[%s6863 + $0x1c] sm:$0xf]
        %v6880 = vunpack.c.l.b16 %v6864
        %v6881 = vunpack.c.l.b16 %v6865
        %v6882 = vunpack.c.l.b16 %v6866
        %v6883 = vunpack.c.l.b16 %v6867
        %v6884 = vunpack.c.l.b16 %v6868
        %v6885 = vunpack.c.l.b16 %v6869
        %v6886 = vunpack.c.l.b16 %v6870
        %v6887 = vunpack.c.l.b16 %v6871
        %v6888 = vpack.c.b16 %v6881, %v6880
        %v6889 = vpack.c.b16 %v6883, %v6882
        %v6890 = vpack.c.b16 %v6885, %v6884
        %v6891 = vpack.c.b16 %v6887, %v6886
        %v6897 = vsel %vm895, %v6847, 0
        %v6900 = vsel %vm895, %v6848, 0
        %v6903 = vsel %vm895, %v6849, 0
        %v6906 = vsel %vm895, %v6850, 0
        %v6909 = vsel %vm895, %v6851, 0
        %v6912 = vsel %vm895, %v6852, 0
        %v6915 = vsel %vm895, %v6853, 0
        %v6918 = vsel %vm895, %v6854, 0
        %v6921 = vsel %vm895, %v6855, 0
        %v6924 = vsel %vm895, %v6856, 0
        %v6927 = vsel %vm895, %v6857, 0
        %v6930 = vsel %vm895, %v6858, 0
        %v6933 = vsel %vm895, %v6859, 0
        %v6936 = vsel %vm895, %v6860, 0
        %v6939 = vsel %vm895, %v6861, 0
        %v6942 = vsel %vm895, %v6862, 0
        %6944 = vmatprep.subr.bf16.mxu0 0
        %6945 = vmatpush1.bf16.msra.mxu0 %v6888
        %6946 = vmatprep.subr.bf16.mxu0 0
        %6947 = vmatpush1.bf16.msra.mxu0 %v6889
        %6948 = vmatprep.subr.bf16.mxu0 0
        %6949 = vmatpush1.bf16.msra.mxu0 %v6890
        %6950 = vmatprep.subr.bf16.mxu0 0
        %6951 = vmatpush1.bf16.msra.mxu0 %v6891
        %6952 = vmatprep.subr.bf16.mxu0 0
        %6953 = vmatpush1.bf16.msra.mxu0 0
        %6954 = vmatprep.subr.bf16.mxu0 0
        %6955 = vmatpush1.bf16.msra.mxu0 0
        %6956 = vmatprep.subr.bf16.mxu0 0
        %6957 = vmatpush1.bf16.msra.mxu0 0
        %6958 = vmatprep.subr.bf16.mxu0 0
        %6959 = vmatpush1.bf16.msra.mxu0 0
        %6960 = vmatprep.subr.bf16.mxu0 0
        %6961 = vmatpush1.bf16.msra.mxu0 0
        %6962 = vmatprep.subr.bf16.mxu0 0
        %6963 = vmatpush1.bf16.msra.mxu0 0
        %6964 = vmatprep.subr.bf16.mxu0 0
        %6965 = vmatpush1.bf16.msra.mxu0 0
        %6966 = vmatprep.subr.bf16.mxu0 0
        %6967 = vmatpush1.bf16.msra.mxu0 0
        %6968 = vmatprep.subr.bf16.mxu0 0
        %6969 = vmatpush1.bf16.msra.mxu0 0
        %6970 = vmatprep.subr.bf16.mxu0 0
        %6971 = vmatpush1.bf16.msra.mxu0 0
        %6972 = vmatprep.subr.bf16.mxu0 0
        %6973 = vmatpush1.bf16.msra.mxu0 0
        %6974 = vmatprep.subr.bf16.mxu0 0
        %6975 = vmatpush1.bf16.msra.mxu0 0
        %6976 = vmatprep.mubr.bf16.mxu0 0
        %6977 = vmatmul.mubr.bf16.gmra.mrb[0].mxu0 %v6897
        %v6978 = vpop.f32.mrb[0].mxu0
        %v6979 = vadd.f32 0.0, %v6978
        %v6980 = vpop.f32.mrb[0].mxu0
        %v6981 = vpop.f32.mrb[0].mxu0
        %v6982 = vadd.f32 0.0, %v6981
        %v6983 = vpop.f32.mrb[0].mxu0
        %6984 = vmatprep.mubr.bf16.mxu0 0
        %6985 = vmatmul.mubr.bf16.gmra.mrb[0].mxu0 %v6900
        %v6986 = vpop.f32.mrb[0].mxu0
        %v6987 = vadd.f32 0.0, %v6986
        %v6988 = vpop.f32.mrb[0].mxu0
        %v6989 = vpop.f32.mrb[0].mxu0
        %v6990 = vadd.f32 0.0, %v6989
        %v6991 = vpop.f32.mrb[0].mxu0
        %6992 = vmatprep.mubr.bf16.mxu0 0
        %6993 = vmatmul.mubr.bf16.gmra.mrb[0].mxu0 %v6903
        %v6994 = vpop.f32.mrb[0].mxu0
        %v6995 = vadd.f32 0.0, %v6994
        %v6996 = vpop.f32.mrb[0].mxu0
        %v6997 = vpop.f32.mrb[0].mxu0
        %v6998 = vadd.f32 0.0, %v6997
        %v6999 = vpop.f32.mrb[0].mxu0
        %7000 = vmatprep.mubr.bf16.mxu0 0
        %7001 = vmatmul.mubr.bf16.gmra.mrb[0].mxu0 %v6906
        %v7002 = vpop.f32.mrb[0].mxu0
        %v7003 = vadd.f32 0.0, %v7002
        %v7004 = vpop.f32.mrb[0].mxu0
        %v7005 = vpop.f32.mrb[0].mxu0
        %v7006 = vadd.f32 0.0, %v7005
        %v7007 = vpop.f32.mrb[0].mxu0
        %7008 = vmatprep.mubr.bf16.mxu0 0
        %7009 = vmatmul.mubr.bf16.gmra.mrb[0].mxu0 %v6909
        %v7010 = vpop.f32.mrb[0].mxu0
        %v7011 = vadd.f32 0.0, %v7010
        %v7012 = vpop.f32.mrb[0].mxu0
        %v7013 = vpop.f32.mrb[0].mxu0
        %v7014 = vadd.f32 0.0, %v7013
        %v7015 = vpop.f32.mrb[0].mxu0
        %7016 = vmatprep.mubr.bf16.mxu0 0
        %7017 = vmatmul.mubr.bf16.gmra.mrb[0].mxu0 %v6912
        %v7018 = vpop.f32.mrb[0].mxu0
        %v7019 = vadd.f32 0.0, %v7018
        %v7020 = vpop.f32.mrb[0].mxu0
        %v7021 = vpop.f32.mrb[0].mxu0
        %v7022 = vadd.f32 0.0, %v7021
        %v7023 = vpop.f32.mrb[0].mxu0
        %7024 = vmatprep.mubr.bf16.mxu0 0
        %7025 = vmatmul.mubr.bf16.gmra.mrb[0].mxu0 %v6915
        %v7026 = vpop.f32.mrb[0].mxu0
        %v7027 = vadd.f32 0.0, %v7026
        %v7028 = vpop.f32.mrb[0].mxu0
        %v7029 = vpop.f32.mrb[0].mxu0
        %v7030 = vadd.f32 0.0, %v7029
        %v7031 = vpop.f32.mrb[0].mxu0
        %7032 = vmatprep.mubr.bf16.mxu0 0
        %7033 = vmatmul.mubr.bf16.gmra.mrb[0].mxu0 %v6918
        %v7034 = vpop.f32.mrb[0].mxu0
        %v7035 = vadd.f32 0.0, %v7034
        %v7036 = vpop.f32.mrb[0].mxu0
        %v7037 = vpop.f32.mrb[0].mxu0
        %v7038 = vadd.f32 0.0, %v7037
        %v7039 = vpop.f32.mrb[0].mxu0
        %7040 = vmatprep.mubr.bf16.mxu0 0
        %7041 = vmatmul.mubr.bf16.gmra.mrb[0].mxu0 %v6921
        %v7042 = vpop.f32.mrb[0].mxu0
        %v7043 = vadd.f32 0.0, %v7042
        %v7044 = vpop.f32.mrb[0].mxu0
        %v7045 = vpop.f32.mrb[0].mxu0
        %v7046 = vadd.f32 0.0, %v7045
        %v7047 = vpop.f32.mrb[0].mxu0
        %7048 = vmatprep.mubr.bf16.mxu0 0
        %7049 = vmatmul.mubr.bf16.gmra.mrb[0].mxu0 %v6924
        %v7050 = vpop.f32.mrb[0].mxu0
        %v7051 = vadd.f32 0.0, %v7050
        %v7052 = vpop.f32.mrb[0].mxu0
        %v7053 = vpop.f32.mrb[0].mxu0
        %v7054 = vadd.f32 0.0, %v7053
        %v7055 = vpop.f32.mrb[0].mxu0
        %7056 = vmatprep.mubr.bf16.mxu0 0
        %7057 = vmatmul.mubr.bf16.gmra.mrb[0].mxu0 %v6927
        %v7058 = vpop.f32.mrb[0].mxu0
        %v7059 = vadd.f32 0.0, %v7058
        %v7060 = vpop.f32.mrb[0].mxu0
        %v7061 = vpop.f32.mrb[0].mxu0
        %v7062 = vadd.f32 0.0, %v7061
        %v7063 = vpop.f32.mrb[0].mxu0
        %7064 = vmatprep.mubr.bf16.mxu0 0
        %7065 = vmatmul.mubr.bf16.gmra.mrb[0].mxu0 %v6930
        %v7066 = vpop.f32.mrb[0].mxu0
        %v7067 = vadd.f32 0.0, %v7066
        %v7068 = vpop.f32.mrb[0].mxu0
        %v7069 = vpop.f32.mrb[0].mxu0
        %v7070 = vadd.f32 0.0, %v7069
        %v7071 = vpop.f32.mrb[0].mxu0
        %7072 = vmatprep.mubr.bf16.mxu0 0
        %7073 = vmatmul.mubr.bf16.gmra.mrb[0].mxu0 %v6933
        %v7074 = vpop.f32.mrb[0].mxu0
        %v7075 = vadd.f32 0.0, %v7074
        %v7076 = vpop.f32.mrb[0].mxu0
        %v7077 = vpop.f32.mrb[0].mxu0
        %v7078 = vadd.f32 0.0, %v7077
        %v7079 = vpop.f32.mrb[0].mxu0
        %7080 = vmatprep.mubr.bf16.mxu0 0
        %7081 = vmatmul.mubr.bf16.gmra.mrb[0].mxu0 %v6936
        %v7082 = vpop.f32.mrb[0].mxu0
        %v7083 = vadd.f32 0.0, %v7082
        %v7084 = vpop.f32.mrb[0].mxu0
        %v7085 = vpop.f32.mrb[0].mxu0
        %v7086 = vadd.f32 0.0, %v7085
        %v7087 = vpop.f32.mrb[0].mxu0
        %7088 = vmatprep.mubr.bf16.mxu0 0
        %7089 = vmatmul.mubr.bf16.gmra.mrb[0].mxu0 %v6939
        %v7090 = vpop.f32.mrb[0].mxu0
        %v7091 = vadd.f32 0.0, %v7090
        %v7092 = vpop.f32.mrb[0].mxu0
        %v7093 = vpop.f32.mrb[0].mxu0
        %v7094 = vadd.f32 0.0, %v7093
        %v7095 = vpop.f32.mrb[0].mxu0
        %7096 = vmatprep.mubr.bf16.mxu0 0
        %7097 = vmatmul.mubr.bf16.gmra.mrb[0].mxu0 %v6942
        %v7098 = vpop.f32.mrb[0].mxu0
        %v7099 = vadd.f32 0.0, %v7098
        %v7100 = vpop.f32.mrb[0].mxu0
        %v7101 = vpop.f32.mrb[0].mxu0
        %v7102 = vadd.f32 0.0, %v7101
        %v7103 = vpop.f32.mrb[0].mxu0
        %7104 = vdwg.mxu0
        %v7105 = vadd.f32 %v6783, %v6979
        %v7106 = vadd.f32 %v6784, %v6982
        %v7107 = vadd.f32 %v6785, %v6987
        %v7108 = vadd.f32 %v6786, %v6990
        %v7109 = vadd.f32 %v6787, %v6995
        %v7110 = vadd.f32 %v6788, %v6998
        %v7111 = vadd.f32 %v6789, %v7003
        %v7112 = vadd.f32 %v6790, %v7006
        %v7113 = vadd.f32 %v6791, %v7011
        %v7114 = vadd.f32 %v6792, %v7014
        %v7115 = vadd.f32 %v6793, %v7019
        %v7116 = vadd.f32 %v6794, %v7022
        %v7117 = vadd.f32 %v6795, %v7027
        %v7118 = vadd.f32 %v6796, %v7030
        %v7119 = vadd.f32 %v6797, %v7035
        %v7120 = vadd.f32 %v6798, %v7038
        %v7121 = vadd.f32 %v6799, %v7043
        %v7122 = vadd.f32 %v6800, %v7046
        %v7123 = vadd.f32 %v6801, %v7051
        %v7124 = vadd.f32 %v6802, %v7054
        %v7125 = vadd.f32 %v6803, %v7059
        %v7126 = vadd.f32 %v6804, %v7062
        %v7127 = vadd.f32 %v6805, %v7067
        %v7128 = vadd.f32 %v6806, %v7070
        %v7129 = vadd.f32 %v6807, %v7075
        %v7130 = vadd.f32 %v6808, %v7078
        %v7131 = vadd.f32 %v6809, %v7083
        %v7132 = vadd.f32 %v6810, %v7086
        %v7133 = vadd.f32 %v6811, %v7091
        %v7134 = vadd.f32 %v6812, %v7094
        %v7135 = vadd.f32 %v6813, %v7099
        %v7136 = vadd.f32 %v6814, %v7102
        %v7137 = vld [vmem:[%s904 + $0x9] sm:$0xff]
        %v7138 = vld [vmem:[%s904 + $0x11] sm:$0xff]
        %v7139 = vld [vmem:[%s904 + $0x29] sm:$0xff]
        %v7140 = vld [vmem:[%s904 + $0x31] sm:$0xff]
        %v7141 = vld [vmem:[%s904 + $0x49] sm:$0xff]
        %v7142 = vld [vmem:[%s904 + $0x51] sm:$0xff]
        %v7143 = vld [vmem:[%s904 + $0x69] sm:$0xff]
        %v7144 = vld [vmem:[%s904 + $0x71] sm:$0xff]
        %v7145 = vld [vmem:[%s904 + $0x89] sm:$0xff]
        %v7146 = vld [vmem:[%s904 + $0x91] sm:$0xff]
        %v7147 = vld [vmem:[%s904 + $0xa9] sm:$0xff]
        %v7148 = vld [vmem:[%s904 + $0xb1] sm:$0xff]
        %v7149 = vld [vmem:[%s904 + $0xc9] sm:$0xff]
        %v7150 = vld [vmem:[%s904 + $0xd1] sm:$0xff]
        %v7151 = vld [vmem:[%s904 + $0xe9] sm:$0xff]
        %v7152 = vld [vmem:[%s904 + $0xf1] sm:$0xff]
        %v7153 = vld [vmem:[%s904 + $0x109] sm:$0xff]
        %v7154 = vld [vmem:[%s904 + $0x111] sm:$0xff]
        %v7155 = vld [vmem:[%s904 + $0x129] sm:$0xff]
        %v7156 = vld [vmem:[%s904 + $0x131] sm:$0xff]
        %v7157 = vld [vmem:[%s904 + $0x149] sm:$0xff]
        %v7158 = vld [vmem:[%s904 + $0x151] sm:$0xff]
        %v7159 = vld [vmem:[%s904 + $0x169] sm:$0xff]
        %v7160 = vld [vmem:[%s904 + $0x171] sm:$0xff]
        %v7161 = vld [vmem:[%s904 + $0x189] sm:$0xff]
        %v7162 = vld [vmem:[%s904 + $0x191] sm:$0xff]
        %v7163 = vld [vmem:[%s904 + $0x1a9] sm:$0xff]
        %v7164 = vld [vmem:[%s904 + $0x1b1] sm:$0xff]
        %v7165 = vld [vmem:[%s904 + $0x1c9] sm:$0xff]
        %v7166 = vld [vmem:[%s904 + $0x1d1] sm:$0xff]
        %v7167 = vld [vmem:[%s904 + $0x1e9] sm:$0xff]
        %v7168 = vld [vmem:[%s904 + $0x1f1] sm:$0xff]
        %v7169 = vpack.c.bf16 %v7138, %v7137
        %v7170 = vpack.c.bf16 %v7140, %v7139
        %v7171 = vpack.c.bf16 %v7142, %v7141
        %v7172 = vpack.c.bf16 %v7144, %v7143
        %v7173 = vpack.c.bf16 %v7146, %v7145
        %v7174 = vpack.c.bf16 %v7148, %v7147
        %v7175 = vpack.c.bf16 %v7150, %v7149
        %v7176 = vpack.c.bf16 %v7152, %v7151
        %v7177 = vpack.c.bf16 %v7154, %v7153
        %v7178 = vpack.c.bf16 %v7156, %v7155
        %v7179 = vpack.c.bf16 %v7158, %v7157
        %v7180 = vpack.c.bf16 %v7160, %v7159
        %v7181 = vpack.c.bf16 %v7162, %v7161
        %v7182 = vpack.c.bf16 %v7164, %v7163
        %v7183 = vpack.c.bf16 %v7166, %v7165
        %v7184 = vpack.c.bf16 %v7168, %v7167
        %s7185 = scalar_lea.vmem [#allocation17], 160
        %v7186 = vld [vmem:[%s7185] sm:$0xf]
        %v7187 = vld [vmem:[%s7185 + $0x4] sm:$0xf]
        %v7188 = vld [vmem:[%s7185 + $0x8] sm:$0xf]
        %v7189 = vld [vmem:[%s7185 + $0xc] sm:$0xf]
        %v7190 = vld [vmem:[%s7185 + $0x10] sm:$0xf]
        %v7191 = vld [vmem:[%s7185 + $0x14] sm:$0xf]
        %v7192 = vld [vmem:[%s7185 + $0x18] sm:$0xf]
        %v7193 = vld [vmem:[%s7185 + $0x1c] sm:$0xf]
        %v7202 = vunpack.c.l.b16 %v7186
        %v7203 = vunpack.c.l.b16 %v7187
        %v7204 = vunpack.c.l.b16 %v7188
        %v7205 = vunpack.c.l.b16 %v7189
        %v7206 = vunpack.c.l.b16 %v7190
        %v7207 = vunpack.c.l.b16 %v7191
        %v7208 = vunpack.c.l.b16 %v7192
        %v7209 = vunpack.c.l.b16 %v7193
        %v7210 = vpack.c.b16 %v7203, %v7202
        %v7211 = vpack.c.b16 %v7205, %v7204
        %v7212 = vpack.c.b16 %v7207, %v7206
        %v7213 = vpack.c.b16 %v7209, %v7208
        %v7219 = vsel %vm895, %v7169, 0
        %v7222 = vsel %vm895, %v7170, 0
        %v7225 = vsel %vm895, %v7171, 0
        %v7228 = vsel %vm895, %v7172, 0
        %v7231 = vsel %vm895, %v7173, 0
        %v7234 = vsel %vm895, %v7174, 0
        %v7237 = vsel %vm895, %v7175, 0
        %v7240 = vsel %vm895, %v7176, 0
        %v7243 = vsel %vm895, %v7177, 0
        %v7246 = vsel %vm895, %v7178, 0
        %v7249 = vsel %vm895, %v7179, 0
        %v7252 = vsel %vm895, %v7180, 0
        %v7255 = vsel %vm895, %v7181, 0
        %v7258 = vsel %vm895, %v7182, 0
        %v7261 = vsel %vm895, %v7183, 0
        %v7264 = vsel %vm895, %v7184, 0
        %7266 = vmatprep.subr.bf16.mxu0 0
        %7267 = vmatpush1.bf16.msra.mxu0 %v7210
        %7268 = vmatprep.subr.bf16.mxu0 0
        %7269 = vmatpush1.bf16.msra.mxu0 %v7211
        %7270 = vmatprep.subr.bf16.mxu0 0
        %7271 = vmatpush1.bf16.msra.mxu0 %v7212
        %7272 = vmatprep.subr.bf16.mxu0 0
        %7273 = vmatpush1.bf16.msra.mxu0 %v7213
        %7274 = vmatprep.subr.bf16.mxu0 0
        %7275 = vmatpush1.bf16.msra.mxu0 0
        %7276 = vmatprep.subr.bf16.mxu0 0
        %7277 = vmatpush1.bf16.msra.mxu0 0
        %7278 = vmatprep.subr.bf16.mxu0 0
        %7279 = vmatpush1.bf16.msra.mxu0 0
        %7280 = vmatprep.subr.bf16.mxu0 0
        %7281 = vmatpush1.bf16.msra.mxu0 0
        %7282 = vmatprep.subr.bf16.mxu0 0
        %7283 = vmatpush1.bf16.msra.mxu0 0
        %7284 = vmatprep.subr.bf16.mxu0 0
        %7285 = vmatpush1.bf16.msra.mxu0 0
        %7286 = vmatprep.subr.bf16.mxu0 0
        %7287 = vmatpush1.bf16.msra.mxu0 0
        %7288 = vmatprep.subr.bf16.mxu0 0
        %7289 = vmatpush1.bf16.msra.mxu0 0
        %7290 = vmatprep.subr.bf16.mxu0 0
        %7291 = vmatpush1.bf16.msra.mxu0 0
        %7292 = vmatprep.subr.bf16.mxu0 0
        %7293 = vmatpush1.bf16.msra.mxu0 0
        %7294 = vmatprep.subr.bf16.mxu0 0
        %7295 = vmatpush1.bf16.msra.mxu0 0
        %7296 = vmatprep.subr.bf16.mxu0 0
        %7297 = vmatpush1.bf16.msra.mxu0 0
        %7298 = vmatprep.mubr.bf16.mxu0 0
        %7299 = vmatmul.mubr.bf16.gmra.mrb[0].mxu0 %v7219
        %v7300 = vpop.f32.mrb[0].mxu0
        %v7301 = vadd.f32 0.0, %v7300
        %v7302 = vpop.f32.mrb[0].mxu0
        %v7303 = vpop.f32.mrb[0].mxu0
        %v7304 = vadd.f32 0.0, %v7303
        %v7305 = vpop.f32.mrb[0].mxu0
        %7306 = vmatprep.mubr.bf16.mxu0 0
        %7307 = vmatmul.mubr.bf16.gmra.mrb[0].mxu0 %v7222
        %v7308 = vpop.f32.mrb[0].mxu0
        %v7309 = vadd.f32 0.0, %v7308
        %v7310 = vpop.f32.mrb[0].mxu0
        %v7311 = vpop.f32.mrb[0].mxu0
        %v7312 = vadd.f32 0.0, %v7311
        %v7313 = vpop.f32.mrb[0].mxu0
        %7314 = vmatprep.mubr.bf16.mxu0 0
        %7315 = vmatmul.mubr.bf16.gmra.mrb[0].mxu0 %v7225
        %v7316 = vpop.f32.mrb[0].mxu0
        %v7317 = vadd.f32 0.0, %v7316
        %v7318 = vpop.f32.mrb[0].mxu0
        %v7319 = vpop.f32.mrb[0].mxu0
        %v7320 = vadd.f32 0.0, %v7319
        %v7321 = vpop.f32.mrb[0].mxu0
        %7322 = vmatprep.mubr.bf16.mxu0 0
        %7323 = vmatmul.mubr.bf16.gmra.mrb[0].mxu0 %v7228
        %v7324 = vpop.f32.mrb[0].mxu0
        %v7325 = vadd.f32 0.0, %v7324
        %v7326 = vpop.f32.mrb[0].mxu0
        %v7327 = vpop.f32.mrb[0].mxu0
        %v7328 = vadd.f32 0.0, %v7327
        %v7329 = vpop.f32.mrb[0].mxu0
        %7330 = vmatprep.mubr.bf16.mxu0 0
        %7331 = vmatmul.mubr.bf16.gmra.mrb[0].mxu0 %v7231
        %v7332 = vpop.f32.mrb[0].mxu0
        %v7333 = vadd.f32 0.0, %v7332
        %v7334 = vpop.f32.mrb[0].mxu0
        %v7335 = vpop.f32.mrb[0].mxu0
        %v7336 = vadd.f32 0.0, %v7335
        %v7337 = vpop.f32.mrb[0].mxu0
        %7338 = vmatprep.mubr.bf16.mxu0 0
        %7339 = vmatmul.mubr.bf16.gmra.mrb[0].mxu0 %v7234
        %v7340 = vpop.f32.mrb[0].mxu0
        %v7341 = vadd.f32 0.0, %v7340
        %v7342 = vpop.f32.mrb[0].mxu0
        %v7343 = vpop.f32.mrb[0].mxu0
        %v7344 = vadd.f32 0.0, %v7343
        %v7345 = vpop.f32.mrb[0].mxu0
        %7346 = vmatprep.mubr.bf16.mxu0 0
        %7347 = vmatmul.mubr.bf16.gmra.mrb[0].mxu0 %v7237
        %v7348 = vpop.f32.mrb[0].mxu0
        %v7349 = vadd.f32 0.0, %v7348
        %v7350 = vpop.f32.mrb[0].mxu0
        %v7351 = vpop.f32.mrb[0].mxu0
        %v7352 = vadd.f32 0.0, %v7351
        %v7353 = vpop.f32.mrb[0].mxu0
        %7354 = vmatprep.mubr.bf16.mxu0 0
        %7355 = vmatmul.mubr.bf16.gmra.mrb[0].mxu0 %v7240
        %v7356 = vpop.f32.mrb[0].mxu0
        %v7357 = vadd.f32 0.0, %v7356
        %v7358 = vpop.f32.mrb[0].mxu0
        %v7359 = vpop.f32.mrb[0].mxu0
        %v7360 = vadd.f32 0.0, %v7359
        %v7361 = vpop.f32.mrb[0].mxu0
        %7362 = vmatprep.mubr.bf16.mxu0 0
        %7363 = vmatmul.mubr.bf16.gmra.mrb[0].mxu0 %v7243
        %v7364 = vpop.f32.mrb[0].mxu0
        %v7365 = vadd.f32 0.0, %v7364
        %v7366 = vpop.f32.mrb[0].mxu0
        %v7367 = vpop.f32.mrb[0].mxu0
        %v7368 = vadd.f32 0.0, %v7367
        %v7369 = vpop.f32.mrb[0].mxu0
        %7370 = vmatprep.mubr.bf16.mxu0 0
        %7371 = vmatmul.mubr.bf16.gmra.mrb[0].mxu0 %v7246
        %v7372 = vpop.f32.mrb[0].mxu0
        %v7373 = vadd.f32 0.0, %v7372
        %v7374 = vpop.f32.mrb[0].mxu0
        %v7375 = vpop.f32.mrb[0].mxu0
        %v7376 = vadd.f32 0.0, %v7375
        %v7377 = vpop.f32.mrb[0].mxu0
        %7378 = vmatprep.mubr.bf16.mxu0 0
        %7379 = vmatmul.mubr.bf16.gmra.mrb[0].mxu0 %v7249
        %v7380 = vpop.f32.mrb[0].mxu0
        %v7381 = vadd.f32 0.0, %v7380
        %v7382 = vpop.f32.mrb[0].mxu0
        %v7383 = vpop.f32.mrb[0].mxu0
        %v7384 = vadd.f32 0.0, %v7383
        %v7385 = vpop.f32.mrb[0].mxu0
        %7386 = vmatprep.mubr.bf16.mxu0 0
        %7387 = vmatmul.mubr.bf16.gmra.mrb[0].mxu0 %v7252
        %v7388 = vpop.f32.mrb[0].mxu0
        %v7389 = vadd.f32 0.0, %v7388
        %v7390 = vpop.f32.mrb[0].mxu0
        %v7391 = vpop.f32.mrb[0].mxu0
        %v7392 = vadd.f32 0.0, %v7391
        %v7393 = vpop.f32.mrb[0].mxu0
        %7394 = vmatprep.mubr.bf16.mxu0 0
        %7395 = vmatmul.mubr.bf16.gmra.mrb[0].mxu0 %v7255
        %v7396 = vpop.f32.mrb[0].mxu0
        %v7397 = vadd.f32 0.0, %v7396
        %v7398 = vpop.f32.mrb[0].mxu0
        %v7399 = vpop.f32.mrb[0].mxu0
        %v7400 = vadd.f32 0.0, %v7399
        %v7401 = vpop.f32.mrb[0].mxu0
        %7402 = vmatprep.mubr.bf16.mxu0 0
        %7403 = vmatmul.mubr.bf16.gmra.mrb[0].mxu0 %v7258
        %v7404 = vpop.f32.mrb[0].mxu0
        %v7405 = vadd.f32 0.0, %v7404
        %v7406 = vpop.f32.mrb[0].mxu0
        %v7407 = vpop.f32.mrb[0].mxu0
        %v7408 = vadd.f32 0.0, %v7407
        %v7409 = vpop.f32.mrb[0].mxu0
        %7410 = vmatprep.mubr.bf16.mxu0 0
        %7411 = vmatmul.mubr.bf16.gmra.mrb[0].mxu0 %v7261
        %v7412 = vpop.f32.mrb[0].mxu0
        %v7413 = vadd.f32 0.0, %v7412
        %v7414 = vpop.f32.mrb[0].mxu0
        %v7415 = vpop.f32.mrb[0].mxu0
        %v7416 = vadd.f32 0.0, %v7415
        %v7417 = vpop.f32.mrb[0].mxu0
        %7418 = vmatprep.mubr.bf16.mxu0 0
        %7419 = vmatmul.mubr.bf16.gmra.mrb[0].mxu0 %v7264
        %v7420 = vpop.f32.mrb[0].mxu0
        %v7421 = vadd.f32 0.0, %v7420
        %v7422 = vpop.f32.mrb[0].mxu0
        %v7423 = vpop.f32.mrb[0].mxu0
        %v7424 = vadd.f32 0.0, %v7423
        %v7425 = vpop.f32.mrb[0].mxu0
        %7426 = vdwg.mxu0
        %v7427 = vadd.f32 %v7105, %v7301
        %v7428 = vadd.f32 %v7106, %v7304
        %v7429 = vadd.f32 %v7107, %v7309
        %v7430 = vadd.f32 %v7108, %v7312
        %v7431 = vadd.f32 %v7109, %v7317
        %v7432 = vadd.f32 %v7110, %v7320
        %v7433 = vadd.f32 %v7111, %v7325
        %v7434 = vadd.f32 %v7112, %v7328
        %v7435 = vadd.f32 %v7113, %v7333
        %v7436 = vadd.f32 %v7114, %v7336
        %v7437 = vadd.f32 %v7115, %v7341
        %v7438 = vadd.f32 %v7116, %v7344
        %v7439 = vadd.f32 %v7117, %v7349
        %v7440 = vadd.f32 %v7118, %v7352
        %v7441 = vadd.f32 %v7119, %v7357
        %v7442 = vadd.f32 %v7120, %v7360
        %v7443 = vadd.f32 %v7121, %v7365
        %v7444 = vadd.f32 %v7122, %v7368
        %v7445 = vadd.f32 %v7123, %v7373
        %v7446 = vadd.f32 %v7124, %v7376
        %v7447 = vadd.f32 %v7125, %v7381
        %v7448 = vadd.f32 %v7126, %v7384
        %v7449 = vadd.f32 %v7127, %v7389
        %v7450 = vadd.f32 %v7128, %v7392
        %v7451 = vadd.f32 %v7129, %v7397
        %v7452 = vadd.f32 %v7130, %v7400
        %v7453 = vadd.f32 %v7131, %v7405
        %v7454 = vadd.f32 %v7132, %v7408
        %v7455 = vadd.f32 %v7133, %v7413
        %v7456 = vadd.f32 %v7134, %v7416
        %v7457 = vadd.f32 %v7135, %v7421
        %v7458 = vadd.f32 %v7136, %v7424
        %s7459 = scalar_lea.vmem [#allocation4], 64
        %v7460 = vld [vmem:[%s7459 + $0x7] sm:$0xff]
        %v7461 = vld [vmem:[%s7459 + $0xf] sm:$0xff]
        %v7462 = vld [vmem:[%s7459 + $0x27] sm:$0xff]
        %v7463 = vld [vmem:[%s7459 + $0x2f] sm:$0xff]
        %v7464 = vld [vmem:[%s7459 + $0x47] sm:$0xff]
        %v7465 = vld [vmem:[%s7459 + $0x4f] sm:$0xff]
        %v7466 = vld [vmem:[%s7459 + $0x67] sm:$0xff]
        %v7467 = vld [vmem:[%s7459 + $0x6f] sm:$0xff]
        %v7468 = vld [vmem:[%s7459 + $0x87] sm:$0xff]
        %v7469 = vld [vmem:[%s7459 + $0x8f] sm:$0xff]
        %v7470 = vld [vmem:[%s7459 + $0xa7] sm:$0xff]
        %v7471 = vld [vmem:[%s7459 + $0xaf] sm:$0xff]
        %v7472 = vld [vmem:[%s7459 + $0xc7] sm:$0xff]
        %v7473 = vld [vmem:[%s7459 + $0xcf] sm:$0xff]
        %v7474 = vld [vmem:[%s7459 + $0xe7] sm:$0xff]
        %v7475 = vld [vmem:[%s7459 + $0xef] sm:$0xff]
        %v7476 = vld [vmem:[%s7459 + $0x107] sm:$0xff]
        %v7477 = vld [vmem:[%s7459 + $0x10f] sm:$0xff]
        %v7478 = vld [vmem:[%s7459 + $0x127] sm:$0xff]
        %v7479 = vld [vmem:[%s7459 + $0x12f] sm:$0xff]
        %v7480 = vld [vmem:[%s7459 + $0x147] sm:$0xff]
        %v7481 = vld [vmem:[%s7459 + $0x14f] sm:$0xff]
        %v7482 = vld [vmem:[%s7459 + $0x167] sm:$0xff]
        %v7483 = vld [vmem:[%s7459 + $0x16f] sm:$0xff]
        %v7484 = vld [vmem:[%s7459 + $0x187] sm:$0xff]
        %v7485 = vld [vmem:[%s7459 + $0x18f] sm:$0xff]
        %v7486 = vld [vmem:[%s7459 + $0x1a7] sm:$0xff]
        %v7487 = vld [vmem:[%s7459 + $0x1af] sm:$0xff]
        %v7488 = vld [vmem:[%s7459 + $0x1c7] sm:$0xff]
        %v7489 = vld [vmem:[%s7459 + $0x1cf] sm:$0xff]
        %v7490 = vld [vmem:[%s7459 + $0x1e7] sm:$0xff]
        %v7491 = vld [vmem:[%s7459 + $0x1ef] sm:$0xff]
        %v7492 = vpack.c.bf16 %v7461, %v7460
        %v7493 = vpack.c.bf16 %v7463, %v7462
        %v7494 = vpack.c.bf16 %v7465, %v7464
        %v7495 = vpack.c.bf16 %v7467, %v7466
        %v7496 = vpack.c.bf16 %v7469, %v7468
        %v7497 = vpack.c.bf16 %v7471, %v7470
        %v7498 = vpack.c.bf16 %v7473, %v7472
        %v7499 = vpack.c.bf16 %v7475, %v7474
        %v7500 = vpack.c.bf16 %v7477, %v7476
        %v7501 = vpack.c.bf16 %v7479, %v7478
        %v7502 = vpack.c.bf16 %v7481, %v7480
        %v7503 = vpack.c.bf16 %v7483, %v7482
        %v7504 = vpack.c.bf16 %v7485, %v7484
        %v7505 = vpack.c.bf16 %v7487, %v7486
        %v7506 = vpack.c.bf16 %v7489, %v7488
        %v7507 = vpack.c.bf16 %v7491, %v7490
        %s7508 = scalar_lea.vmem [#allocation17], 192
        %v7509 = vld [vmem:[%s7508] sm:$0xf]
        %v7510 = vld [vmem:[%s7508 + $0x4] sm:$0xf]
        %v7511 = vld [vmem:[%s7508 + $0x8] sm:$0xf]
        %v7512 = vld [vmem:[%s7508 + $0xc] sm:$0xf]
        %v7513 = vld [vmem:[%s7508 + $0x10] sm:$0xf]
        %v7514 = vld [vmem:[%s7508 + $0x14] sm:$0xf]
        %v7515 = vld [vmem:[%s7508 + $0x18] sm:$0xf]
        %v7516 = vld [vmem:[%s7508 + $0x1c] sm:$0xf]
        %v7525 = vunpack.c.l.b16 %v7509
        %v7526 = vunpack.c.l.b16 %v7510
        %v7527 = vunpack.c.l.b16 %v7511
        %v7528 = vunpack.c.l.b16 %v7512
        %v7529 = vunpack.c.l.b16 %v7513
        %v7530 = vunpack.c.l.b16 %v7514
        %v7531 = vunpack.c.l.b16 %v7515
        %v7532 = vunpack.c.l.b16 %v7516
        %v7533 = vpack.c.b16 %v7526, %v7525
        %v7534 = vpack.c.b16 %v7528, %v7527
        %v7535 = vpack.c.b16 %v7530, %v7529
        %v7536 = vpack.c.b16 %v7532, %v7531
        %v7542 = vsel %vm895, %v7492, 0
        %v7545 = vsel %vm895, %v7493, 0
        %v7548 = vsel %vm895, %v7494, 0
        %v7551 = vsel %vm895, %v7495, 0
        %v7554 = vsel %vm895, %v7496, 0
        %v7557 = vsel %vm895, %v7497, 0
        %v7560 = vsel %vm895, %v7498, 0
        %v7563 = vsel %vm895, %v7499, 0
        %v7566 = vsel %vm895, %v7500, 0
        %v7569 = vsel %vm895, %v7501, 0
        %v7572 = vsel %vm895, %v7502, 0
        %v7575 = vsel %vm895, %v7503, 0
        %v7578 = vsel %vm895, %v7504, 0
        %v7581 = vsel %vm895, %v7505, 0
        %v7584 = vsel %vm895, %v7506, 0
        %v7587 = vsel %vm895, %v7507, 0
        %7589 = vmatprep.subr.bf16.mxu0 0
        %7590 = vmatpush1.bf16.msra.mxu0 %v7533
        %7591 = vmatprep.subr.bf16.mxu0 0
        %7592 = vmatpush1.bf16.msra.mxu0 %v7534
        %7593 = vmatprep.subr.bf16.mxu0 0
        %7594 = vmatpush1.bf16.msra.mxu0 %v7535
        %7595 = vmatprep.subr.bf16.mxu0 0
        %7596 = vmatpush1.bf16.msra.mxu0 %v7536
        %7597 = vmatprep.subr.bf16.mxu0 0
        %7598 = vmatpush1.bf16.msra.mxu0 0
        %7599 = vmatprep.subr.bf16.mxu0 0
        %7600 = vmatpush1.bf16.msra.mxu0 0
        %7601 = vmatprep.subr.bf16.mxu0 0
        %7602 = vmatpush1.bf16.msra.mxu0 0
        %7603 = vmatprep.subr.bf16.mxu0 0
        %7604 = vmatpush1.bf16.msra.mxu0 0
        %7605 = vmatprep.subr.bf16.mxu0 0
        %7606 = vmatpush1.bf16.msra.mxu0 0
        %7607 = vmatprep.subr.bf16.mxu0 0
        %7608 = vmatpush1.bf16.msra.mxu0 0
        %7609 = vmatprep.subr.bf16.mxu0 0
        %7610 = vmatpush1.bf16.msra.mxu0 0
        %7611 = vmatprep.subr.bf16.mxu0 0
        %7612 = vmatpush1.bf16.msra.mxu0 0
        %7613 = vmatprep.subr.bf16.mxu0 0
        %7614 = vmatpush1.bf16.msra.mxu0 0
        %7615 = vmatprep.subr.bf16.mxu0 0
        %7616 = vmatpush1.bf16.msra.mxu0 0
        %7617 = vmatprep.subr.bf16.mxu0 0
        %7618 = vmatpush1.bf16.msra.mxu0 0
        %7619 = vmatprep.subr.bf16.mxu0 0
        %7620 = vmatpush1.bf16.msra.mxu0 0
        %7621 = vmatprep.mubr.bf16.mxu0 0
        %7622 = vmatmul.mubr.bf16.gmra.mrb[0].mxu0 %v7542
        %v7623 = vpop.f32.mrb[0].mxu0
        %v7624 = vadd.f32 0.0, %v7623
        %v7625 = vpop.f32.mrb[0].mxu0
        %v7626 = vpop.f32.mrb[0].mxu0
        %v7627 = vadd.f32 0.0, %v7626
        %v7628 = vpop.f32.mrb[0].mxu0
        %7629 = vmatprep.mubr.bf16.mxu0 0
        %7630 = vmatmul.mubr.bf16.gmra.mrb[0].mxu0 %v7545
        %v7631 = vpop.f32.mrb[0].mxu0
        %v7632 = vadd.f32 0.0, %v7631
        %v7633 = vpop.f32.mrb[0].mxu0
        %v7634 = vpop.f32.mrb[0].mxu0
        %v7635 = vadd.f32 0.0, %v7634
        %v7636 = vpop.f32.mrb[0].mxu0
        %7637 = vmatprep.mubr.bf16.mxu0 0
        %7638 = vmatmul.mubr.bf16.gmra.mrb[0].mxu0 %v7548
        %v7639 = vpop.f32.mrb[0].mxu0
        %v7640 = vadd.f32 0.0, %v7639
        %v7641 = vpop.f32.mrb[0].mxu0
        %v7642 = vpop.f32.mrb[0].mxu0
        %v7643 = vadd.f32 0.0, %v7642
        %v7644 = vpop.f32.mrb[0].mxu0
        %7645 = vmatprep.mubr.bf16.mxu0 0
        %7646 = vmatmul.mubr.bf16.gmra.mrb[0].mxu0 %v7551
        %v7647 = vpop.f32.mrb[0].mxu0
        %v7648 = vadd.f32 0.0, %v7647
        %v7649 = vpop.f32.mrb[0].mxu0
        %v7650 = vpop.f32.mrb[0].mxu0
        %v7651 = vadd.f32 0.0, %v7650
        %v7652 = vpop.f32.mrb[0].mxu0
        %7653 = vmatprep.mubr.bf16.mxu0 0
        %7654 = vmatmul.mubr.bf16.gmra.mrb[0].mxu0 %v7554
        %v7655 = vpop.f32.mrb[0].mxu0
        %v7656 = vadd.f32 0.0, %v7655
        %v7657 = vpop.f32.mrb[0].mxu0
        %v7658 = vpop.f32.mrb[0].mxu0
        %v7659 = vadd.f32 0.0, %v7658
        %v7660 = vpop.f32.mrb[0].mxu0
        %7661 = vmatprep.mubr.bf16.mxu0 0
        %7662 = vmatmul.mubr.bf16.gmra.mrb[0].mxu0 %v7557
        %v7663 = vpop.f32.mrb[0].mxu0
        %v7664 = vadd.f32 0.0, %v7663
        %v7665 = vpop.f32.mrb[0].mxu0
        %v7666 = vpop.f32.mrb[0].mxu0
        %v7667 = vadd.f32 0.0, %v7666
        %v7668 = vpop.f32.mrb[0].mxu0
        %7669 = vmatprep.mubr.bf16.mxu0 0
        %7670 = vmatmul.mubr.bf16.gmra.mrb[0].mxu0 %v7560
        %v7671 = vpop.f32.mrb[0].mxu0
        %v7672 = vadd.f32 0.0, %v7671
        %v7673 = vpop.f32.mrb[0].mxu0
        %v7674 = vpop.f32.mrb[0].mxu0
        %v7675 = vadd.f32 0.0, %v7674
        %v7676 = vpop.f32.mrb[0].mxu0
        %7677 = vmatprep.mubr.bf16.mxu0 0
        %7678 = vmatmul.mubr.bf16.gmra.mrb[0].mxu0 %v7563
        %v7679 = vpop.f32.mrb[0].mxu0
        %v7680 = vadd.f32 0.0, %v7679
        %v7681 = vpop.f32.mrb[0].mxu0
        %v7682 = vpop.f32.mrb[0].mxu0
        %v7683 = vadd.f32 0.0, %v7682
        %v7684 = vpop.f32.mrb[0].mxu0
        %7685 = vmatprep.mubr.bf16.mxu0 0
        %7686 = vmatmul.mubr.bf16.gmra.mrb[0].mxu0 %v7566
        %v7687 = vpop.f32.mrb[0].mxu0
        %v7688 = vadd.f32 0.0, %v7687
        %v7689 = vpop.f32.mrb[0].mxu0
        %v7690 = vpop.f32.mrb[0].mxu0
        %v7691 = vadd.f32 0.0, %v7690
        %v7692 = vpop.f32.mrb[0].mxu0
        %7693 = vmatprep.mubr.bf16.mxu0 0
        %7694 = vmatmul.mubr.bf16.gmra.mrb[0].mxu0 %v7569
        %v7695 = vpop.f32.mrb[0].mxu0
        %v7696 = vadd.f32 0.0, %v7695
        %v7697 = vpop.f32.mrb[0].mxu0
        %v7698 = vpop.f32.mrb[0].mxu0
        %v7699 = vadd.f32 0.0, %v7698
        %v7700 = vpop.f32.mrb[0].mxu0
        %7701 = vmatprep.mubr.bf16.mxu0 0
        %7702 = vmatmul.mubr.bf16.gmra.mrb[0].mxu0 %v7572
        %v7703 = vpop.f32.mrb[0].mxu0
        %v7704 = vadd.f32 0.0, %v7703
        %v7705 = vpop.f32.mrb[0].mxu0
        %v7706 = vpop.f32.mrb[0].mxu0
        %v7707 = vadd.f32 0.0, %v7706
        %v7708 = vpop.f32.mrb[0].mxu0
        %7709 = vmatprep.mubr.bf16.mxu0 0
        %7710 = vmatmul.mubr.bf16.gmra.mrb[0].mxu0 %v7575
        %v7711 = vpop.f32.mrb[0].mxu0
        %v7712 = vadd.f32 0.0, %v7711
        %v7713 = vpop.f32.mrb[0].mxu0
        %v7714 = vpop.f32.mrb[0].mxu0
        %v7715 = vadd.f32 0.0, %v7714
        %v7716 = vpop.f32.mrb[0].mxu0
        %7717 = vmatprep.mubr.bf16.mxu0 0
        %7718 = vmatmul.mubr.bf16.gmra.mrb[0].mxu0 %v7578
        %v7719 = vpop.f32.mrb[0].mxu0
        %v7720 = vadd.f32 0.0, %v7719
        %v7721 = vpop.f32.mrb[0].mxu0
        %v7722 = vpop.f32.mrb[0].mxu0
        %v7723 = vadd.f32 0.0, %v7722
        %v7724 = vpop.f32.mrb[0].mxu0
        %7725 = vmatprep.mubr.bf16.mxu0 0
        %7726 = vmatmul.mubr.bf16.gmra.mrb[0].mxu0 %v7581
        %v7727 = vpop.f32.mrb[0].mxu0
        %v7728 = vadd.f32 0.0, %v7727
        %v7729 = vpop.f32.mrb[0].mxu0
        %v7730 = vpop.f32.mrb[0].mxu0
        %v7731 = vadd.f32 0.0, %v7730
        %v7732 = vpop.f32.mrb[0].mxu0
        %7733 = vmatprep.mubr.bf16.mxu0 0
        %7734 = vmatmul.mubr.bf16.gmra.mrb[0].mxu0 %v7584
        %v7735 = vpop.f32.mrb[0].mxu0
        %v7736 = vadd.f32 0.0, %v7735
        %v7737 = vpop.f32.mrb[0].mxu0
        %v7738 = vpop.f32.mrb[0].mxu0
        %v7739 = vadd.f32 0.0, %v7738
        %v7740 = vpop.f32.mrb[0].mxu0
        %7741 = vmatprep.mubr.bf16.mxu0 0
        %7742 = vmatmul.mubr.bf16.gmra.mrb[0].mxu0 %v7587
        %v7743 = vpop.f32.mrb[0].mxu0
        %v7744 = vadd.f32 0.0, %v7743
        %v7745 = vpop.f32.mrb[0].mxu0
        %v7746 = vpop.f32.mrb[0].mxu0
        %v7747 = vadd.f32 0.0, %v7746
        %v7748 = vpop.f32.mrb[0].mxu0
        %7749 = vdwg.mxu0
        %v7750 = vadd.f32 %v7427, %v7624
        %v7751 = vadd.f32 %v7428, %v7627
        %v7752 = vadd.f32 %v7429, %v7632
        %v7753 = vadd.f32 %v7430, %v7635
        %v7754 = vadd.f32 %v7431, %v7640
        %v7755 = vadd.f32 %v7432, %v7643
        %v7756 = vadd.f32 %v7433, %v7648
        %v7757 = vadd.f32 %v7434, %v7651
        %v7758 = vadd.f32 %v7435, %v7656
        %v7759 = vadd.f32 %v7436, %v7659
        %v7760 = vadd.f32 %v7437, %v7664
        %v7761 = vadd.f32 %v7438, %v7667
        %v7762 = vadd.f32 %v7439, %v7672
        %v7763 = vadd.f32 %v7440, %v7675
        %v7764 = vadd.f32 %v7441, %v7680
        %v7765 = vadd.f32 %v7442, %v7683
        %v7766 = vadd.f32 %v7443, %v7688
        %v7767 = vadd.f32 %v7444, %v7691
        %v7768 = vadd.f32 %v7445, %v7696
        %v7769 = vadd.f32 %v7446, %v7699
        %v7770 = vadd.f32 %v7447, %v7704
        %v7771 = vadd.f32 %v7448, %v7707
        %v7772 = vadd.f32 %v7449, %v7712
        %v7773 = vadd.f32 %v7450, %v7715
        %v7774 = vadd.f32 %v7451, %v7720
        %v7775 = vadd.f32 %v7452, %v7723
        %v7776 = vadd.f32 %v7453, %v7728
        %v7777 = vadd.f32 %v7454, %v7731
        %v7778 = vadd.f32 %v7455, %v7736
        %v7779 = vadd.f32 %v7456, %v7739
        %v7780 = vadd.f32 %v7457, %v7744
        %v7781 = vadd.f32 %v7458, %v7747
        %v7782 = vld [vmem:[%s7459 + $0x8] sm:$0xff]
        %v7783 = vld [vmem:[%s7459 + $0x10] sm:$0xff]
        %v7784 = vld [vmem:[%s7459 + $0x28] sm:$0xff]
        %v7785 = vld [vmem:[%s7459 + $0x30] sm:$0xff]
        %v7786 = vld [vmem:[%s7459 + $0x48] sm:$0xff]
        %v7787 = vld [vmem:[%s7459 + $0x50] sm:$0xff]
        %v7788 = vld [vmem:[%s7459 + $0x68] sm:$0xff]
        %v7789 = vld [vmem:[%s7459 + $0x70] sm:$0xff]
        %v7790 = vld [vmem:[%s7459 + $0x88] sm:$0xff]
        %v7791 = vld [vmem:[%s7459 + $0x90] sm:$0xff]
        %v7792 = vld [vmem:[%s7459 + $0xa8] sm:$0xff]
        %v7793 = vld [vmem:[%s7459 + $0xb0] sm:$0xff]
        %v7794 = vld [vmem:[%s7459 + $0xc8] sm:$0xff]
        %v7795 = vld [vmem:[%s7459 + $0xd0] sm:$0xff]
        %v7796 = vld [vmem:[%s7459 + $0xe8] sm:$0xff]
        %v7797 = vld [vmem:[%s7459 + $0xf0] sm:$0xff]
        %v7798 = vld [vmem:[%s7459 + $0x108] sm:$0xff]
        %v7799 = vld [vmem:[%s7459 + $0x110] sm:$0xff]
        %v7800 = vld [vmem:[%s7459 + $0x128] sm:$0xff]
        %v7801 = vld [vmem:[%s7459 + $0x130] sm:$0xff]
        %v7802 = vld [vmem:[%s7459 + $0x148] sm:$0xff]
        %v7803 = vld [vmem:[%s7459 + $0x150] sm:$0xff]
        %v7804 = vld [vmem:[%s7459 + $0x168] sm:$0xff]
        %v7805 = vld [vmem:[%s7459 + $0x170] sm:$0xff]
        %v7806 = vld [vmem:[%s7459 + $0x188] sm:$0xff]
        %v7807 = vld [vmem:[%s7459 + $0x190] sm:$0xff]
        %v7808 = vld [vmem:[%s7459 + $0x1a8] sm:$0xff]
        %v7809 = vld [vmem:[%s7459 + $0x1b0] sm:$0xff]
        %v7810 = vld [vmem:[%s7459 + $0x1c8] sm:$0xff]
        %v7811 = vld [vmem:[%s7459 + $0x1d0] sm:$0xff]
        %v7812 = vld [vmem:[%s7459 + $0x1e8] sm:$0xff]
        %v7813 = vld [vmem:[%s7459 + $0x1f0] sm:$0xff]
        %v7814 = vpack.c.bf16 %v7783, %v7782
        %v7815 = vpack.c.bf16 %v7785, %v7784
        %v7816 = vpack.c.bf16 %v7787, %v7786
        %v7817 = vpack.c.bf16 %v7789, %v7788
        %v7818 = vpack.c.bf16 %v7791, %v7790
        %v7819 = vpack.c.bf16 %v7793, %v7792
        %v7820 = vpack.c.bf16 %v7795, %v7794
        %v7821 = vpack.c.bf16 %v7797, %v7796
        %v7822 = vpack.c.bf16 %v7799, %v7798
        %v7823 = vpack.c.bf16 %v7801, %v7800
        %v7824 = vpack.c.bf16 %v7803, %v7802
        %v7825 = vpack.c.bf16 %v7805, %v7804
        %v7826 = vpack.c.bf16 %v7807, %v7806
        %v7827 = vpack.c.bf16 %v7809, %v7808
        %v7828 = vpack.c.bf16 %v7811, %v7810
        %v7829 = vpack.c.bf16 %v7813, %v7812
        %s7830 = scalar_lea.vmem [#allocation17], 224
        %v7831 = vld [vmem:[%s7830] sm:$0xf]
        %v7832 = vld [vmem:[%s7830 + $0x4] sm:$0xf]
        %v7833 = vld [vmem:[%s7830 + $0x8] sm:$0xf]
        %v7834 = vld [vmem:[%s7830 + $0xc] sm:$0xf]
        %v7835 = vld [vmem:[%s7830 + $0x10] sm:$0xf]
        %v7836 = vld [vmem:[%s7830 + $0x14] sm:$0xf]
        %v7837 = vld [vmem:[%s7830 + $0x18] sm:$0xf]
        %v7838 = vld [vmem:[%s7830 + $0x1c] sm:$0xf]
        %v7847 = vunpack.c.l.b16 %v7831
        %v7848 = vunpack.c.l.b16 %v7832
        %v7849 = vunpack.c.l.b16 %v7833
        %v7850 = vunpack.c.l.b16 %v7834
        %v7851 = vunpack.c.l.b16 %v7835
        %v7852 = vunpack.c.l.b16 %v7836
        %v7853 = vunpack.c.l.b16 %v7837
        %v7854 = vunpack.c.l.b16 %v7838
        %v7855 = vpack.c.b16 %v7848, %v7847
        %v7856 = vpack.c.b16 %v7850, %v7849
        %v7857 = vpack.c.b16 %v7852, %v7851
        %v7858 = vpack.c.b16 %v7854, %v7853
        %v7864 = vsel %vm895, %v7814, 0
        %v7867 = vsel %vm895, %v7815, 0
        %v7870 = vsel %vm895, %v7816, 0
        %v7873 = vsel %vm895, %v7817, 0
        %v7876 = vsel %vm895, %v7818, 0
        %v7879 = vsel %vm895, %v7819, 0
        %v7882 = vsel %vm895, %v7820, 0
        %v7885 = vsel %vm895, %v7821, 0
        %v7888 = vsel %vm895, %v7822, 0
        %v7891 = vsel %vm895, %v7823, 0
        %v7894 = vsel %vm895, %v7824, 0
        %v7897 = vsel %vm895, %v7825, 0
        %v7900 = vsel %vm895, %v7826, 0
        %v7903 = vsel %vm895, %v7827, 0
        %v7906 = vsel %vm895, %v7828, 0
        %v7909 = vsel %vm895, %v7829, 0
        %7911 = vmatprep.subr.bf16.mxu0 0
        %7912 = vmatpush1.bf16.msra.mxu0 %v7855
        %7913 = vmatprep.subr.bf16.mxu0 0
        %7914 = vmatpush1.bf16.msra.mxu0 %v7856
        %7915 = vmatprep.subr.bf16.mxu0 0
        %7916 = vmatpush1.bf16.msra.mxu0 %v7857
        %7917 = vmatprep.subr.bf16.mxu0 0
        %7918 = vmatpush1.bf16.msra.mxu0 %v7858
        %7919 = vmatprep.subr.bf16.mxu0 0
        %7920 = vmatpush1.bf16.msra.mxu0 0
        %7921 = vmatprep.subr.bf16.mxu0 0
        %7922 = vmatpush1.bf16.msra.mxu0 0
        %7923 = vmatprep.subr.bf16.mxu0 0
        %7924 = vmatpush1.bf16.msra.mxu0 0
        %7925 = vmatprep.subr.bf16.mxu0 0
        %7926 = vmatpush1.bf16.msra.mxu0 0
        %7927 = vmatprep.subr.bf16.mxu0 0
        %7928 = vmatpush1.bf16.msra.mxu0 0
        %7929 = vmatprep.subr.bf16.mxu0 0
        %7930 = vmatpush1.bf16.msra.mxu0 0
        %7931 = vmatprep.subr.bf16.mxu0 0
        %7932 = vmatpush1.bf16.msra.mxu0 0
        %7933 = vmatprep.subr.bf16.mxu0 0
        %7934 = vmatpush1.bf16.msra.mxu0 0
        %7935 = vmatprep.subr.bf16.mxu0 0
        %7936 = vmatpush1.bf16.msra.mxu0 0
        %7937 = vmatprep.subr.bf16.mxu0 0
        %7938 = vmatpush1.bf16.msra.mxu0 0
        %7939 = vmatprep.subr.bf16.mxu0 0
        %7940 = vmatpush1.bf16.msra.mxu0 0
        %7941 = vmatprep.subr.bf16.mxu0 0
        %7942 = vmatpush1.bf16.msra.mxu0 0
        %7943 = vmatprep.mubr.bf16.mxu0 0
        %7944 = vmatmul.mubr.bf16.gmra.mrb[0].mxu0 %v7864
        %v7945 = vpop.f32.mrb[0].mxu0
        %v7946 = vadd.f32 0.0, %v7945
        %v7947 = vpop.f32.mrb[0].mxu0
        %v7948 = vpop.f32.mrb[0].mxu0
        %v7949 = vadd.f32 0.0, %v7948
        %v7950 = vpop.f32.mrb[0].mxu0
        %7951 = vmatprep.mubr.bf16.mxu0 0
        %7952 = vmatmul.mubr.bf16.gmra.mrb[0].mxu0 %v7867
        %v7953 = vpop.f32.mrb[0].mxu0
        %v7954 = vadd.f32 0.0, %v7953
        %v7955 = vpop.f32.mrb[0].mxu0
        %v7956 = vpop.f32.mrb[0].mxu0
        %v7957 = vadd.f32 0.0, %v7956
        %v7958 = vpop.f32.mrb[0].mxu0
        %7959 = vmatprep.mubr.bf16.mxu0 0
        %7960 = vmatmul.mubr.bf16.gmra.mrb[0].mxu0 %v7870
        %v7961 = vpop.f32.mrb[0].mxu0
        %v7962 = vadd.f32 0.0, %v7961
        %v7963 = vpop.f32.mrb[0].mxu0
        %v7964 = vpop.f32.mrb[0].mxu0
        %v7965 = vadd.f32 0.0, %v7964
        %v7966 = vpop.f32.mrb[0].mxu0
        %7967 = vmatprep.mubr.bf16.mxu0 0
        %7968 = vmatmul.mubr.bf16.gmra.mrb[0].mxu0 %v7873
        %v7969 = vpop.f32.mrb[0].mxu0
        %v7970 = vadd.f32 0.0, %v7969
        %v7971 = vpop.f32.mrb[0].mxu0
        %v7972 = vpop.f32.mrb[0].mxu0
        %v7973 = vadd.f32 0.0, %v7972
        %v7974 = vpop.f32.mrb[0].mxu0
        %7975 = vmatprep.mubr.bf16.mxu0 0
        %7976 = vmatmul.mubr.bf16.gmra.mrb[0].mxu0 %v7876
        %v7977 = vpop.f32.mrb[0].mxu0
        %v7978 = vadd.f32 0.0, %v7977
        %v7979 = vpop.f32.mrb[0].mxu0
        %v7980 = vpop.f32.mrb[0].mxu0
        %v7981 = vadd.f32 0.0, %v7980
        %v7982 = vpop.f32.mrb[0].mxu0
        %7983 = vmatprep.mubr.bf16.mxu0 0
        %7984 = vmatmul.mubr.bf16.gmra.mrb[0].mxu0 %v7879
        %v7985 = vpop.f32.mrb[0].mxu0
        %v7986 = vadd.f32 0.0, %v7985
        %v7987 = vpop.f32.mrb[0].mxu0
        %v7988 = vpop.f32.mrb[0].mxu0
        %v7989 = vadd.f32 0.0, %v7988
        %v7990 = vpop.f32.mrb[0].mxu0
        %7991 = vmatprep.mubr.bf16.mxu0 0
        %7992 = vmatmul.mubr.bf16.gmra.mrb[0].mxu0 %v7882
        %v7993 = vpop.f32.mrb[0].mxu0
        %v7994 = vadd.f32 0.0, %v7993
        %v7995 = vpop.f32.mrb[0].mxu0
        %v7996 = vpop.f32.mrb[0].mxu0
        %v7997 = vadd.f32 0.0, %v7996
        %v7998 = vpop.f32.mrb[0].mxu0
        %7999 = vmatprep.mubr.bf16.mxu0 0
        %8000 = vmatmul.mubr.bf16.gmra.mrb[0].mxu0 %v7885
        %v8001 = vpop.f32.mrb[0].mxu0
        %v8002 = vadd.f32 0.0, %v8001
        %v8003 = vpop.f32.mrb[0].mxu0
        %v8004 = vpop.f32.mrb[0].mxu0
        %v8005 = vadd.f32 0.0, %v8004
        %v8006 = vpop.f32.mrb[0].mxu0
        %8007 = vmatprep.mubr.bf16.mxu0 0
        %8008 = vmatmul.mubr.bf16.gmra.mrb[0].mxu0 %v7888
        %v8009 = vpop.f32.mrb[0].mxu0
        %v8010 = vadd.f32 0.0, %v8009
        %v8011 = vpop.f32.mrb[0].mxu0
        %v8012 = vpop.f32.mrb[0].mxu0
        %v8013 = vadd.f32 0.0, %v8012
        %v8014 = vpop.f32.mrb[0].mxu0
        %8015 = vmatprep.mubr.bf16.mxu0 0
        %8016 = vmatmul.mubr.bf16.gmra.mrb[0].mxu0 %v7891
        %v8017 = vpop.f32.mrb[0].mxu0
        %v8018 = vadd.f32 0.0, %v8017
        %v8019 = vpop.f32.mrb[0].mxu0
        %v8020 = vpop.f32.mrb[0].mxu0
        %v8021 = vadd.f32 0.0, %v8020
        %v8022 = vpop.f32.mrb[0].mxu0
        %8023 = vmatprep.mubr.bf16.mxu0 0
        %8024 = vmatmul.mubr.bf16.gmra.mrb[0].mxu0 %v7894
        %v8025 = vpop.f32.mrb[0].mxu0
        %v8026 = vadd.f32 0.0, %v8025
        %v8027 = vpop.f32.mrb[0].mxu0
        %v8028 = vpop.f32.mrb[0].mxu0
        %v8029 = vadd.f32 0.0, %v8028
        %v8030 = vpop.f32.mrb[0].mxu0
        %8031 = vmatprep.mubr.bf16.mxu0 0
        %8032 = vmatmul.mubr.bf16.gmra.mrb[0].mxu0 %v7897
        %v8033 = vpop.f32.mrb[0].mxu0
        %v8034 = vadd.f32 0.0, %v8033
        %v8035 = vpop.f32.mrb[0].mxu0
        %v8036 = vpop.f32.mrb[0].mxu0
        %v8037 = vadd.f32 0.0, %v8036
        %v8038 = vpop.f32.mrb[0].mxu0
        %8039 = vmatprep.mubr.bf16.mxu0 0
        %8040 = vmatmul.mubr.bf16.gmra.mrb[0].mxu0 %v7900
        %v8041 = vpop.f32.mrb[0].mxu0
        %v8042 = vadd.f32 0.0, %v8041
        %v8043 = vpop.f32.mrb[0].mxu0
        %v8044 = vpop.f32.mrb[0].mxu0
        %v8045 = vadd.f32 0.0, %v8044
        %v8046 = vpop.f32.mrb[0].mxu0
        %8047 = vmatprep.mubr.bf16.mxu0 0
        %8048 = vmatmul.mubr.bf16.gmra.mrb[0].mxu0 %v7903
        %v8049 = vpop.f32.mrb[0].mxu0
        %v8050 = vadd.f32 0.0, %v8049
        %v8051 = vpop.f32.mrb[0].mxu0
        %v8052 = vpop.f32.mrb[0].mxu0
        %v8053 = vadd.f32 0.0, %v8052
        %v8054 = vpop.f32.mrb[0].mxu0
        %8055 = vmatprep.mubr.bf16.mxu0 0
        %8056 = vmatmul.mubr.bf16.gmra.mrb[0].mxu0 %v7906
        %v8057 = vpop.f32.mrb[0].mxu0
        %v8058 = vadd.f32 0.0, %v8057
        %v8059 = vpop.f32.mrb[0].mxu0
        %v8060 = vpop.f32.mrb[0].mxu0
        %v8061 = vadd.f32 0.0, %v8060
        %v8062 = vpop.f32.mrb[0].mxu0
        %8063 = vmatprep.mubr.bf16.mxu0 0
        %8064 = vmatmul.mubr.bf16.gmra.mrb[0].mxu0 %v7909
        %v8065 = vpop.f32.mrb[0].mxu0
        %v8066 = vadd.f32 0.0, %v8065
        %v8067 = vpop.f32.mrb[0].mxu0
        %v8068 = vpop.f32.mrb[0].mxu0
        %v8069 = vadd.f32 0.0, %v8068
        %v8070 = vpop.f32.mrb[0].mxu0
        %8071 = vdwg.mxu0
        %v8072 = vadd.f32 %v7750, %v7946
        %v8073 = vadd.f32 %v7751, %v7949
        %v8074 = vadd.f32 %v7752, %v7954
        %v8075 = vadd.f32 %v7753, %v7957
        %v8076 = vadd.f32 %v7754, %v7962
        %v8077 = vadd.f32 %v7755, %v7965
        %v8078 = vadd.f32 %v7756, %v7970
        %v8079 = vadd.f32 %v7757, %v7973
        %v8080 = vadd.f32 %v7758, %v7978
        %v8081 = vadd.f32 %v7759, %v7981
        %v8082 = vadd.f32 %v7760, %v7986
        %v8083 = vadd.f32 %v7761, %v7989
        %v8084 = vadd.f32 %v7762, %v7994
        %v8085 = vadd.f32 %v7763, %v7997
        %v8086 = vadd.f32 %v7764, %v8002
        %v8087 = vadd.f32 %v7765, %v8005
        %v8088 = vadd.f32 %v7766, %v8010
        %v8089 = vadd.f32 %v7767, %v8013
        %v8090 = vadd.f32 %v7768, %v8018
        %v8091 = vadd.f32 %v7769, %v8021
        %v8092 = vadd.f32 %v7770, %v8026
        %v8093 = vadd.f32 %v7771, %v8029
        %v8094 = vadd.f32 %v7772, %v8034
        %v8095 = vadd.f32 %v7773, %v8037
        %v8096 = vadd.f32 %v7774, %v8042
        %v8097 = vadd.f32 %v7775, %v8045
        %v8098 = vadd.f32 %v7776, %v8050
        %v8099 = vadd.f32 %v7777, %v8053
        %v8100 = vadd.f32 %v7778, %v8058
        %v8101 = vadd.f32 %v7779, %v8061
        %v8102 = vadd.f32 %v7780, %v8066
        %v8103 = vadd.f32 %v7781, %v8069
        %v8104 = vld [vmem:[%s7459 + $0x9] sm:$0xff]
        %v8105 = vld [vmem:[%s7459 + $0x11] sm:$0xff]
        %v8106 = vld [vmem:[%s7459 + $0x29] sm:$0xff]
        %v8107 = vld [vmem:[%s7459 + $0x31] sm:$0xff]
        %v8108 = vld [vmem:[%s7459 + $0x49] sm:$0xff]
        %v8109 = vld [vmem:[%s7459 + $0x51] sm:$0xff]
        %v8110 = vld [vmem:[%s7459 + $0x69] sm:$0xff]
        %v8111 = vld [vmem:[%s7459 + $0x71] sm:$0xff]
        %v8112 = vld [vmem:[%s7459 + $0x89] sm:$0xff]
        %v8113 = vld [vmem:[%s7459 + $0x91] sm:$0xff]
        %v8114 = vld [vmem:[%s7459 + $0xa9] sm:$0xff]
        %v8115 = vld [vmem:[%s7459 + $0xb1] sm:$0xff]
        %v8116 = vld [vmem:[%s7459 + $0xc9] sm:$0xff]
        %v8117 = vld [vmem:[%s7459 + $0xd1] sm:$0xff]
        %v8118 = vld [vmem:[%s7459 + $0xe9] sm:$0xff]
        %v8119 = vld [vmem:[%s7459 + $0xf1] sm:$0xff]
        %v8120 = vld [vmem:[%s7459 + $0x109] sm:$0xff]
        %v8121 = vld [vmem:[%s7459 + $0x111] sm:$0xff]
        %v8122 = vld [vmem:[%s7459 + $0x129] sm:$0xff]
        %v8123 = vld [vmem:[%s7459 + $0x131] sm:$0xff]
        %v8124 = vld [vmem:[%s7459 + $0x149] sm:$0xff]
        %v8125 = vld [vmem:[%s7459 + $0x151] sm:$0xff]
        %v8126 = vld [vmem:[%s7459 + $0x169] sm:$0xff]
        %v8127 = vld [vmem:[%s7459 + $0x171] sm:$0xff]
        %v8128 = vld [vmem:[%s7459 + $0x189] sm:$0xff]
        %v8129 = vld [vmem:[%s7459 + $0x191] sm:$0xff]
        %v8130 = vld [vmem:[%s7459 + $0x1a9] sm:$0xff]
        %v8131 = vld [vmem:[%s7459 + $0x1b1] sm:$0xff]
        %v8132 = vld [vmem:[%s7459 + $0x1c9] sm:$0xff]
        %v8133 = vld [vmem:[%s7459 + $0x1d1] sm:$0xff]
        %v8134 = vld [vmem:[%s7459 + $0x1e9] sm:$0xff]
        %v8135 = vld [vmem:[%s7459 + $0x1f1] sm:$0xff]
        %v8136 = vpack.c.bf16 %v8105, %v8104
        %v8137 = vpack.c.bf16 %v8107, %v8106
        %v8138 = vpack.c.bf16 %v8109, %v8108
        %v8139 = vpack.c.bf16 %v8111, %v8110
        %v8140 = vpack.c.bf16 %v8113, %v8112
        %v8141 = vpack.c.bf16 %v8115, %v8114
        %v8142 = vpack.c.bf16 %v8117, %v8116
        %v8143 = vpack.c.bf16 %v8119, %v8118
        %v8144 = vpack.c.bf16 %v8121, %v8120
        %v8145 = vpack.c.bf16 %v8123, %v8122
        %v8146 = vpack.c.bf16 %v8125, %v8124
        %v8147 = vpack.c.bf16 %v8127, %v8126
        %v8148 = vpack.c.bf16 %v8129, %v8128
        %v8149 = vpack.c.bf16 %v8131, %v8130
        %v8150 = vpack.c.bf16 %v8133, %v8132
        %v8151 = vpack.c.bf16 %v8135, %v8134
        %s8152 = scalar_lea.vmem [#allocation17], 256
        %v8153 = vld [vmem:[%s8152] sm:$0xf]
        %v8154 = vld [vmem:[%s8152 + $0x4] sm:$0xf]
        %v8155 = vld [vmem:[%s8152 + $0x8] sm:$0xf]
        %v8156 = vld [vmem:[%s8152 + $0xc] sm:$0xf]
        %v8157 = vld [vmem:[%s8152 + $0x10] sm:$0xf]
        %v8158 = vld [vmem:[%s8152 + $0x14] sm:$0xf]
        %v8159 = vld [vmem:[%s8152 + $0x18] sm:$0xf]
        %v8160 = vld [vmem:[%s8152 + $0x1c] sm:$0xf]
        %v8169 = vunpack.c.l.b16 %v8153
        %v8170 = vunpack.c.l.b16 %v8154
        %v8171 = vunpack.c.l.b16 %v8155
        %v8172 = vunpack.c.l.b16 %v8156
        %v8173 = vunpack.c.l.b16 %v8157
        %v8174 = vunpack.c.l.b16 %v8158
        %v8175 = vunpack.c.l.b16 %v8159
        %v8176 = vunpack.c.l.b16 %v8160
        %v8177 = vpack.c.b16 %v8170, %v8169
        %v8178 = vpack.c.b16 %v8172, %v8171
        %v8179 = vpack.c.b16 %v8174, %v8173
        %v8180 = vpack.c.b16 %v8176, %v8175
        %v8186 = vsel %vm895, %v8136, 0
        %v8189 = vsel %vm895, %v8137, 0
        %v8192 = vsel %vm895, %v8138, 0
        %v8195 = vsel %vm895, %v8139, 0
        %v8198 = vsel %vm895, %v8140, 0
        %v8201 = vsel %vm895, %v8141, 0
        %v8204 = vsel %vm895, %v8142, 0
        %v8207 = vsel %vm895, %v8143, 0
        %v8210 = vsel %vm895, %v8144, 0
        %v8213 = vsel %vm895, %v8145, 0
        %v8216 = vsel %vm895, %v8146, 0
        %v8219 = vsel %vm895, %v8147, 0
        %v8222 = vsel %vm895, %v8148, 0
        %v8225 = vsel %vm895, %v8149, 0
        %v8228 = vsel %vm895, %v8150, 0
        %v8231 = vsel %vm895, %v8151, 0
        %8233 = vmatprep.subr.bf16.mxu0 0
        %8234 = vmatpush1.bf16.msra.mxu0 %v8177
        %8235 = vmatprep.subr.bf16.mxu0 0
        %8236 = vmatpush1.bf16.msra.mxu0 %v8178
        %8237 = vmatprep.subr.bf16.mxu0 0
        %8238 = vmatpush1.bf16.msra.mxu0 %v8179
        %8239 = vmatprep.subr.bf16.mxu0 0
        %8240 = vmatpush1.bf16.msra.mxu0 %v8180
        %8241 = vmatprep.subr.bf16.mxu0 0
        %8242 = vmatpush1.bf16.msra.mxu0 0
        %8243 = vmatprep.subr.bf16.mxu0 0
        %8244 = vmatpush1.bf16.msra.mxu0 0
        %8245 = vmatprep.subr.bf16.mxu0 0
        %8246 = vmatpush1.bf16.msra.mxu0 0
        %8247 = vmatprep.subr.bf16.mxu0 0
        %8248 = vmatpush1.bf16.msra.mxu0 0
        %8249 = vmatprep.subr.bf16.mxu0 0
        %8250 = vmatpush1.bf16.msra.mxu0 0
        %8251 = vmatprep.subr.bf16.mxu0 0
        %8252 = vmatpush1.bf16.msra.mxu0 0
        %8253 = vmatprep.subr.bf16.mxu0 0
        %8254 = vmatpush1.bf16.msra.mxu0 0
        %8255 = vmatprep.subr.bf16.mxu0 0
        %8256 = vmatpush1.bf16.msra.mxu0 0
        %8257 = vmatprep.subr.bf16.mxu0 0
        %8258 = vmatpush1.bf16.msra.mxu0 0
        %8259 = vmatprep.subr.bf16.mxu0 0
        %8260 = vmatpush1.bf16.msra.mxu0 0
        %8261 = vmatprep.subr.bf16.mxu0 0
        %8262 = vmatpush1.bf16.msra.mxu0 0
        %8263 = vmatprep.subr.bf16.mxu0 0
        %8264 = vmatpush1.bf16.msra.mxu0 0
        %8265 = vmatprep.mubr.bf16.mxu0 0
        %8266 = vmatmul.mubr.bf16.gmra.mrb[0].mxu0 %v8186
        %v8267 = vpop.f32.mrb[0].mxu0
        %v8268 = vadd.f32 0.0, %v8267
        %v8269 = vpop.f32.mrb[0].mxu0
        %v8270 = vpop.f32.mrb[0].mxu0
        %v8271 = vadd.f32 0.0, %v8270
        %v8272 = vpop.f32.mrb[0].mxu0
        %8273 = vmatprep.mubr.bf16.mxu0 0
        %8274 = vmatmul.mubr.bf16.gmra.mrb[0].mxu0 %v8189
        %v8275 = vpop.f32.mrb[0].mxu0
        %v8276 = vadd.f32 0.0, %v8275
        %v8277 = vpop.f32.mrb[0].mxu0
        %v8278 = vpop.f32.mrb[0].mxu0
        %v8279 = vadd.f32 0.0, %v8278
        %v8280 = vpop.f32.mrb[0].mxu0
        %8281 = vmatprep.mubr.bf16.mxu0 0
        %8282 = vmatmul.mubr.bf16.gmra.mrb[0].mxu0 %v8192
        %v8283 = vpop.f32.mrb[0].mxu0
        %v8284 = vadd.f32 0.0, %v8283
        %v8285 = vpop.f32.mrb[0].mxu0
        %v8286 = vpop.f32.mrb[0].mxu0
        %v8287 = vadd.f32 0.0, %v8286
        %v8288 = vpop.f32.mrb[0].mxu0
        %8289 = vmatprep.mubr.bf16.mxu0 0
        %8290 = vmatmul.mubr.bf16.gmra.mrb[0].mxu0 %v8195
        %v8291 = vpop.f32.mrb[0].mxu0
        %v8292 = vadd.f32 0.0, %v8291
        %v8293 = vpop.f32.mrb[0].mxu0
        %v8294 = vpop.f32.mrb[0].mxu0
        %v8295 = vadd.f32 0.0, %v8294
        %v8296 = vpop.f32.mrb[0].mxu0
        %8297 = vmatprep.mubr.bf16.mxu0 0
        %8298 = vmatmul.mubr.bf16.gmra.mrb[0].mxu0 %v8198
        %v8299 = vpop.f32.mrb[0].mxu0
        %v8300 = vadd.f32 0.0, %v8299
        %v8301 = vpop.f32.mrb[0].mxu0
        %v8302 = vpop.f32.mrb[0].mxu0
        %v8303 = vadd.f32 0.0, %v8302
        %v8304 = vpop.f32.mrb[0].mxu0
        %8305 = vmatprep.mubr.bf16.mxu0 0
        %8306 = vmatmul.mubr.bf16.gmra.mrb[0].mxu0 %v8201
        %v8307 = vpop.f32.mrb[0].mxu0
        %v8308 = vadd.f32 0.0, %v8307
        %v8309 = vpop.f32.mrb[0].mxu0
        %v8310 = vpop.f32.mrb[0].mxu0
        %v8311 = vadd.f32 0.0, %v8310
        %v8312 = vpop.f32.mrb[0].mxu0
        %8313 = vmatprep.mubr.bf16.mxu0 0
        %8314 = vmatmul.mubr.bf16.gmra.mrb[0].mxu0 %v8204
        %v8315 = vpop.f32.mrb[0].mxu0
        %v8316 = vadd.f32 0.0, %v8315
        %v8317 = vpop.f32.mrb[0].mxu0
        %v8318 = vpop.f32.mrb[0].mxu0
        %v8319 = vadd.f32 0.0, %v8318
        %v8320 = vpop.f32.mrb[0].mxu0
        %8321 = vmatprep.mubr.bf16.mxu0 0
        %8322 = vmatmul.mubr.bf16.gmra.mrb[0].mxu0 %v8207
        %v8323 = vpop.f32.mrb[0].mxu0
        %v8324 = vadd.f32 0.0, %v8323
        %v8325 = vpop.f32.mrb[0].mxu0
        %v8326 = vpop.f32.mrb[0].mxu0
        %v8327 = vadd.f32 0.0, %v8326
        %v8328 = vpop.f32.mrb[0].mxu0
        %8329 = vmatprep.mubr.bf16.mxu0 0
        %8330 = vmatmul.mubr.bf16.gmra.mrb[0].mxu0 %v8210
        %v8331 = vpop.f32.mrb[0].mxu0
        %v8332 = vadd.f32 0.0, %v8331
        %v8333 = vpop.f32.mrb[0].mxu0
        %v8334 = vpop.f32.mrb[0].mxu0
        %v8335 = vadd.f32 0.0, %v8334
        %v8336 = vpop.f32.mrb[0].mxu0
        %8337 = vmatprep.mubr.bf16.mxu0 0
        %8338 = vmatmul.mubr.bf16.gmra.mrb[0].mxu0 %v8213
        %v8339 = vpop.f32.mrb[0].mxu0
        %v8340 = vadd.f32 0.0, %v8339
        %v8341 = vpop.f32.mrb[0].mxu0
        %v8342 = vpop.f32.mrb[0].mxu0
        %v8343 = vadd.f32 0.0, %v8342
        %v8344 = vpop.f32.mrb[0].mxu0
        %8345 = vmatprep.mubr.bf16.mxu0 0
        %8346 = vmatmul.mubr.bf16.gmra.mrb[0].mxu0 %v8216
        %v8347 = vpop.f32.mrb[0].mxu0
        %v8348 = vadd.f32 0.0, %v8347
        %v8349 = vpop.f32.mrb[0].mxu0
        %v8350 = vpop.f32.mrb[0].mxu0
        %v8351 = vadd.f32 0.0, %v8350
        %v8352 = vpop.f32.mrb[0].mxu0
        %8353 = vmatprep.mubr.bf16.mxu0 0
        %8354 = vmatmul.mubr.bf16.gmra.mrb[0].mxu0 %v8219
        %v8355 = vpop.f32.mrb[0].mxu0
        %v8356 = vadd.f32 0.0, %v8355
        %v8357 = vpop.f32.mrb[0].mxu0
        %v8358 = vpop.f32.mrb[0].mxu0
        %v8359 = vadd.f32 0.0, %v8358
        %v8360 = vpop.f32.mrb[0].mxu0
        %8361 = vmatprep.mubr.bf16.mxu0 0
        %8362 = vmatmul.mubr.bf16.gmra.mrb[0].mxu0 %v8222
        %v8363 = vpop.f32.mrb[0].mxu0
        %v8364 = vadd.f32 0.0, %v8363
        %v8365 = vpop.f32.mrb[0].mxu0
        %v8366 = vpop.f32.mrb[0].mxu0
        %v8367 = vadd.f32 0.0, %v8366
        %v8368 = vpop.f32.mrb[0].mxu0
        %8369 = vmatprep.mubr.bf16.mxu0 0
        %8370 = vmatmul.mubr.bf16.gmra.mrb[0].mxu0 %v8225
        %v8371 = vpop.f32.mrb[0].mxu0
        %v8372 = vadd.f32 0.0, %v8371
        %v8373 = vpop.f32.mrb[0].mxu0
        %v8374 = vpop.f32.mrb[0].mxu0
        %v8375 = vadd.f32 0.0, %v8374
        %v8376 = vpop.f32.mrb[0].mxu0
        %8377 = vmatprep.mubr.bf16.mxu0 0
        %8378 = vmatmul.mubr.bf16.gmra.mrb[0].mxu0 %v8228
        %v8379 = vpop.f32.mrb[0].mxu0
        %v8380 = vadd.f32 0.0, %v8379
        %v8381 = vpop.f32.mrb[0].mxu0
        %v8382 = vpop.f32.mrb[0].mxu0
        %v8383 = vadd.f32 0.0, %v8382
        %v8384 = vpop.f32.mrb[0].mxu0
        %8385 = vmatprep.mubr.bf16.mxu0 0
        %8386 = vmatmul.mubr.bf16.gmra.mrb[0].mxu0 %v8231
        %v8387 = vpop.f32.mrb[0].mxu0
        %v8388 = vadd.f32 0.0, %v8387
        %v8389 = vpop.f32.mrb[0].mxu0
        %v8390 = vpop.f32.mrb[0].mxu0
        %v8391 = vadd.f32 0.0, %v8390
        %v8392 = vpop.f32.mrb[0].mxu0
        %8393 = vdwg.mxu0
        %v8394 = vadd.f32 %v8072, %v8268
        %v8395 = vadd.f32 %v8073, %v8271
        %v8396 = vadd.f32 %v8074, %v8276
        %v8397 = vadd.f32 %v8075, %v8279
        %v8398 = vadd.f32 %v8076, %v8284
        %v8399 = vadd.f32 %v8077, %v8287
        %v8400 = vadd.f32 %v8078, %v8292
        %v8401 = vadd.f32 %v8079, %v8295
        %v8402 = vadd.f32 %v8080, %v8300
        %v8403 = vadd.f32 %v8081, %v8303
        %v8404 = vadd.f32 %v8082, %v8308
        %v8405 = vadd.f32 %v8083, %v8311
        %v8406 = vadd.f32 %v8084, %v8316
        %v8407 = vadd.f32 %v8085, %v8319
        %v8408 = vadd.f32 %v8086, %v8324
        %v8409 = vadd.f32 %v8087, %v8327
        %v8410 = vadd.f32 %v8088, %v8332
        %v8411 = vadd.f32 %v8089, %v8335
        %v8412 = vadd.f32 %v8090, %v8340
        %v8413 = vadd.f32 %v8091, %v8343
        %v8414 = vadd.f32 %v8092, %v8348
        %v8415 = vadd.f32 %v8093, %v8351
        %v8416 = vadd.f32 %v8094, %v8356
        %v8417 = vadd.f32 %v8095, %v8359
        %v8418 = vadd.f32 %v8096, %v8364
        %v8419 = vadd.f32 %v8097, %v8367
        %v8420 = vadd.f32 %v8098, %v8372
        %v8421 = vadd.f32 %v8099, %v8375
        %v8422 = vadd.f32 %v8100, %v8380
        %v8423 = vadd.f32 %v8101, %v8383
        %v8424 = vadd.f32 %v8102, %v8388
        %v8425 = vadd.f32 %v8103, %v8391
        %v8426 = vld [vmem:[#allocation19] sm:$0x1]
        %v8428 = vlaneseq
        %v8429 = vshrl.u32 %v8428, 7
        %v8430 = vsub.s32 0, %v8429
        %v8431 = vrot.slane %v8426, %v8430
        %v8433 = vadd.f32 %v8394, %v8431
        %v8434 = vadd.f32 %v8395, %v8431
        %v8435 = vadd.f32 %v8396, %v8431
        %v8436 = vadd.f32 %v8397, %v8431
        %v8437 = vadd.f32 %v8398, %v8431
        %v8438 = vadd.f32 %v8399, %v8431
        %v8439 = vadd.f32 %v8400, %v8431
        %v8440 = vadd.f32 %v8401, %v8431
        %v8441 = vadd.f32 %v8402, %v8431
        %v8442 = vadd.f32 %v8403, %v8431
        %v8443 = vadd.f32 %v8404, %v8431
        %v8444 = vadd.f32 %v8405, %v8431
        %v8445 = vadd.f32 %v8406, %v8431
        %v8446 = vadd.f32 %v8407, %v8431
        %v8447 = vadd.f32 %v8408, %v8431
        %v8448 = vadd.f32 %v8409, %v8431
        %v8449 = vadd.f32 %v8410, %v8431
        %v8450 = vadd.f32 %v8411, %v8431
        %v8451 = vadd.f32 %v8412, %v8431
        %v8452 = vadd.f32 %v8413, %v8431
        %v8453 = vadd.f32 %v8414, %v8431
        %v8454 = vadd.f32 %v8415, %v8431
        %v8455 = vadd.f32 %v8416, %v8431
        %v8456 = vadd.f32 %v8417, %v8431
        %v8457 = vadd.f32 %v8418, %v8431
        %v8458 = vadd.f32 %v8419, %v8431
        %v8459 = vadd.f32 %v8420, %v8431
        %v8460 = vadd.f32 %v8421, %v8431
        %v8461 = vadd.f32 %v8422, %v8431
        %v8462 = vadd.f32 %v8423, %v8431
        %v8463 = vadd.f32 %v8424, %v8431
        %v8464 = vadd.f32 %v8425, %v8431
        %v8465 = vmax.f32 %v8433, 0.0
        %v8466 = vmax.f32 %v8434, 0.0
        %v8467 = vmax.f32 %v8435, 0.0
        %v8468 = vmax.f32 %v8436, 0.0
        %v8469 = vmax.f32 %v8437, 0.0
        %v8470 = vmax.f32 %v8438, 0.0
        %v8471 = vmax.f32 %v8439, 0.0
        %v8472 = vmax.f32 %v8440, 0.0
        %v8473 = vmax.f32 %v8441, 0.0
        %v8474 = vmax.f32 %v8442, 0.0
        %v8475 = vmax.f32 %v8443, 0.0
        %v8476 = vmax.f32 %v8444, 0.0
        %v8477 = vmax.f32 %v8445, 0.0
        %v8478 = vmax.f32 %v8446, 0.0
        %v8479 = vmax.f32 %v8447, 0.0
        %v8480 = vmax.f32 %v8448, 0.0
        %v8481 = vmax.f32 %v8449, 0.0
        %v8482 = vmax.f32 %v8450, 0.0
        %v8483 = vmax.f32 %v8451, 0.0
        %v8484 = vmax.f32 %v8452, 0.0
        %v8485 = vmax.f32 %v8453, 0.0
        %v8486 = vmax.f32 %v8454, 0.0
        %v8487 = vmax.f32 %v8455, 0.0
        %v8488 = vmax.f32 %v8456, 0.0
        %v8489 = vmax.f32 %v8457, 0.0
        %v8490 = vmax.f32 %v8458, 0.0
        %v8491 = vmax.f32 %v8459, 0.0
        %v8492 = vmax.f32 %v8460, 0.0
        %v8493 = vmax.f32 %v8461, 0.0
        %v8494 = vmax.f32 %v8462, 0.0
        %v8495 = vmax.f32 %v8463, 0.0
        %v8496 = vmax.f32 %v8464, 0.0
        %8497 = vxpose.xlu0.b32.start [1/16] %v8465, 128
        %8498 = vxpose.xlu0.b32.cont [2/16] %v8466, 128
        %8499 = vxpose.xlu0.b32.cont [3/16] %v8467, 128
        %8500 = vxpose.xlu0.b32.cont [4/16] %v8468, 128
        %8501 = vxpose.xlu0.b32.cont [5/16] %v8469, 128
        %8502 = vxpose.xlu0.b32.cont [6/16] %v8470, 128
        %8503 = vxpose.xlu0.b32.cont [7/16] %v8471, 128
        %8504 = vxpose.xlu0.b32.cont [8/16] %v8472, 128
        %8505 = vxpose.xlu0.b32.cont [9/16] %v8473, 128
        %8506 = vxpose.xlu0.b32.cont [10/16] %v8474, 128
        %8507 = vxpose.xlu0.b32.cont [11/16] %v8475, 128
        %8508 = vxpose.xlu0.b32.cont [12/16] %v8476, 128
        %8509 = vxpose.xlu0.b32.cont [13/16] %v8477, 128
        %8510 = vxpose.xlu0.b32.cont [14/16] %v8478, 128
        %8511 = vxpose.xlu0.b32.cont [15/16] %v8479, 128
        %8512 = vxpose.xlu0.b32.end [16/16] %v8480, 128
        %v8513 = vpop.trf.xlu0
        %v8514 = vpop.trf.xlu0
        %v8515 = vpop.trf.xlu0
        %v8516 = vpop.trf.xlu0
        %v8517 = vpop.trf.xlu0
        %v8518 = vpop.trf.xlu0
        %v8519 = vpop.trf.xlu0
        %v8520 = vpop.trf.xlu0
        %v8521 = vpop.trf.xlu0
        %v8522 = vpop.trf.xlu0
        %v8523 = vpop.trf.xlu0
        %v8524 = vpop.trf.xlu0
        %v8525 = vpop.trf.xlu0
        %v8526 = vpop.trf.xlu0
        %v8527 = vpop.trf.xlu0
        %v8528 = vpop.trf.xlu0
        %8529 = vxpose.xlu0.b32.start [1/16] %v8481, 128
        %8530 = vxpose.xlu0.b32.cont [2/16] %v8482, 128
        %8531 = vxpose.xlu0.b32.cont [3/16] %v8483, 128
        %8532 = vxpose.xlu0.b32.cont [4/16] %v8484, 128
        %8533 = vxpose.xlu0.b32.cont [5/16] %v8485, 128
        %8534 = vxpose.xlu0.b32.cont [6/16] %v8486, 128
        %8535 = vxpose.xlu0.b32.cont [7/16] %v8487, 128
        %8536 = vxpose.xlu0.b32.cont [8/16] %v8488, 128
        %8537 = vxpose.xlu0.b32.cont [9/16] %v8489, 128
        %8538 = vxpose.xlu0.b32.cont [10/16] %v8490, 128
        %8539 = vxpose.xlu0.b32.cont [11/16] %v8491, 128
        %8540 = vxpose.xlu0.b32.cont [12/16] %v8492, 128
        %8541 = vxpose.xlu0.b32.cont [13/16] %v8493, 128
        %8542 = vxpose.xlu0.b32.cont [14/16] %v8494, 128
        %8543 = vxpose.xlu0.b32.cont [15/16] %v8495, 128
        %8544 = vxpose.xlu0.b32.end [16/16] %v8496, 128
        %v8545 = vpop.trf.xlu0
        %v8546 = vpop.trf.xlu0
        %v8547 = vpop.trf.xlu0
        %v8548 = vpop.trf.xlu0
        %v8549 = vpop.trf.xlu0
        %v8550 = vpop.trf.xlu0
        %v8551 = vpop.trf.xlu0
        %v8552 = vpop.trf.xlu0
        %v8553 = vpop.trf.xlu0
        %v8554 = vpop.trf.xlu0
        %v8555 = vpop.trf.xlu0
        %v8556 = vpop.trf.xlu0
        %v8557 = vpop.trf.xlu0
        %v8558 = vpop.trf.xlu0
        %v8559 = vpop.trf.xlu0
        %v8560 = vpop.trf.xlu0
        %8561 = vst [vmem:[%s458] sm:$0xff] %v8513
        %8562 = vst [vmem:[%s458 + $0x8] sm:$0xff] %v8545
        %8563 = vst [vmem:[%s458 + $0x10] sm:$0xff] %v8514
        %8564 = vst [vmem:[%s458 + $0x18] sm:$0xff] %v8546
        %8565 = vst [vmem:[%s458 + $0x20] sm:$0xff] %v8515
        %8566 = vst [vmem:[%s458 + $0x28] sm:$0xff] %v8547
        %8567 = vst [vmem:[%s458 + $0x30] sm:$0xff] %v8516
        %8568 = vst [vmem:[%s458 + $0x38] sm:$0xff] %v8548
        %8569 = vst [vmem:[%s458 + $0x40] sm:$0xff] %v8517
        %8570 = vst [vmem:[%s458 + $0x48] sm:$0xff] %v8549
        %8571 = vst [vmem:[%s458 + $0x50] sm:$0xff] %v8518
        %8572 = vst [vmem:[%s458 + $0x58] sm:$0xff] %v8550
        %8573 = vst [vmem:[%s458 + $0x60] sm:$0xff] %v8519
        %8574 = vst [vmem:[%s458 + $0x68] sm:$0xff] %v8551
        %8575 = vst [vmem:[%s458 + $0x70] sm:$0xff] %v8520
        %8576 = vst [vmem:[%s458 + $0x78] sm:$0xff] %v8552
        %8577 = vst [vmem:[%s458 + $0x80] sm:$0xff] %v8521
        %8578 = vst [vmem:[%s458 + $0x88] sm:$0xff] %v8553
        %8579 = vst [vmem:[%s458 + $0x90] sm:$0xff] %v8522
        %8580 = vst [vmem:[%s458 + $0x98] sm:$0xff] %v8554
        %8581 = vst [vmem:[%s458 + $0xa0] sm:$0xff] %v8523
        %8582 = vst [vmem:[%s458 + $0xa8] sm:$0xff] %v8555
        %8583 = vst [vmem:[%s458 + $0xb0] sm:$0xff] %v8524
        %8584 = vst [vmem:[%s458 + $0xb8] sm:$0xff] %v8556
        %s8585 = sand.u32 %s232, 1
        %s8586 = scalar_lea.sflag [#allocation7], %s8585
        %s8587 = sand.u32 %s232, 1
        %s8588 = smul.addr %s8587, 192
        %s8589 = scalar_lea.vmem [#allocation20], %s8588
        // Predicated region
        $region93: #{tpu_custom_call.1} parent=55 // pred_check
          %p8590 = pneg %p242
        $region94: #{tpu_custom_call.1} parent=55 // pred_check_branch
          %8592 = sbr.rel (%p8590) target = $region96
        $region95: #{tpu_custom_call.1} parent=55 // pred_region
          %s8594 = ssub.s32 3072, 3072
          %8595 = vsyncadd %s8586, %s8594
          %s8596 = smul.addr %s30, 24
          %s8597 = smul.addr %s8596, 128
          %s8598 = scalar_lea.hbm %s9, %s8597
          %s8599 = sshll.u32 %s8589, 4
          %s8600 = int_to_ptr.vmem [resolvable:$true] %s8599
          %8605 = dma.vmem_to_hbm [thread:$0]  %s8600, 3072, %s8598, %s8586, 256, 256, 16
        $region96: #{tpu_custom_call.1} parent=55 // pred_fallthru
          _
      $region56: #{tpu_custom_call.1} parent=5 // pred_fallthru
        _
      %p8606 = scmp.le.s32.totalorder 2, %s25
      // Predicated region
      $region97: #{tpu_custom_call.1} parent=5 // pred_check
        %p8607 = pneg %p8606
      $region98: #{tpu_custom_call.1} parent=5 // pred_check_branch
        %8609 = sbr.rel (%p8607) target = $region100
      $region99: #{tpu_custom_call.1} parent=5 // pred_region
        %s8610 = ssub.s32 %s25, 2
        // Predicated region
        $region101: #{tpu_custom_call.1} parent=99 // pred_check
          %p8611 = pneg %p248
        $region102: #{tpu_custom_call.1} parent=99 // pred_check_branch
          %8613 = sbr.rel (%p8611) target = $region104
        $region103: #{tpu_custom_call.1} parent=99 // pred_region
          %s8614 = sand.u32 %s233, 1
          %s8615 = scalar_lea.sflag [#allocation7], %s8614
          %s8616 = sand.u32 %s233, 1
          %s8617 = smul.addr %s8616, 192
          %s8618 = scalar_lea.vmem [#allocation20], %s8617
          %8619 = dma.done %s8615, 3072
        $region104: #{tpu_custom_call.1} parent=99 // pred_fallthru
          _
      $region100: #{tpu_custom_call.1} parent=5 // pred_fallthru
        _
    $region6: #{tpu_custom_call.1} parent=1 // loop_footer
      %s29 = sadd.s32 1, %s25
    $region7: #{tpu_custom_call.1} parent=1 // loop_footer_branch
      %24 = sbr.rel target = $region3
    $region8: #{tpu_custom_call.1} parent=1 // loop_exit
      _
    %8620 = vsyncpa [#allocation6], 1
    %s8621 = scalar_lea.sflag [#allocation6], 1
    %8622 = vsyncpa %s8621, 1
    %8623 = vsyncpa [#allocation9], 1
    %8624 = vsyncpa [#allocation12], 1
    %8625 = vsyncpa [#allocation15], 1
    %8626 = vsyncpa [#allocation18], 1
    %8627 = vsyncpa [#allocation7], 1
    %s8628 = scalar_lea.sflag [#allocation7], 1
    %8629 = vsyncpa %s8628, 1

</llo_original>
